<compile_context>
chip_gen: v7x
topology: tpu7x:2x2x1
jax: 0.10.0
libtpu: 0.0.40
codegen_flags: <defaults>
</compile_context>

<pallas_src>
import functools

import jax
import jax.numpy as jnp
from jax import lax
from jax.experimental import pallas as pl
from jax.experimental.pallas import tpu as pltpu


def _vmem_spec():
    return pl.BlockSpec(memory_space=pltpu.MemorySpace.VMEM)


# --------------------------------------------------------------------------
# Kernel 1: fused bidirectional LSTM + rnn embedding Linear(2H -> H).
#   x_ref:  [T, N, Cin]
#   w_ref:  [2*(Cin+H), 8H]   block matrix: rows = [x_f | h_f | x_b | h_b],
#                             cols = [4H forward gates | 4H backward gates]
#   b_ref:  [1, 8H]           (b_ih + b_hh) for fwd | bwd
#   we_ref: [2H, H]           rnn embedding weight^T
#   be_ref: [1, H]
#   enc_ref (out): [T, N, H]
# --------------------------------------------------------------------------
def _bilstm_encoder_kernel(x_ref, w_ref, b_ref, we_ref, be_ref, enc_ref,
                           hf_scr, hb_scr):
    T, N, _ = x_ref.shape
    H = we_ref.shape[1]
    w = w_ref[...]
    b = b_ref[...]

    h_f = jnp.zeros((N, H), jnp.float32)
    c_f = jnp.zeros((N, H), jnp.float32)
    h_b = jnp.zeros((N, H), jnp.float32)
    c_b = jnp.zeros((N, H), jnp.float32)

    def lstm_cell(g, c):
        # PyTorch gate order: i, f, g, o
        i = jax.nn.sigmoid(g[:, 0 * H:1 * H])
        f = jax.nn.sigmoid(g[:, 1 * H:2 * H])
        gg = jnp.tanh(g[:, 2 * H:3 * H])
        o = jax.nn.sigmoid(g[:, 3 * H:4 * H])
        c_new = f * c + i * gg
        return o * jnp.tanh(c_new), c_new

    # statically unrolled over T: one 128x256-class matmul per step drives
    # both directions (input + recurrent projections fused via block matrix).
    for t in range(T):
        xh = jnp.concatenate([x_ref[t], h_f, x_ref[T - 1 - t], h_b], axis=-1)
        gates = jnp.dot(xh, w, preferred_element_type=jnp.float32) + b
        h_f, c_f = lstm_cell(gates[:, :4 * H], c_f)
        h_b, c_b = lstm_cell(gates[:, 4 * H:], c_b)
        hf_scr[t] = h_f            # forward hidden at time t
        hb_scr[T - 1 - t] = h_b    # backward hidden at time T-1-t

    # epilogue: enc[t] = [h_f(t) | h_b(t)] @ We^T + be   (Linear(2H -> H))
    we = we_ref[...]
    be = be_ref[...]
    for t in range(T):
        rec_t = jnp.concatenate([hf_scr[t], hb_scr[t]], axis=-1)
        enc_ref[t] = jnp.dot(rec_t, we, preferred_element_type=jnp.float32) + be


# --------------------------------------------------------------------------
# Kernel 2: fused greedy decode loop (all max_seq_len steps in one call).
#   enc_ref:    [N, T, H]   encoder outputs (lane-dense layout)
#   embtab_ref: [Kpad, H]   embedding table (rows >= K are zero)
#   vatw_ref:   [1, 1, H] ; vatb_ref: [1, 1]
#   combw_ref:  [2H, H]   ; combb_ref: [1, H]
#   gruw_ref:   [2H, 6H]  block-diag [Wih^T -> cols 0:3H ; Whh^T -> cols 3H:6H]
#   grub_ref:   [1, 6H]   [b_ih | b_hh]
#   outw_ref:   [H, Kpad] ; outb_ref: [1, Kpad] (padding bias = -1e30)
#   dec_ref (out): [steps, N, Kpad]   per-step probabilities
# --------------------------------------------------------------------------
def _decode_kernel(enc_ref, embtab_ref, vatw_ref, vatb_ref,
                   combw_ref, combb_ref, gruw_ref, grub_ref,
                   outw_ref, outb_ref, dec_ref, *, start_idx):
    N, T, H = enc_ref.shape
    Kpad = outw_ref.shape[1]
    n_steps = dec_ref.shape[0]

    enc = enc_ref[...]
    emb_tab = embtab_ref[...]
    vat_w = vatw_ref[...]
    vat_b = vatb_ref[...]
    comb_w = combw_ref[...]
    comb_b = combb_ref[...]
    gru_w = gruw_ref[...]
    gru_b = grub_ref[...]
    out_w = outw_ref[...]
    out_b = outb_ref[...]

    iota_f = lax.broadcasted_iota(jnp.int32, (N, Kpad), 1).astype(jnp.float32)
    onehot = (iota_f == float(start_idx)).astype(jnp.float32)   # start token
    hidden = jnp.zeros((N, H), jnp.float32)                     # initHidden

    for step in range(n_steps):   # statically unrolled
        # embedding lookup as one-hot matmul (Dropout(0.1) is identity in eval)
        emb = jnp.dot(onehot, emb_tab, preferred_element_type=jnp.float32)

        # attention over time (softmax over T, lane dim)
        alpha = jnp.tanh(hidden[:, None, :] + enc)                 # [N, T, H]
        scores = jnp.sum(alpha * vat_w, axis=-1) + vat_b           # [N, T]
        m = jnp.max(scores, axis=-1, keepdims=True)
        e = jnp.exp(scores - m)
        attn = e * pl.reciprocal(jnp.sum(e, axis=-1, keepdims=True), approx=True)
        applied = jnp.sum(attn[:, :, None] * enc, axis=1)          # [N, H]

        # attn_combine(cat(emb, applied)) + ReLU
        comb = jnp.concatenate([emb, applied], axis=-1)            # [N, 2H]
        comb = jnp.dot(comb, comb_w, preferred_element_type=jnp.float32) + comb_b
        comb = jnp.maximum(comb, 0.0)

        # GRU cell (PyTorch gate order r, z, n) via one block-diag matmul
        ch = jnp.concatenate([comb, hidden], axis=-1)              # [N, 2H]
        g = jnp.dot(ch, gru_w, preferred_element_type=jnp.float32) + gru_b
        r = jax.nn.sigmoid(g[:, 0 * H:1 * H] + g[:, 3 * H:4 * H])
        z = jax.nn.sigmoid(g[:, 1 * H:2 * H] + g[:, 4 * H:5 * H])
        n_g = jnp.tanh(g[:, 2 * H:3 * H] + r * g[:, 5 * H:6 * H])
        hidden = (1.0 - z) * n_g + z * hidden

        # output projection (lane-padded to Kpad) + log_softmax
        logits = jnp.dot(hidden, out_w, preferred_element_type=jnp.float32) + out_b
        lm = jnp.max(logits, axis=-1, keepdims=True)
        lse = lm + jnp.log(jnp.sum(jnp.exp(logits - lm), axis=-1, keepdims=True))
        logp = logits - lse
        dec_ref[step] = jnp.exp(logp)                              # probs

        # greedy argmax (lowest index on ties) -> next one-hot input
        is_max = logp == jnp.max(logp, axis=-1, keepdims=True)
        sel = jnp.min(jnp.where(is_max, iota_f, float(Kpad)), axis=-1, keepdims=True)
        onehot = (iota_f == sel).astype(jnp.float32)


# --------------------------------------------------------------------------
# CRNN conv front-end: 2x Conv2d(C, C, 3, stride=(2,1)) -> mean over H
# (native XLA conv per perf review; no im2col expansion) -> [T, N, C].
# --------------------------------------------------------------------------
def crnn_conv_frontend(prep, rois):
    dn = ("NCHW", "OIHW", "NCHW")
    x = lax.conv_general_dilated(rois, prep["conv1_w"], (2, 1), "VALID",
                                 dimension_numbers=dn)
    x = x + prep["conv1_b"][None, :, None, None]
    x = lax.conv_general_dilated(x, prep["conv2_w"], (2, 1), "VALID",
                                 dimension_numbers=dn)
    x = x + prep["conv2_b"][None, :, None, None]
    x = jnp.mean(x, axis=2)                       # [N, C, W'']
    return jnp.transpose(x, (2, 0, 1)).astype(jnp.float32)   # [T, N, C]


# --------------------------------------------------------------------------
# One-time weight packing (transposes / block matrices / lane padding).
# --------------------------------------------------------------------------
def prepare_params(p):
    f32 = jnp.float32
    C = p["conv1_b"].shape[0]
    H = C
    Cin = C
    K = p["out_w"].shape[0]
    Kpad = ((K + 127) // 128) * 128

    prep = {}
    prep["conv1_w"] = p["conv1_w"].astype(f32)
    prep["conv1_b"] = p["conv1_b"].astype(f32)
    prep["conv2_w"] = p["conv2_w"].astype(f32)
    prep["conv2_b"] = p["conv2_b"].astype(f32)

    # fused BiLSTM step matrix: rows [x_f | h_f | x_b | h_b] -> cols [fwd 4H | bwd 4H]
    W = jnp.zeros((2 * (Cin + H), 8 * H), f32)
    W = W.at[0:Cin, 0:4 * H].set(p["lstm_wih_f"].T)
    W = W.at[Cin:Cin + H, 0:4 * H].set(p["lstm_whh_f"].T)
    W = W.at[Cin + H:2 * Cin + H, 4 * H:8 * H].set(p["lstm_wih_b"].T)
    W = W.at[2 * Cin + H:, 4 * H:8 * H].set(p["lstm_whh_b"].T)
    prep["lstm_W"] = W
    prep["lstm_b"] = jnp.concatenate(
        [p["lstm_bih_f"] + p["lstm_bhh_f"],
         p["lstm_bih_b"] + p["lstm_bhh_b"]]).reshape(1, 8 * H).astype(f32)
    prep["emb_W"] = p["rnn_emb_w"].T.astype(f32)                 # [2H, H]
    prep["emb_b"] = p["rnn_emb_b"].reshape(1, H).astype(f32)

    # decoder
    prep["att_emb"] = jnp.zeros((Kpad, H), f32).at[:K].set(p["att_embedding"])
    prep["vat_w"] = p["vat_w"].reshape(1, 1, H).astype(f32)
    prep["vat_b"] = p["vat_b"].reshape(1, 1).astype(f32)
    prep["comb_W"] = p["comb_w"].T.astype(f32)                   # [2H, H]
    prep["comb_b"] = p["comb_b"].reshape(1, H).astype(f32)
    GW = jnp.zeros((2 * H, 6 * H), f32)
    GW = GW.at[0:H, 0:3 * H].set(p["gru_wih"].T)
    GW = GW.at[H:2 * H, 3 * H:6 * H].set(p["gru_whh"].T)
    prep["gru_W"] = GW
    prep["gru_b"] = jnp.concatenate(
        [p["gru_bih"], p["gru_bhh"]]).reshape(1, 6 * H).astype(f32)
    ow = jnp.zeros((H, Kpad), f32).at[:, :K].set(p["out_w"].T)
    ob = jnp.full((Kpad,), -1e30, f32).at[:K].set(p["out_b"])
    prep["out_W"] = ow
    prep["out_b"] = ob.reshape(1, Kpad)
    return prep


# --------------------------------------------------------------------------
# ATTPredictor.forward, inference branch (train_mode=False).
# --------------------------------------------------------------------------
def att_predictor_forward(prep, rois, *, num_classes, max_seq_len, start_idx):
    x = crnn_conv_frontend(prep, rois)           # [T, N, C]
    T, N, C = x.shape
    H = C

    # fused BiLSTM + Linear(2H -> H) encoder (single pallas_call)
    enc_tnh = pl.pallas_call(
        _bilstm_encoder_kernel,
        out_shape=jax.ShapeDtypeStruct((T, N, H), jnp.float32),
        in_specs=[_vmem_spec()] * 5,
        out_specs=_vmem_spec(),
        scratch_shapes=[pltpu.VMEM((T, N, H), jnp.float32),
                        pltpu.VMEM((T, N, H), jnp.float32)],
    )(x, prep["lstm_W"], prep["lstm_b"], prep["emb_W"], prep["emb_b"])

    enc = jnp.transpose(enc_tnh, (1, 0, 2))      # [N, T, H] lane-dense decode layout

    # fused greedy decode loop (single pallas_call, all steps resident in VMEM)
    Kpad = prep["out_W"].shape[1]
    decodes = pl.pallas_call(
        functools.partial(_decode_kernel, start_idx=start_idx),
        out_shape=jax.ShapeDtypeStruct((max_seq_len, N, Kpad), jnp.float32),
        in_specs=[_vmem_spec()] * 10,
        out_specs=_vmem_spec(),
    )(enc, prep["att_emb"], prep["vat_w"], prep["vat_b"],
      prep["comb_W"], prep["comb_b"], prep["gru_W"], prep["gru_b"],
      prep["out_W"], prep["out_b"])

    # [steps, N, Kpad] -> [N, steps, K]
    return jnp.transpose(decodes, (1, 0, 2))[:, :, :num_classes]
    # TODO(synk): train_mode branch (random.random() teacher forcing + NLLLoss)
    # is nondeterministic python control flow and is not implemented.


# --------------------------------------------------------------------------
# Deterministic parameter init (synthetic; shapes follow the module __init__).
# --------------------------------------------------------------------------
def init_params(key, C, K):
    ks = jax.random.split(key, 25)

    def rnd(i, shape, scale=0.1):
        return (scale * jax.random.normal(ks[i], shape)).astype(jnp.float32)

    p = {}
    p["conv1_w"] = rnd(0, (C, C, 3, 3)); p["conv1_b"] = rnd(1, (C,))
    p["conv2_w"] = rnd(2, (C, C, 3, 3)); p["conv2_b"] = rnd(3, (C,))
    p["lstm_wih_f"] = rnd(4, (4 * C, C)); p["lstm_whh_f"] = rnd(5, (4 * C, C))
    p["lstm_bih_f"] = rnd(6, (4 * C,));   p["lstm_bhh_f"] = rnd(7, (4 * C,))
    p["lstm_wih_b"] = rnd(8, (4 * C, C)); p["lstm_whh_b"] = rnd(9, (4 * C, C))
    p["lstm_bih_b"] = rnd(10, (4 * C,));  p["lstm_bhh_b"] = rnd(11, (4 * C,))
    p["rnn_emb_w"] = rnd(12, (C, 2 * C)); p["rnn_emb_b"] = rnd(13, (C,))
    p["att_embedding"] = rnd(14, (K, C))
    p["comb_w"] = rnd(15, (C, 2 * C));    p["comb_b"] = rnd(16, (C,))
    p["gru_wih"] = rnd(17, (3 * C, C));   p["gru_whh"] = rnd(18, (3 * C, C))
    p["gru_bih"] = rnd(19, (3 * C,));     p["gru_bhh"] = rnd(20, (3 * C,))
    p["out_w"] = rnd(21, (K, C));         p["out_b"] = rnd(22, (K,))
    p["vat_w"] = rnd(23, (1, C));         p["vat_b"] = rnd(24, (1,))
    return p


if __name__ == "__main__":
    C = 32            # in_channels == hidden_size
    K = 13            # num_classes (small synthetic vocab)
    MAX_SEQ_LEN = 6
    START_IDX = 11

    key = jax.random.PRNGKey(0)
    pkey, xkey = jax.random.split(key)
    params = init_params(pkey, C, K)
    prep = prepare_params(params)          # one-time weight packing (outside jit)
    rois = jax.random.normal(xkey, (2, C, 16, 16), dtype=jnp.float32)   # NCHW

    fwd = jax.jit(functools.partial(att_predictor_forward,
                                    num_classes=K,
                                    max_seq_len=MAX_SEQ_LEN,
                                    start_idx=START_IDX))
    decodes = jax.block_until_ready(fwd(prep, rois))
    assert decodes.shape == (2, MAX_SEQ_LEN, K)
    assert bool(jnp.all(jnp.isfinite(decodes)))
    print("KERNEL_OK")
</pallas_src>

<mosaic_0001>
module attributes {stable_mosaic.version = 11 : i64} {
  func.func @_bilstm_encoder_kernel(%arg0: memref<12x2x32xf32, #tpu.memory_space<vmem>>, %arg1: memref<128x256xf32, #tpu.memory_space<vmem>>, %arg2: memref<1x256xf32, #tpu.memory_space<vmem>>, %arg3: memref<64x32xf32, #tpu.memory_space<vmem>>, %arg4: memref<1x32xf32, #tpu.memory_space<vmem>>, %arg5: memref<12x2x32xf32, #tpu.memory_space<vmem>>, %arg6: memref<12x2x32xf32, #tpu.memory_space<vmem>>, %arg7: memref<12x2x32xf32, #tpu.memory_space<vmem>>) attributes {dimension_semantics = [], scalar_prefetch = 0 : i64, scratch_operands = 2 : i64, tpu.core_type = #tpu.core_type<tc>} {
    %c0 = arith.constant 0 : index
    %c0_0 = arith.constant 0 : index
    %0 = vector.load %arg1[%c0, %c0_0] : memref<128x256xf32, #tpu.memory_space<vmem>>, vector<128x256xf32>
    %c0_1 = arith.constant 0 : index
    %c0_2 = arith.constant 0 : index
    %1 = vector.load %arg2[%c0_1, %c0_2] : memref<1x256xf32, #tpu.memory_space<vmem>>, vector<1x256xf32>
    %cst = arith.constant 0.000000e+00 : f32
    %2 = vector.broadcast %cst : f32 to vector<2x32xf32>
    %cst_3 = arith.constant 0.000000e+00 : f32
    %3 = vector.broadcast %cst_3 : f32 to vector<2x32xf32>
    %cst_4 = arith.constant 0.000000e+00 : f32
    %4 = vector.broadcast %cst_4 : f32 to vector<2x32xf32>
    %cst_5 = arith.constant 0.000000e+00 : f32
    %5 = vector.broadcast %cst_5 : f32 to vector<2x32xf32>
    %c0_6 = arith.constant 0 : index
    %c0_7 = arith.constant 0 : index
    %c0_8 = arith.constant 0 : index
    %6 = vector.load %arg0[%c0_6, %c0_7, %c0_8] : memref<12x2x32xf32, #tpu.memory_space<vmem>>, vector<1x2x32xf32>
    %7 = vector.shape_cast %6 : vector<1x2x32xf32> to vector<2x32xf32>
    %c11 = arith.constant 11 : index
    %c0_9 = arith.constant 0 : index
    %c0_10 = arith.constant 0 : index
    %8 = vector.load %arg0[%c11, %c0_9, %c0_10] : memref<12x2x32xf32, #tpu.memory_space<vmem>>, vector<1x2x32xf32>
    %9 = vector.shape_cast %8 : vector<1x2x32xf32> to vector<2x32xf32>
    %10 = tpu.concatenate %7, %2, %9, %4 in 1 : vector<2x32xf32>, vector<2x32xf32>, vector<2x32xf32>, vector<2x32xf32> -> vector<2x128xf32>
    %cst_11 = arith.constant dense<0.000000e+00> : vector<2x256xf32>
    %11 = tpu.matmul %10, %0, %cst_11 {dimension_numbers = #tpu.dot_dimension_numbers<[1], [0], [0], [1], [0, 0, 1, 1], [], []>} : vector<2x128xf32>, vector<128x256xf32>, vector<2x256xf32> -> vector<2x256xf32>
    %12 = vector.broadcast %1 : vector<1x256xf32> to vector<2x256xf32>
    %13 = arith.addf %11, %12 : vector<2x256xf32>
    %14 = vector.extract_strided_slice %13 {offsets = [0, 0], sizes = [2, 128], strides = [1, 1]} : vector<2x256xf32> to vector<2x128xf32>
    %15 = vector.extract_strided_slice %14 {offsets = [0, 0], sizes = [2, 32], strides = [1, 1]} : vector<2x128xf32> to vector<2x32xf32>
    %16 = arith.negf %15 : vector<2x32xf32>
    %17 = math.exp %16 : vector<2x32xf32>
    %cst_12 = arith.constant 1.000000e+00 : f32
    %18 = vector.broadcast %cst_12 : f32 to vector<2x32xf32>
    %19 = arith.addf %18, %17 : vector<2x32xf32>
    %20 = arith.divf %18, %19 : vector<2x32xf32>
    %21 = vector.extract_strided_slice %14 {offsets = [0, 32], sizes = [2, 32], strides = [1, 1]} : vector<2x128xf32> to vector<2x32xf32>
    %22 = arith.negf %21 : vector<2x32xf32>
    %23 = math.exp %22 : vector<2x32xf32>
    %cst_13 = arith.constant 1.000000e+00 : f32
    %24 = vector.broadcast %cst_13 : f32 to vector<2x32xf32>
    %25 = arith.addf %24, %23 : vector<2x32xf32>
    %26 = arith.divf %24, %25 : vector<2x32xf32>
    %27 = vector.extract_strided_slice %14 {offsets = [0, 64], sizes = [2, 32], strides = [1, 1]} : vector<2x128xf32> to vector<2x32xf32>
    %28 = math.tanh %27 : vector<2x32xf32>
    %29 = vector.extract_strided_slice %14 {offsets = [0, 96], sizes = [2, 32], strides = [1, 1]} : vector<2x128xf32> to vector<2x32xf32>
    %30 = arith.negf %29 : vector<2x32xf32>
    %31 = math.exp %30 : vector<2x32xf32>
    %cst_14 = arith.constant 1.000000e+00 : f32
    %32 = vector.broadcast %cst_14 : f32 to vector<2x32xf32>
    %33 = arith.addf %32, %31 : vector<2x32xf32>
    %34 = arith.divf %32, %33 : vector<2x32xf32>
    %35 = arith.mulf %26, %3 : vector<2x32xf32>
    %36 = arith.mulf %20, %28 : vector<2x32xf32>
    %37 = arith.addf %35, %36 : vector<2x32xf32>
    %38 = math.tanh %37 : vector<2x32xf32>
    %39 = arith.mulf %34, %38 : vector<2x32xf32>
    %40 = vector.extract_strided_slice %13 {offsets = [0, 128], sizes = [2, 128], strides = [1, 1]} : vector<2x256xf32> to vector<2x128xf32>
    %41 = vector.extract_strided_slice %40 {offsets = [0, 0], sizes = [2, 32], strides = [1, 1]} : vector<2x128xf32> to vector<2x32xf32>
    %42 = arith.negf %41 : vector<2x32xf32>
    %43 = math.exp %42 : vector<2x32xf32>
    %cst_15 = arith.constant 1.000000e+00 : f32
    %44 = vector.broadcast %cst_15 : f32 to vector<2x32xf32>
    %45 = arith.addf %44, %43 : vector<2x32xf32>
    %46 = arith.divf %44, %45 : vector<2x32xf32>
    %47 = vector.extract_strided_slice %40 {offsets = [0, 32], sizes = [2, 32], strides = [1, 1]} : vector<2x128xf32> to vector<2x32xf32>
    %48 = arith.negf %47 : vector<2x32xf32>
    %49 = math.exp %48 : vector<2x32xf32>
    %cst_16 = arith.constant 1.000000e+00 : f32
    %50 = vector.broadcast %cst_16 : f32 to vector<2x32xf32>
    %51 = arith.addf %50, %49 : vector<2x32xf32>
    %52 = arith.divf %50, %51 : vector<2x32xf32>
    %53 = vector.extract_strided_slice %40 {offsets = [0, 64], sizes = [2, 32], strides = [1, 1]} : vector<2x128xf32> to vector<2x32xf32>
    %54 = math.tanh %53 : vector<2x32xf32>
    %55 = vector.extract_strided_slice %40 {offsets = [0, 96], sizes = [2, 32], strides = [1, 1]} : vector<2x128xf32> to vector<2x32xf32>
    %56 = arith.negf %55 : vector<2x32xf32>
    %57 = math.exp %56 : vector<2x32xf32>
    %cst_17 = arith.constant 1.000000e+00 : f32
    %58 = vector.broadcast %cst_17 : f32 to vector<2x32xf32>
    %59 = arith.addf %58, %57 : vector<2x32xf32>
    %60 = arith.divf %58, %59 : vector<2x32xf32>
    %61 = arith.mulf %52, %5 : vector<2x32xf32>
    %62 = arith.mulf %46, %54 : vector<2x32xf32>
    %63 = arith.addf %61, %62 : vector<2x32xf32>
    %64 = math.tanh %63 : vector<2x32xf32>
    %65 = arith.mulf %60, %64 : vector<2x32xf32>
    %c0_18 = arith.constant 0 : index
    %c0_19 = arith.constant 0 : index
    %c0_20 = arith.constant 0 : index
    %66 = vector.load %arg6[%c0_18, %c0_19, %c0_20] : memref<12x2x32xf32, #tpu.memory_space<vmem>>, vector<1x2x32xf32>
    %67 = vector.shape_cast %66 : vector<1x2x32xf32> to vector<2x32xf32>
    %68 = vector.shape_cast %39 : vector<2x32xf32> to vector<1x2x32xf32>
    tpu.vector_store %arg6[%c0_18, %c0_19, %c0_20], %68 {strides = array<i32>} : memref<12x2x32xf32, #tpu.memory_space<vmem>>, vector<1x2x32xf32>,
    %c11_21 = arith.constant 11 : index
    %c0_22 = arith.constant 0 : index
    %c0_23 = arith.constant 0 : index
    %69 = vector.load %arg7[%c11_21, %c0_22, %c0_23] : memref<12x2x32xf32, #tpu.memory_space<vmem>>, vector<1x2x32xf32>
    %70 = vector.shape_cast %69 : vector<1x2x32xf32> to vector<2x32xf32>
    %71 = vector.shape_cast %65 : vector<2x32xf32> to vector<1x2x32xf32>
    tpu.vector_store %arg7[%c11_21, %c0_22, %c0_23], %71 {strides = array<i32>} : memref<12x2x32xf32, #tpu.memory_space<vmem>>, vector<1x2x32xf32>,
    %c1 = arith.constant 1 : index
    %c0_24 = arith.constant 0 : index
    %c0_25 = arith.constant 0 : index
    %72 = vector.load %arg0[%c1, %c0_24, %c0_25] : memref<12x2x32xf32, #tpu.memory_space<vmem>>, vector<1x2x32xf32>
    %73 = vector.shape_cast %72 : vector<1x2x32xf32> to vector<2x32xf32>
    %c10 = arith.constant 10 : index
    %c0_26 = arith.constant 0 : index
    %c0_27 = arith.constant 0 : index
    %74 = vector.load %arg0[%c10, %c0_26, %c0_27] : memref<12x2x32xf32, #tpu.memory_space<vmem>>, vector<1x2x32xf32>
    %75 = vector.shape_cast %74 : vector<1x2x32xf32> to vector<2x32xf32>
    %76 = tpu.concatenate %73, %39, %75, %65 in 1 : vector<2x32xf32>, vector<2x32xf32>, vector<2x32xf32>, vector<2x32xf32> -> vector<2x128xf32>
    %cst_28 = arith.constant dense<0.000000e+00> : vector<2x256xf32>
    %77 = tpu.matmul %76, %0, %cst_28 {dimension_numbers = #tpu.dot_dimension_numbers<[1], [0], [0], [1], [0, 0, 1, 1], [], []>} : vector<2x128xf32>, vector<128x256xf32>, vector<2x256xf32> -> vector<2x256xf32>
    %78 = vector.broadcast %1 : vector<1x256xf32> to vector<2x256xf32>
    %79 = arith.addf %77, %78 : vector<2x256xf32>
    %80 = vector.extract_strided_slice %79 {offsets = [0, 0], sizes = [2, 128], strides = [1, 1]} : vector<2x256xf32> to vector<2x128xf32>
    %81 = vector.extract_strided_slice %80 {offsets = [0, 0], sizes = [2, 32], strides = [1, 1]} : vector<2x128xf32> to vector<2x32xf32>
    %82 = arith.negf %81 : vector<2x32xf32>
    %83 = math.exp %82 : vector<2x32xf32>
    %cst_29 = arith.constant 1.000000e+00 : f32
    %84 = vector.broadcast %cst_29 : f32 to vector<2x32xf32>
    %85 = arith.addf %84, %83 : vector<2x32xf32>
    %86 = arith.divf %84, %85 : vector<2x32xf32>
    %87 = vector.extract_strided_slice %80 {offsets = [0, 32], sizes = [2, 32], strides = [1, 1]} : vector<2x128xf32> to vector<2x32xf32>
    %88 = arith.negf %87 : vector<2x32xf32>
    %89 = math.exp %88 : vector<2x32xf32>
    %cst_30 = arith.constant 1.000000e+00 : f32
    %90 = vector.broadcast %cst_30 : f32 to vector<2x32xf32>
    %91 = arith.addf %90, %89 : vector<2x32xf32>
    %92 = arith.divf %90, %91 : vector<2x32xf32>
    %93 = vector.extract_strided_slice %80 {offsets = [0, 64], sizes = [2, 32], strides = [1, 1]} : vector<2x128xf32> to vector<2x32xf32>
    %94 = math.tanh %93 : vector<2x32xf32>
    %95 = vector.extract_strided_slice %80 {offsets = [0, 96], sizes = [2, 32], strides = [1, 1]} : vector<2x128xf32> to vector<2x32xf32>
    %96 = arith.negf %95 : vector<2x32xf32>
    %97 = math.exp %96 : vector<2x32xf32>
    %cst_31 = arith.constant 1.000000e+00 : f32
    %98 = vector.broadcast %cst_31 : f32 to vector<2x32xf32>
    %99 = arith.addf %98, %97 : vector<2x32xf32>
    %100 = arith.divf %98, %99 : vector<2x32xf32>
    %101 = arith.mulf %92, %37 : vector<2x32xf32>
    %102 = arith.mulf %86, %94 : vector<2x32xf32>
    %103 = arith.addf %101, %102 : vector<2x32xf32>
    %104 = math.tanh %103 : vector<2x32xf32>
    %105 = arith.mulf %100, %104 : vector<2x32xf32>
    %106 = vector.extract_strided_slice %79 {offsets = [0, 128], sizes = [2, 128], strides = [1, 1]} : vector<2x256xf32> to vector<2x128xf32>
    %107 = vector.extract_strided_slice %106 {offsets = [0, 0], sizes = [2, 32], strides = [1, 1]} : vector<2x128xf32> to vector<2x32xf32>
    %108 = arith.negf %107 : vector<2x32xf32>
    %109 = math.exp %108 : vector<2x32xf32>
    %cst_32 = arith.constant 1.000000e+00 : f32
    %110 = vector.broadcast %cst_32 : f32 to vector<2x32xf32>
    %111 = arith.addf %110, %109 : vector<2x32xf32>
    %112 = arith.divf %110, %111 : vector<2x32xf32>
    %113 = vector.extract_strided_slice %106 {offsets = [0, 32], sizes = [2, 32], strides = [1, 1]} : vector<2x128xf32> to vector<2x32xf32>
    %114 = arith.negf %113 : vector<2x32xf32>
    %115 = math.exp %114 : vector<2x32xf32>
    %cst_33 = arith.constant 1.000000e+00 : f32
    %116 = vector.broadcast %cst_33 : f32 to vector<2x32xf32>
    %117 = arith.addf %116, %115 : vector<2x32xf32>
    %118 = arith.divf %116, %117 : vector<2x32xf32>
    %119 = vector.extract_strided_slice %106 {offsets = [0, 64], sizes = [2, 32], strides = [1, 1]} : vector<2x128xf32> to vector<2x32xf32>
    %120 = math.tanh %119 : vector<2x32xf32>
    %121 = vector.extract_strided_slice %106 {offsets = [0, 96], sizes = [2, 32], strides = [1, 1]} : vector<2x128xf32> to vector<2x32xf32>
    %122 = arith.negf %121 : vector<2x32xf32>
    %123 = math.exp %122 : vector<2x32xf32>
    %cst_34 = arith.constant 1.000000e+00 : f32
    %124 = vector.broadcast %cst_34 : f32 to vector<2x32xf32>
    %125 = arith.addf %124, %123 : vector<2x32xf32>
    %126 = arith.divf %124, %125 : vector<2x32xf32>
    %127 = arith.mulf %118, %63 : vector<2x32xf32>
    %128 = arith.mulf %112, %120 : vector<2x32xf32>
    %129 = arith.addf %127, %128 : vector<2x32xf32>
    %130 = math.tanh %129 : vector<2x32xf32>
    %131 = arith.mulf %126, %130 : vector<2x32xf32>
    %c1_35 = arith.constant 1 : index
    %c0_36 = arith.constant 0 : index
    %c0_37 = arith.constant 0 : index
    %132 = vector.load %arg6[%c1_35, %c0_36, %c0_37] : memref<12x2x32xf32, #tpu.memory_space<vmem>>, vector<1x2x32xf32>
    %133 = vector.shape_cast %132 : vector<1x2x32xf32> to vector<2x32xf32>
    %134 = vector.shape_cast %105 : vector<2x32xf32> to vector<1x2x32xf32>
    tpu.vector_store %arg6[%c1_35, %c0_36, %c0_37], %134 {strides = array<i32>} : memref<12x2x32xf32, #tpu.memory_space<vmem>>, vector<1x2x32xf32>,
    %c10_38 = arith.constant 10 : index
    %c0_39 = arith.constant 0 : index
    %c0_40 = arith.constant 0 : index
    %135 = vector.load %arg7[%c10_38, %c0_39, %c0_40] : memref<12x2x32xf32, #tpu.memory_space<vmem>>, vector<1x2x32xf32>
    %136 = vector.shape_cast %135 : vector<1x2x32xf32> to vector<2x32xf32>
    %137 = vector.shape_cast %131 : vector<2x32xf32> to vector<1x2x32xf32>
    tpu.vector_store %arg7[%c10_38, %c0_39, %c0_40], %137 {strides = array<i32>} : memref<12x2x32xf32, #tpu.memory_space<vmem>>, vector<1x2x32xf32>,
    %c2 = arith.constant 2 : index
    %c0_41 = arith.constant 0 : index
    %c0_42 = arith.constant 0 : index
    %138 = vector.load %arg0[%c2, %c0_41, %c0_42] : memref<12x2x32xf32, #tpu.memory_space<vmem>>, vector<1x2x32xf32>
    %139 = vector.shape_cast %138 : vector<1x2x32xf32> to vector<2x32xf32>
    %c9 = arith.constant 9 : index
    %c0_43 = arith.constant 0 : index
    %c0_44 = arith.constant 0 : index
    %140 = vector.load %arg0[%c9, %c0_43, %c0_44] : memref<12x2x32xf32, #tpu.memory_space<vmem>>, vector<1x2x32xf32>
    %141 = vector.shape_cast %140 : vector<1x2x32xf32> to vector<2x32xf32>
    %142 = tpu.concatenate %139, %105, %141, %131 in 1 : vector<2x32xf32>, vector<2x32xf32>, vector<2x32xf32>, vector<2x32xf32> -> vector<2x128xf32>
    %cst_45 = arith.constant dense<0.000000e+00> : vector<2x256xf32>
    %143 = tpu.matmul %142, %0, %cst_45 {dimension_numbers = #tpu.dot_dimension_numbers<[1], [0], [0], [1], [0, 0, 1, 1], [], []>} : vector<2x128xf32>, vector<128x256xf32>, vector<2x256xf32> -> vector<2x256xf32>
    %144 = vector.broadcast %1 : vector<1x256xf32> to vector<2x256xf32>
    %145 = arith.addf %143, %144 : vector<2x256xf32>
    %146 = vector.extract_strided_slice %145 {offsets = [0, 0], sizes = [2, 128], strides = [1, 1]} : vector<2x256xf32> to vector<2x128xf32>
    %147 = vector.extract_strided_slice %146 {offsets = [0, 0], sizes = [2, 32], strides = [1, 1]} : vector<2x128xf32> to vector<2x32xf32>
    %148 = arith.negf %147 : vector<2x32xf32>
    %149 = math.exp %148 : vector<2x32xf32>
    %cst_46 = arith.constant 1.000000e+00 : f32
    %150 = vector.broadcast %cst_46 : f32 to vector<2x32xf32>
    %151 = arith.addf %150, %149 : vector<2x32xf32>
    %152 = arith.divf %150, %151 : vector<2x32xf32>
    %153 = vector.extract_strided_slice %146 {offsets = [0, 32], sizes = [2, 32], strides = [1, 1]} : vector<2x128xf32> to vector<2x32xf32>
    %154 = arith.negf %153 : vector<2x32xf32>
    %155 = math.exp %154 : vector<2x32xf32>
    %cst_47 = arith.constant 1.000000e+00 : f32
    %156 = vector.broadcast %cst_47 : f32 to vector<2x32xf32>
    %157 = arith.addf %156, %155 : vector<2x32xf32>
    %158 = arith.divf %156, %157 : vector<2x32xf32>
    %159 = vector.extract_strided_slice %146 {offsets = [0, 64], sizes = [2, 32], strides = [1, 1]} : vector<2x128xf32> to vector<2x32xf32>
    %160 = math.tanh %159 : vector<2x32xf32>
    %161 = vector.extract_strided_slice %146 {offsets = [0, 96], sizes = [2, 32], strides = [1, 1]} : vector<2x128xf32> to vector<2x32xf32>
    %162 = arith.negf %161 : vector<2x32xf32>
    %163 = math.exp %162 : vector<2x32xf32>
    %cst_48 = arith.constant 1.000000e+00 : f32
    %164 = vector.broadcast %cst_48 : f32 to vector<2x32xf32>
    %165 = arith.addf %164, %163 : vector<2x32xf32>
    %166 = arith.divf %164, %165 : vector<2x32xf32>
    %167 = arith.mulf %158, %103 : vector<2x32xf32>
    %168 = arith.mulf %152, %160 : vector<2x32xf32>
    %169 = arith.addf %167, %168 : vector<2x32xf32>
    %170 = math.tanh %169 : vector<2x32xf32>
    %171 = arith.mulf %166, %170 : vector<2x32xf32>
    %172 = vector.extract_strided_slice %145 {offsets = [0, 128], sizes = [2, 128], strides = [1, 1]} : vector<2x256xf32> to vector<2x128xf32>
    %173 = vector.extract_strided_slice %172 {offsets = [0, 0], sizes = [2, 32], strides = [1, 1]} : vector<2x128xf32> to vector<2x32xf32>
    %174 = arith.negf %173 : vector<2x32xf32>
    %175 = math.exp %174 : vector<2x32xf32>
    %cst_49 = arith.constant 1.000000e+00 : f32
    %176 = vector.broadcast %cst_49 : f32 to vector<2x32xf32>
    %177 = arith.addf %176, %175 : vector<2x32xf32>
    %178 = arith.divf %176, %177 : vector<2x32xf32>
    %179 = vector.extract_strided_slice %172 {offsets = [0, 32], sizes = [2, 32], strides = [1, 1]} : vector<2x128xf32> to vector<2x32xf32>
    %180 = arith.negf %179 : vector<2x32xf32>
    %181 = math.exp %180 : vector<2x32xf32>
    %cst_50 = arith.constant 1.000000e+00 : f32
    %182 = vector.broadcast %cst_50 : f32 to vector<2x32xf32>
    %183 = arith.addf %182, %181 : vector<2x32xf32>
    %184 = arith.divf %182, %183 : vector<2x32xf32>
    %185 = vector.extract_strided_slice %172 {offsets = [0, 64], sizes = [2, 32], strides = [1, 1]} : vector<2x128xf32> to vector<2x32xf32>
    %186 = math.tanh %185 : vector<2x32xf32>
    %187 = vector.extract_strided_slice %172 {offsets = [0, 96], sizes = [2, 32], strides = [1, 1]} : vector<2x128xf32> to vector<2x32xf32>
    %188 = arith.negf %187 : vector<2x32xf32>
    %189 = math.exp %188 : vector<2x32xf32>
    %cst_51 = arith.constant 1.000000e+00 : f32
    %190 = vector.broadcast %cst_51 : f32 to vector<2x32xf32>
    %191 = arith.addf %190, %189 : vector<2x32xf32>
    %192 = arith.divf %190, %191 : vector<2x32xf32>
    %193 = arith.mulf %184, %129 : vector<2x32xf32>
    %194 = arith.mulf %178, %186 : vector<2x32xf32>
    %195 = arith.addf %193, %194 : vector<2x32xf32>
    %196 = math.tanh %195 : vector<2x32xf32>
    %197 = arith.mulf %192, %196 : vector<2x32xf32>
    %c2_52 = arith.constant 2 : index
    %c0_53 = arith.constant 0 : index
    %c0_54 = arith.constant 0 : index
    %198 = vector.load %arg6[%c2_52, %c0_53, %c0_54] : memref<12x2x32xf32, #tpu.memory_space<vmem>>, vector<1x2x32xf32>
    %199 = vector.shape_cast %198 : vector<1x2x32xf32> to vector<2x32xf32>
    %200 = vector.shape_cast %171 : vector<2x32xf32> to vector<1x2x32xf32>
    tpu.vector_store %arg6[%c2_52, %c0_53, %c0_54], %200 {strides = array<i32>} : memref<12x2x32xf32, #tpu.memory_space<vmem>>, vector<1x2x32xf32>,
    %c9_55 = arith.constant 9 : index
    %c0_56 = arith.constant 0 : index
    %c0_57 = arith.constant 0 : index
    %201 = vector.load %arg7[%c9_55, %c0_56, %c0_57] : memref<12x2x32xf32, #tpu.memory_space<vmem>>, vector<1x2x32xf32>
    %202 = vector.shape_cast %201 : vector<1x2x32xf32> to vector<2x32xf32>
    %203 = vector.shape_cast %197 : vector<2x32xf32> to vector<1x2x32xf32>
    tpu.vector_store %arg7[%c9_55, %c0_56, %c0_57], %203 {strides = array<i32>} : memref<12x2x32xf32, #tpu.memory_space<vmem>>, vector<1x2x32xf32>,
    %c3 = arith.constant 3 : index
    %c0_58 = arith.constant 0 : index
    %c0_59 = arith.constant 0 : index
    %204 = vector.load %arg0[%c3, %c0_58, %c0_59] : memref<12x2x32xf32, #tpu.memory_space<vmem>>, vector<1x2x32xf32>
    %205 = vector.shape_cast %204 : vector<1x2x32xf32> to vector<2x32xf32>
    %c8 = arith.constant 8 : index
    %c0_60 = arith.constant 0 : index
    %c0_61 = arith.constant 0 : index
    %206 = vector.load %arg0[%c8, %c0_60, %c0_61] : memref<12x2x32xf32, #tpu.memory_space<vmem>>, vector<1x2x32xf32>
    %207 = vector.shape_cast %206 : vector<1x2x32xf32> to vector<2x32xf32>
    %208 = tpu.concatenate %205, %171, %207, %197 in 1 : vector<2x32xf32>, vector<2x32xf32>, vector<2x32xf32>, vector<2x32xf32> -> vector<2x128xf32>
    %cst_62 = arith.constant dense<0.000000e+00> : vector<2x256xf32>
    %209 = tpu.matmul %208, %0, %cst_62 {dimension_numbers = #tpu.dot_dimension_numbers<[1], [0], [0], [1], [0, 0, 1, 1], [], []>} : vector<2x128xf32>, vector<128x256xf32>, vector<2x256xf32> -> vector<2x256xf32>
    %210 = vector.broadcast %1 : vector<1x256xf32> to vector<2x256xf32>
    %211 = arith.addf %209, %210 : vector<2x256xf32>
    %212 = vector.extract_strided_slice %211 {offsets = [0, 0], sizes = [2, 128], strides = [1, 1]} : vector<2x256xf32> to vector<2x128xf32>
    %213 = vector.extract_strided_slice %212 {offsets = [0, 0], sizes = [2, 32], strides = [1, 1]} : vector<2x128xf32> to vector<2x32xf32>
    %214 = arith.negf %213 : vector<2x32xf32>
    %215 = math.exp %214 : vector<2x32xf32>
    %cst_63 = arith.constant 1.000000e+00 : f32
    %216 = vector.broadcast %cst_63 : f32 to vector<2x32xf32>
    %217 = arith.addf %216, %215 : vector<2x32xf32>
    %218 = arith.divf %216, %217 : vector<2x32xf32>
    %219 = vector.extract_strided_slice %212 {offsets = [0, 32], sizes = [2, 32], strides = [1, 1]} : vector<2x128xf32> to vector<2x32xf32>
    %220 = arith.negf %219 : vector<2x32xf32>
    %221 = math.exp %220 : vector<2x32xf32>
    %cst_64 = arith.constant 1.000000e+00 : f32
    %222 = vector.broadcast %cst_64 : f32 to vector<2x32xf32>
    %223 = arith.addf %222, %221 : vector<2x32xf32>
    %224 = arith.divf %222, %223 : vector<2x32xf32>
    %225 = vector.extract_strided_slice %212 {offsets = [0, 64], sizes = [2, 32], strides = [1, 1]} : vector<2x128xf32> to vector<2x32xf32>
    %226 = math.tanh %225 : vector<2x32xf32>
    %227 = vector.extract_strided_slice %212 {offsets = [0, 96], sizes = [2, 32], strides = [1, 1]} : vector<2x128xf32> to vector<2x32xf32>
    %228 = arith.negf %227 : vector<2x32xf32>
    %229 = math.exp %228 : vector<2x32xf32>
    %cst_65 = arith.constant 1.000000e+00 : f32
    %230 = vector.broadcast %cst_65 : f32 to vector<2x32xf32>
    %231 = arith.addf %230, %229 : vector<2x32xf32>
    %232 = arith.divf %230, %231 : vector<2x32xf32>
    %233 = arith.mulf %224, %169 : vector<2x32xf32>
    %234 = arith.mulf %218, %226 : vector<2x32xf32>
    %235 = arith.addf %233, %234 : vector<2x32xf32>
    %236 = math.tanh %235 : vector<2x32xf32>
    %237 = arith.mulf %232, %236 : vector<2x32xf32>
    %238 = vector.extract_strided_slice %211 {offsets = [0, 128], sizes = [2, 128], strides = [1, 1]} : vector<2x256xf32> to vector<2x128xf32>
    %239 = vector.extract_strided_slice %238 {offsets = [0, 0], sizes = [2, 32], strides = [1, 1]} : vector<2x128xf32> to vector<2x32xf32>
    %240 = arith.negf %239 : vector<2x32xf32>
    %241 = math.exp %240 : vector<2x32xf32>
    %cst_66 = arith.constant 1.000000e+00 : f32
    %242 = vector.broadcast %cst_66 : f32 to vector<2x32xf32>
    %243 = arith.addf %242, %241 : vector<2x32xf32>
    %244 = arith.divf %242, %243 : vector<2x32xf32>
    %245 = vector.extract_strided_slice %238 {offsets = [0, 32], sizes = [2, 32], strides = [1, 1]} : vector<2x128xf32> to vector<2x32xf32>
    %246 = arith.negf %245 : vector<2x32xf32>
    %247 = math.exp %246 : vector<2x32xf32>
    %cst_67 = arith.constant 1.000000e+00 : f32
    %248 = vector.broadcast %cst_67 : f32 to vector<2x32xf32>
    %249 = arith.addf %248, %247 : vector<2x32xf32>
    %250 = arith.divf %248, %249 : vector<2x32xf32>
    %251 = vector.extract_strided_slice %238 {offsets = [0, 64], sizes = [2, 32], strides = [1, 1]} : vector<2x128xf32> to vector<2x32xf32>
    %252 = math.tanh %251 : vector<2x32xf32>
    %253 = vector.extract_strided_slice %238 {offsets = [0, 96], sizes = [2, 32], strides = [1, 1]} : vector<2x128xf32> to vector<2x32xf32>
    %254 = arith.negf %253 : vector<2x32xf32>
    %255 = math.exp %254 : vector<2x32xf32>
    %cst_68 = arith.constant 1.000000e+00 : f32
    %256 = vector.broadcast %cst_68 : f32 to vector<2x32xf32>
    %257 = arith.addf %256, %255 : vector<2x32xf32>
    %258 = arith.divf %256, %257 : vector<2x32xf32>
    %259 = arith.mulf %250, %195 : vector<2x32xf32>
    %260 = arith.mulf %244, %252 : vector<2x32xf32>
    %261 = arith.addf %259, %260 : vector<2x32xf32>
    %262 = math.tanh %261 : vector<2x32xf32>
    %263 = arith.mulf %258, %262 : vector<2x32xf32>
    %c3_69 = arith.constant 3 : index
    %c0_70 = arith.constant 0 : index
    %c0_71 = arith.constant 0 : index
    %264 = vector.load %arg6[%c3_69, %c0_70, %c0_71] : memref<12x2x32xf32, #tpu.memory_space<vmem>>, vector<1x2x32xf32>
    %265 = vector.shape_cast %264 : vector<1x2x32xf32> to vector<2x32xf32>
    %266 = vector.shape_cast %237 : vector<2x32xf32> to vector<1x2x32xf32>
    tpu.vector_store %arg6[%c3_69, %c0_70, %c0_71], %266 {strides = array<i32>} : memref<12x2x32xf32, #tpu.memory_space<vmem>>, vector<1x2x32xf32>,
    %c8_72 = arith.constant 8 : index
    %c0_73 = arith.constant 0 : index
    %c0_74 = arith.constant 0 : index
    %267 = vector.load %arg7[%c8_72, %c0_73, %c0_74] : memref<12x2x32xf32, #tpu.memory_space<vmem>>, vector<1x2x32xf32>
    %268 = vector.shape_cast %267 : vector<1x2x32xf32> to vector<2x32xf32>
    %269 = vector.shape_cast %263 : vector<2x32xf32> to vector<1x2x32xf32>
    tpu.vector_store %arg7[%c8_72, %c0_73, %c0_74], %269 {strides = array<i32>} : memref<12x2x32xf32, #tpu.memory_space<vmem>>, vector<1x2x32xf32>,
    %c4 = arith.constant 4 : index
    %c0_75 = arith.constant 0 : index
    %c0_76 = arith.constant 0 : index
    %270 = vector.load %arg0[%c4, %c0_75, %c0_76] : memref<12x2x32xf32, #tpu.memory_space<vmem>>, vector<1x2x32xf32>
    %271 = vector.shape_cast %270 : vector<1x2x32xf32> to vector<2x32xf32>
    %c7 = arith.constant 7 : index
    %c0_77 = arith.constant 0 : index
    %c0_78 = arith.constant 0 : index
    %272 = vector.load %arg0[%c7, %c0_77, %c0_78] : memref<12x2x32xf32, #tpu.memory_space<vmem>>, vector<1x2x32xf32>
    %273 = vector.shape_cast %272 : vector<1x2x32xf32> to vector<2x32xf32>
    %274 = tpu.concatenate %271, %237, %273, %263 in 1 : vector<2x32xf32>, vector<2x32xf32>, vector<2x32xf32>, vector<2x32xf32> -> vector<2x128xf32>
    %cst_79 = arith.constant dense<0.000000e+00> : vector<2x256xf32>
    %275 = tpu.matmul %274, %0, %cst_79 {dimension_numbers = #tpu.dot_dimension_numbers<[1], [0], [0], [1], [0, 0, 1, 1], [], []>} : vector<2x128xf32>, vector<128x256xf32>, vector<2x256xf32> -> vector<2x256xf32>
    %276 = vector.broadcast %1 : vector<1x256xf32> to vector<2x256xf32>
    %277 = arith.addf %275, %276 : vector<2x256xf32>
    %278 = vector.extract_strided_slice %277 {offsets = [0, 0], sizes = [2, 128], strides = [1, 1]} : vector<2x256xf32> to vector<2x128xf32>
    %279 = vector.extract_strided_slice %278 {offsets = [0, 0], sizes = [2, 32], strides = [1, 1]} : vector<2x128xf32> to vector<2x32xf32>
    %280 = arith.negf %279 : vector<2x32xf32>
    %281 = math.exp %280 : vector<2x32xf32>
    %cst_80 = arith.constant 1.000000e+00 : f32
    %282 = vector.broadcast %cst_80 : f32 to vector<2x32xf32>
    %283 = arith.addf %282, %281 : vector<2x32xf32>
    %284 = arith.divf %282, %283 : vector<2x32xf32>
    %285 = vector.extract_strided_slice %278 {offsets = [0, 32], sizes = [2, 32], strides = [1, 1]} : vector<2x128xf32> to vector<2x32xf32>
    %286 = arith.negf %285 : vector<2x32xf32>
    %287 = math.exp %286 : vector<2x32xf32>
    %cst_81 = arith.constant 1.000000e+00 : f32
    %288 = vector.broadcast %cst_81 : f32 to vector<2x32xf32>
    %289 = arith.addf %288, %287 : vector<2x32xf32>
    %290 = arith.divf %288, %289 : vector<2x32xf32>
    %291 = vector.extract_strided_slice %278 {offsets = [0, 64], sizes = [2, 32], strides = [1, 1]} : vector<2x128xf32> to vector<2x32xf32>
    %292 = math.tanh %291 : vector<2x32xf32>
    %293 = vector.extract_strided_slice %278 {offsets = [0, 96], sizes = [2, 32], strides = [1, 1]} : vector<2x128xf32> to vector<2x32xf32>
    %294 = arith.negf %293 : vector<2x32xf32>
    %295 = math.exp %294 : vector<2x32xf32>
    %cst_82 = arith.constant 1.000000e+00 : f32
    %296 = vector.broadcast %cst_82 : f32 to vector<2x32xf32>
    %297 = arith.addf %296, %295 : vector<2x32xf32>
    %298 = arith.divf %296, %297 : vector<2x32xf32>
    %299 = arith.mulf %290, %235 : vector<2x32xf32>
    %300 = arith.mulf %284, %292 : vector<2x32xf32>
    %301 = arith.addf %299, %300 : vector<2x32xf32>
    %302 = math.tanh %301 : vector<2x32xf32>
    %303 = arith.mulf %298, %302 : vector<2x32xf32>
    %304 = vector.extract_strided_slice %277 {offsets = [0, 128], sizes = [2, 128], strides = [1, 1]} : vector<2x256xf32> to vector<2x128xf32>
    %305 = vector.extract_strided_slice %304 {offsets = [0, 0], sizes = [2, 32], strides = [1, 1]} : vector<2x128xf32> to vector<2x32xf32>
    %306 = arith.negf %305 : vector<2x32xf32>
    %307 = math.exp %306 : vector<2x32xf32>
    %cst_83 = arith.constant 1.000000e+00 : f32
    %308 = vector.broadcast %cst_83 : f32 to vector<2x32xf32>
    %309 = arith.addf %308, %307 : vector<2x32xf32>
    %310 = arith.divf %308, %309 : vector<2x32xf32>
    %311 = vector.extract_strided_slice %304 {offsets = [0, 32], sizes = [2, 32], strides = [1, 1]} : vector<2x128xf32> to vector<2x32xf32>
    %312 = arith.negf %311 : vector<2x32xf32>
    %313 = math.exp %312 : vector<2x32xf32>
    %cst_84 = arith.constant 1.000000e+00 : f32
    %314 = vector.broadcast %cst_84 : f32 to vector<2x32xf32>
    %315 = arith.addf %314, %313 : vector<2x32xf32>
    %316 = arith.divf %314, %315 : vector<2x32xf32>
    %317 = vector.extract_strided_slice %304 {offsets = [0, 64], sizes = [2, 32], strides = [1, 1]} : vector<2x128xf32> to vector<2x32xf32>
    %318 = math.tanh %317 : vector<2x32xf32>
    %319 = vector.extract_strided_slice %304 {offsets = [0, 96], sizes = [2, 32], strides = [1, 1]} : vector<2x128xf32> to vector<2x32xf32>
    %320 = arith.negf %319 : vector<2x32xf32>
    %321 = math.exp %320 : vector<2x32xf32>
    %cst_85 = arith.constant 1.000000e+00 : f32
    %322 = vector.broadcast %cst_85 : f32 to vector<2x32xf32>
    %323 = arith.addf %322, %321 : vector<2x32xf32>
    %324 = arith.divf %322, %323 : vector<2x32xf32>
    %325 = arith.mulf %316, %261 : vector<2x32xf32>
    %326 = arith.mulf %310, %318 : vector<2x32xf32>
    %327 = arith.addf %325, %326 : vector<2x32xf32>
    %328 = math.tanh %327 : vector<2x32xf32>
    %329 = arith.mulf %324, %328 : vector<2x32xf32>
    %c4_86 = arith.constant 4 : index
    %c0_87 = arith.constant 0 : index
    %c0_88 = arith.constant 0 : index
    %330 = vector.load %arg6[%c4_86, %c0_87, %c0_88] : memref<12x2x32xf32, #tpu.memory_space<vmem>>, vector<1x2x32xf32>
    %331 = vector.shape_cast %330 : vector<1x2x32xf32> to vector<2x32xf32>
    %332 = vector.shape_cast %303 : vector<2x32xf32> to vector<1x2x32xf32>
    tpu.vector_store %arg6[%c4_86, %c0_87, %c0_88], %332 {strides = array<i32>} : memref<12x2x32xf32, #tpu.memory_space<vmem>>, vector<1x2x32xf32>,
    %c7_89 = arith.constant 7 : index
    %c0_90 = arith.constant 0 : index
    %c0_91 = arith.constant 0 : index
    %333 = vector.load %arg7[%c7_89, %c0_90, %c0_91] : memref<12x2x32xf32, #tpu.memory_space<vmem>>, vector<1x2x32xf32>
    %334 = vector.shape_cast %333 : vector<1x2x32xf32> to vector<2x32xf32>
    %335 = vector.shape_cast %329 : vector<2x32xf32> to vector<1x2x32xf32>
    tpu.vector_store %arg7[%c7_89, %c0_90, %c0_91], %335 {strides = array<i32>} : memref<12x2x32xf32, #tpu.memory_space<vmem>>, vector<1x2x32xf32>,
    %c5 = arith.constant 5 : index
    %c0_92 = arith.constant 0 : index
    %c0_93 = arith.constant 0 : index
    %336 = vector.load %arg0[%c5, %c0_92, %c0_93] : memref<12x2x32xf32, #tpu.memory_space<vmem>>, vector<1x2x32xf32>
    %337 = vector.shape_cast %336 : vector<1x2x32xf32> to vector<2x32xf32>
    %c6 = arith.constant 6 : index
    %c0_94 = arith.constant 0 : index
    %c0_95 = arith.constant 0 : index
    %338 = vector.load %arg0[%c6, %c0_94, %c0_95] : memref<12x2x32xf32, #tpu.memory_space<vmem>>, vector<1x2x32xf32>
    %339 = vector.shape_cast %338 : vector<1x2x32xf32> to vector<2x32xf32>
    %340 = tpu.concatenate %337, %303, %339, %329 in 1 : vector<2x32xf32>, vector<2x32xf32>, vector<2x32xf32>, vector<2x32xf32> -> vector<2x128xf32>
    %cst_96 = arith.constant dense<0.000000e+00> : vector<2x256xf32>
    %341 = tpu.matmul %340, %0, %cst_96 {dimension_numbers = #tpu.dot_dimension_numbers<[1], [0], [0], [1], [0, 0, 1, 1], [], []>} : vector<2x128xf32>, vector<128x256xf32>, vector<2x256xf32> -> vector<2x256xf32>
    %342 = vector.broadcast %1 : vector<1x256xf32> to vector<2x256xf32>
    %343 = arith.addf %341, %342 : vector<2x256xf32>
    %344 = vector.extract_strided_slice %343 {offsets = [0, 0], sizes = [2, 128], strides = [1, 1]} : vector<2x256xf32> to vector<2x128xf32>
    %345 = vector.extract_strided_slice %344 {offsets = [0, 0], sizes = [2, 32], strides = [1, 1]} : vector<2x128xf32> to vector<2x32xf32>
    %346 = arith.negf %345 : vector<2x32xf32>
    %347 = math.exp %346 : vector<2x32xf32>
    %cst_97 = arith.constant 1.000000e+00 : f32
    %348 = vector.broadcast %cst_97 : f32 to vector<2x32xf32>
    %349 = arith.addf %348, %347 : vector<2x32xf32>
    %350 = arith.divf %348, %349 : vector<2x32xf32>
    %351 = vector.extract_strided_slice %344 {offsets = [0, 32], sizes = [2, 32], strides = [1, 1]} : vector<2x128xf32> to vector<2x32xf32>
    %352 = arith.negf %351 : vector<2x32xf32>
    %353 = math.exp %352 : vector<2x32xf32>
    %cst_98 = arith.constant 1.000000e+00 : f32
    %354 = vector.broadcast %cst_98 : f32 to vector<2x32xf32>
    %355 = arith.addf %354, %353 : vector<2x32xf32>
    %356 = arith.divf %354, %355 : vector<2x32xf32>
    %357 = vector.extract_strided_slice %344 {offsets = [0, 64], sizes = [2, 32], strides = [1, 1]} : vector<2x128xf32> to vector<2x32xf32>
    %358 = math.tanh %357 : vector<2x32xf32>
    %359 = vector.extract_strided_slice %344 {offsets = [0, 96], sizes = [2, 32], strides = [1, 1]} : vector<2x128xf32> to vector<2x32xf32>
    %360 = arith.negf %359 : vector<2x32xf32>
    %361 = math.exp %360 : vector<2x32xf32>
    %cst_99 = arith.constant 1.000000e+00 : f32
    %362 = vector.broadcast %cst_99 : f32 to vector<2x32xf32>
    %363 = arith.addf %362, %361 : vector<2x32xf32>
    %364 = arith.divf %362, %363 : vector<2x32xf32>
    %365 = arith.mulf %356, %301 : vector<2x32xf32>
    %366 = arith.mulf %350, %358 : vector<2x32xf32>
    %367 = arith.addf %365, %366 : vector<2x32xf32>
    %368 = math.tanh %367 : vector<2x32xf32>
    %369 = arith.mulf %364, %368 : vector<2x32xf32>
    %370 = vector.extract_strided_slice %343 {offsets = [0, 128], sizes = [2, 128], strides = [1, 1]} : vector<2x256xf32> to vector<2x128xf32>
    %371 = vector.extract_strided_slice %370 {offsets = [0, 0], sizes = [2, 32], strides = [1, 1]} : vector<2x128xf32> to vector<2x32xf32>
    %372 = arith.negf %371 : vector<2x32xf32>
    %373 = math.exp %372 : vector<2x32xf32>
    %cst_100 = arith.constant 1.000000e+00 : f32
    %374 = vector.broadcast %cst_100 : f32 to vector<2x32xf32>
    %375 = arith.addf %374, %373 : vector<2x32xf32>
    %376 = arith.divf %374, %375 : vector<2x32xf32>
    %377 = vector.extract_strided_slice %370 {offsets = [0, 32], sizes = [2, 32], strides = [1, 1]} : vector<2x128xf32> to vector<2x32xf32>
    %378 = arith.negf %377 : vector<2x32xf32>
    %379 = math.exp %378 : vector<2x32xf32>
    %cst_101 = arith.constant 1.000000e+00 : f32
    %380 = vector.broadcast %cst_101 : f32 to vector<2x32xf32>
    %381 = arith.addf %380, %379 : vector<2x32xf32>
    %382 = arith.divf %380, %381 : vector<2x32xf32>
    %383 = vector.extract_strided_slice %370 {offsets = [0, 64], sizes = [2, 32], strides = [1, 1]} : vector<2x128xf32> to vector<2x32xf32>
    %384 = math.tanh %383 : vector<2x32xf32>
    %385 = vector.extract_strided_slice %370 {offsets = [0, 96], sizes = [2, 32], strides = [1, 1]} : vector<2x128xf32> to vector<2x32xf32>
    %386 = arith.negf %385 : vector<2x32xf32>
    %387 = math.exp %386 : vector<2x32xf32>
    %cst_102 = arith.constant 1.000000e+00 : f32
    %388 = vector.broadcast %cst_102 : f32 to vector<2x32xf32>
    %389 = arith.addf %388, %387 : vector<2x32xf32>
    %390 = arith.divf %388, %389 : vector<2x32xf32>
    %391 = arith.mulf %382, %327 : vector<2x32xf32>
    %392 = arith.mulf %376, %384 : vector<2x32xf32>
    %393 = arith.addf %391, %392 : vector<2x32xf32>
    %394 = math.tanh %393 : vector<2x32xf32>
    %395 = arith.mulf %390, %394 : vector<2x32xf32>
    %c5_103 = arith.constant 5 : index
    %c0_104 = arith.constant 0 : index
    %c0_105 = arith.constant 0 : index
    %396 = vector.load %arg6[%c5_103, %c0_104, %c0_105] : memref<12x2x32xf32, #tpu.memory_space<vmem>>, vector<1x2x32xf32>
    %397 = vector.shape_cast %396 : vector<1x2x32xf32> to vector<2x32xf32>
    %398 = vector.shape_cast %369 : vector<2x32xf32> to vector<1x2x32xf32>
    tpu.vector_store %arg6[%c5_103, %c0_104, %c0_105], %398 {strides = array<i32>} : memref<12x2x32xf32, #tpu.memory_space<vmem>>, vector<1x2x32xf32>,
    %c6_106 = arith.constant 6 : index
    %c0_107 = arith.constant 0 : index
    %c0_108 = arith.constant 0 : index
    %399 = vector.load %arg7[%c6_106, %c0_107, %c0_108] : memref<12x2x32xf32, #tpu.memory_space<vmem>>, vector<1x2x32xf32>
    %400 = vector.shape_cast %399 : vector<1x2x32xf32> to vector<2x32xf32>
    %401 = vector.shape_cast %395 : vector<2x32xf32> to vector<1x2x32xf32>
    tpu.vector_store %arg7[%c6_106, %c0_107, %c0_108], %401 {strides = array<i32>} : memref<12x2x32xf32, #tpu.memory_space<vmem>>, vector<1x2x32xf32>,
    %c6_109 = arith.constant 6 : index
    %c0_110 = arith.constant 0 : index
    %c0_111 = arith.constant 0 : index
    %402 = vector.load %arg0[%c6_109, %c0_110, %c0_111] : memref<12x2x32xf32, #tpu.memory_space<vmem>>, vector<1x2x32xf32>
    %403 = vector.shape_cast %402 : vector<1x2x32xf32> to vector<2x32xf32>
    %c5_112 = arith.constant 5 : index
    %c0_113 = arith.constant 0 : index
    %c0_114 = arith.constant 0 : index
    %404 = vector.load %arg0[%c5_112, %c0_113, %c0_114] : memref<12x2x32xf32, #tpu.memory_space<vmem>>, vector<1x2x32xf32>
    %405 = vector.shape_cast %404 : vector<1x2x32xf32> to vector<2x32xf32>
    %406 = tpu.concatenate %403, %369, %405, %395 in 1 : vector<2x32xf32>, vector<2x32xf32>, vector<2x32xf32>, vector<2x32xf32> -> vector<2x128xf32>
    %cst_115 = arith.constant dense<0.000000e+00> : vector<2x256xf32>
    %407 = tpu.matmul %406, %0, %cst_115 {dimension_numbers = #tpu.dot_dimension_numbers<[1], [0], [0], [1], [0, 0, 1, 1], [], []>} : vector<2x128xf32>, vector<128x256xf32>, vector<2x256xf32> -> vector<2x256xf32>
    %408 = vector.broadcast %1 : vector<1x256xf32> to vector<2x256xf32>
    %409 = arith.addf %407, %408 : vector<2x256xf32>
    %410 = vector.extract_strided_slice %409 {offsets = [0, 0], sizes = [2, 128], strides = [1, 1]} : vector<2x256xf32> to vector<2x128xf32>
    %411 = vector.extract_strided_slice %410 {offsets = [0, 0], sizes = [2, 32], strides = [1, 1]} : vector<2x128xf32> to vector<2x32xf32>
    %412 = arith.negf %411 : vector<2x32xf32>
    %413 = math.exp %412 : vector<2x32xf32>
    %cst_116 = arith.constant 1.000000e+00 : f32
    %414 = vector.broadcast %cst_116 : f32 to vector<2x32xf32>
    %415 = arith.addf %414, %413 : vector<2x32xf32>
    %416 = arith.divf %414, %415 : vector<2x32xf32>
    %417 = vector.extract_strided_slice %410 {offsets = [0, 32], sizes = [2, 32], strides = [1, 1]} : vector<2x128xf32> to vector<2x32xf32>
    %418 = arith.negf %417 : vector<2x32xf32>
    %419 = math.exp %418 : vector<2x32xf32>
    %cst_117 = arith.constant 1.000000e+00 : f32
    %420 = vector.broadcast %cst_117 : f32 to vector<2x32xf32>
    %421 = arith.addf %420, %419 : vector<2x32xf32>
    %422 = arith.divf %420, %421 : vector<2x32xf32>
    %423 = vector.extract_strided_slice %410 {offsets = [0, 64], sizes = [2, 32], strides = [1, 1]} : vector<2x128xf32> to vector<2x32xf32>
    %424 = math.tanh %423 : vector<2x32xf32>
    %425 = vector.extract_strided_slice %410 {offsets = [0, 96], sizes = [2, 32], strides = [1, 1]} : vector<2x128xf32> to vector<2x32xf32>
    %426 = arith.negf %425 : vector<2x32xf32>
    %427 = math.exp %426 : vector<2x32xf32>
    %cst_118 = arith.constant 1.000000e+00 : f32
    %428 = vector.broadcast %cst_118 : f32 to vector<2x32xf32>
    %429 = arith.addf %428, %427 : vector<2x32xf32>
    %430 = arith.divf %428, %429 : vector<2x32xf32>
    %431 = arith.mulf %422, %367 : vector<2x32xf32>
    %432 = arith.mulf %416, %424 : vector<2x32xf32>
    %433 = arith.addf %431, %432 : vector<2x32xf32>
    %434 = math.tanh %433 : vector<2x32xf32>
    %435 = arith.mulf %430, %434 : vector<2x32xf32>
    %436 = vector.extract_strided_slice %409 {offsets = [0, 128], sizes = [2, 128], strides = [1, 1]} : vector<2x256xf32> to vector<2x128xf32>
    %437 = vector.extract_strided_slice %436 {offsets = [0, 0], sizes = [2, 32], strides = [1, 1]} : vector<2x128xf32> to vector<2x32xf32>
    %438 = arith.negf %437 : vector<2x32xf32>
    %439 = math.exp %438 : vector<2x32xf32>
    %cst_119 = arith.constant 1.000000e+00 : f32
    %440 = vector.broadcast %cst_119 : f32 to vector<2x32xf32>
    %441 = arith.addf %440, %439 : vector<2x32xf32>
    %442 = arith.divf %440, %441 : vector<2x32xf32>
    %443 = vector.extract_strided_slice %436 {offsets = [0, 32], sizes = [2, 32], strides = [1, 1]} : vector<2x128xf32> to vector<2x32xf32>
    %444 = arith.negf %443 : vector<2x32xf32>
    %445 = math.exp %444 : vector<2x32xf32>
    %cst_120 = arith.constant 1.000000e+00 : f32
    %446 = vector.broadcast %cst_120 : f32 to vector<2x32xf32>
    %447 = arith.addf %446, %445 : vector<2x32xf32>
    %448 = arith.divf %446, %447 : vector<2x32xf32>
    %449 = vector.extract_strided_slice %436 {offsets = [0, 64], sizes = [2, 32], strides = [1, 1]} : vector<2x128xf32> to vector<2x32xf32>
    %450 = math.tanh %449 : vector<2x32xf32>
    %451 = vector.extract_strided_slice %436 {offsets = [0, 96], sizes = [2, 32], strides = [1, 1]} : vector<2x128xf32> to vector<2x32xf32>
    %452 = arith.negf %451 : vector<2x32xf32>
    %453 = math.exp %452 : vector<2x32xf32>
    %cst_121 = arith.constant 1.000000e+00 : f32
    %454 = vector.broadcast %cst_121 : f32 to vector<2x32xf32>
    %455 = arith.addf %454, %453 : vector<2x32xf32>
    %456 = arith.divf %454, %455 : vector<2x32xf32>
    %457 = arith.mulf %448, %393 : vector<2x32xf32>
    %458 = arith.mulf %442, %450 : vector<2x32xf32>
    %459 = arith.addf %457, %458 : vector<2x32xf32>
    %460 = math.tanh %459 : vector<2x32xf32>
    %461 = arith.mulf %456, %460 : vector<2x32xf32>
    %c6_122 = arith.constant 6 : index
    %c0_123 = arith.constant 0 : index
    %c0_124 = arith.constant 0 : index
    %462 = vector.load %arg6[%c6_122, %c0_123, %c0_124] : memref<12x2x32xf32, #tpu.memory_space<vmem>>, vector<1x2x32xf32>
    %463 = vector.shape_cast %462 : vector<1x2x32xf32> to vector<2x32xf32>
    %464 = vector.shape_cast %435 : vector<2x32xf32> to vector<1x2x32xf32>
    tpu.vector_store %arg6[%c6_122, %c0_123, %c0_124], %464 {strides = array<i32>} : memref<12x2x32xf32, #tpu.memory_space<vmem>>, vector<1x2x32xf32>,
    %c5_125 = arith.constant 5 : index
    %c0_126 = arith.constant 0 : index
    %c0_127 = arith.constant 0 : index
    %465 = vector.load %arg7[%c5_125, %c0_126, %c0_127] : memref<12x2x32xf32, #tpu.memory_space<vmem>>, vector<1x2x32xf32>
    %466 = vector.shape_cast %465 : vector<1x2x32xf32> to vector<2x32xf32>
    %467 = vector.shape_cast %461 : vector<2x32xf32> to vector<1x2x32xf32>
    tpu.vector_store %arg7[%c5_125, %c0_126, %c0_127], %467 {strides = array<i32>} : memref<12x2x32xf32, #tpu.memory_space<vmem>>, vector<1x2x32xf32>,
    %c7_128 = arith.constant 7 : index
    %c0_129 = arith.constant 0 : index
    %c0_130 = arith.constant 0 : index
    %468 = vector.load %arg0[%c7_128, %c0_129, %c0_130] : memref<12x2x32xf32, #tpu.memory_space<vmem>>, vector<1x2x32xf32>
    %469 = vector.shape_cast %468 : vector<1x2x32xf32> to vector<2x32xf32>
    %c4_131 = arith.constant 4 : index
    %c0_132 = arith.constant 0 : index
    %c0_133 = arith.constant 0 : index
    %470 = vector.load %arg0[%c4_131, %c0_132, %c0_133] : memref<12x2x32xf32, #tpu.memory_space<vmem>>, vector<1x2x32xf32>
    %471 = vector.shape_cast %470 : vector<1x2x32xf32> to vector<2x32xf32>
    %472 = tpu.concatenate %469, %435, %471, %461 in 1 : vector<2x32xf32>, vector<2x32xf32>, vector<2x32xf32>, vector<2x32xf32> -> vector<2x128xf32>
    %cst_134 = arith.constant dense<0.000000e+00> : vector<2x256xf32>
    %473 = tpu.matmul %472, %0, %cst_134 {dimension_numbers = #tpu.dot_dimension_numbers<[1], [0], [0], [1], [0, 0, 1, 1], [], []>} : vector<2x128xf32>, vector<128x256xf32>, vector<2x256xf32> -> vector<2x256xf32>
    %474 = vector.broadcast %1 : vector<1x256xf32> to vector<2x256xf32>
    %475 = arith.addf %473, %474 : vector<2x256xf32>
    %476 = vector.extract_strided_slice %475 {offsets = [0, 0], sizes = [2, 128], strides = [1, 1]} : vector<2x256xf32> to vector<2x128xf32>
    %477 = vector.extract_strided_slice %476 {offsets = [0, 0], sizes = [2, 32], strides = [1, 1]} : vector<2x128xf32> to vector<2x32xf32>
    %478 = arith.negf %477 : vector<2x32xf32>
    %479 = math.exp %478 : vector<2x32xf32>
    %cst_135 = arith.constant 1.000000e+00 : f32
    %480 = vector.broadcast %cst_135 : f32 to vector<2x32xf32>
    %481 = arith.addf %480, %479 : vector<2x32xf32>
    %482 = arith.divf %480, %481 : vector<2x32xf32>
    %483 = vector.extract_strided_slice %476 {offsets = [0, 32], sizes = [2, 32], strides = [1, 1]} : vector<2x128xf32> to vector<2x32xf32>
    %484 = arith.negf %483 : vector<2x32xf32>
    %485 = math.exp %484 : vector<2x32xf32>
    %cst_136 = arith.constant 1.000000e+00 : f32
    %486 = vector.broadcast %cst_136 : f32 to vector<2x32xf32>
    %487 = arith.addf %486, %485 : vector<2x32xf32>
    %488 = arith.divf %486, %487 : vector<2x32xf32>
    %489 = vector.extract_strided_slice %476 {offsets = [0, 64], sizes = [2, 32], strides = [1, 1]} : vector<2x128xf32> to vector<2x32xf32>
    %490 = math.tanh %489 : vector<2x32xf32>
    %491 = vector.extract_strided_slice %476 {offsets = [0, 96], sizes = [2, 32], strides = [1, 1]} : vector<2x128xf32> to vector<2x32xf32>
    %492 = arith.negf %491 : vector<2x32xf32>
    %493 = math.exp %492 : vector<2x32xf32>
    %cst_137 = arith.constant 1.000000e+00 : f32
    %494 = vector.broadcast %cst_137 : f32 to vector<2x32xf32>
    %495 = arith.addf %494, %493 : vector<2x32xf32>
    %496 = arith.divf %494, %495 : vector<2x32xf32>
    %497 = arith.mulf %488, %433 : vector<2x32xf32>
    %498 = arith.mulf %482, %490 : vector<2x32xf32>
    %499 = arith.addf %497, %498 : vector<2x32xf32>
    %500 = math.tanh %499 : vector<2x32xf32>
    %501 = arith.mulf %496, %500 : vector<2x32xf32>
    %502 = vector.extract_strided_slice %475 {offsets = [0, 128], sizes = [2, 128], strides = [1, 1]} : vector<2x256xf32> to vector<2x128xf32>
    %503 = vector.extract_strided_slice %502 {offsets = [0, 0], sizes = [2, 32], strides = [1, 1]} : vector<2x128xf32> to vector<2x32xf32>
    %504 = arith.negf %503 : vector<2x32xf32>
    %505 = math.exp %504 : vector<2x32xf32>
    %cst_138 = arith.constant 1.000000e+00 : f32
    %506 = vector.broadcast %cst_138 : f32 to vector<2x32xf32>
    %507 = arith.addf %506, %505 : vector<2x32xf32>
    %508 = arith.divf %506, %507 : vector<2x32xf32>
    %509 = vector.extract_strided_slice %502 {offsets = [0, 32], sizes = [2, 32], strides = [1, 1]} : vector<2x128xf32> to vector<2x32xf32>
    %510 = arith.negf %509 : vector<2x32xf32>
    %511 = math.exp %510 : vector<2x32xf32>
    %cst_139 = arith.constant 1.000000e+00 : f32
    %512 = vector.broadcast %cst_139 : f32 to vector<2x32xf32>
    %513 = arith.addf %512, %511 : vector<2x32xf32>
    %514 = arith.divf %512, %513 : vector<2x32xf32>
    %515 = vector.extract_strided_slice %502 {offsets = [0, 64], sizes = [2, 32], strides = [1, 1]} : vector<2x128xf32> to vector<2x32xf32>
    %516 = math.tanh %515 : vector<2x32xf32>
    %517 = vector.extract_strided_slice %502 {offsets = [0, 96], sizes = [2, 32], strides = [1, 1]} : vector<2x128xf32> to vector<2x32xf32>
    %518 = arith.negf %517 : vector<2x32xf32>
    %519 = math.exp %518 : vector<2x32xf32>
    %cst_140 = arith.constant 1.000000e+00 : f32
    %520 = vector.broadcast %cst_140 : f32 to vector<2x32xf32>
    %521 = arith.addf %520, %519 : vector<2x32xf32>
    %522 = arith.divf %520, %521 : vector<2x32xf32>
    %523 = arith.mulf %514, %459 : vector<2x32xf32>
    %524 = arith.mulf %508, %516 : vector<2x32xf32>
    %525 = arith.addf %523, %524 : vector<2x32xf32>
    %526 = math.tanh %525 : vector<2x32xf32>
    %527 = arith.mulf %522, %526 : vector<2x32xf32>
    %c7_141 = arith.constant 7 : index
    %c0_142 = arith.constant 0 : index
    %c0_143 = arith.constant 0 : index
    %528 = vector.load %arg6[%c7_141, %c0_142, %c0_143] : memref<12x2x32xf32, #tpu.memory_space<vmem>>, vector<1x2x32xf32>
    %529 = vector.shape_cast %528 : vector<1x2x32xf32> to vector<2x32xf32>
    %530 = vector.shape_cast %501 : vector<2x32xf32> to vector<1x2x32xf32>
    tpu.vector_store %arg6[%c7_141, %c0_142, %c0_143], %530 {strides = array<i32>} : memref<12x2x32xf32, #tpu.memory_space<vmem>>, vector<1x2x32xf32>,
    %c4_144 = arith.constant 4 : index
    %c0_145 = arith.constant 0 : index
    %c0_146 = arith.constant 0 : index
    %531 = vector.load %arg7[%c4_144, %c0_145, %c0_146] : memref<12x2x32xf32, #tpu.memory_space<vmem>>, vector<1x2x32xf32>
    %532 = vector.shape_cast %531 : vector<1x2x32xf32> to vector<2x32xf32>
    %533 = vector.shape_cast %527 : vector<2x32xf32> to vector<1x2x32xf32>
    tpu.vector_store %arg7[%c4_144, %c0_145, %c0_146], %533 {strides = array<i32>} : memref<12x2x32xf32, #tpu.memory_space<vmem>>, vector<1x2x32xf32>,
    %c8_147 = arith.constant 8 : index
    %c0_148 = arith.constant 0 : index
    %c0_149 = arith.constant 0 : index
    %534 = vector.load %arg0[%c8_147, %c0_148, %c0_149] : memref<12x2x32xf32, #tpu.memory_space<vmem>>, vector<1x2x32xf32>
    %535 = vector.shape_cast %534 : vector<1x2x32xf32> to vector<2x32xf32>
    %c3_150 = arith.constant 3 : index
    %c0_151 = arith.constant 0 : index
    %c0_152 = arith.constant 0 : index
    %536 = vector.load %arg0[%c3_150, %c0_151, %c0_152] : memref<12x2x32xf32, #tpu.memory_space<vmem>>, vector<1x2x32xf32>
    %537 = vector.shape_cast %536 : vector<1x2x32xf32> to vector<2x32xf32>
    %538 = tpu.concatenate %535, %501, %537, %527 in 1 : vector<2x32xf32>, vector<2x32xf32>, vector<2x32xf32>, vector<2x32xf32> -> vector<2x128xf32>
    %cst_153 = arith.constant dense<0.000000e+00> : vector<2x256xf32>
    %539 = tpu.matmul %538, %0, %cst_153 {dimension_numbers = #tpu.dot_dimension_numbers<[1], [0], [0], [1], [0, 0, 1, 1], [], []>} : vector<2x128xf32>, vector<128x256xf32>, vector<2x256xf32> -> vector<2x256xf32>
    %540 = vector.broadcast %1 : vector<1x256xf32> to vector<2x256xf32>
    %541 = arith.addf %539, %540 : vector<2x256xf32>
    %542 = vector.extract_strided_slice %541 {offsets = [0, 0], sizes = [2, 128], strides = [1, 1]} : vector<2x256xf32> to vector<2x128xf32>
    %543 = vector.extract_strided_slice %542 {offsets = [0, 0], sizes = [2, 32], strides = [1, 1]} : vector<2x128xf32> to vector<2x32xf32>
    %544 = arith.negf %543 : vector<2x32xf32>
    %545 = math.exp %544 : vector<2x32xf32>
    %cst_154 = arith.constant 1.000000e+00 : f32
    %546 = vector.broadcast %cst_154 : f32 to vector<2x32xf32>
    %547 = arith.addf %546, %545 : vector<2x32xf32>
    %548 = arith.divf %546, %547 : vector<2x32xf32>
    %549 = vector.extract_strided_slice %542 {offsets = [0, 32], sizes = [2, 32], strides = [1, 1]} : vector<2x128xf32> to vector<2x32xf32>
    %550 = arith.negf %549 : vector<2x32xf32>
    %551 = math.exp %550 : vector<2x32xf32>
    %cst_155 = arith.constant 1.000000e+00 : f32
    %552 = vector.broadcast %cst_155 : f32 to vector<2x32xf32>
    %553 = arith.addf %552, %551 : vector<2x32xf32>
    %554 = arith.divf %552, %553 : vector<2x32xf32>
    %555 = vector.extract_strided_slice %542 {offsets = [0, 64], sizes = [2, 32], strides = [1, 1]} : vector<2x128xf32> to vector<2x32xf32>
    %556 = math.tanh %555 : vector<2x32xf32>
    %557 = vector.extract_strided_slice %542 {offsets = [0, 96], sizes = [2, 32], strides = [1, 1]} : vector<2x128xf32> to vector<2x32xf32>
    %558 = arith.negf %557 : vector<2x32xf32>
    %559 = math.exp %558 : vector<2x32xf32>
    %cst_156 = arith.constant 1.000000e+00 : f32
    %560 = vector.broadcast %cst_156 : f32 to vector<2x32xf32>
    %561 = arith.addf %560, %559 : vector<2x32xf32>
    %562 = arith.divf %560, %561 : vector<2x32xf32>
    %563 = arith.mulf %554, %499 : vector<2x32xf32>
    %564 = arith.mulf %548, %556 : vector<2x32xf32>
    %565 = arith.addf %563, %564 : vector<2x32xf32>
    %566 = math.tanh %565 : vector<2x32xf32>
    %567 = arith.mulf %562, %566 : vector<2x32xf32>
    %568 = vector.extract_strided_slice %541 {offsets = [0, 128], sizes = [2, 128], strides = [1, 1]} : vector<2x256xf32> to vector<2x128xf32>
    %569 = vector.extract_strided_slice %568 {offsets = [0, 0], sizes = [2, 32], strides = [1, 1]} : vector<2x128xf32> to vector<2x32xf32>
    %570 = arith.negf %569 : vector<2x32xf32>
    %571 = math.exp %570 : vector<2x32xf32>
    %cst_157 = arith.constant 1.000000e+00 : f32
    %572 = vector.broadcast %cst_157 : f32 to vector<2x32xf32>
    %573 = arith.addf %572, %571 : vector<2x32xf32>
    %574 = arith.divf %572, %573 : vector<2x32xf32>
    %575 = vector.extract_strided_slice %568 {offsets = [0, 32], sizes = [2, 32], strides = [1, 1]} : vector<2x128xf32> to vector<2x32xf32>
    %576 = arith.negf %575 : vector<2x32xf32>
    %577 = math.exp %576 : vector<2x32xf32>
    %cst_158 = arith.constant 1.000000e+00 : f32
    %578 = vector.broadcast %cst_158 : f32 to vector<2x32xf32>
    %579 = arith.addf %578, %577 : vector<2x32xf32>
    %580 = arith.divf %578, %579 : vector<2x32xf32>
    %581 = vector.extract_strided_slice %568 {offsets = [0, 64], sizes = [2, 32], strides = [1, 1]} : vector<2x128xf32> to vector<2x32xf32>
    %582 = math.tanh %581 : vector<2x32xf32>
    %583 = vector.extract_strided_slice %568 {offsets = [0, 96], sizes = [2, 32], strides = [1, 1]} : vector<2x128xf32> to vector<2x32xf32>
    %584 = arith.negf %583 : vector<2x32xf32>
    %585 = math.exp %584 : vector<2x32xf32>
    %cst_159 = arith.constant 1.000000e+00 : f32
    %586 = vector.broadcast %cst_159 : f32 to vector<2x32xf32>
    %587 = arith.addf %586, %585 : vector<2x32xf32>
    %588 = arith.divf %586, %587 : vector<2x32xf32>
    %589 = arith.mulf %580, %525 : vector<2x32xf32>
    %590 = arith.mulf %574, %582 : vector<2x32xf32>
    %591 = arith.addf %589, %590 : vector<2x32xf32>
    %592 = math.tanh %591 : vector<2x32xf32>
    %593 = arith.mulf %588, %592 : vector<2x32xf32>
    %c8_160 = arith.constant 8 : index
    %c0_161 = arith.constant 0 : index
    %c0_162 = arith.constant 0 : index
    %594 = vector.load %arg6[%c8_160, %c0_161, %c0_162] : memref<12x2x32xf32, #tpu.memory_space<vmem>>, vector<1x2x32xf32>
    %595 = vector.shape_cast %594 : vector<1x2x32xf32> to vector<2x32xf32>
    %596 = vector.shape_cast %567 : vector<2x32xf32> to vector<1x2x32xf32>
    tpu.vector_store %arg6[%c8_160, %c0_161, %c0_162], %596 {strides = array<i32>} : memref<12x2x32xf32, #tpu.memory_space<vmem>>, vector<1x2x32xf32>,
    %c3_163 = arith.constant 3 : index
    %c0_164 = arith.constant 0 : index
    %c0_165 = arith.constant 0 : index
    %597 = vector.load %arg7[%c3_163, %c0_164, %c0_165] : memref<12x2x32xf32, #tpu.memory_space<vmem>>, vector<1x2x32xf32>
    %598 = vector.shape_cast %597 : vector<1x2x32xf32> to vector<2x32xf32>
    %599 = vector.shape_cast %593 : vector<2x32xf32> to vector<1x2x32xf32>
    tpu.vector_store %arg7[%c3_163, %c0_164, %c0_165], %599 {strides = array<i32>} : memref<12x2x32xf32, #tpu.memory_space<vmem>>, vector<1x2x32xf32>,
    %c9_166 = arith.constant 9 : index
    %c0_167 = arith.constant 0 : index
    %c0_168 = arith.constant 0 : index
    %600 = vector.load %arg0[%c9_166, %c0_167, %c0_168] : memref<12x2x32xf32, #tpu.memory_space<vmem>>, vector<1x2x32xf32>
    %601 = vector.shape_cast %600 : vector<1x2x32xf32> to vector<2x32xf32>
    %c2_169 = arith.constant 2 : index
    %c0_170 = arith.constant 0 : index
    %c0_171 = arith.constant 0 : index
    %602 = vector.load %arg0[%c2_169, %c0_170, %c0_171] : memref<12x2x32xf32, #tpu.memory_space<vmem>>, vector<1x2x32xf32>
    %603 = vector.shape_cast %602 : vector<1x2x32xf32> to vector<2x32xf32>
    %604 = tpu.concatenate %601, %567, %603, %593 in 1 : vector<2x32xf32>, vector<2x32xf32>, vector<2x32xf32>, vector<2x32xf32> -> vector<2x128xf32>
    %cst_172 = arith.constant dense<0.000000e+00> : vector<2x256xf32>
    %605 = tpu.matmul %604, %0, %cst_172 {dimension_numbers = #tpu.dot_dimension_numbers<[1], [0], [0], [1], [0, 0, 1, 1], [], []>} : vector<2x128xf32>, vector<128x256xf32>, vector<2x256xf32> -> vector<2x256xf32>
    %606 = vector.broadcast %1 : vector<1x256xf32> to vector<2x256xf32>
    %607 = arith.addf %605, %606 : vector<2x256xf32>
    %608 = vector.extract_strided_slice %607 {offsets = [0, 0], sizes = [2, 128], strides = [1, 1]} : vector<2x256xf32> to vector<2x128xf32>
    %609 = vector.extract_strided_slice %608 {offsets = [0, 0], sizes = [2, 32], strides = [1, 1]} : vector<2x128xf32> to vector<2x32xf32>
    %610 = arith.negf %609 : vector<2x32xf32>
    %611 = math.exp %610 : vector<2x32xf32>
    %cst_173 = arith.constant 1.000000e+00 : f32
    %612 = vector.broadcast %cst_173 : f32 to vector<2x32xf32>
    %613 = arith.addf %612, %611 : vector<2x32xf32>
    %614 = arith.divf %612, %613 : vector<2x32xf32>
    %615 = vector.extract_strided_slice %608 {offsets = [0, 32], sizes = [2, 32], strides = [1, 1]} : vector<2x128xf32> to vector<2x32xf32>
    %616 = arith.negf %615 : vector<2x32xf32>
    %617 = math.exp %616 : vector<2x32xf32>
    %cst_174 = arith.constant 1.000000e+00 : f32
    %618 = vector.broadcast %cst_174 : f32 to vector<2x32xf32>
    %619 = arith.addf %618, %617 : vector<2x32xf32>
    %620 = arith.divf %618, %619 : vector<2x32xf32>
    %621 = vector.extract_strided_slice %608 {offsets = [0, 64], sizes = [2, 32], strides = [1, 1]} : vector<2x128xf32> to vector<2x32xf32>
    %622 = math.tanh %621 : vector<2x32xf32>
    %623 = vector.extract_strided_slice %608 {offsets = [0, 96], sizes = [2, 32], strides = [1, 1]} : vector<2x128xf32> to vector<2x32xf32>
    %624 = arith.negf %623 : vector<2x32xf32>
    %625 = math.exp %624 : vector<2x32xf32>
    %cst_175 = arith.constant 1.000000e+00 : f32
    %626 = vector.broadcast %cst_175 : f32 to vector<2x32xf32>
    %627 = arith.addf %626, %625 : vector<2x32xf32>
    %628 = arith.divf %626, %627 : vector<2x32xf32>
    %629 = arith.mulf %620, %565 : vector<2x32xf32>
    %630 = arith.mulf %614, %622 : vector<2x32xf32>
    %631 = arith.addf %629, %630 : vector<2x32xf32>
    %632 = math.tanh %631 : vector<2x32xf32>
    %633 = arith.mulf %628, %632 : vector<2x32xf32>
    %634 = vector.extract_strided_slice %607 {offsets = [0, 128], sizes = [2, 128], strides = [1, 1]} : vector<2x256xf32> to vector<2x128xf32>
    %635 = vector.extract_strided_slice %634 {offsets = [0, 0], sizes = [2, 32], strides = [1, 1]} : vector<2x128xf32> to vector<2x32xf32>
    %636 = arith.negf %635 : vector<2x32xf32>
    %637 = math.exp %636 : vector<2x32xf32>
    %cst_176 = arith.constant 1.000000e+00 : f32
    %638 = vector.broadcast %cst_176 : f32 to vector<2x32xf32>
    %639 = arith.addf %638, %637 : vector<2x32xf32>
    %640 = arith.divf %638, %639 : vector<2x32xf32>
    %641 = vector.extract_strided_slice %634 {offsets = [0, 32], sizes = [2, 32], strides = [1, 1]} : vector<2x128xf32> to vector<2x32xf32>
    %642 = arith.negf %641 : vector<2x32xf32>
    %643 = math.exp %642 : vector<2x32xf32>
    %cst_177 = arith.constant 1.000000e+00 : f32
    %644 = vector.broadcast %cst_177 : f32 to vector<2x32xf32>
    %645 = arith.addf %644, %643 : vector<2x32xf32>
    %646 = arith.divf %644, %645 : vector<2x32xf32>
    %647 = vector.extract_strided_slice %634 {offsets = [0, 64], sizes = [2, 32], strides = [1, 1]} : vector<2x128xf32> to vector<2x32xf32>
    %648 = math.tanh %647 : vector<2x32xf32>
    %649 = vector.extract_strided_slice %634 {offsets = [0, 96], sizes = [2, 32], strides = [1, 1]} : vector<2x128xf32> to vector<2x32xf32>
    %650 = arith.negf %649 : vector<2x32xf32>
    %651 = math.exp %650 : vector<2x32xf32>
    %cst_178 = arith.constant 1.000000e+00 : f32
    %652 = vector.broadcast %cst_178 : f32 to vector<2x32xf32>
    %653 = arith.addf %652, %651 : vector<2x32xf32>
    %654 = arith.divf %652, %653 : vector<2x32xf32>
    %655 = arith.mulf %646, %591 : vector<2x32xf32>
    %656 = arith.mulf %640, %648 : vector<2x32xf32>
    %657 = arith.addf %655, %656 : vector<2x32xf32>
    %658 = math.tanh %657 : vector<2x32xf32>
    %659 = arith.mulf %654, %658 : vector<2x32xf32>
    %c9_179 = arith.constant 9 : index
    %c0_180 = arith.constant 0 : index
    %c0_181 = arith.constant 0 : index
    %660 = vector.load %arg6[%c9_179, %c0_180, %c0_181] : memref<12x2x32xf32, #tpu.memory_space<vmem>>, vector<1x2x32xf32>
    %661 = vector.shape_cast %660 : vector<1x2x32xf32> to vector<2x32xf32>
    %662 = vector.shape_cast %633 : vector<2x32xf32> to vector<1x2x32xf32>
    tpu.vector_store %arg6[%c9_179, %c0_180, %c0_181], %662 {strides = array<i32>} : memref<12x2x32xf32, #tpu.memory_space<vmem>>, vector<1x2x32xf32>,
    %c2_182 = arith.constant 2 : index
    %c0_183 = arith.constant 0 : index
    %c0_184 = arith.constant 0 : index
    %663 = vector.load %arg7[%c2_182, %c0_183, %c0_184] : memref<12x2x32xf32, #tpu.memory_space<vmem>>, vector<1x2x32xf32>
    %664 = vector.shape_cast %663 : vector<1x2x32xf32> to vector<2x32xf32>
    %665 = vector.shape_cast %659 : vector<2x32xf32> to vector<1x2x32xf32>
    tpu.vector_store %arg7[%c2_182, %c0_183, %c0_184], %665 {strides = array<i32>} : memref<12x2x32xf32, #tpu.memory_space<vmem>>, vector<1x2x32xf32>,
    %c10_185 = arith.constant 10 : index
    %c0_186 = arith.constant 0 : index
    %c0_187 = arith.constant 0 : index
    %666 = vector.load %arg0[%c10_185, %c0_186, %c0_187] : memref<12x2x32xf32, #tpu.memory_space<vmem>>, vector<1x2x32xf32>
    %667 = vector.shape_cast %666 : vector<1x2x32xf32> to vector<2x32xf32>
    %c1_188 = arith.constant 1 : index
    %c0_189 = arith.constant 0 : index
    %c0_190 = arith.constant 0 : index
    %668 = vector.load %arg0[%c1_188, %c0_189, %c0_190] : memref<12x2x32xf32, #tpu.memory_space<vmem>>, vector<1x2x32xf32>
    %669 = vector.shape_cast %668 : vector<1x2x32xf32> to vector<2x32xf32>
    %670 = tpu.concatenate %667, %633, %669, %659 in 1 : vector<2x32xf32>, vector<2x32xf32>, vector<2x32xf32>, vector<2x32xf32> -> vector<2x128xf32>
    %cst_191 = arith.constant dense<0.000000e+00> : vector<2x256xf32>
    %671 = tpu.matmul %670, %0, %cst_191 {dimension_numbers = #tpu.dot_dimension_numbers<[1], [0], [0], [1], [0, 0, 1, 1], [], []>} : vector<2x128xf32>, vector<128x256xf32>, vector<2x256xf32> -> vector<2x256xf32>
    %672 = vector.broadcast %1 : vector<1x256xf32> to vector<2x256xf32>
    %673 = arith.addf %671, %672 : vector<2x256xf32>
    %674 = vector.extract_strided_slice %673 {offsets = [0, 0], sizes = [2, 128], strides = [1, 1]} : vector<2x256xf32> to vector<2x128xf32>
    %675 = vector.extract_strided_slice %674 {offsets = [0, 0], sizes = [2, 32], strides = [1, 1]} : vector<2x128xf32> to vector<2x32xf32>
    %676 = arith.negf %675 : vector<2x32xf32>
    %677 = math.exp %676 : vector<2x32xf32>
    %cst_192 = arith.constant 1.000000e+00 : f32
    %678 = vector.broadcast %cst_192 : f32 to vector<2x32xf32>
    %679 = arith.addf %678, %677 : vector<2x32xf32>
    %680 = arith.divf %678, %679 : vector<2x32xf32>
    %681 = vector.extract_strided_slice %674 {offsets = [0, 32], sizes = [2, 32], strides = [1, 1]} : vector<2x128xf32> to vector<2x32xf32>
    %682 = arith.negf %681 : vector<2x32xf32>
    %683 = math.exp %682 : vector<2x32xf32>
    %cst_193 = arith.constant 1.000000e+00 : f32
    %684 = vector.broadcast %cst_193 : f32 to vector<2x32xf32>
    %685 = arith.addf %684, %683 : vector<2x32xf32>
    %686 = arith.divf %684, %685 : vector<2x32xf32>
    %687 = vector.extract_strided_slice %674 {offsets = [0, 64], sizes = [2, 32], strides = [1, 1]} : vector<2x128xf32> to vector<2x32xf32>
    %688 = math.tanh %687 : vector<2x32xf32>
    %689 = vector.extract_strided_slice %674 {offsets = [0, 96], sizes = [2, 32], strides = [1, 1]} : vector<2x128xf32> to vector<2x32xf32>
    %690 = arith.negf %689 : vector<2x32xf32>
    %691 = math.exp %690 : vector<2x32xf32>
    %cst_194 = arith.constant 1.000000e+00 : f32
    %692 = vector.broadcast %cst_194 : f32 to vector<2x32xf32>
    %693 = arith.addf %692, %691 : vector<2x32xf32>
    %694 = arith.divf %692, %693 : vector<2x32xf32>
    %695 = arith.mulf %686, %631 : vector<2x32xf32>
    %696 = arith.mulf %680, %688 : vector<2x32xf32>
    %697 = arith.addf %695, %696 : vector<2x32xf32>
    %698 = math.tanh %697 : vector<2x32xf32>
    %699 = arith.mulf %694, %698 : vector<2x32xf32>
    %700 = vector.extract_strided_slice %673 {offsets = [0, 128], sizes = [2, 128], strides = [1, 1]} : vector<2x256xf32> to vector<2x128xf32>
    %701 = vector.extract_strided_slice %700 {offsets = [0, 0], sizes = [2, 32], strides = [1, 1]} : vector<2x128xf32> to vector<2x32xf32>
    %702 = arith.negf %701 : vector<2x32xf32>
    %703 = math.exp %702 : vector<2x32xf32>
    %cst_195 = arith.constant 1.000000e+00 : f32
    %704 = vector.broadcast %cst_195 : f32 to vector<2x32xf32>
    %705 = arith.addf %704, %703 : vector<2x32xf32>
    %706 = arith.divf %704, %705 : vector<2x32xf32>
    %707 = vector.extract_strided_slice %700 {offsets = [0, 32], sizes = [2, 32], strides = [1, 1]} : vector<2x128xf32> to vector<2x32xf32>
    %708 = arith.negf %707 : vector<2x32xf32>
    %709 = math.exp %708 : vector<2x32xf32>
    %cst_196 = arith.constant 1.000000e+00 : f32
    %710 = vector.broadcast %cst_196 : f32 to vector<2x32xf32>
    %711 = arith.addf %710, %709 : vector<2x32xf32>
    %712 = arith.divf %710, %711 : vector<2x32xf32>
    %713 = vector.extract_strided_slice %700 {offsets = [0, 64], sizes = [2, 32], strides = [1, 1]} : vector<2x128xf32> to vector<2x32xf32>
    %714 = math.tanh %713 : vector<2x32xf32>
    %715 = vector.extract_strided_slice %700 {offsets = [0, 96], sizes = [2, 32], strides = [1, 1]} : vector<2x128xf32> to vector<2x32xf32>
    %716 = arith.negf %715 : vector<2x32xf32>
    %717 = math.exp %716 : vector<2x32xf32>
    %cst_197 = arith.constant 1.000000e+00 : f32
    %718 = vector.broadcast %cst_197 : f32 to vector<2x32xf32>
    %719 = arith.addf %718, %717 : vector<2x32xf32>
    %720 = arith.divf %718, %719 : vector<2x32xf32>
    %721 = arith.mulf %712, %657 : vector<2x32xf32>
    %722 = arith.mulf %706, %714 : vector<2x32xf32>
    %723 = arith.addf %721, %722 : vector<2x32xf32>
    %724 = math.tanh %723 : vector<2x32xf32>
    %725 = arith.mulf %720, %724 : vector<2x32xf32>
    %c10_198 = arith.constant 10 : index
    %c0_199 = arith.constant 0 : index
    %c0_200 = arith.constant 0 : index
    %726 = vector.load %arg6[%c10_198, %c0_199, %c0_200] : memref<12x2x32xf32, #tpu.memory_space<vmem>>, vector<1x2x32xf32>
    %727 = vector.shape_cast %726 : vector<1x2x32xf32> to vector<2x32xf32>
    %728 = vector.shape_cast %699 : vector<2x32xf32> to vector<1x2x32xf32>
    tpu.vector_store %arg6[%c10_198, %c0_199, %c0_200], %728 {strides = array<i32>} : memref<12x2x32xf32, #tpu.memory_space<vmem>>, vector<1x2x32xf32>,
    %c1_201 = arith.constant 1 : index
    %c0_202 = arith.constant 0 : index
    %c0_203 = arith.constant 0 : index
    %729 = vector.load %arg7[%c1_201, %c0_202, %c0_203] : memref<12x2x32xf32, #tpu.memory_space<vmem>>, vector<1x2x32xf32>
    %730 = vector.shape_cast %729 : vector<1x2x32xf32> to vector<2x32xf32>
    %731 = vector.shape_cast %725 : vector<2x32xf32> to vector<1x2x32xf32>
    tpu.vector_store %arg7[%c1_201, %c0_202, %c0_203], %731 {strides = array<i32>} : memref<12x2x32xf32, #tpu.memory_space<vmem>>, vector<1x2x32xf32>,
    %c11_204 = arith.constant 11 : index
    %c0_205 = arith.constant 0 : index
    %c0_206 = arith.constant 0 : index
    %732 = vector.load %arg0[%c11_204, %c0_205, %c0_206] : memref<12x2x32xf32, #tpu.memory_space<vmem>>, vector<1x2x32xf32>
    %733 = vector.shape_cast %732 : vector<1x2x32xf32> to vector<2x32xf32>
    %c0_207 = arith.constant 0 : index
    %c0_208 = arith.constant 0 : index
    %c0_209 = arith.constant 0 : index
    %734 = vector.load %arg0[%c0_207, %c0_208, %c0_209] : memref<12x2x32xf32, #tpu.memory_space<vmem>>, vector<1x2x32xf32>
    %735 = vector.shape_cast %734 : vector<1x2x32xf32> to vector<2x32xf32>
    %736 = tpu.concatenate %733, %699, %735, %725 in 1 : vector<2x32xf32>, vector<2x32xf32>, vector<2x32xf32>, vector<2x32xf32> -> vector<2x128xf32>
    %cst_210 = arith.constant dense<0.000000e+00> : vector<2x256xf32>
    %737 = tpu.matmul %736, %0, %cst_210 {dimension_numbers = #tpu.dot_dimension_numbers<[1], [0], [0], [1], [0, 0, 1, 1], [], []>} : vector<2x128xf32>, vector<128x256xf32>, vector<2x256xf32> -> vector<2x256xf32>
    %738 = vector.broadcast %1 : vector<1x256xf32> to vector<2x256xf32>
    %739 = arith.addf %737, %738 : vector<2x256xf32>
    %740 = vector.extract_strided_slice %739 {offsets = [0, 0], sizes = [2, 128], strides = [1, 1]} : vector<2x256xf32> to vector<2x128xf32>
    %741 = vector.extract_strided_slice %740 {offsets = [0, 0], sizes = [2, 32], strides = [1, 1]} : vector<2x128xf32> to vector<2x32xf32>
    %742 = arith.negf %741 : vector<2x32xf32>
    %743 = math.exp %742 : vector<2x32xf32>
    %cst_211 = arith.constant 1.000000e+00 : f32
    %744 = vector.broadcast %cst_211 : f32 to vector<2x32xf32>
    %745 = arith.addf %744, %743 : vector<2x32xf32>
    %746 = arith.divf %744, %745 : vector<2x32xf32>
    %747 = vector.extract_strided_slice %740 {offsets = [0, 32], sizes = [2, 32], strides = [1, 1]} : vector<2x128xf32> to vector<2x32xf32>
    %748 = arith.negf %747 : vector<2x32xf32>
    %749 = math.exp %748 : vector<2x32xf32>
    %cst_212 = arith.constant 1.000000e+00 : f32
    %750 = vector.broadcast %cst_212 : f32 to vector<2x32xf32>
    %751 = arith.addf %750, %749 : vector<2x32xf32>
    %752 = arith.divf %750, %751 : vector<2x32xf32>
    %753 = vector.extract_strided_slice %740 {offsets = [0, 64], sizes = [2, 32], strides = [1, 1]} : vector<2x128xf32> to vector<2x32xf32>
    %754 = math.tanh %753 : vector<2x32xf32>
    %755 = vector.extract_strided_slice %740 {offsets = [0, 96], sizes = [2, 32], strides = [1, 1]} : vector<2x128xf32> to vector<2x32xf32>
    %756 = arith.negf %755 : vector<2x32xf32>
    %757 = math.exp %756 : vector<2x32xf32>
    %cst_213 = arith.constant 1.000000e+00 : f32
    %758 = vector.broadcast %cst_213 : f32 to vector<2x32xf32>
    %759 = arith.addf %758, %757 : vector<2x32xf32>
    %760 = arith.divf %758, %759 : vector<2x32xf32>
    %761 = arith.mulf %752, %697 : vector<2x32xf32>
    %762 = arith.mulf %746, %754 : vector<2x32xf32>
    %763 = arith.addf %761, %762 : vector<2x32xf32>
    %764 = math.tanh %763 : vector<2x32xf32>
    %765 = arith.mulf %760, %764 : vector<2x32xf32>
    %766 = vector.extract_strided_slice %739 {offsets = [0, 128], sizes = [2, 128], strides = [1, 1]} : vector<2x256xf32> to vector<2x128xf32>
    %767 = vector.extract_strided_slice %766 {offsets = [0, 0], sizes = [2, 32], strides = [1, 1]} : vector<2x128xf32> to vector<2x32xf32>
    %768 = arith.negf %767 : vector<2x32xf32>
    %769 = math.exp %768 : vector<2x32xf32>
    %cst_214 = arith.constant 1.000000e+00 : f32
    %770 = vector.broadcast %cst_214 : f32 to vector<2x32xf32>
    %771 = arith.addf %770, %769 : vector<2x32xf32>
    %772 = arith.divf %770, %771 : vector<2x32xf32>
    %773 = vector.extract_strided_slice %766 {offsets = [0, 32], sizes = [2, 32], strides = [1, 1]} : vector<2x128xf32> to vector<2x32xf32>
    %774 = arith.negf %773 : vector<2x32xf32>
    %775 = math.exp %774 : vector<2x32xf32>
    %cst_215 = arith.constant 1.000000e+00 : f32
    %776 = vector.broadcast %cst_215 : f32 to vector<2x32xf32>
    %777 = arith.addf %776, %775 : vector<2x32xf32>
    %778 = arith.divf %776, %777 : vector<2x32xf32>
    %779 = vector.extract_strided_slice %766 {offsets = [0, 64], sizes = [2, 32], strides = [1, 1]} : vector<2x128xf32> to vector<2x32xf32>
    %780 = math.tanh %779 : vector<2x32xf32>
    %781 = vector.extract_strided_slice %766 {offsets = [0, 96], sizes = [2, 32], strides = [1, 1]} : vector<2x128xf32> to vector<2x32xf32>
    %782 = arith.negf %781 : vector<2x32xf32>
    %783 = math.exp %782 : vector<2x32xf32>
    %cst_216 = arith.constant 1.000000e+00 : f32
    %784 = vector.broadcast %cst_216 : f32 to vector<2x32xf32>
    %785 = arith.addf %784, %783 : vector<2x32xf32>
    %786 = arith.divf %784, %785 : vector<2x32xf32>
    %787 = arith.mulf %778, %723 : vector<2x32xf32>
    %788 = arith.mulf %772, %780 : vector<2x32xf32>
    %789 = arith.addf %787, %788 : vector<2x32xf32>
    %790 = math.tanh %789 : vector<2x32xf32>
    %791 = arith.mulf %786, %790 : vector<2x32xf32>
    %c11_217 = arith.constant 11 : index
    %c0_218 = arith.constant 0 : index
    %c0_219 = arith.constant 0 : index
    %792 = vector.load %arg6[%c11_217, %c0_218, %c0_219] : memref<12x2x32xf32, #tpu.memory_space<vmem>>, vector<1x2x32xf32>
    %793 = vector.shape_cast %792 : vector<1x2x32xf32> to vector<2x32xf32>
    %794 = vector.shape_cast %765 : vector<2x32xf32> to vector<1x2x32xf32>
    tpu.vector_store %arg6[%c11_217, %c0_218, %c0_219], %794 {strides = array<i32>} : memref<12x2x32xf32, #tpu.memory_space<vmem>>, vector<1x2x32xf32>,
    %c0_220 = arith.constant 0 : index
    %c0_221 = arith.constant 0 : index
    %c0_222 = arith.constant 0 : index
    %795 = vector.load %arg7[%c0_220, %c0_221, %c0_222] : memref<12x2x32xf32, #tpu.memory_space<vmem>>, vector<1x2x32xf32>
    %796 = vector.shape_cast %795 : vector<1x2x32xf32> to vector<2x32xf32>
    %797 = vector.shape_cast %791 : vector<2x32xf32> to vector<1x2x32xf32>
    tpu.vector_store %arg7[%c0_220, %c0_221, %c0_222], %797 {strides = array<i32>} : memref<12x2x32xf32, #tpu.memory_space<vmem>>, vector<1x2x32xf32>,
    %c0_223 = arith.constant 0 : index
    %c0_224 = arith.constant 0 : index
    %798 = vector.load %arg3[%c0_223, %c0_224] : memref<64x32xf32, #tpu.memory_space<vmem>>, vector<64x32xf32>
    %c0_225 = arith.constant 0 : index
    %c0_226 = arith.constant 0 : index
    %799 = vector.load %arg4[%c0_225, %c0_226] : memref<1x32xf32, #tpu.memory_space<vmem>>, vector<1x32xf32>
    %c0_227 = arith.constant 0 : index
    %c0_228 = arith.constant 0 : index
    %c0_229 = arith.constant 0 : index
    %800 = vector.load %arg6[%c0_227, %c0_228, %c0_229] : memref<12x2x32xf32, #tpu.memory_space<vmem>>, vector<1x2x32xf32>
    %801 = vector.shape_cast %800 : vector<1x2x32xf32> to vector<2x32xf32>
    %c0_230 = arith.constant 0 : index
    %c0_231 = arith.constant 0 : index
    %c0_232 = arith.constant 0 : index
    %802 = vector.load %arg7[%c0_230, %c0_231, %c0_232] : memref<12x2x32xf32, #tpu.memory_space<vmem>>, vector<1x2x32xf32>
    %803 = vector.shape_cast %802 : vector<1x2x32xf32> to vector<2x32xf32>
    %804 = tpu.concatenate %801, %803 in 1 : vector<2x32xf32>, vector<2x32xf32> -> vector<2x64xf32>
    %cst_233 = arith.constant dense<0.000000e+00> : vector<2x32xf32>
    %805 = tpu.matmul %804, %798, %cst_233 {dimension_numbers = #tpu.dot_dimension_numbers<[1], [0], [0], [1], [0, 0, 1, 1], [], []>} : vector<2x64xf32>, vector<64x32xf32>, vector<2x32xf32> -> vector<2x32xf32>
    %806 = vector.broadcast %799 : vector<1x32xf32> to vector<2x32xf32>
    %807 = arith.addf %805, %806 : vector<2x32xf32>
    %c0_234 = arith.constant 0 : index
    %c0_235 = arith.constant 0 : index
    %c0_236 = arith.constant 0 : index
    %808 = vector.load %arg5[%c0_234, %c0_235, %c0_236] : memref<12x2x32xf32, #tpu.memory_space<vmem>>, vector<1x2x32xf32>
    %809 = vector.shape_cast %808 : vector<1x2x32xf32> to vector<2x32xf32>
    %810 = vector.shape_cast %807 : vector<2x32xf32> to vector<1x2x32xf32>
    tpu.vector_store %arg5[%c0_234, %c0_235, %c0_236], %810 {strides = array<i32>} : memref<12x2x32xf32, #tpu.memory_space<vmem>>, vector<1x2x32xf32>,
    %c1_237 = arith.constant 1 : index
    %c0_238 = arith.constant 0 : index
    %c0_239 = arith.constant 0 : index
    %811 = vector.load %arg6[%c1_237, %c0_238, %c0_239] : memref<12x2x32xf32, #tpu.memory_space<vmem>>, vector<1x2x32xf32>
    %812 = vector.shape_cast %811 : vector<1x2x32xf32> to vector<2x32xf32>
    %c1_240 = arith.constant 1 : index
    %c0_241 = arith.constant 0 : index
    %c0_242 = arith.constant 0 : index
    %813 = vector.load %arg7[%c1_240, %c0_241, %c0_242] : memref<12x2x32xf32, #tpu.memory_space<vmem>>, vector<1x2x32xf32>
    %814 = vector.shape_cast %813 : vector<1x2x32xf32> to vector<2x32xf32>
    %815 = tpu.concatenate %812, %814 in 1 : vector<2x32xf32>, vector<2x32xf32> -> vector<2x64xf32>
    %cst_243 = arith.constant dense<0.000000e+00> : vector<2x32xf32>
    %816 = tpu.matmul %815, %798, %cst_243 {dimension_numbers = #tpu.dot_dimension_numbers<[1], [0], [0], [1], [0, 0, 1, 1], [], []>} : vector<2x64xf32>, vector<64x32xf32>, vector<2x32xf32> -> vector<2x32xf32>
    %817 = vector.broadcast %799 : vector<1x32xf32> to vector<2x32xf32>
    %818 = arith.addf %816, %817 : vector<2x32xf32>
    %c1_244 = arith.constant 1 : index
    %c0_245 = arith.constant 0 : index
    %c0_246 = arith.constant 0 : index
    %819 = vector.load %arg5[%c1_244, %c0_245, %c0_246] : memref<12x2x32xf32, #tpu.memory_space<vmem>>, vector<1x2x32xf32>
    %820 = vector.shape_cast %819 : vector<1x2x32xf32> to vector<2x32xf32>
    %821 = vector.shape_cast %818 : vector<2x32xf32> to vector<1x2x32xf32>
    tpu.vector_store %arg5[%c1_244, %c0_245, %c0_246], %821 {strides = array<i32>} : memref<12x2x32xf32, #tpu.memory_space<vmem>>, vector<1x2x32xf32>,
    %c2_247 = arith.constant 2 : index
    %c0_248 = arith.constant 0 : index
    %c0_249 = arith.constant 0 : index
    %822 = vector.load %arg6[%c2_247, %c0_248, %c0_249] : memref<12x2x32xf32, #tpu.memory_space<vmem>>, vector<1x2x32xf32>
    %823 = vector.shape_cast %822 : vector<1x2x32xf32> to vector<2x32xf32>
    %c2_250 = arith.constant 2 : index
    %c0_251 = arith.constant 0 : index
    %c0_252 = arith.constant 0 : index
    %824 = vector.load %arg7[%c2_250, %c0_251, %c0_252] : memref<12x2x32xf32, #tpu.memory_space<vmem>>, vector<1x2x32xf32>
    %825 = vector.shape_cast %824 : vector<1x2x32xf32> to vector<2x32xf32>
    %826 = tpu.concatenate %823, %825 in 1 : vector<2x32xf32>, vector<2x32xf32> -> vector<2x64xf32>
    %cst_253 = arith.constant dense<0.000000e+00> : vector<2x32xf32>
    %827 = tpu.matmul %826, %798, %cst_253 {dimension_numbers = #tpu.dot_dimension_numbers<[1], [0], [0], [1], [0, 0, 1, 1], [], []>} : vector<2x64xf32>, vector<64x32xf32>, vector<2x32xf32> -> vector<2x32xf32>
    %828 = vector.broadcast %799 : vector<1x32xf32> to vector<2x32xf32>
    %829 = arith.addf %827, %828 : vector<2x32xf32>
    %c2_254 = arith.constant 2 : index
    %c0_255 = arith.constant 0 : index
    %c0_256 = arith.constant 0 : index
    %830 = vector.load %arg5[%c2_254, %c0_255, %c0_256] : memref<12x2x32xf32, #tpu.memory_space<vmem>>, vector<1x2x32xf32>
    %831 = vector.shape_cast %830 : vector<1x2x32xf32> to vector<2x32xf32>
    %832 = vector.shape_cast %829 : vector<2x32xf32> to vector<1x2x32xf32>
    tpu.vector_store %arg5[%c2_254, %c0_255, %c0_256], %832 {strides = array<i32>} : memref<12x2x32xf32, #tpu.memory_space<vmem>>, vector<1x2x32xf32>,
    %c3_257 = arith.constant 3 : index
    %c0_258 = arith.constant 0 : index
    %c0_259 = arith.constant 0 : index
    %833 = vector.load %arg6[%c3_257, %c0_258, %c0_259] : memref<12x2x32xf32, #tpu.memory_space<vmem>>, vector<1x2x32xf32>
    %834 = vector.shape_cast %833 : vector<1x2x32xf32> to vector<2x32xf32>
    %c3_260 = arith.constant 3 : index
    %c0_261 = arith.constant 0 : index
    %c0_262 = arith.constant 0 : index
    %835 = vector.load %arg7[%c3_260, %c0_261, %c0_262] : memref<12x2x32xf32, #tpu.memory_space<vmem>>, vector<1x2x32xf32>
    %836 = vector.shape_cast %835 : vector<1x2x32xf32> to vector<2x32xf32>
    %837 = tpu.concatenate %834, %836 in 1 : vector<2x32xf32>, vector<2x32xf32> -> vector<2x64xf32>
    %cst_263 = arith.constant dense<0.000000e+00> : vector<2x32xf32>
    %838 = tpu.matmul %837, %798, %cst_263 {dimension_numbers = #tpu.dot_dimension_numbers<[1], [0], [0], [1], [0, 0, 1, 1], [], []>} : vector<2x64xf32>, vector<64x32xf32>, vector<2x32xf32> -> vector<2x32xf32>
    %839 = vector.broadcast %799 : vector<1x32xf32> to vector<2x32xf32>
    %840 = arith.addf %838, %839 : vector<2x32xf32>
    %c3_264 = arith.constant 3 : index
    %c0_265 = arith.constant 0 : index
    %c0_266 = arith.constant 0 : index
    %841 = vector.load %arg5[%c3_264, %c0_265, %c0_266] : memref<12x2x32xf32, #tpu.memory_space<vmem>>, vector<1x2x32xf32>
    %842 = vector.shape_cast %841 : vector<1x2x32xf32> to vector<2x32xf32>
    %843 = vector.shape_cast %840 : vector<2x32xf32> to vector<1x2x32xf32>
    tpu.vector_store %arg5[%c3_264, %c0_265, %c0_266], %843 {strides = array<i32>} : memref<12x2x32xf32, #tpu.memory_space<vmem>>, vector<1x2x32xf32>,
    %c4_267 = arith.constant 4 : index
    %c0_268 = arith.constant 0 : index
    %c0_269 = arith.constant 0 : index
    %844 = vector.load %arg6[%c4_267, %c0_268, %c0_269] : memref<12x2x32xf32, #tpu.memory_space<vmem>>, vector<1x2x32xf32>
    %845 = vector.shape_cast %844 : vector<1x2x32xf32> to vector<2x32xf32>
    %c4_270 = arith.constant 4 : index
    %c0_271 = arith.constant 0 : index
    %c0_272 = arith.constant 0 : index
    %846 = vector.load %arg7[%c4_270, %c0_271, %c0_272] : memref<12x2x32xf32, #tpu.memory_space<vmem>>, vector<1x2x32xf32>
    %847 = vector.shape_cast %846 : vector<1x2x32xf32> to vector<2x32xf32>
    %848 = tpu.concatenate %845, %847 in 1 : vector<2x32xf32>, vector<2x32xf32> -> vector<2x64xf32>
    %cst_273 = arith.constant dense<0.000000e+00> : vector<2x32xf32>
    %849 = tpu.matmul %848, %798, %cst_273 {dimension_numbers = #tpu.dot_dimension_numbers<[1], [0], [0], [1], [0, 0, 1, 1], [], []>} : vector<2x64xf32>, vector<64x32xf32>, vector<2x32xf32> -> vector<2x32xf32>
    %850 = vector.broadcast %799 : vector<1x32xf32> to vector<2x32xf32>
    %851 = arith.addf %849, %850 : vector<2x32xf32>
    %c4_274 = arith.constant 4 : index
    %c0_275 = arith.constant 0 : index
    %c0_276 = arith.constant 0 : index
    %852 = vector.load %arg5[%c4_274, %c0_275, %c0_276] : memref<12x2x32xf32, #tpu.memory_space<vmem>>, vector<1x2x32xf32>
    %853 = vector.shape_cast %852 : vector<1x2x32xf32> to vector<2x32xf32>
    %854 = vector.shape_cast %851 : vector<2x32xf32> to vector<1x2x32xf32>
    tpu.vector_store %arg5[%c4_274, %c0_275, %c0_276], %854 {strides = array<i32>} : memref<12x2x32xf32, #tpu.memory_space<vmem>>, vector<1x2x32xf32>,
    %c5_277 = arith.constant 5 : index
    %c0_278 = arith.constant 0 : index
    %c0_279 = arith.constant 0 : index
    %855 = vector.load %arg6[%c5_277, %c0_278, %c0_279] : memref<12x2x32xf32, #tpu.memory_space<vmem>>, vector<1x2x32xf32>
    %856 = vector.shape_cast %855 : vector<1x2x32xf32> to vector<2x32xf32>
    %c5_280 = arith.constant 5 : index
    %c0_281 = arith.constant 0 : index
    %c0_282 = arith.constant 0 : index
    %857 = vector.load %arg7[%c5_280, %c0_281, %c0_282] : memref<12x2x32xf32, #tpu.memory_space<vmem>>, vector<1x2x32xf32>
    %858 = vector.shape_cast %857 : vector<1x2x32xf32> to vector<2x32xf32>
    %859 = tpu.concatenate %856, %858 in 1 : vector<2x32xf32>, vector<2x32xf32> -> vector<2x64xf32>
    %cst_283 = arith.constant dense<0.000000e+00> : vector<2x32xf32>
    %860 = tpu.matmul %859, %798, %cst_283 {dimension_numbers = #tpu.dot_dimension_numbers<[1], [0], [0], [1], [0, 0, 1, 1], [], []>} : vector<2x64xf32>, vector<64x32xf32>, vector<2x32xf32> -> vector<2x32xf32>
    %861 = vector.broadcast %799 : vector<1x32xf32> to vector<2x32xf32>
    %862 = arith.addf %860, %861 : vector<2x32xf32>
    %c5_284 = arith.constant 5 : index
    %c0_285 = arith.constant 0 : index
    %c0_286 = arith.constant 0 : index
    %863 = vector.load %arg5[%c5_284, %c0_285, %c0_286] : memref<12x2x32xf32, #tpu.memory_space<vmem>>, vector<1x2x32xf32>
    %864 = vector.shape_cast %863 : vector<1x2x32xf32> to vector<2x32xf32>
    %865 = vector.shape_cast %862 : vector<2x32xf32> to vector<1x2x32xf32>
    tpu.vector_store %arg5[%c5_284, %c0_285, %c0_286], %865 {strides = array<i32>} : memref<12x2x32xf32, #tpu.memory_space<vmem>>, vector<1x2x32xf32>,
    %c6_287 = arith.constant 6 : index
    %c0_288 = arith.constant 0 : index
    %c0_289 = arith.constant 0 : index
    %866 = vector.load %arg6[%c6_287, %c0_288, %c0_289] : memref<12x2x32xf32, #tpu.memory_space<vmem>>, vector<1x2x32xf32>
    %867 = vector.shape_cast %866 : vector<1x2x32xf32> to vector<2x32xf32>
    %c6_290 = arith.constant 6 : index
    %c0_291 = arith.constant 0 : index
    %c0_292 = arith.constant 0 : index
    %868 = vector.load %arg7[%c6_290, %c0_291, %c0_292] : memref<12x2x32xf32, #tpu.memory_space<vmem>>, vector<1x2x32xf32>
    %869 = vector.shape_cast %868 : vector<1x2x32xf32> to vector<2x32xf32>
    %870 = tpu.concatenate %867, %869 in 1 : vector<2x32xf32>, vector<2x32xf32> -> vector<2x64xf32>
    %cst_293 = arith.constant dense<0.000000e+00> : vector<2x32xf32>
    %871 = tpu.matmul %870, %798, %cst_293 {dimension_numbers = #tpu.dot_dimension_numbers<[1], [0], [0], [1], [0, 0, 1, 1], [], []>} : vector<2x64xf32>, vector<64x32xf32>, vector<2x32xf32> -> vector<2x32xf32>
    %872 = vector.broadcast %799 : vector<1x32xf32> to vector<2x32xf32>
    %873 = arith.addf %871, %872 : vector<2x32xf32>
    %c6_294 = arith.constant 6 : index
    %c0_295 = arith.constant 0 : index
    %c0_296 = arith.constant 0 : index
    %874 = vector.load %arg5[%c6_294, %c0_295, %c0_296] : memref<12x2x32xf32, #tpu.memory_space<vmem>>, vector<1x2x32xf32>
    %875 = vector.shape_cast %874 : vector<1x2x32xf32> to vector<2x32xf32>
    %876 = vector.shape_cast %873 : vector<2x32xf32> to vector<1x2x32xf32>
    tpu.vector_store %arg5[%c6_294, %c0_295, %c0_296], %876 {strides = array<i32>} : memref<12x2x32xf32, #tpu.memory_space<vmem>>, vector<1x2x32xf32>,
    %c7_297 = arith.constant 7 : index
    %c0_298 = arith.constant 0 : index
    %c0_299 = arith.constant 0 : index
    %877 = vector.load %arg6[%c7_297, %c0_298, %c0_299] : memref<12x2x32xf32, #tpu.memory_space<vmem>>, vector<1x2x32xf32>
    %878 = vector.shape_cast %877 : vector<1x2x32xf32> to vector<2x32xf32>
    %c7_300 = arith.constant 7 : index
    %c0_301 = arith.constant 0 : index
    %c0_302 = arith.constant 0 : index
    %879 = vector.load %arg7[%c7_300, %c0_301, %c0_302] : memref<12x2x32xf32, #tpu.memory_space<vmem>>, vector<1x2x32xf32>
    %880 = vector.shape_cast %879 : vector<1x2x32xf32> to vector<2x32xf32>
    %881 = tpu.concatenate %878, %880 in 1 : vector<2x32xf32>, vector<2x32xf32> -> vector<2x64xf32>
    %cst_303 = arith.constant dense<0.000000e+00> : vector<2x32xf32>
    %882 = tpu.matmul %881, %798, %cst_303 {dimension_numbers = #tpu.dot_dimension_numbers<[1], [0], [0], [1], [0, 0, 1, 1], [], []>} : vector<2x64xf32>, vector<64x32xf32>, vector<2x32xf32> -> vector<2x32xf32>
    %883 = vector.broadcast %799 : vector<1x32xf32> to vector<2x32xf32>
    %884 = arith.addf %882, %883 : vector<2x32xf32>
    %c7_304 = arith.constant 7 : index
    %c0_305 = arith.constant 0 : index
    %c0_306 = arith.constant 0 : index
    %885 = vector.load %arg5[%c7_304, %c0_305, %c0_306] : memref<12x2x32xf32, #tpu.memory_space<vmem>>, vector<1x2x32xf32>
    %886 = vector.shape_cast %885 : vector<1x2x32xf32> to vector<2x32xf32>
    %887 = vector.shape_cast %884 : vector<2x32xf32> to vector<1x2x32xf32>
    tpu.vector_store %arg5[%c7_304, %c0_305, %c0_306], %887 {strides = array<i32>} : memref<12x2x32xf32, #tpu.memory_space<vmem>>, vector<1x2x32xf32>,
    %c8_307 = arith.constant 8 : index
    %c0_308 = arith.constant 0 : index
    %c0_309 = arith.constant 0 : index
    %888 = vector.load %arg6[%c8_307, %c0_308, %c0_309] : memref<12x2x32xf32, #tpu.memory_space<vmem>>, vector<1x2x32xf32>
    %889 = vector.shape_cast %888 : vector<1x2x32xf32> to vector<2x32xf32>
    %c8_310 = arith.constant 8 : index
    %c0_311 = arith.constant 0 : index
    %c0_312 = arith.constant 0 : index
    %890 = vector.load %arg7[%c8_310, %c0_311, %c0_312] : memref<12x2x32xf32, #tpu.memory_space<vmem>>, vector<1x2x32xf32>
    %891 = vector.shape_cast %890 : vector<1x2x32xf32> to vector<2x32xf32>
    %892 = tpu.concatenate %889, %891 in 1 : vector<2x32xf32>, vector<2x32xf32> -> vector<2x64xf32>
    %cst_313 = arith.constant dense<0.000000e+00> : vector<2x32xf32>
    %893 = tpu.matmul %892, %798, %cst_313 {dimension_numbers = #tpu.dot_dimension_numbers<[1], [0], [0], [1], [0, 0, 1, 1], [], []>} : vector<2x64xf32>, vector<64x32xf32>, vector<2x32xf32> -> vector<2x32xf32>
    %894 = vector.broadcast %799 : vector<1x32xf32> to vector<2x32xf32>
    %895 = arith.addf %893, %894 : vector<2x32xf32>
    %c8_314 = arith.constant 8 : index
    %c0_315 = arith.constant 0 : index
    %c0_316 = arith.constant 0 : index
    %896 = vector.load %arg5[%c8_314, %c0_315, %c0_316] : memref<12x2x32xf32, #tpu.memory_space<vmem>>, vector<1x2x32xf32>
    %897 = vector.shape_cast %896 : vector<1x2x32xf32> to vector<2x32xf32>
    %898 = vector.shape_cast %895 : vector<2x32xf32> to vector<1x2x32xf32>
    tpu.vector_store %arg5[%c8_314, %c0_315, %c0_316], %898 {strides = array<i32>} : memref<12x2x32xf32, #tpu.memory_space<vmem>>, vector<1x2x32xf32>,
    %c9_317 = arith.constant 9 : index
    %c0_318 = arith.constant 0 : index
    %c0_319 = arith.constant 0 : index
    %899 = vector.load %arg6[%c9_317, %c0_318, %c0_319] : memref<12x2x32xf32, #tpu.memory_space<vmem>>, vector<1x2x32xf32>
    %900 = vector.shape_cast %899 : vector<1x2x32xf32> to vector<2x32xf32>
    %c9_320 = arith.constant 9 : index
    %c0_321 = arith.constant 0 : index
    %c0_322 = arith.constant 0 : index
    %901 = vector.load %arg7[%c9_320, %c0_321, %c0_322] : memref<12x2x32xf32, #tpu.memory_space<vmem>>, vector<1x2x32xf32>
    %902 = vector.shape_cast %901 : vector<1x2x32xf32> to vector<2x32xf32>
    %903 = tpu.concatenate %900, %902 in 1 : vector<2x32xf32>, vector<2x32xf32> -> vector<2x64xf32>
    %cst_323 = arith.constant dense<0.000000e+00> : vector<2x32xf32>
    %904 = tpu.matmul %903, %798, %cst_323 {dimension_numbers = #tpu.dot_dimension_numbers<[1], [0], [0], [1], [0, 0, 1, 1], [], []>} : vector<2x64xf32>, vector<64x32xf32>, vector<2x32xf32> -> vector<2x32xf32>
    %905 = vector.broadcast %799 : vector<1x32xf32> to vector<2x32xf32>
    %906 = arith.addf %904, %905 : vector<2x32xf32>
    %c9_324 = arith.constant 9 : index
    %c0_325 = arith.constant 0 : index
    %c0_326 = arith.constant 0 : index
    %907 = vector.load %arg5[%c9_324, %c0_325, %c0_326] : memref<12x2x32xf32, #tpu.memory_space<vmem>>, vector<1x2x32xf32>
    %908 = vector.shape_cast %907 : vector<1x2x32xf32> to vector<2x32xf32>
    %909 = vector.shape_cast %906 : vector<2x32xf32> to vector<1x2x32xf32>
    tpu.vector_store %arg5[%c9_324, %c0_325, %c0_326], %909 {strides = array<i32>} : memref<12x2x32xf32, #tpu.memory_space<vmem>>, vector<1x2x32xf32>,
    %c10_327 = arith.constant 10 : index
    %c0_328 = arith.constant 0 : index
    %c0_329 = arith.constant 0 : index
    %910 = vector.load %arg6[%c10_327, %c0_328, %c0_329] : memref<12x2x32xf32, #tpu.memory_space<vmem>>, vector<1x2x32xf32>
    %911 = vector.shape_cast %910 : vector<1x2x32xf32> to vector<2x32xf32>
    %c10_330 = arith.constant 10 : index
    %c0_331 = arith.constant 0 : index
    %c0_332 = arith.constant 0 : index
    %912 = vector.load %arg7[%c10_330, %c0_331, %c0_332] : memref<12x2x32xf32, #tpu.memory_space<vmem>>, vector<1x2x32xf32>
    %913 = vector.shape_cast %912 : vector<1x2x32xf32> to vector<2x32xf32>
    %914 = tpu.concatenate %911, %913 in 1 : vector<2x32xf32>, vector<2x32xf32> -> vector<2x64xf32>
    %cst_333 = arith.constant dense<0.000000e+00> : vector<2x32xf32>
    %915 = tpu.matmul %914, %798, %cst_333 {dimension_numbers = #tpu.dot_dimension_numbers<[1], [0], [0], [1], [0, 0, 1, 1], [], []>} : vector<2x64xf32>, vector<64x32xf32>, vector<2x32xf32> -> vector<2x32xf32>
    %916 = vector.broadcast %799 : vector<1x32xf32> to vector<2x32xf32>
    %917 = arith.addf %915, %916 : vector<2x32xf32>
    %c10_334 = arith.constant 10 : index
    %c0_335 = arith.constant 0 : index
    %c0_336 = arith.constant 0 : index
    %918 = vector.load %arg5[%c10_334, %c0_335, %c0_336] : memref<12x2x32xf32, #tpu.memory_space<vmem>>, vector<1x2x32xf32>
    %919 = vector.shape_cast %918 : vector<1x2x32xf32> to vector<2x32xf32>
    %920 = vector.shape_cast %917 : vector<2x32xf32> to vector<1x2x32xf32>
    tpu.vector_store %arg5[%c10_334, %c0_335, %c0_336], %920 {strides = array<i32>} : memref<12x2x32xf32, #tpu.memory_space<vmem>>, vector<1x2x32xf32>,
    %c11_337 = arith.constant 11 : index
    %c0_338 = arith.constant 0 : index
    %c0_339 = arith.constant 0 : index
    %921 = vector.load %arg6[%c11_337, %c0_338, %c0_339] : memref<12x2x32xf32, #tpu.memory_space<vmem>>, vector<1x2x32xf32>
    %922 = vector.shape_cast %921 : vector<1x2x32xf32> to vector<2x32xf32>
    %c11_340 = arith.constant 11 : index
    %c0_341 = arith.constant 0 : index
    %c0_342 = arith.constant 0 : index
    %923 = vector.load %arg7[%c11_340, %c0_341, %c0_342] : memref<12x2x32xf32, #tpu.memory_space<vmem>>, vector<1x2x32xf32>
    %924 = vector.shape_cast %923 : vector<1x2x32xf32> to vector<2x32xf32>
    %925 = tpu.concatenate %922, %924 in 1 : vector<2x32xf32>, vector<2x32xf32> -> vector<2x64xf32>
    %cst_343 = arith.constant dense<0.000000e+00> : vector<2x32xf32>
    %926 = tpu.matmul %925, %798, %cst_343 {dimension_numbers = #tpu.dot_dimension_numbers<[1], [0], [0], [1], [0, 0, 1, 1], [], []>} : vector<2x64xf32>, vector<64x32xf32>, vector<2x32xf32> -> vector<2x32xf32>
    %927 = vector.broadcast %799 : vector<1x32xf32> to vector<2x32xf32>
    %928 = arith.addf %926, %927 : vector<2x32xf32>
    %c11_344 = arith.constant 11 : index
    %c0_345 = arith.constant 0 : index
    %c0_346 = arith.constant 0 : index
    %929 = vector.load %arg5[%c11_344, %c0_345, %c0_346] : memref<12x2x32xf32, #tpu.memory_space<vmem>>, vector<1x2x32xf32>
    %930 = vector.shape_cast %929 : vector<1x2x32xf32> to vector<2x32xf32>
    %931 = vector.shape_cast %928 : vector<2x32xf32> to vector<1x2x32xf32>
    tpu.vector_store %arg5[%c11_344, %c0_345, %c0_346], %931 {strides = array<i32>} : memref<12x2x32xf32, #tpu.memory_space<vmem>>, vector<1x2x32xf32>,
    return
  }
}

module attributes {stable_mosaic.version = 11 : i64} {
  func.func @_decode_kernel(%arg0: memref<2x12x32xf32, #tpu.memory_space<vmem>>, %arg1: memref<128x32xf32, #tpu.memory_space<vmem>>, %arg2: memref<1x1x32xf32, #tpu.memory_space<vmem>>, %arg3: memref<1x1xf32, #tpu.memory_space<vmem>>, %arg4: memref<64x32xf32, #tpu.memory_space<vmem>>, %arg5: memref<1x32xf32, #tpu.memory_space<vmem>>, %arg6: memref<64x192xf32, #tpu.memory_space<vmem>>, %arg7: memref<1x192xf32, #tpu.memory_space<vmem>>, %arg8: memref<32x128xf32, #tpu.memory_space<vmem>>, %arg9: memref<1x128xf32, #tpu.memory_space<vmem>>, %arg10: memref<6x2x128xf32, #tpu.memory_space<vmem>>) attributes {dimension_semantics = [], scalar_prefetch = 0 : i64, scratch_operands = 0 : i64, tpu.core_type = #tpu.core_type<tc>} {
    %c0 = arith.constant 0 : index
    %c0_0 = arith.constant 0 : index
    %c0_1 = arith.constant 0 : index
    %0 = vector.load %arg0[%c0, %c0_0, %c0_1] : memref<2x12x32xf32, #tpu.memory_space<vmem>>, vector<2x12x32xf32>
    %c0_2 = arith.constant 0 : index
    %c0_3 = arith.constant 0 : index
    %1 = vector.load %arg1[%c0_2, %c0_3] : memref<128x32xf32, #tpu.memory_space<vmem>>, vector<128x32xf32>
    %c0_4 = arith.constant 0 : index
    %c0_5 = arith.constant 0 : index
    %c0_6 = arith.constant 0 : index
    %2 = vector.load %arg2[%c0_4, %c0_5, %c0_6] : memref<1x1x32xf32, #tpu.memory_space<vmem>>, vector<1x1x32xf32>
    %c0_7 = arith.constant 0 : index
    %c0_8 = arith.constant 0 : index
    %3 = vector.load %arg3[%c0_7, %c0_8] : memref<1x1xf32, #tpu.memory_space<vmem>>, vector<1x1xf32>
    %c0_9 = arith.constant 0 : index
    %c0_10 = arith.constant 0 : index
    %4 = vector.load %arg4[%c0_9, %c0_10] : memref<64x32xf32, #tpu.memory_space<vmem>>, vector<64x32xf32>
    %c0_11 = arith.constant 0 : index
    %c0_12 = arith.constant 0 : index
    %5 = vector.load %arg5[%c0_11, %c0_12] : memref<1x32xf32, #tpu.memory_space<vmem>>, vector<1x32xf32>
    %c0_13 = arith.constant 0 : index
    %c0_14 = arith.constant 0 : index
    %6 = vector.load %arg6[%c0_13, %c0_14] : memref<64x192xf32, #tpu.memory_space<vmem>>, vector<64x192xf32>
    %c0_15 = arith.constant 0 : index
    %c0_16 = arith.constant 0 : index
    %7 = vector.load %arg7[%c0_15, %c0_16] : memref<1x192xf32, #tpu.memory_space<vmem>>, vector<1x192xf32>
    %c0_17 = arith.constant 0 : index
    %c0_18 = arith.constant 0 : index
    %8 = vector.load %arg8[%c0_17, %c0_18] : memref<32x128xf32, #tpu.memory_space<vmem>>, vector<32x128xf32>
    %c0_19 = arith.constant 0 : index
    %c0_20 = arith.constant 0 : index
    %9 = vector.load %arg9[%c0_19, %c0_20] : memref<1x128xf32, #tpu.memory_space<vmem>>, vector<1x128xf32>
    %10 = tpu.iota {dimensions = array<i32: 1>} : vector<2x128xi32>
    %11 = arith.sitofp %10 : vector<2x128xi32> to vector<2x128xf32>
    %cst = arith.constant 1.100000e+01 : f32
    %12 = vector.broadcast %cst : f32 to vector<2x128xf32>
    %13 = arith.cmpf oeq, %11, %12 : vector<2x128xf32>
    %14 = arith.extui %13 : vector<2x128xi1> to vector<2x128xi32>
    %15 = arith.sitofp %14 : vector<2x128xi32> to vector<2x128xf32>
    %cst_21 = arith.constant 0.000000e+00 : f32
    %16 = vector.broadcast %cst_21 : f32 to vector<2x32xf32>
    %cst_22 = arith.constant dense<0.000000e+00> : vector<2x32xf32>
    %17 = tpu.matmul %15, %1, %cst_22 {dimension_numbers = #tpu.dot_dimension_numbers<[1], [0], [0], [1], [0, 0, 1, 1], [], []>} : vector<2x128xf32>, vector<128x32xf32>, vector<2x32xf32> -> vector<2x32xf32>
    %18 = vector.shape_cast %16 : vector<2x32xf32> to vector<2x1x32xf32>
    %19 = vector.broadcast %18 : vector<2x1x32xf32> to vector<2x12x32xf32>
    %20 = arith.addf %19, %0 : vector<2x12x32xf32>
    %21 = math.tanh %20 : vector<2x12x32xf32>
    %22 = vector.broadcast %2 : vector<1x1x32xf32> to vector<2x12x32xf32>
    %23 = arith.mulf %21, %22 : vector<2x12x32xf32>
    %cst_23 = arith.constant dense<0.000000e+00> : vector<2x12xf32>
    %24 = vector.multi_reduction <add>, %23, %cst_23 [2] : vector<2x12x32xf32> to vector<2x12xf32>
    %25 = vector.broadcast %3 : vector<1x1xf32> to vector<2x12xf32>
    %26 = arith.addf %24, %25 : vector<2x12xf32>
    %cst_24 = arith.constant dense<0xFF800000> : vector<2xf32>
    %27 = vector.multi_reduction <maximumf>, %26, %cst_24 [1] : vector<2x12xf32> to vector<2xf32>
    %28 = vector.shape_cast %27 : vector<2xf32> to vector<2x1xf32>
    %29 = vector.broadcast %28 : vector<2x1xf32> to vector<2x12xf32>
    %30 = arith.subf %26, %29 : vector<2x12xf32>
    %31 = math.exp %30 : vector<2x12xf32>
    %cst_25 = arith.constant dense<0.000000e+00> : vector<2xf32>
    %32 = vector.multi_reduction <add>, %31, %cst_25 [1] : vector<2x12xf32> to vector<2xf32>
    %33 = vector.shape_cast %32 : vector<2xf32> to vector<2x1xf32>
    %34 = tpu.reciprocal %33 {approx = true} : vector<2x1xf32> -> vector<2x1xf32>
    %35 = vector.broadcast %34 : vector<2x1xf32> to vector<2x12xf32>
    %36 = arith.mulf %31, %35 : vector<2x12xf32>
    %37 = vector.shape_cast %36 : vector<2x12xf32> to vector<2x12x1xf32>
    %38 = vector.broadcast %37 : vector<2x12x1xf32> to vector<2x12x32xf32>
    %39 = arith.mulf %38, %0 : vector<2x12x32xf32>
    %cst_26 = arith.constant dense<0.000000e+00> : vector<2x32xf32>
    %40 = vector.multi_reduction <add>, %39, %cst_26 [1] : vector<2x12x32xf32> to vector<2x32xf32>
    %41 = tpu.concatenate %17, %40 in 1 : vector<2x32xf32>, vector<2x32xf32> -> vector<2x64xf32>
    %cst_27 = arith.constant dense<0.000000e+00> : vector<2x32xf32>
    %42 = tpu.matmul %41, %4, %cst_27 {dimension_numbers = #tpu.dot_dimension_numbers<[1], [0], [0], [1], [0, 0, 1, 1], [], []>} : vector<2x64xf32>, vector<64x32xf32>, vector<2x32xf32> -> vector<2x32xf32>
    %43 = vector.broadcast %5 : vector<1x32xf32> to vector<2x32xf32>
    %44 = arith.addf %42, %43 : vector<2x32xf32>
    %cst_28 = arith.constant 0.000000e+00 : f32
    %45 = vector.broadcast %cst_28 : f32 to vector<2x32xf32>
    %46 = arith.maximumf %44, %45 : vector<2x32xf32>
    %47 = tpu.concatenate %46, %16 in 1 : vector<2x32xf32>, vector<2x32xf32> -> vector<2x64xf32>
    %cst_29 = arith.constant dense<0.000000e+00> : vector<2x192xf32>
    %48 = tpu.matmul %47, %6, %cst_29 {dimension_numbers = #tpu.dot_dimension_numbers<[1], [0], [0], [1], [0, 0, 1, 1], [], []>} : vector<2x64xf32>, vector<64x192xf32>, vector<2x192xf32> -> vector<2x192xf32>
    %49 = vector.broadcast %7 : vector<1x192xf32> to vector<2x192xf32>
    %50 = arith.addf %48, %49 : vector<2x192xf32>
    %51 = vector.extract_strided_slice %50 {offsets = [0, 0], sizes = [2, 32], strides = [1, 1]} : vector<2x192xf32> to vector<2x32xf32>
    %52 = vector.extract_strided_slice %50 {offsets = [0, 96], sizes = [2, 32], strides = [1, 1]} : vector<2x192xf32> to vector<2x32xf32>
    %53 = arith.addf %51, %52 : vector<2x32xf32>
    %54 = arith.negf %53 : vector<2x32xf32>
    %55 = math.exp %54 : vector<2x32xf32>
    %cst_30 = arith.constant 1.000000e+00 : f32
    %56 = vector.broadcast %cst_30 : f32 to vector<2x32xf32>
    %57 = arith.addf %56, %55 : vector<2x32xf32>
    %58 = arith.divf %56, %57 : vector<2x32xf32>
    %59 = vector.extract_strided_slice %50 {offsets = [0, 32], sizes = [2, 32], strides = [1, 1]} : vector<2x192xf32> to vector<2x32xf32>
    %60 = vector.extract_strided_slice %50 {offsets = [0, 128], sizes = [2, 32], strides = [1, 1]} : vector<2x192xf32> to vector<2x32xf32>
    %61 = arith.addf %59, %60 : vector<2x32xf32>
    %62 = arith.negf %61 : vector<2x32xf32>
    %63 = math.exp %62 : vector<2x32xf32>
    %cst_31 = arith.constant 1.000000e+00 : f32
    %64 = vector.broadcast %cst_31 : f32 to vector<2x32xf32>
    %65 = arith.addf %64, %63 : vector<2x32xf32>
    %66 = arith.divf %64, %65 : vector<2x32xf32>
    %67 = vector.extract_strided_slice %50 {offsets = [0, 64], sizes = [2, 32], strides = [1, 1]} : vector<2x192xf32> to vector<2x32xf32>
    %68 = vector.extract_strided_slice %50 {offsets = [0, 160], sizes = [2, 32], strides = [1, 1]} : vector<2x192xf32> to vector<2x32xf32>
    %69 = arith.mulf %58, %68 : vector<2x32xf32>
    %70 = arith.addf %67, %69 : vector<2x32xf32>
    %71 = math.tanh %70 : vector<2x32xf32>
    %cst_32 = arith.constant 1.000000e+00 : f32
    %72 = vector.broadcast %cst_32 : f32 to vector<2x32xf32>
    %73 = arith.subf %72, %66 : vector<2x32xf32>
    %74 = arith.mulf %73, %71 : vector<2x32xf32>
    %75 = arith.mulf %66, %16 : vector<2x32xf32>
    %76 = arith.addf %74, %75 : vector<2x32xf32>
    %cst_33 = arith.constant dense<0.000000e+00> : vector<2x128xf32>
    %77 = tpu.matmul %76, %8, %cst_33 {dimension_numbers = #tpu.dot_dimension_numbers<[1], [0], [0], [1], [0, 0, 1, 1], [], []>} : vector<2x32xf32>, vector<32x128xf32>, vector<2x128xf32> -> vector<2x128xf32>
    %78 = vector.broadcast %9 : vector<1x128xf32> to vector<2x128xf32>
    %79 = arith.addf %77, %78 : vector<2x128xf32>
    %cst_34 = arith.constant dense<0xFF800000> : vector<2xf32>
    %80 = vector.multi_reduction <maximumf>, %79, %cst_34 [1] : vector<2x128xf32> to vector<2xf32>
    %81 = vector.shape_cast %80 : vector<2xf32> to vector<2x1xf32>
    %82 = vector.broadcast %81 : vector<2x1xf32> to vector<2x128xf32>
    %83 = arith.subf %79, %82 : vector<2x128xf32>
    %84 = math.exp %83 : vector<2x128xf32>
    %cst_35 = arith.constant dense<0.000000e+00> : vector<2xf32>
    %85 = vector.multi_reduction <add>, %84, %cst_35 [1] : vector<2x128xf32> to vector<2xf32>
    %86 = vector.shape_cast %85 : vector<2xf32> to vector<2x1xf32>
    %87 = math.log %86 : vector<2x1xf32>
    %88 = arith.addf %81, %87 : vector<2x1xf32>
    %89 = vector.broadcast %88 : vector<2x1xf32> to vector<2x128xf32>
    %90 = arith.subf %79, %89 : vector<2x128xf32>
    %91 = math.exp %90 : vector<2x128xf32>
    %c0_36 = arith.constant 0 : index
    %c0_37 = arith.constant 0 : index
    %c0_38 = arith.constant 0 : index
    %92 = vector.load %arg10[%c0_36, %c0_37, %c0_38] : memref<6x2x128xf32, #tpu.memory_space<vmem>>, vector<1x2x128xf32>
    %93 = vector.shape_cast %92 : vector<1x2x128xf32> to vector<2x128xf32>
    %94 = vector.shape_cast %91 : vector<2x128xf32> to vector<1x2x128xf32>
    tpu.vector_store %arg10[%c0_36, %c0_37, %c0_38], %94 {strides = array<i32>} : memref<6x2x128xf32, #tpu.memory_space<vmem>>, vector<1x2x128xf32>,
    %cst_39 = arith.constant dense<0xFF800000> : vector<2xf32>
    %95 = vector.multi_reduction <maximumf>, %90, %cst_39 [1] : vector<2x128xf32> to vector<2xf32>
    %96 = vector.shape_cast %95 : vector<2xf32> to vector<2x1xf32>
    %97 = vector.broadcast %96 : vector<2x1xf32> to vector<2x128xf32>
    %98 = arith.cmpf oeq, %90, %97 : vector<2x128xf32>
    %cst_40 = arith.constant 1.280000e+02 : f32
    %99 = vector.broadcast %cst_40 : f32 to vector<2x128xf32>
    %100 = arith.select %98, %11, %99 : vector<2x128xi1>, vector<2x128xf32>
    %cst_41 = arith.constant dense<0x7F800000> : vector<2xf32>
    %101 = vector.multi_reduction <minimumf>, %100, %cst_41 [1] : vector<2x128xf32> to vector<2xf32>
    %102 = vector.shape_cast %101 : vector<2xf32> to vector<2x1xf32>
    %103 = vector.broadcast %102 : vector<2x1xf32> to vector<2x128xf32>
    %104 = arith.cmpf oeq, %11, %103 : vector<2x128xf32>
    %105 = arith.extui %104 : vector<2x128xi1> to vector<2x128xi32>
    %106 = arith.sitofp %105 : vector<2x128xi32> to vector<2x128xf32>
    %cst_42 = arith.constant dense<0.000000e+00> : vector<2x32xf32>
    %107 = tpu.matmul %106, %1, %cst_42 {dimension_numbers = #tpu.dot_dimension_numbers<[1], [0], [0], [1], [0, 0, 1, 1], [], []>} : vector<2x128xf32>, vector<128x32xf32>, vector<2x32xf32> -> vector<2x32xf32>
    %108 = vector.shape_cast %76 : vector<2x32xf32> to vector<2x1x32xf32>
    %109 = vector.broadcast %108 : vector<2x1x32xf32> to vector<2x12x32xf32>
    %110 = arith.addf %109, %0 : vector<2x12x32xf32>
    %111 = math.tanh %110 : vector<2x12x32xf32>
    %112 = vector.broadcast %2 : vector<1x1x32xf32> to vector<2x12x32xf32>
    %113 = arith.mulf %111, %112 : vector<2x12x32xf32>
    %cst_43 = arith.constant dense<0.000000e+00> : vector<2x12xf32>
    %114 = vector.multi_reduction <add>, %113, %cst_43 [2] : vector<2x12x32xf32> to vector<2x12xf32>
    %115 = vector.broadcast %3 : vector<1x1xf32> to vector<2x12xf32>
    %116 = arith.addf %114, %115 : vector<2x12xf32>
    %cst_44 = arith.constant dense<0xFF800000> : vector<2xf32>
    %117 = vector.multi_reduction <maximumf>, %116, %cst_44 [1] : vector<2x12xf32> to vector<2xf32>
    %118 = vector.shape_cast %117 : vector<2xf32> to vector<2x1xf32>
    %119 = vector.broadcast %118 : vector<2x1xf32> to vector<2x12xf32>
    %120 = arith.subf %116, %119 : vector<2x12xf32>
    %121 = math.exp %120 : vector<2x12xf32>
    %cst_45 = arith.constant dense<0.000000e+00> : vector<2xf32>
    %122 = vector.multi_reduction <add>, %121, %cst_45 [1] : vector<2x12xf32> to vector<2xf32>
    %123 = vector.shape_cast %122 : vector<2xf32> to vector<2x1xf32>
    %124 = tpu.reciprocal %123 {approx = true} : vector<2x1xf32> -> vector<2x1xf32>
    %125 = vector.broadcast %124 : vector<2x1xf32> to vector<2x12xf32>
    %126 = arith.mulf %121, %125 : vector<2x12xf32>
    %127 = vector.shape_cast %126 : vector<2x12xf32> to vector<2x12x1xf32>
    %128 = vector.broadcast %127 : vector<2x12x1xf32> to vector<2x12x32xf32>
    %129 = arith.mulf %128, %0 : vector<2x12x32xf32>
    %cst_46 = arith.constant dense<0.000000e+00> : vector<2x32xf32>
    %130 = vector.multi_reduction <add>, %129, %cst_46 [1] : vector<2x12x32xf32> to vector<2x32xf32>
    %131 = tpu.concatenate %107, %130 in 1 : vector<2x32xf32>, vector<2x32xf32> -> vector<2x64xf32>
    %cst_47 = arith.constant dense<0.000000e+00> : vector<2x32xf32>
    %132 = tpu.matmul %131, %4, %cst_47 {dimension_numbers = #tpu.dot_dimension_numbers<[1], [0], [0], [1], [0, 0, 1, 1], [], []>} : vector<2x64xf32>, vector<64x32xf32>, vector<2x32xf32> -> vector<2x32xf32>
    %133 = vector.broadcast %5 : vector<1x32xf32> to vector<2x32xf32>
    %134 = arith.addf %132, %133 : vector<2x32xf32>
    %cst_48 = arith.constant 0.000000e+00 : f32
    %135 = vector.broadcast %cst_48 : f32 to vector<2x32xf32>
    %136 = arith.maximumf %134, %135 : vector<2x32xf32>
    %137 = tpu.concatenate %136, %76 in 1 : vector<2x32xf32>, vector<2x32xf32> -> vector<2x64xf32>
    %cst_49 = arith.constant dense<0.000000e+00> : vector<2x192xf32>
    %138 = tpu.matmul %137, %6, %cst_49 {dimension_numbers = #tpu.dot_dimension_numbers<[1], [0], [0], [1], [0, 0, 1, 1], [], []>} : vector<2x64xf32>, vector<64x192xf32>, vector<2x192xf32> -> vector<2x192xf32>
    %139 = vector.broadcast %7 : vector<1x192xf32> to vector<2x192xf32>
    %140 = arith.addf %138, %139 : vector<2x192xf32>
    %141 = vector.extract_strided_slice %140 {offsets = [0, 0], sizes = [2, 32], strides = [1, 1]} : vector<2x192xf32> to vector<2x32xf32>
    %142 = vector.extract_strided_slice %140 {offsets = [0, 96], sizes = [2, 32], strides = [1, 1]} : vector<2x192xf32> to vector<2x32xf32>
    %143 = arith.addf %141, %142 : vector<2x32xf32>
    %144 = arith.negf %143 : vector<2x32xf32>
    %145 = math.exp %144 : vector<2x32xf32>
    %cst_50 = arith.constant 1.000000e+00 : f32
    %146 = vector.broadcast %cst_50 : f32 to vector<2x32xf32>
    %147 = arith.addf %146, %145 : vector<2x32xf32>
    %148 = arith.divf %146, %147 : vector<2x32xf32>
    %149 = vector.extract_strided_slice %140 {offsets = [0, 32], sizes = [2, 32], strides = [1, 1]} : vector<2x192xf32> to vector<2x32xf32>
    %150 = vector.extract_strided_slice %140 {offsets = [0, 128], sizes = [2, 32], strides = [1, 1]} : vector<2x192xf32> to vector<2x32xf32>
    %151 = arith.addf %149, %150 : vector<2x32xf32>
    %152 = arith.negf %151 : vector<2x32xf32>
    %153 = math.exp %152 : vector<2x32xf32>
    %cst_51 = arith.constant 1.000000e+00 : f32
    %154 = vector.broadcast %cst_51 : f32 to vector<2x32xf32>
    %155 = arith.addf %154, %153 : vector<2x32xf32>
    %156 = arith.divf %154, %155 : vector<2x32xf32>
    %157 = vector.extract_strided_slice %140 {offsets = [0, 64], sizes = [2, 32], strides = [1, 1]} : vector<2x192xf32> to vector<2x32xf32>
    %158 = vector.extract_strided_slice %140 {offsets = [0, 160], sizes = [2, 32], strides = [1, 1]} : vector<2x192xf32> to vector<2x32xf32>
    %159 = arith.mulf %148, %158 : vector<2x32xf32>
    %160 = arith.addf %157, %159 : vector<2x32xf32>
    %161 = math.tanh %160 : vector<2x32xf32>
    %cst_52 = arith.constant 1.000000e+00 : f32
    %162 = vector.broadcast %cst_52 : f32 to vector<2x32xf32>
    %163 = arith.subf %162, %156 : vector<2x32xf32>
    %164 = arith.mulf %163, %161 : vector<2x32xf32>
    %165 = arith.mulf %156, %76 : vector<2x32xf32>
    %166 = arith.addf %164, %165 : vector<2x32xf32>
    %cst_53 = arith.constant dense<0.000000e+00> : vector<2x128xf32>
    %167 = tpu.matmul %166, %8, %cst_53 {dimension_numbers = #tpu.dot_dimension_numbers<[1], [0], [0], [1], [0, 0, 1, 1], [], []>} : vector<2x32xf32>, vector<32x128xf32>, vector<2x128xf32> -> vector<2x128xf32>
    %168 = vector.broadcast %9 : vector<1x128xf32> to vector<2x128xf32>
    %169 = arith.addf %167, %168 : vector<2x128xf32>
    %cst_54 = arith.constant dense<0xFF800000> : vector<2xf32>
    %170 = vector.multi_reduction <maximumf>, %169, %cst_54 [1] : vector<2x128xf32> to vector<2xf32>
    %171 = vector.shape_cast %170 : vector<2xf32> to vector<2x1xf32>
    %172 = vector.broadcast %171 : vector<2x1xf32> to vector<2x128xf32>
    %173 = arith.subf %169, %172 : vector<2x128xf32>
    %174 = math.exp %173 : vector<2x128xf32>
    %cst_55 = arith.constant dense<0.000000e+00> : vector<2xf32>
    %175 = vector.multi_reduction <add>, %174, %cst_55 [1] : vector<2x128xf32> to vector<2xf32>
    %176 = vector.shape_cast %175 : vector<2xf32> to vector<2x1xf32>
    %177 = math.log %176 : vector<2x1xf32>
    %178 = arith.addf %171, %177 : vector<2x1xf32>
    %179 = vector.broadcast %178 : vector<2x1xf32> to vector<2x128xf32>
    %180 = arith.subf %169, %179 : vector<2x128xf32>
    %181 = math.exp %180 : vector<2x128xf32>
    %c1 = arith.constant 1 : index
    %c0_56 = arith.constant 0 : index
    %c0_57 = arith.constant 0 : index
    %182 = vector.load %arg10[%c1, %c0_56, %c0_57] : memref<6x2x128xf32, #tpu.memory_space<vmem>>, vector<1x2x128xf32>
    %183 = vector.shape_cast %182 : vector<1x2x128xf32> to vector<2x128xf32>
    %184 = vector.shape_cast %181 : vector<2x128xf32> to vector<1x2x128xf32>
    tpu.vector_store %arg10[%c1, %c0_56, %c0_57], %184 {strides = array<i32>} : memref<6x2x128xf32, #tpu.memory_space<vmem>>, vector<1x2x128xf32>,
    %cst_58 = arith.constant dense<0xFF800000> : vector<2xf32>
    %185 = vector.multi_reduction <maximumf>, %180, %cst_58 [1] : vector<2x128xf32> to vector<2xf32>
    %186 = vector.shape_cast %185 : vector<2xf32> to vector<2x1xf32>
    %187 = vector.broadcast %186 : vector<2x1xf32> to vector<2x128xf32>
    %188 = arith.cmpf oeq, %180, %187 : vector<2x128xf32>
    %cst_59 = arith.constant 1.280000e+02 : f32
    %189 = vector.broadcast %cst_59 : f32 to vector<2x128xf32>
    %190 = arith.select %188, %11, %189 : vector<2x128xi1>, vector<2x128xf32>
    %cst_60 = arith.constant dense<0x7F800000> : vector<2xf32>
    %191 = vector.multi_reduction <minimumf>, %190, %cst_60 [1] : vector<2x128xf32> to vector<2xf32>
    %192 = vector.shape_cast %191 : vector<2xf32> to vector<2x1xf32>
    %193 = vector.broadcast %192 : vector<2x1xf32> to vector<2x128xf32>
    %194 = arith.cmpf oeq, %11, %193 : vector<2x128xf32>
    %195 = arith.extui %194 : vector<2x128xi1> to vector<2x128xi32>
    %196 = arith.sitofp %195 : vector<2x128xi32> to vector<2x128xf32>
    %cst_61 = arith.constant dense<0.000000e+00> : vector<2x32xf32>
    %197 = tpu.matmul %196, %1, %cst_61 {dimension_numbers = #tpu.dot_dimension_numbers<[1], [0], [0], [1], [0, 0, 1, 1], [], []>} : vector<2x128xf32>, vector<128x32xf32>, vector<2x32xf32> -> vector<2x32xf32>
    %198 = vector.shape_cast %166 : vector<2x32xf32> to vector<2x1x32xf32>
    %199 = vector.broadcast %198 : vector<2x1x32xf32> to vector<2x12x32xf32>
    %200 = arith.addf %199, %0 : vector<2x12x32xf32>
    %201 = math.tanh %200 : vector<2x12x32xf32>
    %202 = vector.broadcast %2 : vector<1x1x32xf32> to vector<2x12x32xf32>
    %203 = arith.mulf %201, %202 : vector<2x12x32xf32>
    %cst_62 = arith.constant dense<0.000000e+00> : vector<2x12xf32>
    %204 = vector.multi_reduction <add>, %203, %cst_62 [2] : vector<2x12x32xf32> to vector<2x12xf32>
    %205 = vector.broadcast %3 : vector<1x1xf32> to vector<2x12xf32>
    %206 = arith.addf %204, %205 : vector<2x12xf32>
    %cst_63 = arith.constant dense<0xFF800000> : vector<2xf32>
    %207 = vector.multi_reduction <maximumf>, %206, %cst_63 [1] : vector<2x12xf32> to vector<2xf32>
    %208 = vector.shape_cast %207 : vector<2xf32> to vector<2x1xf32>
    %209 = vector.broadcast %208 : vector<2x1xf32> to vector<2x12xf32>
    %210 = arith.subf %206, %209 : vector<2x12xf32>
    %211 = math.exp %210 : vector<2x12xf32>
    %cst_64 = arith.constant dense<0.000000e+00> : vector<2xf32>
    %212 = vector.multi_reduction <add>, %211, %cst_64 [1] : vector<2x12xf32> to vector<2xf32>
    %213 = vector.shape_cast %212 : vector<2xf32> to vector<2x1xf32>
    %214 = tpu.reciprocal %213 {approx = true} : vector<2x1xf32> -> vector<2x1xf32>
    %215 = vector.broadcast %214 : vector<2x1xf32> to vector<2x12xf32>
    %216 = arith.mulf %211, %215 : vector<2x12xf32>
    %217 = vector.shape_cast %216 : vector<2x12xf32> to vector<2x12x1xf32>
    %218 = vector.broadcast %217 : vector<2x12x1xf32> to vector<2x12x32xf32>
    %219 = arith.mulf %218, %0 : vector<2x12x32xf32>
    %cst_65 = arith.constant dense<0.000000e+00> : vector<2x32xf32>
    %220 = vector.multi_reduction <add>, %219, %cst_65 [1] : vector<2x12x32xf32> to vector<2x32xf32>
    %221 = tpu.concatenate %197, %220 in 1 : vector<2x32xf32>, vector<2x32xf32> -> vector<2x64xf32>
    %cst_66 = arith.constant dense<0.000000e+00> : vector<2x32xf32>
    %222 = tpu.matmul %221, %4, %cst_66 {dimension_numbers = #tpu.dot_dimension_numbers<[1], [0], [0], [1], [0, 0, 1, 1], [], []>} : vector<2x64xf32>, vector<64x32xf32>, vector<2x32xf32> -> vector<2x32xf32>
    %223 = vector.broadcast %5 : vector<1x32xf32> to vector<2x32xf32>
    %224 = arith.addf %222, %223 : vector<2x32xf32>
    %cst_67 = arith.constant 0.000000e+00 : f32
    %225 = vector.broadcast %cst_67 : f32 to vector<2x32xf32>
    %226 = arith.maximumf %224, %225 : vector<2x32xf32>
    %227 = tpu.concatenate %226, %166 in 1 : vector<2x32xf32>, vector<2x32xf32> -> vector<2x64xf32>
    %cst_68 = arith.constant dense<0.000000e+00> : vector<2x192xf32>
    %228 = tpu.matmul %227, %6, %cst_68 {dimension_numbers = #tpu.dot_dimension_numbers<[1], [0], [0], [1], [0, 0, 1, 1], [], []>} : vector<2x64xf32>, vector<64x192xf32>, vector<2x192xf32> -> vector<2x192xf32>
    %229 = vector.broadcast %7 : vector<1x192xf32> to vector<2x192xf32>
    %230 = arith.addf %228, %229 : vector<2x192xf32>
    %231 = vector.extract_strided_slice %230 {offsets = [0, 0], sizes = [2, 32], strides = [1, 1]} : vector<2x192xf32> to vector<2x32xf32>
    %232 = vector.extract_strided_slice %230 {offsets = [0, 96], sizes = [2, 32], strides = [1, 1]} : vector<2x192xf32> to vector<2x32xf32>
    %233 = arith.addf %231, %232 : vector<2x32xf32>
    %234 = arith.negf %233 : vector<2x32xf32>
    %235 = math.exp %234 : vector<2x32xf32>
    %cst_69 = arith.constant 1.000000e+00 : f32
    %236 = vector.broadcast %cst_69 : f32 to vector<2x32xf32>
    %237 = arith.addf %236, %235 : vector<2x32xf32>
    %238 = arith.divf %236, %237 : vector<2x32xf32>
    %239 = vector.extract_strided_slice %230 {offsets = [0, 32], sizes = [2, 32], strides = [1, 1]} : vector<2x192xf32> to vector<2x32xf32>
    %240 = vector.extract_strided_slice %230 {offsets = [0, 128], sizes = [2, 32], strides = [1, 1]} : vector<2x192xf32> to vector<2x32xf32>
    %241 = arith.addf %239, %240 : vector<2x32xf32>
    %242 = arith.negf %241 : vector<2x32xf32>
    %243 = math.exp %242 : vector<2x32xf32>
    %cst_70 = arith.constant 1.000000e+00 : f32
    %244 = vector.broadcast %cst_70 : f32 to vector<2x32xf32>
    %245 = arith.addf %244, %243 : vector<2x32xf32>
    %246 = arith.divf %244, %245 : vector<2x32xf32>
    %247 = vector.extract_strided_slice %230 {offsets = [0, 64], sizes = [2, 32], strides = [1, 1]} : vector<2x192xf32> to vector<2x32xf32>
    %248 = vector.extract_strided_slice %230 {offsets = [0, 160], sizes = [2, 32], strides = [1, 1]} : vector<2x192xf32> to vector<2x32xf32>
    %249 = arith.mulf %238, %248 : vector<2x32xf32>
    %250 = arith.addf %247, %249 : vector<2x32xf32>
    %251 = math.tanh %250 : vector<2x32xf32>
    %cst_71 = arith.constant 1.000000e+00 : f32
    %252 = vector.broadcast %cst_71 : f32 to vector<2x32xf32>
    %253 = arith.subf %252, %246 : vector<2x32xf32>
    %254 = arith.mulf %253, %251 : vector<2x32xf32>
    %255 = arith.mulf %246, %166 : vector<2x32xf32>
    %256 = arith.addf %254, %255 : vector<2x32xf32>
    %cst_72 = arith.constant dense<0.000000e+00> : vector<2x128xf32>
    %257 = tpu.matmul %256, %8, %cst_72 {dimension_numbers = #tpu.dot_dimension_numbers<[1], [0], [0], [1], [0, 0, 1, 1], [], []>} : vector<2x32xf32>, vector<32x128xf32>, vector<2x128xf32> -> vector<2x128xf32>
    %258 = vector.broadcast %9 : vector<1x128xf32> to vector<2x128xf32>
    %259 = arith.addf %257, %258 : vector<2x128xf32>
    %cst_73 = arith.constant dense<0xFF800000> : vector<2xf32>
    %260 = vector.multi_reduction <maximumf>, %259, %cst_73 [1] : vector<2x128xf32> to vector<2xf32>
    %261 = vector.shape_cast %260 : vector<2xf32> to vector<2x1xf32>
    %262 = vector.broadcast %261 : vector<2x1xf32> to vector<2x128xf32>
    %263 = arith.subf %259, %262 : vector<2x128xf32>
    %264 = math.exp %263 : vector<2x128xf32>
    %cst_74 = arith.constant dense<0.000000e+00> : vector<2xf32>
    %265 = vector.multi_reduction <add>, %264, %cst_74 [1] : vector<2x128xf32> to vector<2xf32>
    %266 = vector.shape_cast %265 : vector<2xf32> to vector<2x1xf32>
    %267 = math.log %266 : vector<2x1xf32>
    %268 = arith.addf %261, %267 : vector<2x1xf32>
    %269 = vector.broadcast %268 : vector<2x1xf32> to vector<2x128xf32>
    %270 = arith.subf %259, %269 : vector<2x128xf32>
    %271 = math.exp %270 : vector<2x128xf32>
    %c2 = arith.constant 2 : index
    %c0_75 = arith.constant 0 : index
    %c0_76 = arith.constant 0 : index
    %272 = vector.load %arg10[%c2, %c0_75, %c0_76] : memref<6x2x128xf32, #tpu.memory_space<vmem>>, vector<1x2x128xf32>
    %273 = vector.shape_cast %272 : vector<1x2x128xf32> to vector<2x128xf32>
    %274 = vector.shape_cast %271 : vector<2x128xf32> to vector<1x2x128xf32>
    tpu.vector_store %arg10[%c2, %c0_75, %c0_76], %274 {strides = array<i32>} : memref<6x2x128xf32, #tpu.memory_space<vmem>>, vector<1x2x128xf32>,
    %cst_77 = arith.constant dense<0xFF800000> : vector<2xf32>
    %275 = vector.multi_reduction <maximumf>, %270, %cst_77 [1] : vector<2x128xf32> to vector<2xf32>
    %276 = vector.shape_cast %275 : vector<2xf32> to vector<2x1xf32>
    %277 = vector.broadcast %276 : vector<2x1xf32> to vector<2x128xf32>
    %278 = arith.cmpf oeq, %270, %277 : vector<2x128xf32>
    %cst_78 = arith.constant 1.280000e+02 : f32
    %279 = vector.broadcast %cst_78 : f32 to vector<2x128xf32>
    %280 = arith.select %278, %11, %279 : vector<2x128xi1>, vector<2x128xf32>
    %cst_79 = arith.constant dense<0x7F800000> : vector<2xf32>
    %281 = vector.multi_reduction <minimumf>, %280, %cst_79 [1] : vector<2x128xf32> to vector<2xf32>
    %282 = vector.shape_cast %281 : vector<2xf32> to vector<2x1xf32>
    %283 = vector.broadcast %282 : vector<2x1xf32> to vector<2x128xf32>
    %284 = arith.cmpf oeq, %11, %283 : vector<2x128xf32>
    %285 = arith.extui %284 : vector<2x128xi1> to vector<2x128xi32>
    %286 = arith.sitofp %285 : vector<2x128xi32> to vector<2x128xf32>
    %cst_80 = arith.constant dense<0.000000e+00> : vector<2x32xf32>
    %287 = tpu.matmul %286, %1, %cst_80 {dimension_numbers = #tpu.dot_dimension_numbers<[1], [0], [0], [1], [0, 0, 1, 1], [], []>} : vector<2x128xf32>, vector<128x32xf32>, vector<2x32xf32> -> vector<2x32xf32>
    %288 = vector.shape_cast %256 : vector<2x32xf32> to vector<2x1x32xf32>
    %289 = vector.broadcast %288 : vector<2x1x32xf32> to vector<2x12x32xf32>
    %290 = arith.addf %289, %0 : vector<2x12x32xf32>
    %291 = math.tanh %290 : vector<2x12x32xf32>
    %292 = vector.broadcast %2 : vector<1x1x32xf32> to vector<2x12x32xf32>
    %293 = arith.mulf %291, %292 : vector<2x12x32xf32>
    %cst_81 = arith.constant dense<0.000000e+00> : vector<2x12xf32>
    %294 = vector.multi_reduction <add>, %293, %cst_81 [2] : vector<2x12x32xf32> to vector<2x12xf32>
    %295 = vector.broadcast %3 : vector<1x1xf32> to vector<2x12xf32>
    %296 = arith.addf %294, %295 : vector<2x12xf32>
    %cst_82 = arith.constant dense<0xFF800000> : vector<2xf32>
    %297 = vector.multi_reduction <maximumf>, %296, %cst_82 [1] : vector<2x12xf32> to vector<2xf32>
    %298 = vector.shape_cast %297 : vector<2xf32> to vector<2x1xf32>
    %299 = vector.broadcast %298 : vector<2x1xf32> to vector<2x12xf32>
    %300 = arith.subf %296, %299 : vector<2x12xf32>
    %301 = math.exp %300 : vector<2x12xf32>
    %cst_83 = arith.constant dense<0.000000e+00> : vector<2xf32>
    %302 = vector.multi_reduction <add>, %301, %cst_83 [1] : vector<2x12xf32> to vector<2xf32>
    %303 = vector.shape_cast %302 : vector<2xf32> to vector<2x1xf32>
    %304 = tpu.reciprocal %303 {approx = true} : vector<2x1xf32> -> vector<2x1xf32>
    %305 = vector.broadcast %304 : vector<2x1xf32> to vector<2x12xf32>
    %306 = arith.mulf %301, %305 : vector<2x12xf32>
    %307 = vector.shape_cast %306 : vector<2x12xf32> to vector<2x12x1xf32>
    %308 = vector.broadcast %307 : vector<2x12x1xf32> to vector<2x12x32xf32>
    %309 = arith.mulf %308, %0 : vector<2x12x32xf32>
    %cst_84 = arith.constant dense<0.000000e+00> : vector<2x32xf32>
    %310 = vector.multi_reduction <add>, %309, %cst_84 [1] : vector<2x12x32xf32> to vector<2x32xf32>
    %311 = tpu.concatenate %287, %310 in 1 : vector<2x32xf32>, vector<2x32xf32> -> vector<2x64xf32>
    %cst_85 = arith.constant dense<0.000000e+00> : vector<2x32xf32>
    %312 = tpu.matmul %311, %4, %cst_85 {dimension_numbers = #tpu.dot_dimension_numbers<[1], [0], [0], [1], [0, 0, 1, 1], [], []>} : vector<2x64xf32>, vector<64x32xf32>, vector<2x32xf32> -> vector<2x32xf32>
    %313 = vector.broadcast %5 : vector<1x32xf32> to vector<2x32xf32>
    %314 = arith.addf %312, %313 : vector<2x32xf32>
    %cst_86 = arith.constant 0.000000e+00 : f32
    %315 = vector.broadcast %cst_86 : f32 to vector<2x32xf32>
    %316 = arith.maximumf %314, %315 : vector<2x32xf32>
    %317 = tpu.concatenate %316, %256 in 1 : vector<2x32xf32>, vector<2x32xf32> -> vector<2x64xf32>
    %cst_87 = arith.constant dense<0.000000e+00> : vector<2x192xf32>
    %318 = tpu.matmul %317, %6, %cst_87 {dimension_numbers = #tpu.dot_dimension_numbers<[1], [0], [0], [1], [0, 0, 1, 1], [], []>} : vector<2x64xf32>, vector<64x192xf32>, vector<2x192xf32> -> vector<2x192xf32>
    %319 = vector.broadcast %7 : vector<1x192xf32> to vector<2x192xf32>
    %320 = arith.addf %318, %319 : vector<2x192xf32>
    %321 = vector.extract_strided_slice %320 {offsets = [0, 0], sizes = [2, 32], strides = [1, 1]} : vector<2x192xf32> to vector<2x32xf32>
    %322 = vector.extract_strided_slice %320 {offsets = [0, 96], sizes = [2, 32], strides = [1, 1]} : vector<2x192xf32> to vector<2x32xf32>
    %323 = arith.addf %321, %322 : vector<2x32xf32>
    %324 = arith.negf %323 : vector<2x32xf32>
    %325 = math.exp %324 : vector<2x32xf32>
    %cst_88 = arith.constant 1.000000e+00 : f32
    %326 = vector.broadcast %cst_88 : f32 to vector<2x32xf32>
    %327 = arith.addf %326, %325 : vector<2x32xf32>
    %328 = arith.divf %326, %327 : vector<2x32xf32>
    %329 = vector.extract_strided_slice %320 {offsets = [0, 32], sizes = [2, 32], strides = [1, 1]} : vector<2x192xf32> to vector<2x32xf32>
    %330 = vector.extract_strided_slice %320 {offsets = [0, 128], sizes = [2, 32], strides = [1, 1]} : vector<2x192xf32> to vector<2x32xf32>
    %331 = arith.addf %329, %330 : vector<2x32xf32>
    %332 = arith.negf %331 : vector<2x32xf32>
    %333 = math.exp %332 : vector<2x32xf32>
    %cst_89 = arith.constant 1.000000e+00 : f32
    %334 = vector.broadcast %cst_89 : f32 to vector<2x32xf32>
    %335 = arith.addf %334, %333 : vector<2x32xf32>
    %336 = arith.divf %334, %335 : vector<2x32xf32>
    %337 = vector.extract_strided_slice %320 {offsets = [0, 64], sizes = [2, 32], strides = [1, 1]} : vector<2x192xf32> to vector<2x32xf32>
    %338 = vector.extract_strided_slice %320 {offsets = [0, 160], sizes = [2, 32], strides = [1, 1]} : vector<2x192xf32> to vector<2x32xf32>
    %339 = arith.mulf %328, %338 : vector<2x32xf32>
    %340 = arith.addf %337, %339 : vector<2x32xf32>
    %341 = math.tanh %340 : vector<2x32xf32>
    %cst_90 = arith.constant 1.000000e+00 : f32
    %342 = vector.broadcast %cst_90 : f32 to vector<2x32xf32>
    %343 = arith.subf %342, %336 : vector<2x32xf32>
    %344 = arith.mulf %343, %341 : vector<2x32xf32>
    %345 = arith.mulf %336, %256 : vector<2x32xf32>
    %346 = arith.addf %344, %345 : vector<2x32xf32>
    %cst_91 = arith.constant dense<0.000000e+00> : vector<2x128xf32>
    %347 = tpu.matmul %346, %8, %cst_91 {dimension_numbers = #tpu.dot_dimension_numbers<[1], [0], [0], [1], [0, 0, 1, 1], [], []>} : vector<2x32xf32>, vector<32x128xf32>, vector<2x128xf32> -> vector<2x128xf32>
    %348 = vector.broadcast %9 : vector<1x128xf32> to vector<2x128xf32>
    %349 = arith.addf %347, %348 : vector<2x128xf32>
    %cst_92 = arith.constant dense<0xFF800000> : vector<2xf32>
    %350 = vector.multi_reduction <maximumf>, %349, %cst_92 [1] : vector<2x128xf32> to vector<2xf32>
    %351 = vector.shape_cast %350 : vector<2xf32> to vector<2x1xf32>
    %352 = vector.broadcast %351 : vector<2x1xf32> to vector<2x128xf32>
    %353 = arith.subf %349, %352 : vector<2x128xf32>
    %354 = math.exp %353 : vector<2x128xf32>
    %cst_93 = arith.constant dense<0.000000e+00> : vector<2xf32>
    %355 = vector.multi_reduction <add>, %354, %cst_93 [1] : vector<2x128xf32> to vector<2xf32>
    %356 = vector.shape_cast %355 : vector<2xf32> to vector<2x1xf32>
    %357 = math.log %356 : vector<2x1xf32>
    %358 = arith.addf %351, %357 : vector<2x1xf32>
    %359 = vector.broadcast %358 : vector<2x1xf32> to vector<2x128xf32>
    %360 = arith.subf %349, %359 : vector<2x128xf32>
    %361 = math.exp %360 : vector<2x128xf32>
    %c3 = arith.constant 3 : index
    %c0_94 = arith.constant 0 : index
    %c0_95 = arith.constant 0 : index
    %362 = vector.load %arg10[%c3, %c0_94, %c0_95] : memref<6x2x128xf32, #tpu.memory_space<vmem>>, vector<1x2x128xf32>
    %363 = vector.shape_cast %362 : vector<1x2x128xf32> to vector<2x128xf32>
    %364 = vector.shape_cast %361 : vector<2x128xf32> to vector<1x2x128xf32>
    tpu.vector_store %arg10[%c3, %c0_94, %c0_95], %364 {strides = array<i32>} : memref<6x2x128xf32, #tpu.memory_space<vmem>>, vector<1x2x128xf32>,
    %cst_96 = arith.constant dense<0xFF800000> : vector<2xf32>
    %365 = vector.multi_reduction <maximumf>, %360, %cst_96 [1] : vector<2x128xf32> to vector<2xf32>
    %366 = vector.shape_cast %365 : vector<2xf32> to vector<2x1xf32>
    %367 = vector.broadcast %366 : vector<2x1xf32> to vector<2x128xf32>
    %368 = arith.cmpf oeq, %360, %367 : vector<2x128xf32>
    %cst_97 = arith.constant 1.280000e+02 : f32
    %369 = vector.broadcast %cst_97 : f32 to vector<2x128xf32>
    %370 = arith.select %368, %11, %369 : vector<2x128xi1>, vector<2x128xf32>
    %cst_98 = arith.constant dense<0x7F800000> : vector<2xf32>
    %371 = vector.multi_reduction <minimumf>, %370, %cst_98 [1] : vector<2x128xf32> to vector<2xf32>
    %372 = vector.shape_cast %371 : vector<2xf32> to vector<2x1xf32>
    %373 = vector.broadcast %372 : vector<2x1xf32> to vector<2x128xf32>
    %374 = arith.cmpf oeq, %11, %373 : vector<2x128xf32>
    %375 = arith.extui %374 : vector<2x128xi1> to vector<2x128xi32>
    %376 = arith.sitofp %375 : vector<2x128xi32> to vector<2x128xf32>
    %cst_99 = arith.constant dense<0.000000e+00> : vector<2x32xf32>
    %377 = tpu.matmul %376, %1, %cst_99 {dimension_numbers = #tpu.dot_dimension_numbers<[1], [0], [0], [1], [0, 0, 1, 1], [], []>} : vector<2x128xf32>, vector<128x32xf32>, vector<2x32xf32> -> vector<2x32xf32>
    %378 = vector.shape_cast %346 : vector<2x32xf32> to vector<2x1x32xf32>
    %379 = vector.broadcast %378 : vector<2x1x32xf32> to vector<2x12x32xf32>
    %380 = arith.addf %379, %0 : vector<2x12x32xf32>
    %381 = math.tanh %380 : vector<2x12x32xf32>
    %382 = vector.broadcast %2 : vector<1x1x32xf32> to vector<2x12x32xf32>
    %383 = arith.mulf %381, %382 : vector<2x12x32xf32>
    %cst_100 = arith.constant dense<0.000000e+00> : vector<2x12xf32>
    %384 = vector.multi_reduction <add>, %383, %cst_100 [2] : vector<2x12x32xf32> to vector<2x12xf32>
    %385 = vector.broadcast %3 : vector<1x1xf32> to vector<2x12xf32>
    %386 = arith.addf %384, %385 : vector<2x12xf32>
    %cst_101 = arith.constant dense<0xFF800000> : vector<2xf32>
    %387 = vector.multi_reduction <maximumf>, %386, %cst_101 [1] : vector<2x12xf32> to vector<2xf32>
    %388 = vector.shape_cast %387 : vector<2xf32> to vector<2x1xf32>
    %389 = vector.broadcast %388 : vector<2x1xf32> to vector<2x12xf32>
    %390 = arith.subf %386, %389 : vector<2x12xf32>
    %391 = math.exp %390 : vector<2x12xf32>
    %cst_102 = arith.constant dense<0.000000e+00> : vector<2xf32>
    %392 = vector.multi_reduction <add>, %391, %cst_102 [1] : vector<2x12xf32> to vector<2xf32>
    %393 = vector.shape_cast %392 : vector<2xf32> to vector<2x1xf32>
    %394 = tpu.reciprocal %393 {approx = true} : vector<2x1xf32> -> vector<2x1xf32>
    %395 = vector.broadcast %394 : vector<2x1xf32> to vector<2x12xf32>
    %396 = arith.mulf %391, %395 : vector<2x12xf32>
    %397 = vector.shape_cast %396 : vector<2x12xf32> to vector<2x12x1xf32>
    %398 = vector.broadcast %397 : vector<2x12x1xf32> to vector<2x12x32xf32>
    %399 = arith.mulf %398, %0 : vector<2x12x32xf32>
    %cst_103 = arith.constant dense<0.000000e+00> : vector<2x32xf32>
    %400 = vector.multi_reduction <add>, %399, %cst_103 [1] : vector<2x12x32xf32> to vector<2x32xf32>
    %401 = tpu.concatenate %377, %400 in 1 : vector<2x32xf32>, vector<2x32xf32> -> vector<2x64xf32>
    %cst_104 = arith.constant dense<0.000000e+00> : vector<2x32xf32>
    %402 = tpu.matmul %401, %4, %cst_104 {dimension_numbers = #tpu.dot_dimension_numbers<[1], [0], [0], [1], [0, 0, 1, 1], [], []>} : vector<2x64xf32>, vector<64x32xf32>, vector<2x32xf32> -> vector<2x32xf32>
    %403 = vector.broadcast %5 : vector<1x32xf32> to vector<2x32xf32>
    %404 = arith.addf %402, %403 : vector<2x32xf32>
    %cst_105 = arith.constant 0.000000e+00 : f32
    %405 = vector.broadcast %cst_105 : f32 to vector<2x32xf32>
    %406 = arith.maximumf %404, %405 : vector<2x32xf32>
    %407 = tpu.concatenate %406, %346 in 1 : vector<2x32xf32>, vector<2x32xf32> -> vector<2x64xf32>
    %cst_106 = arith.constant dense<0.000000e+00> : vector<2x192xf32>
    %408 = tpu.matmul %407, %6, %cst_106 {dimension_numbers = #tpu.dot_dimension_numbers<[1], [0], [0], [1], [0, 0, 1, 1], [], []>} : vector<2x64xf32>, vector<64x192xf32>, vector<2x192xf32> -> vector<2x192xf32>
    %409 = vector.broadcast %7 : vector<1x192xf32> to vector<2x192xf32>
    %410 = arith.addf %408, %409 : vector<2x192xf32>
    %411 = vector.extract_strided_slice %410 {offsets = [0, 0], sizes = [2, 32], strides = [1, 1]} : vector<2x192xf32> to vector<2x32xf32>
    %412 = vector.extract_strided_slice %410 {offsets = [0, 96], sizes = [2, 32], strides = [1, 1]} : vector<2x192xf32> to vector<2x32xf32>
    %413 = arith.addf %411, %412 : vector<2x32xf32>
    %414 = arith.negf %413 : vector<2x32xf32>
    %415 = math.exp %414 : vector<2x32xf32>
    %cst_107 = arith.constant 1.000000e+00 : f32
    %416 = vector.broadcast %cst_107 : f32 to vector<2x32xf32>
    %417 = arith.addf %416, %415 : vector<2x32xf32>
    %418 = arith.divf %416, %417 : vector<2x32xf32>
    %419 = vector.extract_strided_slice %410 {offsets = [0, 32], sizes = [2, 32], strides = [1, 1]} : vector<2x192xf32> to vector<2x32xf32>
    %420 = vector.extract_strided_slice %410 {offsets = [0, 128], sizes = [2, 32], strides = [1, 1]} : vector<2x192xf32> to vector<2x32xf32>
    %421 = arith.addf %419, %420 : vector<2x32xf32>
    %422 = arith.negf %421 : vector<2x32xf32>
    %423 = math.exp %422 : vector<2x32xf32>
    %cst_108 = arith.constant 1.000000e+00 : f32
    %424 = vector.broadcast %cst_108 : f32 to vector<2x32xf32>
    %425 = arith.addf %424, %423 : vector<2x32xf32>
    %426 = arith.divf %424, %425 : vector<2x32xf32>
    %427 = vector.extract_strided_slice %410 {offsets = [0, 64], sizes = [2, 32], strides = [1, 1]} : vector<2x192xf32> to vector<2x32xf32>
    %428 = vector.extract_strided_slice %410 {offsets = [0, 160], sizes = [2, 32], strides = [1, 1]} : vector<2x192xf32> to vector<2x32xf32>
    %429 = arith.mulf %418, %428 : vector<2x32xf32>
    %430 = arith.addf %427, %429 : vector<2x32xf32>
    %431 = math.tanh %430 : vector<2x32xf32>
    %cst_109 = arith.constant 1.000000e+00 : f32
    %432 = vector.broadcast %cst_109 : f32 to vector<2x32xf32>
    %433 = arith.subf %432, %426 : vector<2x32xf32>
    %434 = arith.mulf %433, %431 : vector<2x32xf32>
    %435 = arith.mulf %426, %346 : vector<2x32xf32>
    %436 = arith.addf %434, %435 : vector<2x32xf32>
    %cst_110 = arith.constant dense<0.000000e+00> : vector<2x128xf32>
    %437 = tpu.matmul %436, %8, %cst_110 {dimension_numbers = #tpu.dot_dimension_numbers<[1], [0], [0], [1], [0, 0, 1, 1], [], []>} : vector<2x32xf32>, vector<32x128xf32>, vector<2x128xf32> -> vector<2x128xf32>
    %438 = vector.broadcast %9 : vector<1x128xf32> to vector<2x128xf32>
    %439 = arith.addf %437, %438 : vector<2x128xf32>
    %cst_111 = arith.constant dense<0xFF800000> : vector<2xf32>
    %440 = vector.multi_reduction <maximumf>, %439, %cst_111 [1] : vector<2x128xf32> to vector<2xf32>
    %441 = vector.shape_cast %440 : vector<2xf32> to vector<2x1xf32>
    %442 = vector.broadcast %441 : vector<2x1xf32> to vector<2x128xf32>
    %443 = arith.subf %439, %442 : vector<2x128xf32>
    %444 = math.exp %443 : vector<2x128xf32>
    %cst_112 = arith.constant dense<0.000000e+00> : vector<2xf32>
    %445 = vector.multi_reduction <add>, %444, %cst_112 [1] : vector<2x128xf32> to vector<2xf32>
    %446 = vector.shape_cast %445 : vector<2xf32> to vector<2x1xf32>
    %447 = math.log %446 : vector<2x1xf32>
    %448 = arith.addf %441, %447 : vector<2x1xf32>
    %449 = vector.broadcast %448 : vector<2x1xf32> to vector<2x128xf32>
    %450 = arith.subf %439, %449 : vector<2x128xf32>
    %451 = math.exp %450 : vector<2x128xf32>
    %c4 = arith.constant 4 : index
    %c0_113 = arith.constant 0 : index
    %c0_114 = arith.constant 0 : index
    %452 = vector.load %arg10[%c4, %c0_113, %c0_114] : memref<6x2x128xf32, #tpu.memory_space<vmem>>, vector<1x2x128xf32>
    %453 = vector.shape_cast %452 : vector<1x2x128xf32> to vector<2x128xf32>
    %454 = vector.shape_cast %451 : vector<2x128xf32> to vector<1x2x128xf32>
    tpu.vector_store %arg10[%c4, %c0_113, %c0_114], %454 {strides = array<i32>} : memref<6x2x128xf32, #tpu.memory_space<vmem>>, vector<1x2x128xf32>,
    %cst_115 = arith.constant dense<0xFF800000> : vector<2xf32>
    %455 = vector.multi_reduction <maximumf>, %450, %cst_115 [1] : vector<2x128xf32> to vector<2xf32>
    %456 = vector.shape_cast %455 : vector<2xf32> to vector<2x1xf32>
    %457 = vector.broadcast %456 : vector<2x1xf32> to vector<2x128xf32>
    %458 = arith.cmpf oeq, %450, %457 : vector<2x128xf32>
    %cst_116 = arith.constant 1.280000e+02 : f32
    %459 = vector.broadcast %cst_116 : f32 to vector<2x128xf32>
    %460 = arith.select %458, %11, %459 : vector<2x128xi1>, vector<2x128xf32>
    %cst_117 = arith.constant dense<0x7F800000> : vector<2xf32>
    %461 = vector.multi_reduction <minimumf>, %460, %cst_117 [1] : vector<2x128xf32> to vector<2xf32>
    %462 = vector.shape_cast %461 : vector<2xf32> to vector<2x1xf32>
    %463 = vector.broadcast %462 : vector<2x1xf32> to vector<2x128xf32>
    %464 = arith.cmpf oeq, %11, %463 : vector<2x128xf32>
    %465 = arith.extui %464 : vector<2x128xi1> to vector<2x128xi32>
    %466 = arith.sitofp %465 : vector<2x128xi32> to vector<2x128xf32>
    %cst_118 = arith.constant dense<0.000000e+00> : vector<2x32xf32>
    %467 = tpu.matmul %466, %1, %cst_118 {dimension_numbers = #tpu.dot_dimension_numbers<[1], [0], [0], [1], [0, 0, 1, 1], [], []>} : vector<2x128xf32>, vector<128x32xf32>, vector<2x32xf32> -> vector<2x32xf32>
    %468 = vector.shape_cast %436 : vector<2x32xf32> to vector<2x1x32xf32>
    %469 = vector.broadcast %468 : vector<2x1x32xf32> to vector<2x12x32xf32>
    %470 = arith.addf %469, %0 : vector<2x12x32xf32>
    %471 = math.tanh %470 : vector<2x12x32xf32>
    %472 = vector.broadcast %2 : vector<1x1x32xf32> to vector<2x12x32xf32>
    %473 = arith.mulf %471, %472 : vector<2x12x32xf32>
    %cst_119 = arith.constant dense<0.000000e+00> : vector<2x12xf32>
    %474 = vector.multi_reduction <add>, %473, %cst_119 [2] : vector<2x12x32xf32> to vector<2x12xf32>
    %475 = vector.broadcast %3 : vector<1x1xf32> to vector<2x12xf32>
    %476 = arith.addf %474, %475 : vector<2x12xf32>
    %cst_120 = arith.constant dense<0xFF800000> : vector<2xf32>
    %477 = vector.multi_reduction <maximumf>, %476, %cst_120 [1] : vector<2x12xf32> to vector<2xf32>
    %478 = vector.shape_cast %477 : vector<2xf32> to vector<2x1xf32>
    %479 = vector.broadcast %478 : vector<2x1xf32> to vector<2x12xf32>
    %480 = arith.subf %476, %479 : vector<2x12xf32>
    %481 = math.exp %480 : vector<2x12xf32>
    %cst_121 = arith.constant dense<0.000000e+00> : vector<2xf32>
    %482 = vector.multi_reduction <add>, %481, %cst_121 [1] : vector<2x12xf32> to vector<2xf32>
    %483 = vector.shape_cast %482 : vector<2xf32> to vector<2x1xf32>
    %484 = tpu.reciprocal %483 {approx = true} : vector<2x1xf32> -> vector<2x1xf32>
    %485 = vector.broadcast %484 : vector<2x1xf32> to vector<2x12xf32>
    %486 = arith.mulf %481, %485 : vector<2x12xf32>
    %487 = vector.shape_cast %486 : vector<2x12xf32> to vector<2x12x1xf32>
    %488 = vector.broadcast %487 : vector<2x12x1xf32> to vector<2x12x32xf32>
    %489 = arith.mulf %488, %0 : vector<2x12x32xf32>
    %cst_122 = arith.constant dense<0.000000e+00> : vector<2x32xf32>
    %490 = vector.multi_reduction <add>, %489, %cst_122 [1] : vector<2x12x32xf32> to vector<2x32xf32>
    %491 = tpu.concatenate %467, %490 in 1 : vector<2x32xf32>, vector<2x32xf32> -> vector<2x64xf32>
    %cst_123 = arith.constant dense<0.000000e+00> : vector<2x32xf32>
    %492 = tpu.matmul %491, %4, %cst_123 {dimension_numbers = #tpu.dot_dimension_numbers<[1], [0], [0], [1], [0, 0, 1, 1], [], []>} : vector<2x64xf32>, vector<64x32xf32>, vector<2x32xf32> -> vector<2x32xf32>
    %493 = vector.broadcast %5 : vector<1x32xf32> to vector<2x32xf32>
    %494 = arith.addf %492, %493 : vector<2x32xf32>
    %cst_124 = arith.constant 0.000000e+00 : f32
    %495 = vector.broadcast %cst_124 : f32 to vector<2x32xf32>
    %496 = arith.maximumf %494, %495 : vector<2x32xf32>
    %497 = tpu.concatenate %496, %436 in 1 : vector<2x32xf32>, vector<2x32xf32> -> vector<2x64xf32>
    %cst_125 = arith.constant dense<0.000000e+00> : vector<2x192xf32>
    %498 = tpu.matmul %497, %6, %cst_125 {dimension_numbers = #tpu.dot_dimension_numbers<[1], [0], [0], [1], [0, 0, 1, 1], [], []>} : vector<2x64xf32>, vector<64x192xf32>, vector<2x192xf32> -> vector<2x192xf32>
    %499 = vector.broadcast %7 : vector<1x192xf32> to vector<2x192xf32>
    %500 = arith.addf %498, %499 : vector<2x192xf32>
    %501 = vector.extract_strided_slice %500 {offsets = [0, 0], sizes = [2, 32], strides = [1, 1]} : vector<2x192xf32> to vector<2x32xf32>
    %502 = vector.extract_strided_slice %500 {offsets = [0, 96], sizes = [2, 32], strides = [1, 1]} : vector<2x192xf32> to vector<2x32xf32>
    %503 = arith.addf %501, %502 : vector<2x32xf32>
    %504 = arith.negf %503 : vector<2x32xf32>
    %505 = math.exp %504 : vector<2x32xf32>
    %cst_126 = arith.constant 1.000000e+00 : f32
    %506 = vector.broadcast %cst_126 : f32 to vector<2x32xf32>
    %507 = arith.addf %506, %505 : vector<2x32xf32>
    %508 = arith.divf %506, %507 : vector<2x32xf32>
    %509 = vector.extract_strided_slice %500 {offsets = [0, 32], sizes = [2, 32], strides = [1, 1]} : vector<2x192xf32> to vector<2x32xf32>
    %510 = vector.extract_strided_slice %500 {offsets = [0, 128], sizes = [2, 32], strides = [1, 1]} : vector<2x192xf32> to vector<2x32xf32>
    %511 = arith.addf %509, %510 : vector<2x32xf32>
    %512 = arith.negf %511 : vector<2x32xf32>
    %513 = math.exp %512 : vector<2x32xf32>
    %cst_127 = arith.constant 1.000000e+00 : f32
    %514 = vector.broadcast %cst_127 : f32 to vector<2x32xf32>
    %515 = arith.addf %514, %513 : vector<2x32xf32>
    %516 = arith.divf %514, %515 : vector<2x32xf32>
    %517 = vector.extract_strided_slice %500 {offsets = [0, 64], sizes = [2, 32], strides = [1, 1]} : vector<2x192xf32> to vector<2x32xf32>
    %518 = vector.extract_strided_slice %500 {offsets = [0, 160], sizes = [2, 32], strides = [1, 1]} : vector<2x192xf32> to vector<2x32xf32>
    %519 = arith.mulf %508, %518 : vector<2x32xf32>
    %520 = arith.addf %517, %519 : vector<2x32xf32>
    %521 = math.tanh %520 : vector<2x32xf32>
    %cst_128 = arith.constant 1.000000e+00 : f32
    %522 = vector.broadcast %cst_128 : f32 to vector<2x32xf32>
    %523 = arith.subf %522, %516 : vector<2x32xf32>
    %524 = arith.mulf %523, %521 : vector<2x32xf32>
    %525 = arith.mulf %516, %436 : vector<2x32xf32>
    %526 = arith.addf %524, %525 : vector<2x32xf32>
    %cst_129 = arith.constant dense<0.000000e+00> : vector<2x128xf32>
    %527 = tpu.matmul %526, %8, %cst_129 {dimension_numbers = #tpu.dot_dimension_numbers<[1], [0], [0], [1], [0, 0, 1, 1], [], []>} : vector<2x32xf32>, vector<32x128xf32>, vector<2x128xf32> -> vector<2x128xf32>
    %528 = vector.broadcast %9 : vector<1x128xf32> to vector<2x128xf32>
    %529 = arith.addf %527, %528 : vector<2x128xf32>
    %cst_130 = arith.constant dense<0xFF800000> : vector<2xf32>
    %530 = vector.multi_reduction <maximumf>, %529, %cst_130 [1] : vector<2x128xf32> to vector<2xf32>
    %531 = vector.shape_cast %530 : vector<2xf32> to vector<2x1xf32>
    %532 = vector.broadcast %531 : vector<2x1xf32> to vector<2x128xf32>
    %533 = arith.subf %529, %532 : vector<2x128xf32>
    %534 = math.exp %533 : vector<2x128xf32>
    %cst_131 = arith.constant dense<0.000000e+00> : vector<2xf32>
    %535 = vector.multi_reduction <add>, %534, %cst_131 [1] : vector<2x128xf32> to vector<2xf32>
    %536 = vector.shape_cast %535 : vector<2xf32> to vector<2x1xf32>
    %537 = math.log %536 : vector<2x1xf32>
    %538 = arith.addf %531, %537 : vector<2x1xf32>
    %539 = vector.broadcast %538 : vector<2x1xf32> to vector<2x128xf32>
    %540 = arith.subf %529, %539 : vector<2x128xf32>
    %541 = math.exp %540 : vector<2x128xf32>
    %c5 = arith.constant 5 : index
    %c0_132 = arith.constant 0 : index
    %c0_133 = arith.constant 0 : index
    %542 = vector.load %arg10[%c5, %c0_132, %c0_133] : memref<6x2x128xf32, #tpu.memory_space<vmem>>, vector<1x2x128xf32>
    %543 = vector.shape_cast %542 : vector<1x2x128xf32> to vector<2x128xf32>
    %544 = vector.shape_cast %541 : vector<2x128xf32> to vector<1x2x128xf32>
    tpu.vector_store %arg10[%c5, %c0_132, %c0_133], %544 {strides = array<i32>} : memref<6x2x128xf32, #tpu.memory_space<vmem>>, vector<1x2x128xf32>,
    return
  }
}

</mosaic_0001>

<llo_original>
// kernel: att_predictor_forward.2
$region0: #{att_predictor_forward.2}
  #allocation0 [shape = 'u32[]', space=smem, size = 0x4, offset = 0x4, fixed_abs, tag = 'smem constant byte address 0x4 - core index']
  #allocation1 [shape = 'u32[144,128]{1,0:T(1,128)}', space=vmem, size = 0x12000, scoped, tag = 'internal scratch']
  #allocation2 [shape = 'f32[12,2,32]{2,1,0:T(2,128)}', space=vmem, size = 0x3000, scoped, tag = 'scratch operand']
  #allocation3 [shape = 'f32[12,2,32]{2,1,0:T(2,128)}', space=vmem, size = 0x3000, scoped, tag = 'scratch operand']
  %s0 = inlined_call_operand.vmem [shape: f32[12,2,32], index: 0, kind: input, shape index: {}]
  %s1 = inlined_call_operand.vmem [shape: f32[128,256], index: 1, kind: input, shape index: {}]
  %s2 = inlined_call_operand.vmem [shape: f32[1,256], index: 2, kind: input, shape index: {}]
  %s3 = inlined_call_operand.vmem [shape: f32[64,32], index: 3, kind: input, shape index: {}]
  %s4 = inlined_call_operand.vmem [shape: f32[1,32], index: 4, kind: input, shape index: {}]
  %s5 = inlined_call_operand.vmem [shape: f32[12,2,32], index: 5, kind: output, shape index: {}]
  %s6 = sld [smem:[#allocation0]]
  $region30: #{att_predictor_forward.2} parent=0
    _
  %s8 = ssub.s32 1, %s6
  %s9 = scalar_select 0, %s8, %s6
  // Predicated region
  $region2: #{att_predictor_forward.2} parent=0 // pred_check
    _
  $region3: #{att_predictor_forward.2} parent=0 // pred_check_branch
    %11 = sbr.rel (0) target = $region5
  $region4: #{att_predictor_forward.2} parent=0 // pred_region
    _
  $region5: #{att_predictor_forward.2} parent=0 // pred_fallthru
    _
  // Predicated region
  $region6: #{att_predictor_forward.2} parent=0 // pred_check
    _
  $region7: #{att_predictor_forward.2} parent=0 // pred_check_branch
    %13 = sbr.rel (0) target = $region9
  $region8: #{att_predictor_forward.2} parent=0 // pred_region
    _
  $region9: #{att_predictor_forward.2} parent=0 // pred_fallthru
    _
  // Predicated region
  $region10: #{att_predictor_forward.2} parent=0 // pred_check
    _
  $region11: #{att_predictor_forward.2} parent=0 // pred_check_branch
    %15 = sbr.rel (0) target = $region13
  $region12: #{att_predictor_forward.2} parent=0 // pred_region
    _
  $region13: #{att_predictor_forward.2} parent=0 // pred_fallthru
    _
  // Predicated region
  $region14: #{att_predictor_forward.2} parent=0 // pred_check
    _
  $region15: #{att_predictor_forward.2} parent=0 // pred_check_branch
    %17 = sbr.rel (0) target = $region17
  $region16: #{att_predictor_forward.2} parent=0 // pred_region
    _
  $region17: #{att_predictor_forward.2} parent=0 // pred_fallthru
    _
  // Predicated region
  $region18: #{att_predictor_forward.2} parent=0 // pred_check
    _
  $region19: #{att_predictor_forward.2} parent=0 // pred_check_branch
    %19 = sbr.rel (0) target = $region21
  $region20: #{att_predictor_forward.2} parent=0 // pred_region
    _
  $region21: #{att_predictor_forward.2} parent=0 // pred_fallthru
    _
  %v20 = vld [vmem:[%s1] sm:$0xff]
  %v21 = vld [vmem:[%s1 + $0x8] sm:$0xff]
  %v22 = vld [vmem:[%s1 + $0x10] sm:$0xff]
  %v23 = vld [vmem:[%s1 + $0x18] sm:$0xff]
  %v24 = vld [vmem:[%s1 + $0x20] sm:$0xff]
  %v25 = vld [vmem:[%s1 + $0x28] sm:$0xff]
  %v26 = vld [vmem:[%s1 + $0x30] sm:$0xff]
  %v27 = vld [vmem:[%s1 + $0x38] sm:$0xff]
  %v28 = vld [vmem:[%s1 + $0x40] sm:$0xff]
  %v29 = vld [vmem:[%s1 + $0x48] sm:$0xff]
  %v30 = vld [vmem:[%s1 + $0x50] sm:$0xff]
  %v31 = vld [vmem:[%s1 + $0x58] sm:$0xff]
  %v32 = vld [vmem:[%s1 + $0x60] sm:$0xff]
  %v33 = vld [vmem:[%s1 + $0x68] sm:$0xff]
  %v34 = vld [vmem:[%s1 + $0x70] sm:$0xff]
  %v35 = vld [vmem:[%s1 + $0x78] sm:$0xff]
  %v36 = vld [vmem:[%s1 + $0x80] sm:$0xff]
  %v37 = vld [vmem:[%s1 + $0x88] sm:$0xff]
  %v38 = vld [vmem:[%s1 + $0x90] sm:$0xff]
  %v39 = vld [vmem:[%s1 + $0x98] sm:$0xff]
  %v40 = vld [vmem:[%s1 + $0xa0] sm:$0xff]
  %v41 = vld [vmem:[%s1 + $0xa8] sm:$0xff]
  %v42 = vld [vmem:[%s1 + $0xb0] sm:$0xff]
  %v43 = vld [vmem:[%s1 + $0xb8] sm:$0xff]
  %v44 = vld [vmem:[%s1 + $0xc0] sm:$0xff]
  %v45 = vld [vmem:[%s1 + $0xc8] sm:$0xff]
  %v46 = vld [vmem:[%s1 + $0xd0] sm:$0xff]
  %v47 = vld [vmem:[%s1 + $0xd8] sm:$0xff]
  %v48 = vld [vmem:[%s1 + $0xe0] sm:$0xff]
  %v49 = vld [vmem:[%s1 + $0xe8] sm:$0xff]
  %v50 = vld [vmem:[%s1 + $0xf0] sm:$0xff]
  %v51 = vld [vmem:[%s1 + $0xf8] sm:$0xff]
  %v52 = vld [vmem:[%s2] sm:$0x3]
  %v53 = vld [vmem:[%s0] sm:$0x3]
  %s54 = scalar_lea.vmem %s0, 22
  %v55 = vld [vmem:[%s54] sm:$0x3]
  %57 = vrot.lane.b32.xlu0 %v55, 64
  %v58 = vpop.permute.xlu0 %57
  %vm60 = vcmask 261120
  %v61 = vsel %vm60, %v53, 0.0
  %vm62 = vcmask 523264
  %v63 = vsel %vm62, %v61, %v58
  %vm64 = vcmask 785408
  %v65 = vsel %vm64, %v63, 0.0
  %v67 = vlaneseq
  %v68 = vshrl.u32 %v67, 7
  %v69 = vsub.s32 0, %v68
  %v70 = vrot.slane %v52, %v69
  %v71 = vlaneseq
  %v72 = vshrl.u32 %v71, 7
  %v73 = vsub.s32 1, %v72
  %v74 = vrot.slane %v52, %v73
  %77 = vmatprep.subr.mxu0 %v21
  %78 = vmatpush1.msra.mxu0 %v20
  %79 = vmatprep.subr.mxu0 %v23
  %80 = vmatpush1.msra.mxu0 %v22
  %81 = vmatprep.subr.mxu0 %v25
  %82 = vmatpush1.msra.mxu0 %v24
  %83 = vmatprep.subr.mxu0 %v27
  %84 = vmatpush1.msra.mxu0 %v26
  %85 = vmatprep.subr.mxu0 %v29
  %86 = vmatpush1.msra.mxu0 %v28
  %87 = vmatprep.subr.mxu0 %v31
  %88 = vmatpush1.msra.mxu0 %v30
  %89 = vmatprep.subr.mxu0 %v33
  %90 = vmatpush1.msra.mxu0 %v32
  %91 = vmatprep.subr.mxu0 %v35
  %92 = vmatpush1.msra.mxu0 %v34
  %93 = vmatprep.subr.mxu0 %v37
  %94 = vmatpush1.msra.mxu0 %v36
  %95 = vmatprep.subr.mxu0 %v39
  %96 = vmatpush1.msra.mxu0 %v38
  %97 = vmatprep.subr.mxu0 %v41
  %98 = vmatpush1.msra.mxu0 %v40
  %99 = vmatprep.subr.mxu0 %v43
  %100 = vmatpush1.msra.mxu0 %v42
  %101 = vmatprep.subr.mxu0 %v45
  %102 = vmatpush1.msra.mxu0 %v44
  %103 = vmatprep.subr.mxu0 %v47
  %104 = vmatpush1.msra.mxu0 %v46
  %105 = vmatprep.subr.mxu0 %v49
  %106 = vmatpush1.msra.mxu0 %v48
  %107 = vmatprep.subr.mxu0 %v51
  %108 = vmatpush1.msra.mxu0 %v50
  %109 = vmatprep.subr.mxu0 0.0
  %110 = vmatpush1.msra.mxu0 0.0
  %111 = vmatprep.subr.mxu0 0.0
  %112 = vmatpush1.msra.mxu0 0.0
  %113 = vmatprep.subr.mxu0 0.0
  %114 = vmatpush1.msra.mxu0 0.0
  %115 = vmatprep.subr.mxu0 0.0
  %116 = vmatpush1.msra.mxu0 0.0
  %117 = vmatprep.subr.mxu0 0.0
  %118 = vmatpush1.msra.mxu0 0.0
  %119 = vmatprep.subr.mxu0 0.0
  %120 = vmatpush1.msra.mxu0 0.0
  %121 = vmatprep.subr.mxu0 0.0
  %122 = vmatpush1.msra.mxu0 0.0
  %123 = vmatprep.subr.mxu0 0.0
  %124 = vmatpush1.msra.mxu0 0.0
  %125 = vmatprep.subr.mxu0 0.0
  %126 = vmatpush1.msra.mxu0 0.0
  %127 = vmatprep.subr.mxu0 0.0
  %128 = vmatpush1.msra.mxu0 0.0
  %129 = vmatprep.subr.mxu0 0.0
  %130 = vmatpush1.msra.mxu0 0.0
  %131 = vmatprep.subr.mxu0 0.0
  %132 = vmatpush1.msra.mxu0 0.0
  %133 = vmatprep.subr.mxu0 0.0
  %134 = vmatpush1.msra.mxu0 0.0
  %135 = vmatprep.subr.mxu0 0.0
  %136 = vmatpush1.msra.mxu0 0.0
  %137 = vmatprep.subr.mxu0 0.0
  %138 = vmatpush1.msra.mxu0 0.0
  %139 = vmatprep.subr.mxu0 0.0
  %140 = vmatpush1.msra.mxu0 0.0
  %141 = vmatprep.mubr.f32.mxu0 0.0
  %142 = vmatmul.mubr.f32.gmra.mrb[0].mxu0 %v65
  %v143 = vpop.f32.mrb[0].mxu0
  %v144 = vadd.f32 %v70, %v143
  %v145 = vpop.f32.mrb[0].mxu0
  %v146 = vadd.f32 %v74, %v145
  %147 = vdwg.mxu0
  %v148 = vxor.u32 %v144, 2147483648
  %v149 = vmul.f32 %v148, 1.442695
  %v150 = vpow.pop %v149
  %v151 = vadd.f32 %v150, 1.0
  %v152 = vrcp.pop %v151
  %v153 = vmul.f32 1.0, %v152
  %v154 = vtanh.pop %v144
  %v155 = vmul.f32 %v153, 0.0
  %157 = vrot.lane.b32.xlu0 %v154, 64
  %v158 = vpop.permute.xlu0 %157
  %v160 = vmul.f32 %v153, %v158
  %162 = vrot.lane.b32.xlu0 %v160, 32
  %v163 = vpop.permute.xlu0 %162
  %v165 = vadd.f32 %v155, %v163
  %v166 = vtanh.pop %v165
  %168 = vrot.lane.b32.xlu0 %v166, 64
  %v169 = vpop.permute.xlu0 %168
  %v171 = vmul.f32 %v153, %v169
  %v172 = vxor.u32 %v146, 2147483648
  %v173 = vmul.f32 %v172, 1.442695
  %v174 = vpow.pop %v173
  %v175 = vadd.f32 %v174, 1.0
  %v176 = vrcp.pop %v175
  %v177 = vmul.f32 1.0, %v176
  %v178 = vtanh.pop %v146
  %v179 = vmul.f32 %v177, 0.0
  %181 = vrot.lane.b32.xlu0 %v178, 64
  %v182 = vpop.permute.xlu0 %181
  %v184 = vmul.f32 %v177, %v182
  %186 = vrot.lane.b32.xlu0 %v184, 32
  %v187 = vpop.permute.xlu0 %186
  %v189 = vadd.f32 %v179, %v187
  %v190 = vtanh.pop %v189
  %192 = vrot.lane.b32.xlu0 %v190, 64
  %v193 = vpop.permute.xlu0 %192
  %v195 = vmul.f32 %v177, %v193
  %197 = vrot.lane.b32.xlu0 %v171, 32
  %v198 = vpop.permute.xlu0 %197
  %vm200 = vcmask 254976
  %201 = vst.msk [vmem:[#allocation2] sm:$0x3] %vm200, %v198
  %203 = vrot.lane.b32.xlu0 %v195, 32
  %v204 = vpop.permute.xlu0 %203
  %s206 = scalar_lea.vmem [#allocation3], 22
  %207 = vst.msk [vmem:[%s206] sm:$0x3] %vm200, %v204
  %s208 = scalar_lea.vmem %s0, 2
  %v209 = vld [vmem:[%s208] sm:$0x3]
  %s210 = scalar_lea.vmem %s0, 20
  %v211 = vld [vmem:[%s210] sm:$0x3]
  %212 = vrot.lane.b32.xlu0 %v171, 64
  %v213 = vpop.permute.xlu0 %212
  %216 = vrot.lane.b32.xlu0 %v211, 64
  %v217 = vpop.permute.xlu0 %216
  %v219 = vsel %vm60, %v209, %v213
  %v220 = vsel %vm62, %v219, %v217
  %v221 = vsel %vm64, %v220, %v195
  %222 = vmatprep.subr.mxu0 %v21
  %223 = vmatpush1.msra.mxu0 %v20
  %224 = vmatprep.subr.mxu0 %v23
  %225 = vmatpush1.msra.mxu0 %v22
  %226 = vmatprep.subr.mxu0 %v25
  %227 = vmatpush1.msra.mxu0 %v24
  %228 = vmatprep.subr.mxu0 %v27
  %229 = vmatpush1.msra.mxu0 %v26
  %230 = vmatprep.subr.mxu0 %v29
  %231 = vmatpush1.msra.mxu0 %v28
  %232 = vmatprep.subr.mxu0 %v31
  %233 = vmatpush1.msra.mxu0 %v30
  %234 = vmatprep.subr.mxu0 %v33
  %235 = vmatpush1.msra.mxu0 %v32
  %236 = vmatprep.subr.mxu0 %v35
  %237 = vmatpush1.msra.mxu0 %v34
  %238 = vmatprep.subr.mxu0 %v37
  %239 = vmatpush1.msra.mxu0 %v36
  %240 = vmatprep.subr.mxu0 %v39
  %241 = vmatpush1.msra.mxu0 %v38
  %242 = vmatprep.subr.mxu0 %v41
  %243 = vmatpush1.msra.mxu0 %v40
  %244 = vmatprep.subr.mxu0 %v43
  %245 = vmatpush1.msra.mxu0 %v42
  %246 = vmatprep.subr.mxu0 %v45
  %247 = vmatpush1.msra.mxu0 %v44
  %248 = vmatprep.subr.mxu0 %v47
  %249 = vmatpush1.msra.mxu0 %v46
  %250 = vmatprep.subr.mxu0 %v49
  %251 = vmatpush1.msra.mxu0 %v48
  %252 = vmatprep.subr.mxu0 %v51
  %253 = vmatpush1.msra.mxu0 %v50
  %254 = vmatprep.subr.mxu0 0.0
  %255 = vmatpush1.msra.mxu0 0.0
  %256 = vmatprep.subr.mxu0 0.0
  %257 = vmatpush1.msra.mxu0 0.0
  %258 = vmatprep.subr.mxu0 0.0
  %259 = vmatpush1.msra.mxu0 0.0
  %260 = vmatprep.subr.mxu0 0.0
  %261 = vmatpush1.msra.mxu0 0.0
  %262 = vmatprep.subr.mxu0 0.0
  %263 = vmatpush1.msra.mxu0 0.0
  %264 = vmatprep.subr.mxu0 0.0
  %265 = vmatpush1.msra.mxu0 0.0
  %266 = vmatprep.subr.mxu0 0.0
  %267 = vmatpush1.msra.mxu0 0.0
  %268 = vmatprep.subr.mxu0 0.0
  %269 = vmatpush1.msra.mxu0 0.0
  %270 = vmatprep.subr.mxu0 0.0
  %271 = vmatpush1.msra.mxu0 0.0
  %272 = vmatprep.subr.mxu0 0.0
  %273 = vmatpush1.msra.mxu0 0.0
  %274 = vmatprep.subr.mxu0 0.0
  %275 = vmatpush1.msra.mxu0 0.0
  %276 = vmatprep.subr.mxu0 0.0
  %277 = vmatpush1.msra.mxu0 0.0
  %278 = vmatprep.subr.mxu0 0.0
  %279 = vmatpush1.msra.mxu0 0.0
  %280 = vmatprep.subr.mxu0 0.0
  %281 = vmatpush1.msra.mxu0 0.0
  %282 = vmatprep.subr.mxu0 0.0
  %283 = vmatpush1.msra.mxu0 0.0
  %284 = vmatprep.subr.mxu0 0.0
  %285 = vmatpush1.msra.mxu0 0.0
  %286 = vmatprep.mubr.f32.mxu0 0.0
  %287 = vmatmul.mubr.f32.gmra.mrb[0].mxu0 %v221
  %v288 = vpop.f32.mrb[0].mxu0
  %v289 = vadd.f32 %v70, %v288
  %v290 = vpop.f32.mrb[0].mxu0
  %v291 = vadd.f32 %v74, %v290
  %292 = vdwg.mxu0
  %v293 = vxor.u32 %v289, 2147483648
  %v294 = vmul.f32 %v293, 1.442695
  %v295 = vpow.pop %v294
  %v296 = vadd.f32 %v295, 1.0
  %v297 = vrcp.pop %v296
  %v298 = vmul.f32 1.0, %v297
  %v299 = vtanh.pop %v289
  %v300 = vmul.f32 %v298, %v165
  %302 = vrot.lane.b32.xlu0 %v299, 64
  %v303 = vpop.permute.xlu0 %302
  %v305 = vmul.f32 %v298, %v303
  %307 = vrot.lane.b32.xlu0 %v305, 32
  %v308 = vpop.permute.xlu0 %307
  %v310 = vadd.f32 %v300, %v308
  %v311 = vtanh.pop %v310
  %313 = vrot.lane.b32.xlu0 %v311, 64
  %v314 = vpop.permute.xlu0 %313
  %v316 = vmul.f32 %v298, %v314
  %v317 = vxor.u32 %v291, 2147483648
  %v318 = vmul.f32 %v317, 1.442695
  %v319 = vpow.pop %v318
  %v320 = vadd.f32 %v319, 1.0
  %v321 = vrcp.pop %v320
  %v322 = vmul.f32 1.0, %v321
  %v323 = vtanh.pop %v291
  %v324 = vmul.f32 %v322, %v189
  %326 = vrot.lane.b32.xlu0 %v323, 64
  %v327 = vpop.permute.xlu0 %326
  %v329 = vmul.f32 %v322, %v327
  %331 = vrot.lane.b32.xlu0 %v329, 32
  %v332 = vpop.permute.xlu0 %331
  %v334 = vadd.f32 %v324, %v332
  %v335 = vtanh.pop %v334
  %337 = vrot.lane.b32.xlu0 %v335, 64
  %v338 = vpop.permute.xlu0 %337
  %v340 = vmul.f32 %v322, %v338
  %342 = vrot.lane.b32.xlu0 %v316, 32
  %v343 = vpop.permute.xlu0 %342
  %s345 = scalar_lea.vmem [#allocation2], 2
  %346 = vst.msk [vmem:[%s345] sm:$0x3] %vm200, %v343
  %348 = vrot.lane.b32.xlu0 %v340, 32
  %v349 = vpop.permute.xlu0 %348
  %s351 = scalar_lea.vmem [#allocation3], 20
  %352 = vst.msk [vmem:[%s351] sm:$0x3] %vm200, %v349
  %s353 = scalar_lea.vmem %s0, 4
  %v354 = vld [vmem:[%s353] sm:$0x3]
  %s355 = scalar_lea.vmem %s0, 18
  %v356 = vld [vmem:[%s355] sm:$0x3]
  %357 = vrot.lane.b32.xlu0 %v316, 64
  %v358 = vpop.permute.xlu0 %357
  %361 = vrot.lane.b32.xlu0 %v356, 64
  %v362 = vpop.permute.xlu0 %361
  %v364 = vsel %vm60, %v354, %v358
  %v365 = vsel %vm62, %v364, %v362
  %v366 = vsel %vm64, %v365, %v340
  %367 = vmatprep.subr.mxu0 %v21
  %368 = vmatpush1.msra.mxu0 %v20
  %369 = vmatprep.subr.mxu0 %v23
  %370 = vmatpush1.msra.mxu0 %v22
  %371 = vmatprep.subr.mxu0 %v25
  %372 = vmatpush1.msra.mxu0 %v24
  %373 = vmatprep.subr.mxu0 %v27
  %374 = vmatpush1.msra.mxu0 %v26
  %375 = vmatprep.subr.mxu0 %v29
  %376 = vmatpush1.msra.mxu0 %v28
  %377 = vmatprep.subr.mxu0 %v31
  %378 = vmatpush1.msra.mxu0 %v30
  %379 = vmatprep.subr.mxu0 %v33
  %380 = vmatpush1.msra.mxu0 %v32
  %381 = vmatprep.subr.mxu0 %v35
  %382 = vmatpush1.msra.mxu0 %v34
  %383 = vmatprep.subr.mxu0 %v37
  %384 = vmatpush1.msra.mxu0 %v36
  %385 = vmatprep.subr.mxu0 %v39
  %386 = vmatpush1.msra.mxu0 %v38
  %387 = vmatprep.subr.mxu0 %v41
  %388 = vmatpush1.msra.mxu0 %v40
  %389 = vmatprep.subr.mxu0 %v43
  %390 = vmatpush1.msra.mxu0 %v42
  %391 = vmatprep.subr.mxu0 %v45
  %392 = vmatpush1.msra.mxu0 %v44
  %393 = vmatprep.subr.mxu0 %v47
  %394 = vmatpush1.msra.mxu0 %v46
  %395 = vmatprep.subr.mxu0 %v49
  %396 = vmatpush1.msra.mxu0 %v48
  %397 = vmatprep.subr.mxu0 %v51
  %398 = vmatpush1.msra.mxu0 %v50
  %399 = vmatprep.subr.mxu0 0.0
  %400 = vmatpush1.msra.mxu0 0.0
  %401 = vmatprep.subr.mxu0 0.0
  %402 = vmatpush1.msra.mxu0 0.0
  %403 = vmatprep.subr.mxu0 0.0
  %404 = vmatpush1.msra.mxu0 0.0
  %405 = vmatprep.subr.mxu0 0.0
  %406 = vmatpush1.msra.mxu0 0.0
  %407 = vmatprep.subr.mxu0 0.0
  %408 = vmatpush1.msra.mxu0 0.0
  %409 = vmatprep.subr.mxu0 0.0
  %410 = vmatpush1.msra.mxu0 0.0
  %411 = vmatprep.subr.mxu0 0.0
  %412 = vmatpush1.msra.mxu0 0.0
  %413 = vmatprep.subr.mxu0 0.0
  %414 = vmatpush1.msra.mxu0 0.0
  %415 = vmatprep.subr.mxu0 0.0
  %416 = vmatpush1.msra.mxu0 0.0
  %417 = vmatprep.subr.mxu0 0.0
  %418 = vmatpush1.msra.mxu0 0.0
  %419 = vmatprep.subr.mxu0 0.0
  %420 = vmatpush1.msra.mxu0 0.0
  %421 = vmatprep.subr.mxu0 0.0
  %422 = vmatpush1.msra.mxu0 0.0
  %423 = vmatprep.subr.mxu0 0.0
  %424 = vmatpush1.msra.mxu0 0.0
  %425 = vmatprep.subr.mxu0 0.0
  %426 = vmatpush1.msra.mxu0 0.0
  %427 = vmatprep.subr.mxu0 0.0
  %428 = vmatpush1.msra.mxu0 0.0
  %429 = vmatprep.subr.mxu0 0.0
  %430 = vmatpush1.msra.mxu0 0.0
  %431 = vmatprep.mubr.f32.mxu0 0.0
  %432 = vmatmul.mubr.f32.gmra.mrb[0].mxu0 %v366
  %v433 = vpop.f32.mrb[0].mxu0
  %v434 = vadd.f32 %v70, %v433
  %v435 = vpop.f32.mrb[0].mxu0
  %v436 = vadd.f32 %v74, %v435
  %437 = vdwg.mxu0
  %v438 = vxor.u32 %v434, 2147483648
  %v439 = vmul.f32 %v438, 1.442695
  %v440 = vpow.pop %v439
  %v441 = vadd.f32 %v440, 1.0
  %v442 = vrcp.pop %v441
  %v443 = vmul.f32 1.0, %v442
  %v444 = vtanh.pop %v434
  %v445 = vmul.f32 %v443, %v310
  %447 = vrot.lane.b32.xlu0 %v444, 64
  %v448 = vpop.permute.xlu0 %447
  %v450 = vmul.f32 %v443, %v448
  %452 = vrot.lane.b32.xlu0 %v450, 32
  %v453 = vpop.permute.xlu0 %452
  %v455 = vadd.f32 %v445, %v453
  %v456 = vtanh.pop %v455
  %458 = vrot.lane.b32.xlu0 %v456, 64
  %v459 = vpop.permute.xlu0 %458
  %v461 = vmul.f32 %v443, %v459
  %v462 = vxor.u32 %v436, 2147483648
  %v463 = vmul.f32 %v462, 1.442695
  %v464 = vpow.pop %v463
  %v465 = vadd.f32 %v464, 1.0
  %v466 = vrcp.pop %v465
  %v467 = vmul.f32 1.0, %v466
  %v468 = vtanh.pop %v436
  %v469 = vmul.f32 %v467, %v334
  %471 = vrot.lane.b32.xlu0 %v468, 64
  %v472 = vpop.permute.xlu0 %471
  %v474 = vmul.f32 %v467, %v472
  %476 = vrot.lane.b32.xlu0 %v474, 32
  %v477 = vpop.permute.xlu0 %476
  %v479 = vadd.f32 %v469, %v477
  %v480 = vtanh.pop %v479
  %482 = vrot.lane.b32.xlu0 %v480, 64
  %v483 = vpop.permute.xlu0 %482
  %v485 = vmul.f32 %v467, %v483
  %487 = vrot.lane.b32.xlu0 %v461, 32
  %v488 = vpop.permute.xlu0 %487
  %s490 = scalar_lea.vmem [#allocation2], 4
  %491 = vst.msk [vmem:[%s490] sm:$0x3] %vm200, %v488
  %493 = vrot.lane.b32.xlu0 %v485, 32
  %v494 = vpop.permute.xlu0 %493
  %s496 = scalar_lea.vmem [#allocation3], 18
  %497 = vst.msk [vmem:[%s496] sm:$0x3] %vm200, %v494
  %s498 = scalar_lea.vmem %s0, 6
  %v499 = vld [vmem:[%s498] sm:$0x3]
  %s500 = scalar_lea.vmem %s0, 16
  %v501 = vld [vmem:[%s500] sm:$0x3]
  %502 = vrot.lane.b32.xlu0 %v461, 64
  %v503 = vpop.permute.xlu0 %502
  %506 = vrot.lane.b32.xlu0 %v501, 64
  %v507 = vpop.permute.xlu0 %506
  %v509 = vsel %vm60, %v499, %v503
  %v510 = vsel %vm62, %v509, %v507
  %v511 = vsel %vm64, %v510, %v485
  %512 = vmatprep.subr.mxu0 %v21
  %513 = vmatpush1.msra.mxu0 %v20
  %514 = vmatprep.subr.mxu0 %v23
  %515 = vmatpush1.msra.mxu0 %v22
  %516 = vmatprep.subr.mxu0 %v25
  %517 = vmatpush1.msra.mxu0 %v24
  %518 = vmatprep.subr.mxu0 %v27
  %519 = vmatpush1.msra.mxu0 %v26
  %520 = vmatprep.subr.mxu0 %v29
  %521 = vmatpush1.msra.mxu0 %v28
  %522 = vmatprep.subr.mxu0 %v31
  %523 = vmatpush1.msra.mxu0 %v30
  %524 = vmatprep.subr.mxu0 %v33
  %525 = vmatpush1.msra.mxu0 %v32
  %526 = vmatprep.subr.mxu0 %v35
  %527 = vmatpush1.msra.mxu0 %v34
  %528 = vmatprep.subr.mxu0 %v37
  %529 = vmatpush1.msra.mxu0 %v36
  %530 = vmatprep.subr.mxu0 %v39
  %531 = vmatpush1.msra.mxu0 %v38
  %532 = vmatprep.subr.mxu0 %v41
  %533 = vmatpush1.msra.mxu0 %v40
  %534 = vmatprep.subr.mxu0 %v43
  %535 = vmatpush1.msra.mxu0 %v42
  %536 = vmatprep.subr.mxu0 %v45
  %537 = vmatpush1.msra.mxu0 %v44
  %538 = vmatprep.subr.mxu0 %v47
  %539 = vmatpush1.msra.mxu0 %v46
  %540 = vmatprep.subr.mxu0 %v49
  %541 = vmatpush1.msra.mxu0 %v48
  %542 = vmatprep.subr.mxu0 %v51
  %543 = vmatpush1.msra.mxu0 %v50
  %544 = vmatprep.subr.mxu0 0.0
  %545 = vmatpush1.msra.mxu0 0.0
  %546 = vmatprep.subr.mxu0 0.0
  %547 = vmatpush1.msra.mxu0 0.0
  %548 = vmatprep.subr.mxu0 0.0
  %549 = vmatpush1.msra.mxu0 0.0
  %550 = vmatprep.subr.mxu0 0.0
  %551 = vmatpush1.msra.mxu0 0.0
  %552 = vmatprep.subr.mxu0 0.0
  %553 = vmatpush1.msra.mxu0 0.0
  %554 = vmatprep.subr.mxu0 0.0
  %555 = vmatpush1.msra.mxu0 0.0
  %556 = vmatprep.subr.mxu0 0.0
  %557 = vmatpush1.msra.mxu0 0.0
  %558 = vmatprep.subr.mxu0 0.0
  %559 = vmatpush1.msra.mxu0 0.0
  %560 = vmatprep.subr.mxu0 0.0
  %561 = vmatpush1.msra.mxu0 0.0
  %562 = vmatprep.subr.mxu0 0.0
  %563 = vmatpush1.msra.mxu0 0.0
  %564 = vmatprep.subr.mxu0 0.0
  %565 = vmatpush1.msra.mxu0 0.0
  %566 = vmatprep.subr.mxu0 0.0
  %567 = vmatpush1.msra.mxu0 0.0
  %568 = vmatprep.subr.mxu0 0.0
  %569 = vmatpush1.msra.mxu0 0.0
  %570 = vmatprep.subr.mxu0 0.0
  %571 = vmatpush1.msra.mxu0 0.0
  %572 = vmatprep.subr.mxu0 0.0
  %573 = vmatpush1.msra.mxu0 0.0
  %574 = vmatprep.subr.mxu0 0.0
  %575 = vmatpush1.msra.mxu0 0.0
  %576 = vmatprep.mubr.f32.mxu0 0.0
  %577 = vmatmul.mubr.f32.gmra.mrb[0].mxu0 %v511
  %v578 = vpop.f32.mrb[0].mxu0
  %v579 = vadd.f32 %v70, %v578
  %v580 = vpop.f32.mrb[0].mxu0
  %v581 = vadd.f32 %v74, %v580
  %582 = vdwg.mxu0
  %v583 = vxor.u32 %v579, 2147483648
  %v584 = vmul.f32 %v583, 1.442695
  %v585 = vpow.pop %v584
  %v586 = vadd.f32 %v585, 1.0
  %v587 = vrcp.pop %v586
  %v588 = vmul.f32 1.0, %v587
  %v589 = vtanh.pop %v579
  %v590 = vmul.f32 %v588, %v455
  %592 = vrot.lane.b32.xlu0 %v589, 64
  %v593 = vpop.permute.xlu0 %592
  %v595 = vmul.f32 %v588, %v593
  %597 = vrot.lane.b32.xlu0 %v595, 32
  %v598 = vpop.permute.xlu0 %597
  %v600 = vadd.f32 %v590, %v598
  %v601 = vtanh.pop %v600
  %603 = vrot.lane.b32.xlu0 %v601, 64
  %v604 = vpop.permute.xlu0 %603
  %v606 = vmul.f32 %v588, %v604
  %v607 = vxor.u32 %v581, 2147483648
  %v608 = vmul.f32 %v607, 1.442695
  %v609 = vpow.pop %v608
  %v610 = vadd.f32 %v609, 1.0
  %v611 = vrcp.pop %v610
  %v612 = vmul.f32 1.0, %v611
  %v613 = vtanh.pop %v581
  %v614 = vmul.f32 %v612, %v479
  %616 = vrot.lane.b32.xlu0 %v613, 64
  %v617 = vpop.permute.xlu0 %616
  %v619 = vmul.f32 %v612, %v617
  %621 = vrot.lane.b32.xlu0 %v619, 32
  %v622 = vpop.permute.xlu0 %621
  %v624 = vadd.f32 %v614, %v622
  %v625 = vtanh.pop %v624
  %627 = vrot.lane.b32.xlu0 %v625, 64
  %v628 = vpop.permute.xlu0 %627
  %v630 = vmul.f32 %v612, %v628
  %632 = vrot.lane.b32.xlu0 %v606, 32
  %v633 = vpop.permute.xlu0 %632
  %s635 = scalar_lea.vmem [#allocation2], 6
  %636 = vst.msk [vmem:[%s635] sm:$0x3] %vm200, %v633
  %638 = vrot.lane.b32.xlu0 %v630, 32
  %v639 = vpop.permute.xlu0 %638
  %s641 = scalar_lea.vmem [#allocation3], 16
  %642 = vst.msk [vmem:[%s641] sm:$0x3] %vm200, %v639
  %s643 = scalar_lea.vmem %s0, 8
  %v644 = vld [vmem:[%s643] sm:$0x3]
  %s645 = scalar_lea.vmem %s0, 14
  %v646 = vld [vmem:[%s645] sm:$0x3]
  %647 = vrot.lane.b32.xlu0 %v606, 64
  %v648 = vpop.permute.xlu0 %647
  %651 = vrot.lane.b32.xlu0 %v646, 64
  %v652 = vpop.permute.xlu0 %651
  %v654 = vsel %vm60, %v644, %v648
  %v655 = vsel %vm62, %v654, %v652
  %v656 = vsel %vm64, %v655, %v630
  %657 = vmatprep.subr.mxu0 %v21
  %658 = vmatpush1.msra.mxu0 %v20
  %659 = vmatprep.subr.mxu0 %v23
  %660 = vmatpush1.msra.mxu0 %v22
  %661 = vmatprep.subr.mxu0 %v25
  %662 = vmatpush1.msra.mxu0 %v24
  %663 = vmatprep.subr.mxu0 %v27
  %664 = vmatpush1.msra.mxu0 %v26
  %665 = vmatprep.subr.mxu0 %v29
  %666 = vmatpush1.msra.mxu0 %v28
  %667 = vmatprep.subr.mxu0 %v31
  %668 = vmatpush1.msra.mxu0 %v30
  %669 = vmatprep.subr.mxu0 %v33
  %670 = vmatpush1.msra.mxu0 %v32
  %671 = vmatprep.subr.mxu0 %v35
  %672 = vmatpush1.msra.mxu0 %v34
  %673 = vmatprep.subr.mxu0 %v37
  %674 = vmatpush1.msra.mxu0 %v36
  %675 = vmatprep.subr.mxu0 %v39
  %676 = vmatpush1.msra.mxu0 %v38
  %677 = vmatprep.subr.mxu0 %v41
  %678 = vmatpush1.msra.mxu0 %v40
  %679 = vmatprep.subr.mxu0 %v43
  %680 = vmatpush1.msra.mxu0 %v42
  %681 = vmatprep.subr.mxu0 %v45
  %682 = vmatpush1.msra.mxu0 %v44
  %683 = vmatprep.subr.mxu0 %v47
  %684 = vmatpush1.msra.mxu0 %v46
  %685 = vmatprep.subr.mxu0 %v49
  %686 = vmatpush1.msra.mxu0 %v48
  %687 = vmatprep.subr.mxu0 %v51
  %688 = vmatpush1.msra.mxu0 %v50
  %689 = vmatprep.subr.mxu0 0.0
  %690 = vmatpush1.msra.mxu0 0.0
  %691 = vmatprep.subr.mxu0 0.0
  %692 = vmatpush1.msra.mxu0 0.0
  %693 = vmatprep.subr.mxu0 0.0
  %694 = vmatpush1.msra.mxu0 0.0
  %695 = vmatprep.subr.mxu0 0.0
  %696 = vmatpush1.msra.mxu0 0.0
  %697 = vmatprep.subr.mxu0 0.0
  %698 = vmatpush1.msra.mxu0 0.0
  %699 = vmatprep.subr.mxu0 0.0
  %700 = vmatpush1.msra.mxu0 0.0
  %701 = vmatprep.subr.mxu0 0.0
  %702 = vmatpush1.msra.mxu0 0.0
  %703 = vmatprep.subr.mxu0 0.0
  %704 = vmatpush1.msra.mxu0 0.0
  %705 = vmatprep.subr.mxu0 0.0
  %706 = vmatpush1.msra.mxu0 0.0
  %707 = vmatprep.subr.mxu0 0.0
  %708 = vmatpush1.msra.mxu0 0.0
  %709 = vmatprep.subr.mxu0 0.0
  %710 = vmatpush1.msra.mxu0 0.0
  %711 = vmatprep.subr.mxu0 0.0
  %712 = vmatpush1.msra.mxu0 0.0
  %713 = vmatprep.subr.mxu0 0.0
  %714 = vmatpush1.msra.mxu0 0.0
  %715 = vmatprep.subr.mxu0 0.0
  %716 = vmatpush1.msra.mxu0 0.0
  %717 = vmatprep.subr.mxu0 0.0
  %718 = vmatpush1.msra.mxu0 0.0
  %719 = vmatprep.subr.mxu0 0.0
  %720 = vmatpush1.msra.mxu0 0.0
  %721 = vmatprep.mubr.f32.mxu0 0.0
  %722 = vmatmul.mubr.f32.gmra.mrb[0].mxu0 %v656
  %v723 = vpop.f32.mrb[0].mxu0
  %v724 = vadd.f32 %v70, %v723
  %v725 = vpop.f32.mrb[0].mxu0
  %v726 = vadd.f32 %v74, %v725
  %727 = vdwg.mxu0
  %v728 = vxor.u32 %v724, 2147483648
  %v729 = vmul.f32 %v728, 1.442695
  %v730 = vpow.pop %v729
  %v731 = vadd.f32 %v730, 1.0
  %v732 = vrcp.pop %v731
  %v733 = vmul.f32 1.0, %v732
  %v734 = vtanh.pop %v724
  %v735 = vmul.f32 %v733, %v600
  %737 = vrot.lane.b32.xlu0 %v734, 64
  %v738 = vpop.permute.xlu0 %737
  %v740 = vmul.f32 %v733, %v738
  %742 = vrot.lane.b32.xlu0 %v740, 32
  %v743 = vpop.permute.xlu0 %742
  %v745 = vadd.f32 %v735, %v743
  %v746 = vtanh.pop %v745
  %748 = vrot.lane.b32.xlu0 %v746, 64
  %v749 = vpop.permute.xlu0 %748
  %v751 = vmul.f32 %v733, %v749
  %v752 = vxor.u32 %v726, 2147483648
  %v753 = vmul.f32 %v752, 1.442695
  %v754 = vpow.pop %v753
  %v755 = vadd.f32 %v754, 1.0
  %v756 = vrcp.pop %v755
  %v757 = vmul.f32 1.0, %v756
  %v758 = vtanh.pop %v726
  %v759 = vmul.f32 %v757, %v624
  %761 = vrot.lane.b32.xlu0 %v758, 64
  %v762 = vpop.permute.xlu0 %761
  %v764 = vmul.f32 %v757, %v762
  %766 = vrot.lane.b32.xlu0 %v764, 32
  %v767 = vpop.permute.xlu0 %766
  %v769 = vadd.f32 %v759, %v767
  %v770 = vtanh.pop %v769
  %772 = vrot.lane.b32.xlu0 %v770, 64
  %v773 = vpop.permute.xlu0 %772
  %v775 = vmul.f32 %v757, %v773
  %777 = vrot.lane.b32.xlu0 %v751, 32
  %v778 = vpop.permute.xlu0 %777
  %s780 = scalar_lea.vmem [#allocation2], 8
  %781 = vst.msk [vmem:[%s780] sm:$0x3] %vm200, %v778
  %783 = vrot.lane.b32.xlu0 %v775, 32
  %v784 = vpop.permute.xlu0 %783
  %s786 = scalar_lea.vmem [#allocation3], 14
  %787 = vst.msk [vmem:[%s786] sm:$0x3] %vm200, %v784
  %s788 = scalar_lea.vmem %s0, 10
  %v789 = vld [vmem:[%s788] sm:$0x3]
  %s790 = scalar_lea.vmem %s0, 12
  %v791 = vld [vmem:[%s790] sm:$0x3]
  %792 = vrot.lane.b32.xlu0 %v751, 64
  %v793 = vpop.permute.xlu0 %792
  %796 = vrot.lane.b32.xlu0 %v791, 64
  %v797 = vpop.permute.xlu0 %796
  %v799 = vsel %vm60, %v789, %v793
  %v800 = vsel %vm62, %v799, %v797
  %v801 = vsel %vm64, %v800, %v775
  %802 = vmatprep.subr.mxu0 %v21
  %803 = vmatpush1.msra.mxu0 %v20
  %804 = vmatprep.subr.mxu0 %v23
  %805 = vmatpush1.msra.mxu0 %v22
  %806 = vmatprep.subr.mxu0 %v25
  %807 = vmatpush1.msra.mxu0 %v24
  %808 = vmatprep.subr.mxu0 %v27
  %809 = vmatpush1.msra.mxu0 %v26
  %810 = vmatprep.subr.mxu0 %v29
  %811 = vmatpush1.msra.mxu0 %v28
  %812 = vmatprep.subr.mxu0 %v31
  %813 = vmatpush1.msra.mxu0 %v30
  %814 = vmatprep.subr.mxu0 %v33
  %815 = vmatpush1.msra.mxu0 %v32
  %816 = vmatprep.subr.mxu0 %v35
  %817 = vmatpush1.msra.mxu0 %v34
  %818 = vmatprep.subr.mxu0 %v37
  %819 = vmatpush1.msra.mxu0 %v36
  %820 = vmatprep.subr.mxu0 %v39
  %821 = vmatpush1.msra.mxu0 %v38
  %822 = vmatprep.subr.mxu0 %v41
  %823 = vmatpush1.msra.mxu0 %v40
  %824 = vmatprep.subr.mxu0 %v43
  %825 = vmatpush1.msra.mxu0 %v42
  %826 = vmatprep.subr.mxu0 %v45
  %827 = vmatpush1.msra.mxu0 %v44
  %828 = vmatprep.subr.mxu0 %v47
  %829 = vmatpush1.msra.mxu0 %v46
  %830 = vmatprep.subr.mxu0 %v49
  %831 = vmatpush1.msra.mxu0 %v48
  %832 = vmatprep.subr.mxu0 %v51
  %833 = vmatpush1.msra.mxu0 %v50
  %834 = vmatprep.subr.mxu0 0.0
  %835 = vmatpush1.msra.mxu0 0.0
  %836 = vmatprep.subr.mxu0 0.0
  %837 = vmatpush1.msra.mxu0 0.0
  %838 = vmatprep.subr.mxu0 0.0
  %839 = vmatpush1.msra.mxu0 0.0
  %840 = vmatprep.subr.mxu0 0.0
  %841 = vmatpush1.msra.mxu0 0.0
  %842 = vmatprep.subr.mxu0 0.0
  %843 = vmatpush1.msra.mxu0 0.0
  %844 = vmatprep.subr.mxu0 0.0
  %845 = vmatpush1.msra.mxu0 0.0
  %846 = vmatprep.subr.mxu0 0.0
  %847 = vmatpush1.msra.mxu0 0.0
  %848 = vmatprep.subr.mxu0 0.0
  %849 = vmatpush1.msra.mxu0 0.0
  %850 = vmatprep.subr.mxu0 0.0
  %851 = vmatpush1.msra.mxu0 0.0
  %852 = vmatprep.subr.mxu0 0.0
  %853 = vmatpush1.msra.mxu0 0.0
  %854 = vmatprep.subr.mxu0 0.0
  %855 = vmatpush1.msra.mxu0 0.0
  %856 = vmatprep.subr.mxu0 0.0
  %857 = vmatpush1.msra.mxu0 0.0
  %858 = vmatprep.subr.mxu0 0.0
  %859 = vmatpush1.msra.mxu0 0.0
  %860 = vmatprep.subr.mxu0 0.0
  %861 = vmatpush1.msra.mxu0 0.0
  %862 = vmatprep.subr.mxu0 0.0
  %863 = vmatpush1.msra.mxu0 0.0
  %864 = vmatprep.subr.mxu0 0.0
  %865 = vmatpush1.msra.mxu0 0.0
  %866 = vmatprep.mubr.f32.mxu0 0.0
  %867 = vmatmul.mubr.f32.gmra.mrb[0].mxu0 %v801
  %v868 = vpop.f32.mrb[0].mxu0
  %v869 = vadd.f32 %v70, %v868
  %v870 = vpop.f32.mrb[0].mxu0
  %v871 = vadd.f32 %v74, %v870
  %872 = vdwg.mxu0
  %v873 = vxor.u32 %v869, 2147483648
  %v874 = vmul.f32 %v873, 1.442695
  %v875 = vpow.pop %v874
  %v876 = vadd.f32 %v875, 1.0
  %v877 = vrcp.pop %v876
  %v878 = vmul.f32 1.0, %v877
  %v879 = vtanh.pop %v869
  %v880 = vmul.f32 %v878, %v745
  %882 = vrot.lane.b32.xlu0 %v879, 64
  %v883 = vpop.permute.xlu0 %882
  %v885 = vmul.f32 %v878, %v883
  %887 = vrot.lane.b32.xlu0 %v885, 32
  %v888 = vpop.permute.xlu0 %887
  %v890 = vadd.f32 %v880, %v888
  %v891 = vtanh.pop %v890
  %893 = vrot.lane.b32.xlu0 %v891, 64
  %v894 = vpop.permute.xlu0 %893
  %v896 = vmul.f32 %v878, %v894
  %v897 = vxor.u32 %v871, 2147483648
  %v898 = vmul.f32 %v897, 1.442695
  %v899 = vpow.pop %v898
  %v900 = vadd.f32 %v899, 1.0
  %v901 = vrcp.pop %v900
  %v902 = vmul.f32 1.0, %v901
  %v903 = vtanh.pop %v871
  %v904 = vmul.f32 %v902, %v769
  %906 = vrot.lane.b32.xlu0 %v903, 64
  %v907 = vpop.permute.xlu0 %906
  %v909 = vmul.f32 %v902, %v907
  %911 = vrot.lane.b32.xlu0 %v909, 32
  %v912 = vpop.permute.xlu0 %911
  %v914 = vadd.f32 %v904, %v912
  %v915 = vtanh.pop %v914
  %917 = vrot.lane.b32.xlu0 %v915, 64
  %v918 = vpop.permute.xlu0 %917
  %v920 = vmul.f32 %v902, %v918
  %922 = vrot.lane.b32.xlu0 %v896, 32
  %v923 = vpop.permute.xlu0 %922
  %s925 = scalar_lea.vmem [#allocation2], 10
  %926 = vst.msk [vmem:[%s925] sm:$0x3] %vm200, %v923
  %928 = vrot.lane.b32.xlu0 %v920, 32
  %v929 = vpop.permute.xlu0 %928
  %s931 = scalar_lea.vmem [#allocation3], 12
  %932 = vst.msk [vmem:[%s931] sm:$0x3] %vm200, %v929
  %v933 = vld [vmem:[%s790] sm:$0x3]
  %v934 = vld [vmem:[%s788] sm:$0x3]
  %935 = vrot.lane.b32.xlu0 %v896, 64
  %v936 = vpop.permute.xlu0 %935
  %939 = vrot.lane.b32.xlu0 %v934, 64
  %v940 = vpop.permute.xlu0 %939
  %v942 = vsel %vm60, %v933, %v936
  %v943 = vsel %vm62, %v942, %v940
  %v944 = vsel %vm64, %v943, %v920
  %945 = vmatprep.subr.mxu0 %v21
  %946 = vmatpush1.msra.mxu0 %v20
  %947 = vmatprep.subr.mxu0 %v23
  %948 = vmatpush1.msra.mxu0 %v22
  %949 = vmatprep.subr.mxu0 %v25
  %950 = vmatpush1.msra.mxu0 %v24
  %951 = vmatprep.subr.mxu0 %v27
  %952 = vmatpush1.msra.mxu0 %v26
  %953 = vmatprep.subr.mxu0 %v29
  %954 = vmatpush1.msra.mxu0 %v28
  %955 = vmatprep.subr.mxu0 %v31
  %956 = vmatpush1.msra.mxu0 %v30
  %957 = vmatprep.subr.mxu0 %v33
  %958 = vmatpush1.msra.mxu0 %v32
  %959 = vmatprep.subr.mxu0 %v35
  %960 = vmatpush1.msra.mxu0 %v34
  %961 = vmatprep.subr.mxu0 %v37
  %962 = vmatpush1.msra.mxu0 %v36
  %963 = vmatprep.subr.mxu0 %v39
  %964 = vmatpush1.msra.mxu0 %v38
  %965 = vmatprep.subr.mxu0 %v41
  %966 = vmatpush1.msra.mxu0 %v40
  %967 = vmatprep.subr.mxu0 %v43
  %968 = vmatpush1.msra.mxu0 %v42
  %969 = vmatprep.subr.mxu0 %v45
  %970 = vmatpush1.msra.mxu0 %v44
  %971 = vmatprep.subr.mxu0 %v47
  %972 = vmatpush1.msra.mxu0 %v46
  %973 = vmatprep.subr.mxu0 %v49
  %974 = vmatpush1.msra.mxu0 %v48
  %975 = vmatprep.subr.mxu0 %v51
  %976 = vmatpush1.msra.mxu0 %v50
  %977 = vmatprep.subr.mxu0 0.0
  %978 = vmatpush1.msra.mxu0 0.0
  %979 = vmatprep.subr.mxu0 0.0
  %980 = vmatpush1.msra.mxu0 0.0
  %981 = vmatprep.subr.mxu0 0.0
  %982 = vmatpush1.msra.mxu0 0.0
  %983 = vmatprep.subr.mxu0 0.0
  %984 = vmatpush1.msra.mxu0 0.0
  %985 = vmatprep.subr.mxu0 0.0
  %986 = vmatpush1.msra.mxu0 0.0
  %987 = vmatprep.subr.mxu0 0.0
  %988 = vmatpush1.msra.mxu0 0.0
  %989 = vmatprep.subr.mxu0 0.0
  %990 = vmatpush1.msra.mxu0 0.0
  %991 = vmatprep.subr.mxu0 0.0
  %992 = vmatpush1.msra.mxu0 0.0
  %993 = vmatprep.subr.mxu0 0.0
  %994 = vmatpush1.msra.mxu0 0.0
  %995 = vmatprep.subr.mxu0 0.0
  %996 = vmatpush1.msra.mxu0 0.0
  %997 = vmatprep.subr.mxu0 0.0
  %998 = vmatpush1.msra.mxu0 0.0
  %999 = vmatprep.subr.mxu0 0.0
  %1000 = vmatpush1.msra.mxu0 0.0
  %1001 = vmatprep.subr.mxu0 0.0
  %1002 = vmatpush1.msra.mxu0 0.0
  %1003 = vmatprep.subr.mxu0 0.0
  %1004 = vmatpush1.msra.mxu0 0.0
  %1005 = vmatprep.subr.mxu0 0.0
  %1006 = vmatpush1.msra.mxu0 0.0
  %1007 = vmatprep.subr.mxu0 0.0
  %1008 = vmatpush1.msra.mxu0 0.0
  %1009 = vmatprep.mubr.f32.mxu0 0.0
  %1010 = vmatmul.mubr.f32.gmra.mrb[0].mxu0 %v944
  %v1011 = vpop.f32.mrb[0].mxu0
  %v1012 = vadd.f32 %v70, %v1011
  %v1013 = vpop.f32.mrb[0].mxu0
  %v1014 = vadd.f32 %v74, %v1013
  %1015 = vdwg.mxu0
  %v1016 = vxor.u32 %v1012, 2147483648
  %v1017 = vmul.f32 %v1016, 1.442695
  %v1018 = vpow.pop %v1017
  %v1019 = vadd.f32 %v1018, 1.0
  %v1020 = vrcp.pop %v1019
  %v1021 = vmul.f32 1.0, %v1020
  %v1022 = vtanh.pop %v1012
  %v1023 = vmul.f32 %v1021, %v890
  %1025 = vrot.lane.b32.xlu0 %v1022, 64
  %v1026 = vpop.permute.xlu0 %1025
  %v1028 = vmul.f32 %v1021, %v1026
  %1030 = vrot.lane.b32.xlu0 %v1028, 32
  %v1031 = vpop.permute.xlu0 %1030
  %v1033 = vadd.f32 %v1023, %v1031
  %v1034 = vtanh.pop %v1033
  %1036 = vrot.lane.b32.xlu0 %v1034, 64
  %v1037 = vpop.permute.xlu0 %1036
  %v1039 = vmul.f32 %v1021, %v1037
  %v1040 = vxor.u32 %v1014, 2147483648
  %v1041 = vmul.f32 %v1040, 1.442695
  %v1042 = vpow.pop %v1041
  %v1043 = vadd.f32 %v1042, 1.0
  %v1044 = vrcp.pop %v1043
  %v1045 = vmul.f32 1.0, %v1044
  %v1046 = vtanh.pop %v1014
  %v1047 = vmul.f32 %v1045, %v914
  %1049 = vrot.lane.b32.xlu0 %v1046, 64
  %v1050 = vpop.permute.xlu0 %1049
  %v1052 = vmul.f32 %v1045, %v1050
  %1054 = vrot.lane.b32.xlu0 %v1052, 32
  %v1055 = vpop.permute.xlu0 %1054
  %v1057 = vadd.f32 %v1047, %v1055
  %v1058 = vtanh.pop %v1057
  %1060 = vrot.lane.b32.xlu0 %v1058, 64
  %v1061 = vpop.permute.xlu0 %1060
  %v1063 = vmul.f32 %v1045, %v1061
  %1065 = vrot.lane.b32.xlu0 %v1039, 32
  %v1066 = vpop.permute.xlu0 %1065
  %s1068 = scalar_lea.vmem [#allocation2], 12
  %1069 = vst.msk [vmem:[%s1068] sm:$0x3] %vm200, %v1066
  %1071 = vrot.lane.b32.xlu0 %v1063, 32
  %v1072 = vpop.permute.xlu0 %1071
  %s1074 = scalar_lea.vmem [#allocation3], 10
  %1075 = vst.msk [vmem:[%s1074] sm:$0x3] %vm200, %v1072
  %v1076 = vld [vmem:[%s645] sm:$0x3]
  %v1077 = vld [vmem:[%s643] sm:$0x3]
  %1078 = vrot.lane.b32.xlu0 %v1039, 64
  %v1079 = vpop.permute.xlu0 %1078
  %1082 = vrot.lane.b32.xlu0 %v1077, 64
  %v1083 = vpop.permute.xlu0 %1082
  %v1085 = vsel %vm60, %v1076, %v1079
  %v1086 = vsel %vm62, %v1085, %v1083
  %v1087 = vsel %vm64, %v1086, %v1063
  %1088 = vmatprep.subr.mxu0 %v21
  %1089 = vmatpush1.msra.mxu0 %v20
  %1090 = vmatprep.subr.mxu0 %v23
  %1091 = vmatpush1.msra.mxu0 %v22
  %1092 = vmatprep.subr.mxu0 %v25
  %1093 = vmatpush1.msra.mxu0 %v24
  %1094 = vmatprep.subr.mxu0 %v27
  %1095 = vmatpush1.msra.mxu0 %v26
  %1096 = vmatprep.subr.mxu0 %v29
  %1097 = vmatpush1.msra.mxu0 %v28
  %1098 = vmatprep.subr.mxu0 %v31
  %1099 = vmatpush1.msra.mxu0 %v30
  %1100 = vmatprep.subr.mxu0 %v33
  %1101 = vmatpush1.msra.mxu0 %v32
  %1102 = vmatprep.subr.mxu0 %v35
  %1103 = vmatpush1.msra.mxu0 %v34
  %1104 = vmatprep.subr.mxu0 %v37
  %1105 = vmatpush1.msra.mxu0 %v36
  %1106 = vmatprep.subr.mxu0 %v39
  %1107 = vmatpush1.msra.mxu0 %v38
  %1108 = vmatprep.subr.mxu0 %v41
  %1109 = vmatpush1.msra.mxu0 %v40
  %1110 = vmatprep.subr.mxu0 %v43
  %1111 = vmatpush1.msra.mxu0 %v42
  %1112 = vmatprep.subr.mxu0 %v45
  %1113 = vmatpush1.msra.mxu0 %v44
  %1114 = vmatprep.subr.mxu0 %v47
  %1115 = vmatpush1.msra.mxu0 %v46
  %1116 = vmatprep.subr.mxu0 %v49
  %1117 = vmatpush1.msra.mxu0 %v48
  %1118 = vmatprep.subr.mxu0 %v51
  %1119 = vmatpush1.msra.mxu0 %v50
  %1120 = vmatprep.subr.mxu0 0.0
  %1121 = vmatpush1.msra.mxu0 0.0
  %1122 = vmatprep.subr.mxu0 0.0
  %1123 = vmatpush1.msra.mxu0 0.0
  %1124 = vmatprep.subr.mxu0 0.0
  %1125 = vmatpush1.msra.mxu0 0.0
  %1126 = vmatprep.subr.mxu0 0.0
  %1127 = vmatpush1.msra.mxu0 0.0
  %1128 = vmatprep.subr.mxu0 0.0
  %1129 = vmatpush1.msra.mxu0 0.0
  %1130 = vmatprep.subr.mxu0 0.0
  %1131 = vmatpush1.msra.mxu0 0.0
  %1132 = vmatprep.subr.mxu0 0.0
  %1133 = vmatpush1.msra.mxu0 0.0
  %1134 = vmatprep.subr.mxu0 0.0
  %1135 = vmatpush1.msra.mxu0 0.0
  %1136 = vmatprep.subr.mxu0 0.0
  %1137 = vmatpush1.msra.mxu0 0.0
  %1138 = vmatprep.subr.mxu0 0.0
  %1139 = vmatpush1.msra.mxu0 0.0
  %1140 = vmatprep.subr.mxu0 0.0
  %1141 = vmatpush1.msra.mxu0 0.0
  %1142 = vmatprep.subr.mxu0 0.0
  %1143 = vmatpush1.msra.mxu0 0.0
  %1144 = vmatprep.subr.mxu0 0.0
  %1145 = vmatpush1.msra.mxu0 0.0
  %1146 = vmatprep.subr.mxu0 0.0
  %1147 = vmatpush1.msra.mxu0 0.0
  %1148 = vmatprep.subr.mxu0 0.0
  %1149 = vmatpush1.msra.mxu0 0.0
  %1150 = vmatprep.subr.mxu0 0.0
  %1151 = vmatpush1.msra.mxu0 0.0
  %1152 = vmatprep.mubr.f32.mxu0 0.0
  %1153 = vmatmul.mubr.f32.gmra.mrb[0].mxu0 %v1087
  %v1154 = vpop.f32.mrb[0].mxu0
  %v1155 = vadd.f32 %v70, %v1154
  %v1156 = vpop.f32.mrb[0].mxu0
  %v1157 = vadd.f32 %v74, %v1156
  %1158 = vdwg.mxu0
  %v1159 = vxor.u32 %v1155, 2147483648
  %v1160 = vmul.f32 %v1159, 1.442695
  %v1161 = vpow.pop %v1160
  %v1162 = vadd.f32 %v1161, 1.0
  %v1163 = vrcp.pop %v1162
  %v1164 = vmul.f32 1.0, %v1163
  %v1165 = vtanh.pop %v1155
  %v1166 = vmul.f32 %v1164, %v1033
  %1168 = vrot.lane.b32.xlu0 %v1165, 64
  %v1169 = vpop.permute.xlu0 %1168
  %v1171 = vmul.f32 %v1164, %v1169
  %1173 = vrot.lane.b32.xlu0 %v1171, 32
  %v1174 = vpop.permute.xlu0 %1173
  %v1176 = vadd.f32 %v1166, %v1174
  %v1177 = vtanh.pop %v1176
  %1179 = vrot.lane.b32.xlu0 %v1177, 64
  %v1180 = vpop.permute.xlu0 %1179
  %v1182 = vmul.f32 %v1164, %v1180
  %v1183 = vxor.u32 %v1157, 2147483648
  %v1184 = vmul.f32 %v1183, 1.442695
  %v1185 = vpow.pop %v1184
  %v1186 = vadd.f32 %v1185, 1.0
  %v1187 = vrcp.pop %v1186
  %v1188 = vmul.f32 1.0, %v1187
  %v1189 = vtanh.pop %v1157
  %v1190 = vmul.f32 %v1188, %v1057
  %1192 = vrot.lane.b32.xlu0 %v1189, 64
  %v1193 = vpop.permute.xlu0 %1192
  %v1195 = vmul.f32 %v1188, %v1193
  %1197 = vrot.lane.b32.xlu0 %v1195, 32
  %v1198 = vpop.permute.xlu0 %1197
  %v1200 = vadd.f32 %v1190, %v1198
  %v1201 = vtanh.pop %v1200
  %1203 = vrot.lane.b32.xlu0 %v1201, 64
  %v1204 = vpop.permute.xlu0 %1203
  %v1206 = vmul.f32 %v1188, %v1204
  %1208 = vrot.lane.b32.xlu0 %v1182, 32
  %v1209 = vpop.permute.xlu0 %1208
  %s1211 = scalar_lea.vmem [#allocation2], 14
  %1212 = vst.msk [vmem:[%s1211] sm:$0x3] %vm200, %v1209
  %1214 = vrot.lane.b32.xlu0 %v1206, 32
  %v1215 = vpop.permute.xlu0 %1214
  %s1217 = scalar_lea.vmem [#allocation3], 8
  %1218 = vst.msk [vmem:[%s1217] sm:$0x3] %vm200, %v1215
  %v1219 = vld [vmem:[%s500] sm:$0x3]
  %v1220 = vld [vmem:[%s498] sm:$0x3]
  %1221 = vrot.lane.b32.xlu0 %v1182, 64
  %v1222 = vpop.permute.xlu0 %1221
  %1225 = vrot.lane.b32.xlu0 %v1220, 64
  %v1226 = vpop.permute.xlu0 %1225
  %v1228 = vsel %vm60, %v1219, %v1222
  %v1229 = vsel %vm62, %v1228, %v1226
  %v1230 = vsel %vm64, %v1229, %v1206
  %1231 = vmatprep.subr.mxu0 %v21
  %1232 = vmatpush1.msra.mxu0 %v20
  %1233 = vmatprep.subr.mxu0 %v23
  %1234 = vmatpush1.msra.mxu0 %v22
  %1235 = vmatprep.subr.mxu0 %v25
  %1236 = vmatpush1.msra.mxu0 %v24
  %1237 = vmatprep.subr.mxu0 %v27
  %1238 = vmatpush1.msra.mxu0 %v26
  %1239 = vmatprep.subr.mxu0 %v29
  %1240 = vmatpush1.msra.mxu0 %v28
  %1241 = vmatprep.subr.mxu0 %v31
  %1242 = vmatpush1.msra.mxu0 %v30
  %1243 = vmatprep.subr.mxu0 %v33
  %1244 = vmatpush1.msra.mxu0 %v32
  %1245 = vmatprep.subr.mxu0 %v35
  %1246 = vmatpush1.msra.mxu0 %v34
  %1247 = vmatprep.subr.mxu0 %v37
  %1248 = vmatpush1.msra.mxu0 %v36
  %1249 = vmatprep.subr.mxu0 %v39
  %1250 = vmatpush1.msra.mxu0 %v38
  %1251 = vmatprep.subr.mxu0 %v41
  %1252 = vmatpush1.msra.mxu0 %v40
  %1253 = vmatprep.subr.mxu0 %v43
  %1254 = vmatpush1.msra.mxu0 %v42
  %1255 = vmatprep.subr.mxu0 %v45
  %1256 = vmatpush1.msra.mxu0 %v44
  %1257 = vmatprep.subr.mxu0 %v47
  %1258 = vmatpush1.msra.mxu0 %v46
  %1259 = vmatprep.subr.mxu0 %v49
  %1260 = vmatpush1.msra.mxu0 %v48
  %1261 = vmatprep.subr.mxu0 %v51
  %1262 = vmatpush1.msra.mxu0 %v50
  %1263 = vmatprep.subr.mxu0 0.0
  %1264 = vmatpush1.msra.mxu0 0.0
  %1265 = vmatprep.subr.mxu0 0.0
  %1266 = vmatpush1.msra.mxu0 0.0
  %1267 = vmatprep.subr.mxu0 0.0
  %1268 = vmatpush1.msra.mxu0 0.0
  %1269 = vmatprep.subr.mxu0 0.0
  %1270 = vmatpush1.msra.mxu0 0.0
  %1271 = vmatprep.subr.mxu0 0.0
  %1272 = vmatpush1.msra.mxu0 0.0
  %1273 = vmatprep.subr.mxu0 0.0
  %1274 = vmatpush1.msra.mxu0 0.0
  %1275 = vmatprep.subr.mxu0 0.0
  %1276 = vmatpush1.msra.mxu0 0.0
  %1277 = vmatprep.subr.mxu0 0.0
  %1278 = vmatpush1.msra.mxu0 0.0
  %1279 = vmatprep.subr.mxu0 0.0
  %1280 = vmatpush1.msra.mxu0 0.0
  %1281 = vmatprep.subr.mxu0 0.0
  %1282 = vmatpush1.msra.mxu0 0.0
  %1283 = vmatprep.subr.mxu0 0.0
  %1284 = vmatpush1.msra.mxu0 0.0
  %1285 = vmatprep.subr.mxu0 0.0
  %1286 = vmatpush1.msra.mxu0 0.0
  %1287 = vmatprep.subr.mxu0 0.0
  %1288 = vmatpush1.msra.mxu0 0.0
  %1289 = vmatprep.subr.mxu0 0.0
  %1290 = vmatpush1.msra.mxu0 0.0
  %1291 = vmatprep.subr.mxu0 0.0
  %1292 = vmatpush1.msra.mxu0 0.0
  %1293 = vmatprep.subr.mxu0 0.0
  %1294 = vmatpush1.msra.mxu0 0.0
  %1295 = vmatprep.mubr.f32.mxu0 0.0
  %1296 = vmatmul.mubr.f32.gmra.mrb[0].mxu0 %v1230
  %v1297 = vpop.f32.mrb[0].mxu0
  %v1298 = vadd.f32 %v70, %v1297
  %v1299 = vpop.f32.mrb[0].mxu0
  %v1300 = vadd.f32 %v74, %v1299
  %1301 = vdwg.mxu0
  %v1302 = vxor.u32 %v1298, 2147483648
  %v1303 = vmul.f32 %v1302, 1.442695
  %v1304 = vpow.pop %v1303
  %v1305 = vadd.f32 %v1304, 1.0
  %v1306 = vrcp.pop %v1305
  %v1307 = vmul.f32 1.0, %v1306
  %v1308 = vtanh.pop %v1298
  %v1309 = vmul.f32 %v1307, %v1176
  %1311 = vrot.lane.b32.xlu0 %v1308, 64
  %v1312 = vpop.permute.xlu0 %1311
  %v1314 = vmul.f32 %v1307, %v1312
  %1316 = vrot.lane.b32.xlu0 %v1314, 32
  %v1317 = vpop.permute.xlu0 %1316
  %v1319 = vadd.f32 %v1309, %v1317
  %v1320 = vtanh.pop %v1319
  %1322 = vrot.lane.b32.xlu0 %v1320, 64
  %v1323 = vpop.permute.xlu0 %1322
  %v1325 = vmul.f32 %v1307, %v1323
  %v1326 = vxor.u32 %v1300, 2147483648
  %v1327 = vmul.f32 %v1326, 1.442695
  %v1328 = vpow.pop %v1327
  %v1329 = vadd.f32 %v1328, 1.0
  %v1330 = vrcp.pop %v1329
  %v1331 = vmul.f32 1.0, %v1330
  %v1332 = vtanh.pop %v1300
  %v1333 = vmul.f32 %v1331, %v1200
  %1335 = vrot.lane.b32.xlu0 %v1332, 64
  %v1336 = vpop.permute.xlu0 %1335
  %v1338 = vmul.f32 %v1331, %v1336
  %1340 = vrot.lane.b32.xlu0 %v1338, 32
  %v1341 = vpop.permute.xlu0 %1340
  %v1343 = vadd.f32 %v1333, %v1341
  %v1344 = vtanh.pop %v1343
  %1346 = vrot.lane.b32.xlu0 %v1344, 64
  %v1347 = vpop.permute.xlu0 %1346
  %v1349 = vmul.f32 %v1331, %v1347
  %1351 = vrot.lane.b32.xlu0 %v1325, 32
  %v1352 = vpop.permute.xlu0 %1351
  %s1354 = scalar_lea.vmem [#allocation2], 16
  %1355 = vst.msk [vmem:[%s1354] sm:$0x3] %vm200, %v1352
  %1357 = vrot.lane.b32.xlu0 %v1349, 32
  %v1358 = vpop.permute.xlu0 %1357
  %s1360 = scalar_lea.vmem [#allocation3], 6
  %1361 = vst.msk [vmem:[%s1360] sm:$0x3] %vm200, %v1358
  %v1362 = vld [vmem:[%s355] sm:$0x3]
  %v1363 = vld [vmem:[%s353] sm:$0x3]
  %1364 = vrot.lane.b32.xlu0 %v1325, 64
  %v1365 = vpop.permute.xlu0 %1364
  %1368 = vrot.lane.b32.xlu0 %v1363, 64
  %v1369 = vpop.permute.xlu0 %1368
  %v1371 = vsel %vm60, %v1362, %v1365
  %v1372 = vsel %vm62, %v1371, %v1369
  %v1373 = vsel %vm64, %v1372, %v1349
  %1374 = vmatprep.subr.mxu0 %v21
  %1375 = vmatpush1.msra.mxu0 %v20
  %1376 = vmatprep.subr.mxu0 %v23
  %1377 = vmatpush1.msra.mxu0 %v22
  %1378 = vmatprep.subr.mxu0 %v25
  %1379 = vmatpush1.msra.mxu0 %v24
  %1380 = vmatprep.subr.mxu0 %v27
  %1381 = vmatpush1.msra.mxu0 %v26
  %1382 = vmatprep.subr.mxu0 %v29
  %1383 = vmatpush1.msra.mxu0 %v28
  %1384 = vmatprep.subr.mxu0 %v31
  %1385 = vmatpush1.msra.mxu0 %v30
  %1386 = vmatprep.subr.mxu0 %v33
  %1387 = vmatpush1.msra.mxu0 %v32
  %1388 = vmatprep.subr.mxu0 %v35
  %1389 = vmatpush1.msra.mxu0 %v34
  %1390 = vmatprep.subr.mxu0 %v37
  %1391 = vmatpush1.msra.mxu0 %v36
  %1392 = vmatprep.subr.mxu0 %v39
  %1393 = vmatpush1.msra.mxu0 %v38
  %1394 = vmatprep.subr.mxu0 %v41
  %1395 = vmatpush1.msra.mxu0 %v40
  %1396 = vmatprep.subr.mxu0 %v43
  %1397 = vmatpush1.msra.mxu0 %v42
  %1398 = vmatprep.subr.mxu0 %v45
  %1399 = vmatpush1.msra.mxu0 %v44
  %1400 = vmatprep.subr.mxu0 %v47
  %1401 = vmatpush1.msra.mxu0 %v46
  %1402 = vmatprep.subr.mxu0 %v49
  %1403 = vmatpush1.msra.mxu0 %v48
  %1404 = vmatprep.subr.mxu0 %v51
  %1405 = vmatpush1.msra.mxu0 %v50
  %1406 = vmatprep.subr.mxu0 0.0
  %1407 = vmatpush1.msra.mxu0 0.0
  %1408 = vmatprep.subr.mxu0 0.0
  %1409 = vmatpush1.msra.mxu0 0.0
  %1410 = vmatprep.subr.mxu0 0.0
  %1411 = vmatpush1.msra.mxu0 0.0
  %1412 = vmatprep.subr.mxu0 0.0
  %1413 = vmatpush1.msra.mxu0 0.0
  %1414 = vmatprep.subr.mxu0 0.0
  %1415 = vmatpush1.msra.mxu0 0.0
  %1416 = vmatprep.subr.mxu0 0.0
  %1417 = vmatpush1.msra.mxu0 0.0
  %1418 = vmatprep.subr.mxu0 0.0
  %1419 = vmatpush1.msra.mxu0 0.0
  %1420 = vmatprep.subr.mxu0 0.0
  %1421 = vmatpush1.msra.mxu0 0.0
  %1422 = vmatprep.subr.mxu0 0.0
  %1423 = vmatpush1.msra.mxu0 0.0
  %1424 = vmatprep.subr.mxu0 0.0
  %1425 = vmatpush1.msra.mxu0 0.0
  %1426 = vmatprep.subr.mxu0 0.0
  %1427 = vmatpush1.msra.mxu0 0.0
  %1428 = vmatprep.subr.mxu0 0.0
  %1429 = vmatpush1.msra.mxu0 0.0
  %1430 = vmatprep.subr.mxu0 0.0
  %1431 = vmatpush1.msra.mxu0 0.0
  %1432 = vmatprep.subr.mxu0 0.0
  %1433 = vmatpush1.msra.mxu0 0.0
  %1434 = vmatprep.subr.mxu0 0.0
  %1435 = vmatpush1.msra.mxu0 0.0
  %1436 = vmatprep.subr.mxu0 0.0
  %1437 = vmatpush1.msra.mxu0 0.0
  %1438 = vmatprep.mubr.f32.mxu0 0.0
  %1439 = vmatmul.mubr.f32.gmra.mrb[0].mxu0 %v1373
  %v1440 = vpop.f32.mrb[0].mxu0
  %v1441 = vadd.f32 %v70, %v1440
  %v1442 = vpop.f32.mrb[0].mxu0
  %v1443 = vadd.f32 %v74, %v1442
  %1444 = vdwg.mxu0
  %v1445 = vxor.u32 %v1441, 2147483648
  %v1446 = vmul.f32 %v1445, 1.442695
  %v1447 = vpow.pop %v1446
  %v1448 = vadd.f32 %v1447, 1.0
  %v1449 = vrcp.pop %v1448
  %v1450 = vmul.f32 1.0, %v1449
  %v1451 = vtanh.pop %v1441
  %v1452 = vmul.f32 %v1450, %v1319
  %1454 = vrot.lane.b32.xlu0 %v1451, 64
  %v1455 = vpop.permute.xlu0 %1454
  %v1457 = vmul.f32 %v1450, %v1455
  %1459 = vrot.lane.b32.xlu0 %v1457, 32
  %v1460 = vpop.permute.xlu0 %1459
  %v1462 = vadd.f32 %v1452, %v1460
  %v1463 = vtanh.pop %v1462
  %1465 = vrot.lane.b32.xlu0 %v1463, 64
  %v1466 = vpop.permute.xlu0 %1465
  %v1468 = vmul.f32 %v1450, %v1466
  %v1469 = vxor.u32 %v1443, 2147483648
  %v1470 = vmul.f32 %v1469, 1.442695
  %v1471 = vpow.pop %v1470
  %v1472 = vadd.f32 %v1471, 1.0
  %v1473 = vrcp.pop %v1472
  %v1474 = vmul.f32 1.0, %v1473
  %v1475 = vtanh.pop %v1443
  %v1476 = vmul.f32 %v1474, %v1343
  %1478 = vrot.lane.b32.xlu0 %v1475, 64
  %v1479 = vpop.permute.xlu0 %1478
  %v1481 = vmul.f32 %v1474, %v1479
  %1483 = vrot.lane.b32.xlu0 %v1481, 32
  %v1484 = vpop.permute.xlu0 %1483
  %v1486 = vadd.f32 %v1476, %v1484
  %v1487 = vtanh.pop %v1486
  %1489 = vrot.lane.b32.xlu0 %v1487, 64
  %v1490 = vpop.permute.xlu0 %1489
  %v1492 = vmul.f32 %v1474, %v1490
  %1494 = vrot.lane.b32.xlu0 %v1468, 32
  %v1495 = vpop.permute.xlu0 %1494
  %s1497 = scalar_lea.vmem [#allocation2], 18
  %1498 = vst.msk [vmem:[%s1497] sm:$0x3] %vm200, %v1495
  %1500 = vrot.lane.b32.xlu0 %v1492, 32
  %v1501 = vpop.permute.xlu0 %1500
  %s1503 = scalar_lea.vmem [#allocation3], 4
  %1504 = vst.msk [vmem:[%s1503] sm:$0x3] %vm200, %v1501
  %v1505 = vld [vmem:[%s210] sm:$0x3]
  %v1506 = vld [vmem:[%s208] sm:$0x3]
  %1507 = vrot.lane.b32.xlu0 %v1468, 64
  %v1508 = vpop.permute.xlu0 %1507
  %1511 = vrot.lane.b32.xlu0 %v1506, 64
  %v1512 = vpop.permute.xlu0 %1511
  %v1514 = vsel %vm60, %v1505, %v1508
  %v1515 = vsel %vm62, %v1514, %v1512
  %v1516 = vsel %vm64, %v1515, %v1492
  %1517 = vmatprep.subr.mxu0 %v21
  %1518 = vmatpush1.msra.mxu0 %v20
  %1519 = vmatprep.subr.mxu0 %v23
  %1520 = vmatpush1.msra.mxu0 %v22
  %1521 = vmatprep.subr.mxu0 %v25
  %1522 = vmatpush1.msra.mxu0 %v24
  %1523 = vmatprep.subr.mxu0 %v27
  %1524 = vmatpush1.msra.mxu0 %v26
  %1525 = vmatprep.subr.mxu0 %v29
  %1526 = vmatpush1.msra.mxu0 %v28
  %1527 = vmatprep.subr.mxu0 %v31
  %1528 = vmatpush1.msra.mxu0 %v30
  %1529 = vmatprep.subr.mxu0 %v33
  %1530 = vmatpush1.msra.mxu0 %v32
  %1531 = vmatprep.subr.mxu0 %v35
  %1532 = vmatpush1.msra.mxu0 %v34
  %1533 = vmatprep.subr.mxu0 %v37
  %1534 = vmatpush1.msra.mxu0 %v36
  %1535 = vmatprep.subr.mxu0 %v39
  %1536 = vmatpush1.msra.mxu0 %v38
  %1537 = vmatprep.subr.mxu0 %v41
  %1538 = vmatpush1.msra.mxu0 %v40
  %1539 = vmatprep.subr.mxu0 %v43
  %1540 = vmatpush1.msra.mxu0 %v42
  %1541 = vmatprep.subr.mxu0 %v45
  %1542 = vmatpush1.msra.mxu0 %v44
  %1543 = vmatprep.subr.mxu0 %v47
  %1544 = vmatpush1.msra.mxu0 %v46
  %1545 = vmatprep.subr.mxu0 %v49
  %1546 = vmatpush1.msra.mxu0 %v48
  %1547 = vmatprep.subr.mxu0 %v51
  %1548 = vmatpush1.msra.mxu0 %v50
  %1549 = vmatprep.subr.mxu0 0.0
  %1550 = vmatpush1.msra.mxu0 0.0
  %1551 = vmatprep.subr.mxu0 0.0
  %1552 = vmatpush1.msra.mxu0 0.0
  %1553 = vmatprep.subr.mxu0 0.0
  %1554 = vmatpush1.msra.mxu0 0.0
  %1555 = vmatprep.subr.mxu0 0.0
  %1556 = vmatpush1.msra.mxu0 0.0
  %1557 = vmatprep.subr.mxu0 0.0
  %1558 = vmatpush1.msra.mxu0 0.0
  %1559 = vmatprep.subr.mxu0 0.0
  %1560 = vmatpush1.msra.mxu0 0.0
  %1561 = vmatprep.subr.mxu0 0.0
  %1562 = vmatpush1.msra.mxu0 0.0
  %1563 = vmatprep.subr.mxu0 0.0
  %1564 = vmatpush1.msra.mxu0 0.0
  %1565 = vmatprep.subr.mxu0 0.0
  %1566 = vmatpush1.msra.mxu0 0.0
  %1567 = vmatprep.subr.mxu0 0.0
  %1568 = vmatpush1.msra.mxu0 0.0
  %1569 = vmatprep.subr.mxu0 0.0
  %1570 = vmatpush1.msra.mxu0 0.0
  %1571 = vmatprep.subr.mxu0 0.0
  %1572 = vmatpush1.msra.mxu0 0.0
  %1573 = vmatprep.subr.mxu0 0.0
  %1574 = vmatpush1.msra.mxu0 0.0
  %1575 = vmatprep.subr.mxu0 0.0
  %1576 = vmatpush1.msra.mxu0 0.0
  %1577 = vmatprep.subr.mxu0 0.0
  %1578 = vmatpush1.msra.mxu0 0.0
  %1579 = vmatprep.subr.mxu0 0.0
  %1580 = vmatpush1.msra.mxu0 0.0
  %1581 = vmatprep.mubr.f32.mxu0 0.0
  %1582 = vmatmul.mubr.f32.gmra.mrb[0].mxu0 %v1516
  %v1583 = vpop.f32.mrb[0].mxu0
  %v1584 = vadd.f32 %v70, %v1583
  %v1585 = vpop.f32.mrb[0].mxu0
  %v1586 = vadd.f32 %v74, %v1585
  %1587 = vdwg.mxu0
  %v1588 = vxor.u32 %v1584, 2147483648
  %v1589 = vmul.f32 %v1588, 1.442695
  %v1590 = vpow.pop %v1589
  %v1591 = vadd.f32 %v1590, 1.0
  %v1592 = vrcp.pop %v1591
  %v1593 = vmul.f32 1.0, %v1592
  %v1594 = vtanh.pop %v1584
  %v1595 = vmul.f32 %v1593, %v1462
  %1597 = vrot.lane.b32.xlu0 %v1594, 64
  %v1598 = vpop.permute.xlu0 %1597
  %v1600 = vmul.f32 %v1593, %v1598
  %1602 = vrot.lane.b32.xlu0 %v1600, 32
  %v1603 = vpop.permute.xlu0 %1602
  %v1605 = vadd.f32 %v1595, %v1603
  %v1606 = vtanh.pop %v1605
  %1608 = vrot.lane.b32.xlu0 %v1606, 64
  %v1609 = vpop.permute.xlu0 %1608
  %v1611 = vmul.f32 %v1593, %v1609
  %v1612 = vxor.u32 %v1586, 2147483648
  %v1613 = vmul.f32 %v1612, 1.442695
  %v1614 = vpow.pop %v1613
  %v1615 = vadd.f32 %v1614, 1.0
  %v1616 = vrcp.pop %v1615
  %v1617 = vmul.f32 1.0, %v1616
  %v1618 = vtanh.pop %v1586
  %v1619 = vmul.f32 %v1617, %v1486
  %1621 = vrot.lane.b32.xlu0 %v1618, 64
  %v1622 = vpop.permute.xlu0 %1621
  %v1624 = vmul.f32 %v1617, %v1622
  %1626 = vrot.lane.b32.xlu0 %v1624, 32
  %v1627 = vpop.permute.xlu0 %1626
  %v1629 = vadd.f32 %v1619, %v1627
  %v1630 = vtanh.pop %v1629
  %1632 = vrot.lane.b32.xlu0 %v1630, 64
  %v1633 = vpop.permute.xlu0 %1632
  %v1635 = vmul.f32 %v1617, %v1633
  %1637 = vrot.lane.b32.xlu0 %v1611, 32
  %v1638 = vpop.permute.xlu0 %1637
  %s1640 = scalar_lea.vmem [#allocation2], 20
  %1641 = vst.msk [vmem:[%s1640] sm:$0x3] %vm200, %v1638
  %1643 = vrot.lane.b32.xlu0 %v1635, 32
  %v1644 = vpop.permute.xlu0 %1643
  %s1646 = scalar_lea.vmem [#allocation3], 2
  %1647 = vst.msk [vmem:[%s1646] sm:$0x3] %vm200, %v1644
  %v1648 = vld [vmem:[%s54] sm:$0x3]
  %v1649 = vld [vmem:[%s0] sm:$0x3]
  %1650 = vrot.lane.b32.xlu0 %v1611, 64
  %v1651 = vpop.permute.xlu0 %1650
  %1654 = vrot.lane.b32.xlu0 %v1649, 64
  %v1655 = vpop.permute.xlu0 %1654
  %v1657 = vsel %vm60, %v1648, %v1651
  %v1658 = vsel %vm62, %v1657, %v1655
  %v1659 = vsel %vm64, %v1658, %v1635
  %1660 = vmatprep.subr.mxu0 %v21
  %1661 = vmatpush1.msra.mxu0 %v20
  %1662 = vmatprep.subr.mxu0 %v23
  %1663 = vmatpush1.msra.mxu0 %v22
  %1664 = vmatprep.subr.mxu0 %v25
  %1665 = vmatpush1.msra.mxu0 %v24
  %1666 = vmatprep.subr.mxu0 %v27
  %1667 = vmatpush1.msra.mxu0 %v26
  %1668 = vmatprep.subr.mxu0 %v29
  %1669 = vmatpush1.msra.mxu0 %v28
  %1670 = vmatprep.subr.mxu0 %v31
  %1671 = vmatpush1.msra.mxu0 %v30
  %1672 = vmatprep.subr.mxu0 %v33
  %1673 = vmatpush1.msra.mxu0 %v32
  %1674 = vmatprep.subr.mxu0 %v35
  %1675 = vmatpush1.msra.mxu0 %v34
  %1676 = vmatprep.subr.mxu0 %v37
  %1677 = vmatpush1.msra.mxu0 %v36
  %1678 = vmatprep.subr.mxu0 %v39
  %1679 = vmatpush1.msra.mxu0 %v38
  %1680 = vmatprep.subr.mxu0 %v41
  %1681 = vmatpush1.msra.mxu0 %v40
  %1682 = vmatprep.subr.mxu0 %v43
  %1683 = vmatpush1.msra.mxu0 %v42
  %1684 = vmatprep.subr.mxu0 %v45
  %1685 = vmatpush1.msra.mxu0 %v44
  %1686 = vmatprep.subr.mxu0 %v47
  %1687 = vmatpush1.msra.mxu0 %v46
  %1688 = vmatprep.subr.mxu0 %v49
  %1689 = vmatpush1.msra.mxu0 %v48
  %1690 = vmatprep.subr.mxu0 %v51
  %1691 = vmatpush1.msra.mxu0 %v50
  %1692 = vmatprep.subr.mxu0 0.0
  %1693 = vmatpush1.msra.mxu0 0.0
  %1694 = vmatprep.subr.mxu0 0.0
  %1695 = vmatpush1.msra.mxu0 0.0
  %1696 = vmatprep.subr.mxu0 0.0
  %1697 = vmatpush1.msra.mxu0 0.0
  %1698 = vmatprep.subr.mxu0 0.0
  %1699 = vmatpush1.msra.mxu0 0.0
  %1700 = vmatprep.subr.mxu0 0.0
  %1701 = vmatpush1.msra.mxu0 0.0
  %1702 = vmatprep.subr.mxu0 0.0
  %1703 = vmatpush1.msra.mxu0 0.0
  %1704 = vmatprep.subr.mxu0 0.0
  %1705 = vmatpush1.msra.mxu0 0.0
  %1706 = vmatprep.subr.mxu0 0.0
  %1707 = vmatpush1.msra.mxu0 0.0
  %1708 = vmatprep.subr.mxu0 0.0
  %1709 = vmatpush1.msra.mxu0 0.0
  %1710 = vmatprep.subr.mxu0 0.0
  %1711 = vmatpush1.msra.mxu0 0.0
  %1712 = vmatprep.subr.mxu0 0.0
  %1713 = vmatpush1.msra.mxu0 0.0
  %1714 = vmatprep.subr.mxu0 0.0
  %1715 = vmatpush1.msra.mxu0 0.0
  %1716 = vmatprep.subr.mxu0 0.0
  %1717 = vmatpush1.msra.mxu0 0.0
  %1718 = vmatprep.subr.mxu0 0.0
  %1719 = vmatpush1.msra.mxu0 0.0
  %1720 = vmatprep.subr.mxu0 0.0
  %1721 = vmatpush1.msra.mxu0 0.0
  %1722 = vmatprep.subr.mxu0 0.0
  %1723 = vmatpush1.msra.mxu0 0.0
  %1724 = vmatprep.mubr.f32.mxu0 0.0
  %1725 = vmatmul.mubr.f32.gmra.mrb[0].mxu0 %v1659
  %v1726 = vpop.f32.mrb[0].mxu0
  %v1727 = vadd.f32 %v70, %v1726
  %v1728 = vpop.f32.mrb[0].mxu0
  %v1729 = vadd.f32 %v74, %v1728
  %1730 = vdwg.mxu0
  %v1731 = vxor.u32 %v1727, 2147483648
  %v1732 = vmul.f32 %v1731, 1.442695
  %v1733 = vpow.pop %v1732
  %v1734 = vadd.f32 %v1733, 1.0
  %v1735 = vrcp.pop %v1734
  %v1736 = vmul.f32 1.0, %v1735
  %v1737 = vtanh.pop %v1727
  %v1738 = vmul.f32 %v1736, %v1605
  %1740 = vrot.lane.b32.xlu0 %v1737, 64
  %v1741 = vpop.permute.xlu0 %1740
  %v1743 = vmul.f32 %v1736, %v1741
  %1745 = vrot.lane.b32.xlu0 %v1743, 32
  %v1746 = vpop.permute.xlu0 %1745
  %v1748 = vadd.f32 %v1738, %v1746
  %v1749 = vtanh.pop %v1748
  %1751 = vrot.lane.b32.xlu0 %v1749, 64
  %v1752 = vpop.permute.xlu0 %1751
  %v1754 = vmul.f32 %v1736, %v1752
  %v1755 = vxor.u32 %v1729, 2147483648
  %v1756 = vmul.f32 %v1755, 1.442695
  %v1757 = vpow.pop %v1756
  %v1758 = vadd.f32 %v1757, 1.0
  %v1759 = vrcp.pop %v1758
  %v1760 = vmul.f32 1.0, %v1759
  %v1761 = vtanh.pop %v1729
  %v1762 = vmul.f32 %v1760, %v1629
  %1764 = vrot.lane.b32.xlu0 %v1761, 64
  %v1765 = vpop.permute.xlu0 %1764
  %v1767 = vmul.f32 %v1760, %v1765
  %1769 = vrot.lane.b32.xlu0 %v1767, 32
  %v1770 = vpop.permute.xlu0 %1769
  %v1772 = vadd.f32 %v1762, %v1770
  %v1773 = vtanh.pop %v1772
  %1775 = vrot.lane.b32.xlu0 %v1773, 64
  %v1776 = vpop.permute.xlu0 %1775
  %v1778 = vmul.f32 %v1760, %v1776
  %1780 = vrot.lane.b32.xlu0 %v1754, 32
  %v1781 = vpop.permute.xlu0 %1780
  %s1783 = scalar_lea.vmem [#allocation2], 22
  %1784 = vst.msk [vmem:[%s1783] sm:$0x3] %vm200, %v1781
  %1786 = vrot.lane.b32.xlu0 %v1778, 32
  %v1787 = vpop.permute.xlu0 %1786
  %1789 = vst.msk [vmem:[#allocation3] sm:$0x3] %vm200, %v1787
  %v1790 = vld [vmem:[%s3] sm:$0xff]
  %v1791 = vld [vmem:[%s3 + $0x8] sm:$0xff]
  %v1792 = vld [vmem:[%s3 + $0x10] sm:$0xff]
  %v1793 = vld [vmem:[%s3 + $0x18] sm:$0xff]
  %v1794 = vld [vmem:[%s3 + $0x20] sm:$0xff]
  %v1795 = vld [vmem:[%s3 + $0x28] sm:$0xff]
  %v1796 = vld [vmem:[%s3 + $0x30] sm:$0xff]
  %v1797 = vld [vmem:[%s3 + $0x38] sm:$0xff]
  %v1798 = vld [vmem:[%s4] sm:$0x1]
  %v1799 = vld [vmem:[#allocation2] sm:$0x3]
  %v1800 = vld [vmem:[#allocation3] sm:$0x3]
  %1802 = vrot.lane.b32.xlu0 %v1800, 32
  %v1803 = vpop.permute.xlu0 %1802
  %v1805 = vsel %vm60, %v1799, %v1803
  %v1807 = vlaneseq
  %v1808 = vshrl.u32 %v1807, 7
  %v1809 = vsub.s32 0, %v1808
  %v1810 = vrot.slane %v1798, %v1809
  %v1813 = vsel %vm62, %v1805, 0
  %1815 = vmatprep.subr.mxu0 0.0
  %1816 = vmatpush1.msra.mxu0 %v1790
  %1817 = vmatprep.subr.mxu0 0.0
  %1818 = vmatpush1.msra.mxu0 %v1791
  %1819 = vmatprep.subr.mxu0 0.0
  %1820 = vmatpush1.msra.mxu0 %v1792
  %1821 = vmatprep.subr.mxu0 0.0
  %1822 = vmatpush1.msra.mxu0 %v1793
  %1823 = vmatprep.subr.mxu0 0.0
  %1824 = vmatpush1.msra.mxu0 %v1794
  %1825 = vmatprep.subr.mxu0 0.0
  %1826 = vmatpush1.msra.mxu0 %v1795
  %1827 = vmatprep.subr.mxu0 0.0
  %1828 = vmatpush1.msra.mxu0 %v1796
  %1829 = vmatprep.subr.mxu0 0.0
  %1830 = vmatpush1.msra.mxu0 %v1797
  %1831 = vmatprep.subr.mxu0 0.0
  %1832 = vmatpush1.msra.mxu0 0.0
  %1833 = vmatprep.subr.mxu0 0.0
  %1834 = vmatpush1.msra.mxu0 0.0
  %1835 = vmatprep.subr.mxu0 0.0
  %1836 = vmatpush1.msra.mxu0 0.0
  %1837 = vmatprep.subr.mxu0 0.0
  %1838 = vmatpush1.msra.mxu0 0.0
  %1839 = vmatprep.subr.mxu0 0.0
  %1840 = vmatpush1.msra.mxu0 0.0
  %1841 = vmatprep.subr.mxu0 0.0
  %1842 = vmatpush1.msra.mxu0 0.0
  %1843 = vmatprep.subr.mxu0 0.0
  %1844 = vmatpush1.msra.mxu0 0.0
  %1845 = vmatprep.subr.mxu0 0.0
  %1846 = vmatpush1.msra.mxu0 0.0
  %1847 = vmatprep.subr.mxu0 0.0
  %1848 = vmatpush1.msra.mxu0 0.0
  %1849 = vmatprep.subr.mxu0 0.0
  %1850 = vmatpush1.msra.mxu0 0.0
  %1851 = vmatprep.subr.mxu0 0.0
  %1852 = vmatpush1.msra.mxu0 0.0
  %1853 = vmatprep.subr.mxu0 0.0
  %1854 = vmatpush1.msra.mxu0 0.0
  %1855 = vmatprep.subr.mxu0 0.0
  %1856 = vmatpush1.msra.mxu0 0.0
  %1857 = vmatprep.subr.mxu0 0.0
  %1858 = vmatpush1.msra.mxu0 0.0
  %1859 = vmatprep.subr.mxu0 0.0
  %1860 = vmatpush1.msra.mxu0 0.0
  %1861 = vmatprep.subr.mxu0 0.0
  %1862 = vmatpush1.msra.mxu0 0.0
  %1863 = vmatprep.subr.mxu0 0.0
  %1864 = vmatpush1.msra.mxu0 0.0
  %1865 = vmatprep.subr.mxu0 0.0
  %1866 = vmatpush1.msra.mxu0 0.0
  %1867 = vmatprep.subr.mxu0 0.0
  %1868 = vmatpush1.msra.mxu0 0.0
  %1869 = vmatprep.subr.mxu0 0.0
  %1870 = vmatpush1.msra.mxu0 0.0
  %1871 = vmatprep.subr.mxu0 0.0
  %1872 = vmatpush1.msra.mxu0 0.0
  %1873 = vmatprep.subr.mxu0 0.0
  %1874 = vmatpush1.msra.mxu0 0.0
  %1875 = vmatprep.subr.mxu0 0.0
  %1876 = vmatpush1.msra.mxu0 0.0
  %1877 = vmatprep.subr.mxu0 0.0
  %1878 = vmatpush1.msra.mxu0 0.0
  %1879 = vmatprep.mubr.f32.mxu0 0.0
  %1880 = vmatmul.mubr.f32.gmra.mrb[0].mxu0 %v1813
  %v1881 = vpop.f32.mrb[0].mxu0
  %v1882 = vadd.f32 %v1810, %v1881
  %v1883 = vpop.f32.mrb[0].mxu0
  %1884 = vdwg.mxu0
  %1885 = vst.msk [vmem:[%s5] sm:$0x3] %vm200, %v1882
  %v1886 = vld [vmem:[%s345] sm:$0x3]
  %v1887 = vld [vmem:[%s1646] sm:$0x3]
  %1889 = vrot.lane.b32.xlu0 %v1887, 32
  %v1890 = vpop.permute.xlu0 %1889
  %v1892 = vsel %vm60, %v1886, %v1890
  %v1894 = vsel %vm62, %v1892, 0
  %1896 = vmatprep.subr.mxu0 0.0
  %1897 = vmatpush1.msra.mxu0 %v1790
  %1898 = vmatprep.subr.mxu0 0.0
  %1899 = vmatpush1.msra.mxu0 %v1791
  %1900 = vmatprep.subr.mxu0 0.0
  %1901 = vmatpush1.msra.mxu0 %v1792
  %1902 = vmatprep.subr.mxu0 0.0
  %1903 = vmatpush1.msra.mxu0 %v1793
  %1904 = vmatprep.subr.mxu0 0.0
  %1905 = vmatpush1.msra.mxu0 %v1794
  %1906 = vmatprep.subr.mxu0 0.0
  %1907 = vmatpush1.msra.mxu0 %v1795
  %1908 = vmatprep.subr.mxu0 0.0
  %1909 = vmatpush1.msra.mxu0 %v1796
  %1910 = vmatprep.subr.mxu0 0.0
  %1911 = vmatpush1.msra.mxu0 %v1797
  %1912 = vmatprep.subr.mxu0 0.0
  %1913 = vmatpush1.msra.mxu0 0.0
  %1914 = vmatprep.subr.mxu0 0.0
  %1915 = vmatpush1.msra.mxu0 0.0
  %1916 = vmatprep.subr.mxu0 0.0
  %1917 = vmatpush1.msra.mxu0 0.0
  %1918 = vmatprep.subr.mxu0 0.0
  %1919 = vmatpush1.msra.mxu0 0.0
  %1920 = vmatprep.subr.mxu0 0.0
  %1921 = vmatpush1.msra.mxu0 0.0
  %1922 = vmatprep.subr.mxu0 0.0
  %1923 = vmatpush1.msra.mxu0 0.0
  %1924 = vmatprep.subr.mxu0 0.0
  %1925 = vmatpush1.msra.mxu0 0.0
  %1926 = vmatprep.subr.mxu0 0.0
  %1927 = vmatpush1.msra.mxu0 0.0
  %1928 = vmatprep.subr.mxu0 0.0
  %1929 = vmatpush1.msra.mxu0 0.0
  %1930 = vmatprep.subr.mxu0 0.0
  %1931 = vmatpush1.msra.mxu0 0.0
  %1932 = vmatprep.subr.mxu0 0.0
  %1933 = vmatpush1.msra.mxu0 0.0
  %1934 = vmatprep.subr.mxu0 0.0
  %1935 = vmatpush1.msra.mxu0 0.0
  %1936 = vmatprep.subr.mxu0 0.0
  %1937 = vmatpush1.msra.mxu0 0.0
  %1938 = vmatprep.subr.mxu0 0.0
  %1939 = vmatpush1.msra.mxu0 0.0
  %1940 = vmatprep.subr.mxu0 0.0
  %1941 = vmatpush1.msra.mxu0 0.0
  %1942 = vmatprep.subr.mxu0 0.0
  %1943 = vmatpush1.msra.mxu0 0.0
  %1944 = vmatprep.subr.mxu0 0.0
  %1945 = vmatpush1.msra.mxu0 0.0
  %1946 = vmatprep.subr.mxu0 0.0
  %1947 = vmatpush1.msra.mxu0 0.0
  %1948 = vmatprep.subr.mxu0 0.0
  %1949 = vmatpush1.msra.mxu0 0.0
  %1950 = vmatprep.subr.mxu0 0.0
  %1951 = vmatpush1.msra.mxu0 0.0
  %1952 = vmatprep.subr.mxu0 0.0
  %1953 = vmatpush1.msra.mxu0 0.0
  %1954 = vmatprep.subr.mxu0 0.0
  %1955 = vmatpush1.msra.mxu0 0.0
  %1956 = vmatprep.subr.mxu0 0.0
  %1957 = vmatpush1.msra.mxu0 0.0
  %1958 = vmatprep.subr.mxu0 0.0
  %1959 = vmatpush1.msra.mxu0 0.0
  %1960 = vmatprep.mubr.f32.mxu0 0.0
  %1961 = vmatmul.mubr.f32.gmra.mrb[0].mxu0 %v1894
  %v1962 = vpop.f32.mrb[0].mxu0
  %v1963 = vadd.f32 %v1810, %v1962
  %v1964 = vpop.f32.mrb[0].mxu0
  %1965 = vdwg.mxu0
  %s1966 = scalar_lea.vmem %s5, 2
  %1967 = vst.msk [vmem:[%s1966] sm:$0x3] %vm200, %v1963
  %v1968 = vld [vmem:[%s490] sm:$0x3]
  %v1969 = vld [vmem:[%s1503] sm:$0x3]
  %1971 = vrot.lane.b32.xlu0 %v1969, 32
  %v1972 = vpop.permute.xlu0 %1971
  %v1974 = vsel %vm60, %v1968, %v1972
  %v1976 = vsel %vm62, %v1974, 0
  %1978 = vmatprep.subr.mxu0 0.0
  %1979 = vmatpush1.msra.mxu0 %v1790
  %1980 = vmatprep.subr.mxu0 0.0
  %1981 = vmatpush1.msra.mxu0 %v1791
  %1982 = vmatprep.subr.mxu0 0.0
  %1983 = vmatpush1.msra.mxu0 %v1792
  %1984 = vmatprep.subr.mxu0 0.0
  %1985 = vmatpush1.msra.mxu0 %v1793
  %1986 = vmatprep.subr.mxu0 0.0
  %1987 = vmatpush1.msra.mxu0 %v1794
  %1988 = vmatprep.subr.mxu0 0.0
  %1989 = vmatpush1.msra.mxu0 %v1795
  %1990 = vmatprep.subr.mxu0 0.0
  %1991 = vmatpush1.msra.mxu0 %v1796
  %1992 = vmatprep.subr.mxu0 0.0
  %1993 = vmatpush1.msra.mxu0 %v1797
  %1994 = vmatprep.subr.mxu0 0.0
  %1995 = vmatpush1.msra.mxu0 0.0
  %1996 = vmatprep.subr.mxu0 0.0
  %1997 = vmatpush1.msra.mxu0 0.0
  %1998 = vmatprep.subr.mxu0 0.0
  %1999 = vmatpush1.msra.mxu0 0.0
  %2000 = vmatprep.subr.mxu0 0.0
  %2001 = vmatpush1.msra.mxu0 0.0
  %2002 = vmatprep.subr.mxu0 0.0
  %2003 = vmatpush1.msra.mxu0 0.0
  %2004 = vmatprep.subr.mxu0 0.0
  %2005 = vmatpush1.msra.mxu0 0.0
  %2006 = vmatprep.subr.mxu0 0.0
  %2007 = vmatpush1.msra.mxu0 0.0
  %2008 = vmatprep.subr.mxu0 0.0
  %2009 = vmatpush1.msra.mxu0 0.0
  %2010 = vmatprep.subr.mxu0 0.0
  %2011 = vmatpush1.msra.mxu0 0.0
  %2012 = vmatprep.subr.mxu0 0.0
  %2013 = vmatpush1.msra.mxu0 0.0
  %2014 = vmatprep.subr.mxu0 0.0
  %2015 = vmatpush1.msra.mxu0 0.0
  %2016 = vmatprep.subr.mxu0 0.0
  %2017 = vmatpush1.msra.mxu0 0.0
  %2018 = vmatprep.subr.mxu0 0.0
  %2019 = vmatpush1.msra.mxu0 0.0
  %2020 = vmatprep.subr.mxu0 0.0
  %2021 = vmatpush1.msra.mxu0 0.0
  %2022 = vmatprep.subr.mxu0 0.0
  %2023 = vmatpush1.msra.mxu0 0.0
  %2024 = vmatprep.subr.mxu0 0.0
  %2025 = vmatpush1.msra.mxu0 0.0
  %2026 = vmatprep.subr.mxu0 0.0
  %2027 = vmatpush1.msra.mxu0 0.0
  %2028 = vmatprep.subr.mxu0 0.0
  %2029 = vmatpush1.msra.mxu0 0.0
  %2030 = vmatprep.subr.mxu0 0.0
  %2031 = vmatpush1.msra.mxu0 0.0
  %2032 = vmatprep.subr.mxu0 0.0
  %2033 = vmatpush1.msra.mxu0 0.0
  %2034 = vmatprep.subr.mxu0 0.0
  %2035 = vmatpush1.msra.mxu0 0.0
  %2036 = vmatprep.subr.mxu0 0.0
  %2037 = vmatpush1.msra.mxu0 0.0
  %2038 = vmatprep.subr.mxu0 0.0
  %2039 = vmatpush1.msra.mxu0 0.0
  %2040 = vmatprep.subr.mxu0 0.0
  %2041 = vmatpush1.msra.mxu0 0.0
  %2042 = vmatprep.mubr.f32.mxu0 0.0
  %2043 = vmatmul.mubr.f32.gmra.mrb[0].mxu0 %v1976
  %v2044 = vpop.f32.mrb[0].mxu0
  %v2045 = vadd.f32 %v1810, %v2044
  %v2046 = vpop.f32.mrb[0].mxu0
  %2047 = vdwg.mxu0
  %s2048 = scalar_lea.vmem %s5, 4
  %2049 = vst.msk [vmem:[%s2048] sm:$0x3] %vm200, %v2045
  %v2050 = vld [vmem:[%s635] sm:$0x3]
  %v2051 = vld [vmem:[%s1360] sm:$0x3]
  %2053 = vrot.lane.b32.xlu0 %v2051, 32
  %v2054 = vpop.permute.xlu0 %2053
  %v2056 = vsel %vm60, %v2050, %v2054
  %v2058 = vsel %vm62, %v2056, 0
  %2060 = vmatprep.subr.mxu0 0.0
  %2061 = vmatpush1.msra.mxu0 %v1790
  %2062 = vmatprep.subr.mxu0 0.0
  %2063 = vmatpush1.msra.mxu0 %v1791
  %2064 = vmatprep.subr.mxu0 0.0
  %2065 = vmatpush1.msra.mxu0 %v1792
  %2066 = vmatprep.subr.mxu0 0.0
  %2067 = vmatpush1.msra.mxu0 %v1793
  %2068 = vmatprep.subr.mxu0 0.0
  %2069 = vmatpush1.msra.mxu0 %v1794
  %2070 = vmatprep.subr.mxu0 0.0
  %2071 = vmatpush1.msra.mxu0 %v1795
  %2072 = vmatprep.subr.mxu0 0.0
  %2073 = vmatpush1.msra.mxu0 %v1796
  %2074 = vmatprep.subr.mxu0 0.0
  %2075 = vmatpush1.msra.mxu0 %v1797
  %2076 = vmatprep.subr.mxu0 0.0
  %2077 = vmatpush1.msra.mxu0 0.0
  %2078 = vmatprep.subr.mxu0 0.0
  %2079 = vmatpush1.msra.mxu0 0.0
  %2080 = vmatprep.subr.mxu0 0.0
  %2081 = vmatpush1.msra.mxu0 0.0
  %2082 = vmatprep.subr.mxu0 0.0
  %2083 = vmatpush1.msra.mxu0 0.0
  %2084 = vmatprep.subr.mxu0 0.0
  %2085 = vmatpush1.msra.mxu0 0.0
  %2086 = vmatprep.subr.mxu0 0.0
  %2087 = vmatpush1.msra.mxu0 0.0
  %2088 = vmatprep.subr.mxu0 0.0
  %2089 = vmatpush1.msra.mxu0 0.0
  %2090 = vmatprep.subr.mxu0 0.0
  %2091 = vmatpush1.msra.mxu0 0.0
  %2092 = vmatprep.subr.mxu0 0.0
  %2093 = vmatpush1.msra.mxu0 0.0
  %2094 = vmatprep.subr.mxu0 0.0
  %2095 = vmatpush1.msra.mxu0 0.0
  %2096 = vmatprep.subr.mxu0 0.0
  %2097 = vmatpush1.msra.mxu0 0.0
  %2098 = vmatprep.subr.mxu0 0.0
  %2099 = vmatpush1.msra.mxu0 0.0
  %2100 = vmatprep.subr.mxu0 0.0
  %2101 = vmatpush1.msra.mxu0 0.0
  %2102 = vmatprep.subr.mxu0 0.0
  %2103 = vmatpush1.msra.mxu0 0.0
  %2104 = vmatprep.subr.mxu0 0.0
  %2105 = vmatpush1.msra.mxu0 0.0
  %2106 = vmatprep.subr.mxu0 0.0
  %2107 = vmatpush1.msra.mxu0 0.0
  %2108 = vmatprep.subr.mxu0 0.0
  %2109 = vmatpush1.msra.mxu0 0.0
  %2110 = vmatprep.subr.mxu0 0.0
  %2111 = vmatpush1.msra.mxu0 0.0
  %2112 = vmatprep.subr.mxu0 0.0
  %2113 = vmatpush1.msra.mxu0 0.0
  %2114 = vmatprep.subr.mxu0 0.0
  %2115 = vmatpush1.msra.mxu0 0.0
  %2116 = vmatprep.subr.mxu0 0.0
  %2117 = vmatpush1.msra.mxu0 0.0
  %2118 = vmatprep.subr.mxu0 0.0
  %2119 = vmatpush1.msra.mxu0 0.0
  %2120 = vmatprep.subr.mxu0 0.0
  %2121 = vmatpush1.msra.mxu0 0.0
  %2122 = vmatprep.subr.mxu0 0.0
  %2123 = vmatpush1.msra.mxu0 0.0
  %2124 = vmatprep.mubr.f32.mxu0 0.0
  %2125 = vmatmul.mubr.f32.gmra.mrb[0].mxu0 %v2058
  %v2126 = vpop.f32.mrb[0].mxu0
  %v2127 = vadd.f32 %v1810, %v2126
  %v2128 = vpop.f32.mrb[0].mxu0
  %2129 = vdwg.mxu0
  %s2130 = scalar_lea.vmem %s5, 6
  %2131 = vst.msk [vmem:[%s2130] sm:$0x3] %vm200, %v2127
  %v2132 = vld [vmem:[%s780] sm:$0x3]
  %v2133 = vld [vmem:[%s1217] sm:$0x3]
  %2135 = vrot.lane.b32.xlu0 %v2133, 32
  %v2136 = vpop.permute.xlu0 %2135
  %v2138 = vsel %vm60, %v2132, %v2136
  %v2140 = vsel %vm62, %v2138, 0
  %2142 = vmatprep.subr.mxu0 0.0
  %2143 = vmatpush1.msra.mxu0 %v1790
  %2144 = vmatprep.subr.mxu0 0.0
  %2145 = vmatpush1.msra.mxu0 %v1791
  %2146 = vmatprep.subr.mxu0 0.0
  %2147 = vmatpush1.msra.mxu0 %v1792
  %2148 = vmatprep.subr.mxu0 0.0
  %2149 = vmatpush1.msra.mxu0 %v1793
  %2150 = vmatprep.subr.mxu0 0.0
  %2151 = vmatpush1.msra.mxu0 %v1794
  %2152 = vmatprep.subr.mxu0 0.0
  %2153 = vmatpush1.msra.mxu0 %v1795
  %2154 = vmatprep.subr.mxu0 0.0
  %2155 = vmatpush1.msra.mxu0 %v1796
  %2156 = vmatprep.subr.mxu0 0.0
  %2157 = vmatpush1.msra.mxu0 %v1797
  %2158 = vmatprep.subr.mxu0 0.0
  %2159 = vmatpush1.msra.mxu0 0.0
  %2160 = vmatprep.subr.mxu0 0.0
  %2161 = vmatpush1.msra.mxu0 0.0
  %2162 = vmatprep.subr.mxu0 0.0
  %2163 = vmatpush1.msra.mxu0 0.0
  %2164 = vmatprep.subr.mxu0 0.0
  %2165 = vmatpush1.msra.mxu0 0.0
  %2166 = vmatprep.subr.mxu0 0.0
  %2167 = vmatpush1.msra.mxu0 0.0
  %2168 = vmatprep.subr.mxu0 0.0
  %2169 = vmatpush1.msra.mxu0 0.0
  %2170 = vmatprep.subr.mxu0 0.0
  %2171 = vmatpush1.msra.mxu0 0.0
  %2172 = vmatprep.subr.mxu0 0.0
  %2173 = vmatpush1.msra.mxu0 0.0
  %2174 = vmatprep.subr.mxu0 0.0
  %2175 = vmatpush1.msra.mxu0 0.0
  %2176 = vmatprep.subr.mxu0 0.0
  %2177 = vmatpush1.msra.mxu0 0.0
  %2178 = vmatprep.subr.mxu0 0.0
  %2179 = vmatpush1.msra.mxu0 0.0
  %2180 = vmatprep.subr.mxu0 0.0
  %2181 = vmatpush1.msra.mxu0 0.0
  %2182 = vmatprep.subr.mxu0 0.0
  %2183 = vmatpush1.msra.mxu0 0.0
  %2184 = vmatprep.subr.mxu0 0.0
  %2185 = vmatpush1.msra.mxu0 0.0
  %2186 = vmatprep.subr.mxu0 0.0
  %2187 = vmatpush1.msra.mxu0 0.0
  %2188 = vmatprep.subr.mxu0 0.0
  %2189 = vmatpush1.msra.mxu0 0.0
  %2190 = vmatprep.subr.mxu0 0.0
  %2191 = vmatpush1.msra.mxu0 0.0
  %2192 = vmatprep.subr.mxu0 0.0
  %2193 = vmatpush1.msra.mxu0 0.0
  %2194 = vmatprep.subr.mxu0 0.0
  %2195 = vmatpush1.msra.mxu0 0.0
  %2196 = vmatprep.subr.mxu0 0.0
  %2197 = vmatpush1.msra.mxu0 0.0
  %2198 = vmatprep.subr.mxu0 0.0
  %2199 = vmatpush1.msra.mxu0 0.0
  %2200 = vmatprep.subr.mxu0 0.0
  %2201 = vmatpush1.msra.mxu0 0.0
  %2202 = vmatprep.subr.mxu0 0.0
  %2203 = vmatpush1.msra.mxu0 0.0
  %2204 = vmatprep.subr.mxu0 0.0
  %2205 = vmatpush1.msra.mxu0 0.0
  %2206 = vmatprep.mubr.f32.mxu0 0.0
  %2207 = vmatmul.mubr.f32.gmra.mrb[0].mxu0 %v2140
  %v2208 = vpop.f32.mrb[0].mxu0
  %v2209 = vadd.f32 %v1810, %v2208
  %v2210 = vpop.f32.mrb[0].mxu0
  %2211 = vdwg.mxu0
  %s2212 = scalar_lea.vmem %s5, 8
  %2213 = vst.msk [vmem:[%s2212] sm:$0x3] %vm200, %v2209
  %v2214 = vld [vmem:[%s925] sm:$0x3]
  %v2215 = vld [vmem:[%s1074] sm:$0x3]
  %2217 = vrot.lane.b32.xlu0 %v2215, 32
  %v2218 = vpop.permute.xlu0 %2217
  %v2220 = vsel %vm60, %v2214, %v2218
  %v2222 = vsel %vm62, %v2220, 0
  %2224 = vmatprep.subr.mxu0 0.0
  %2225 = vmatpush1.msra.mxu0 %v1790
  %2226 = vmatprep.subr.mxu0 0.0
  %2227 = vmatpush1.msra.mxu0 %v1791
  %2228 = vmatprep.subr.mxu0 0.0
  %2229 = vmatpush1.msra.mxu0 %v1792
  %2230 = vmatprep.subr.mxu0 0.0
  %2231 = vmatpush1.msra.mxu0 %v1793
  %2232 = vmatprep.subr.mxu0 0.0
  %2233 = vmatpush1.msra.mxu0 %v1794
  %2234 = vmatprep.subr.mxu0 0.0
  %2235 = vmatpush1.msra.mxu0 %v1795
  %2236 = vmatprep.subr.mxu0 0.0
  %2237 = vmatpush1.msra.mxu0 %v1796
  %2238 = vmatprep.subr.mxu0 0.0
  %2239 = vmatpush1.msra.mxu0 %v1797
  %2240 = vmatprep.subr.mxu0 0.0
  %2241 = vmatpush1.msra.mxu0 0.0
  %2242 = vmatprep.subr.mxu0 0.0
  %2243 = vmatpush1.msra.mxu0 0.0
  %2244 = vmatprep.subr.mxu0 0.0
  %2245 = vmatpush1.msra.mxu0 0.0
  %2246 = vmatprep.subr.mxu0 0.0
  %2247 = vmatpush1.msra.mxu0 0.0
  %2248 = vmatprep.subr.mxu0 0.0
  %2249 = vmatpush1.msra.mxu0 0.0
  %2250 = vmatprep.subr.mxu0 0.0
  %2251 = vmatpush1.msra.mxu0 0.0
  %2252 = vmatprep.subr.mxu0 0.0
  %2253 = vmatpush1.msra.mxu0 0.0
  %2254 = vmatprep.subr.mxu0 0.0
  %2255 = vmatpush1.msra.mxu0 0.0
  %2256 = vmatprep.subr.mxu0 0.0
  %2257 = vmatpush1.msra.mxu0 0.0
  %2258 = vmatprep.subr.mxu0 0.0
  %2259 = vmatpush1.msra.mxu0 0.0
  %2260 = vmatprep.subr.mxu0 0.0
  %2261 = vmatpush1.msra.mxu0 0.0
  %2262 = vmatprep.subr.mxu0 0.0
  %2263 = vmatpush1.msra.mxu0 0.0
  %2264 = vmatprep.subr.mxu0 0.0
  %2265 = vmatpush1.msra.mxu0 0.0
  %2266 = vmatprep.subr.mxu0 0.0
  %2267 = vmatpush1.msra.mxu0 0.0
  %2268 = vmatprep.subr.mxu0 0.0
  %2269 = vmatpush1.msra.mxu0 0.0
  %2270 = vmatprep.subr.mxu0 0.0
  %2271 = vmatpush1.msra.mxu0 0.0
  %2272 = vmatprep.subr.mxu0 0.0
  %2273 = vmatpush1.msra.mxu0 0.0
  %2274 = vmatprep.subr.mxu0 0.0
  %2275 = vmatpush1.msra.mxu0 0.0
  %2276 = vmatprep.subr.mxu0 0.0
  %2277 = vmatpush1.msra.mxu0 0.0
  %2278 = vmatprep.subr.mxu0 0.0
  %2279 = vmatpush1.msra.mxu0 0.0
  %2280 = vmatprep.subr.mxu0 0.0
  %2281 = vmatpush1.msra.mxu0 0.0
  %2282 = vmatprep.subr.mxu0 0.0
  %2283 = vmatpush1.msra.mxu0 0.0
  %2284 = vmatprep.subr.mxu0 0.0
  %2285 = vmatpush1.msra.mxu0 0.0
  %2286 = vmatprep.subr.mxu0 0.0
  %2287 = vmatpush1.msra.mxu0 0.0
  %2288 = vmatprep.mubr.f32.mxu0 0.0
  %2289 = vmatmul.mubr.f32.gmra.mrb[0].mxu0 %v2222
  %v2290 = vpop.f32.mrb[0].mxu0
  %v2291 = vadd.f32 %v1810, %v2290
  %v2292 = vpop.f32.mrb[0].mxu0
  %2293 = vdwg.mxu0
  %s2294 = scalar_lea.vmem %s5, 10
  %2295 = vst.msk [vmem:[%s2294] sm:$0x3] %vm200, %v2291
  %v2296 = vld [vmem:[%s1068] sm:$0x3]
  %v2297 = vld [vmem:[%s931] sm:$0x3]
  %2299 = vrot.lane.b32.xlu0 %v2297, 32
  %v2300 = vpop.permute.xlu0 %2299
  %v2302 = vsel %vm60, %v2296, %v2300
  %v2304 = vsel %vm62, %v2302, 0
  %2306 = vmatprep.subr.mxu0 0.0
  %2307 = vmatpush1.msra.mxu0 %v1790
  %2308 = vmatprep.subr.mxu0 0.0
  %2309 = vmatpush1.msra.mxu0 %v1791
  %2310 = vmatprep.subr.mxu0 0.0
  %2311 = vmatpush1.msra.mxu0 %v1792
  %2312 = vmatprep.subr.mxu0 0.0
  %2313 = vmatpush1.msra.mxu0 %v1793
  %2314 = vmatprep.subr.mxu0 0.0
  %2315 = vmatpush1.msra.mxu0 %v1794
  %2316 = vmatprep.subr.mxu0 0.0
  %2317 = vmatpush1.msra.mxu0 %v1795
  %2318 = vmatprep.subr.mxu0 0.0
  %2319 = vmatpush1.msra.mxu0 %v1796
  %2320 = vmatprep.subr.mxu0 0.0
  %2321 = vmatpush1.msra.mxu0 %v1797
  %2322 = vmatprep.subr.mxu0 0.0
  %2323 = vmatpush1.msra.mxu0 0.0
  %2324 = vmatprep.subr.mxu0 0.0
  %2325 = vmatpush1.msra.mxu0 0.0
  %2326 = vmatprep.subr.mxu0 0.0
  %2327 = vmatpush1.msra.mxu0 0.0
  %2328 = vmatprep.subr.mxu0 0.0
  %2329 = vmatpush1.msra.mxu0 0.0
  %2330 = vmatprep.subr.mxu0 0.0
  %2331 = vmatpush1.msra.mxu0 0.0
  %2332 = vmatprep.subr.mxu0 0.0
  %2333 = vmatpush1.msra.mxu0 0.0
  %2334 = vmatprep.subr.mxu0 0.0
  %2335 = vmatpush1.msra.mxu0 0.0
  %2336 = vmatprep.subr.mxu0 0.0
  %2337 = vmatpush1.msra.mxu0 0.0
  %2338 = vmatprep.subr.mxu0 0.0
  %2339 = vmatpush1.msra.mxu0 0.0
  %2340 = vmatprep.subr.mxu0 0.0
  %2341 = vmatpush1.msra.mxu0 0.0
  %2342 = vmatprep.subr.mxu0 0.0
  %2343 = vmatpush1.msra.mxu0 0.0
  %2344 = vmatprep.subr.mxu0 0.0
  %2345 = vmatpush1.msra.mxu0 0.0
  %2346 = vmatprep.subr.mxu0 0.0
  %2347 = vmatpush1.msra.mxu0 0.0
  %2348 = vmatprep.subr.mxu0 0.0
  %2349 = vmatpush1.msra.mxu0 0.0
  %2350 = vmatprep.subr.mxu0 0.0
  %2351 = vmatpush1.msra.mxu0 0.0
  %2352 = vmatprep.subr.mxu0 0.0
  %2353 = vmatpush1.msra.mxu0 0.0
  %2354 = vmatprep.subr.mxu0 0.0
  %2355 = vmatpush1.msra.mxu0 0.0
  %2356 = vmatprep.subr.mxu0 0.0
  %2357 = vmatpush1.msra.mxu0 0.0
  %2358 = vmatprep.subr.mxu0 0.0
  %2359 = vmatpush1.msra.mxu0 0.0
  %2360 = vmatprep.subr.mxu0 0.0
  %2361 = vmatpush1.msra.mxu0 0.0
  %2362 = vmatprep.subr.mxu0 0.0
  %2363 = vmatpush1.msra.mxu0 0.0
  %2364 = vmatprep.subr.mxu0 0.0
  %2365 = vmatpush1.msra.mxu0 0.0
  %2366 = vmatprep.subr.mxu0 0.0
  %2367 = vmatpush1.msra.mxu0 0.0
  %2368 = vmatprep.subr.mxu0 0.0
  %2369 = vmatpush1.msra.mxu0 0.0
  %2370 = vmatprep.mubr.f32.mxu0 0.0
  %2371 = vmatmul.mubr.f32.gmra.mrb[0].mxu0 %v2304
  %v2372 = vpop.f32.mrb[0].mxu0
  %v2373 = vadd.f32 %v1810, %v2372
  %v2374 = vpop.f32.mrb[0].mxu0
  %2375 = vdwg.mxu0
  %s2376 = scalar_lea.vmem %s5, 12
  %2377 = vst.msk [vmem:[%s2376] sm:$0x3] %vm200, %v2373
  %v2378 = vld [vmem:[%s1211] sm:$0x3]
  %v2379 = vld [vmem:[%s786] sm:$0x3]
  %2381 = vrot.lane.b32.xlu0 %v2379, 32
  %v2382 = vpop.permute.xlu0 %2381
  %v2384 = vsel %vm60, %v2378, %v2382
  %v2386 = vsel %vm62, %v2384, 0
  %2388 = vmatprep.subr.mxu0 0.0
  %2389 = vmatpush1.msra.mxu0 %v1790
  %2390 = vmatprep.subr.mxu0 0.0
  %2391 = vmatpush1.msra.mxu0 %v1791
  %2392 = vmatprep.subr.mxu0 0.0
  %2393 = vmatpush1.msra.mxu0 %v1792
  %2394 = vmatprep.subr.mxu0 0.0
  %2395 = vmatpush1.msra.mxu0 %v1793
  %2396 = vmatprep.subr.mxu0 0.0
  %2397 = vmatpush1.msra.mxu0 %v1794
  %2398 = vmatprep.subr.mxu0 0.0
  %2399 = vmatpush1.msra.mxu0 %v1795
  %2400 = vmatprep.subr.mxu0 0.0
  %2401 = vmatpush1.msra.mxu0 %v1796
  %2402 = vmatprep.subr.mxu0 0.0
  %2403 = vmatpush1.msra.mxu0 %v1797
  %2404 = vmatprep.subr.mxu0 0.0
  %2405 = vmatpush1.msra.mxu0 0.0
  %2406 = vmatprep.subr.mxu0 0.0
  %2407 = vmatpush1.msra.mxu0 0.0
  %2408 = vmatprep.subr.mxu0 0.0
  %2409 = vmatpush1.msra.mxu0 0.0
  %2410 = vmatprep.subr.mxu0 0.0
  %2411 = vmatpush1.msra.mxu0 0.0
  %2412 = vmatprep.subr.mxu0 0.0
  %2413 = vmatpush1.msra.mxu0 0.0
  %2414 = vmatprep.subr.mxu0 0.0
  %2415 = vmatpush1.msra.mxu0 0.0
  %2416 = vmatprep.subr.mxu0 0.0
  %2417 = vmatpush1.msra.mxu0 0.0
  %2418 = vmatprep.subr.mxu0 0.0
  %2419 = vmatpush1.msra.mxu0 0.0
  %2420 = vmatprep.subr.mxu0 0.0
  %2421 = vmatpush1.msra.mxu0 0.0
  %2422 = vmatprep.subr.mxu0 0.0
  %2423 = vmatpush1.msra.mxu0 0.0
  %2424 = vmatprep.subr.mxu0 0.0
  %2425 = vmatpush1.msra.mxu0 0.0
  %2426 = vmatprep.subr.mxu0 0.0
  %2427 = vmatpush1.msra.mxu0 0.0
  %2428 = vmatprep.subr.mxu0 0.0
  %2429 = vmatpush1.msra.mxu0 0.0
  %2430 = vmatprep.subr.mxu0 0.0
  %2431 = vmatpush1.msra.mxu0 0.0
  %2432 = vmatprep.subr.mxu0 0.0
  %2433 = vmatpush1.msra.mxu0 0.0
  %2434 = vmatprep.subr.mxu0 0.0
  %2435 = vmatpush1.msra.mxu0 0.0
  %2436 = vmatprep.subr.mxu0 0.0
  %2437 = vmatpush1.msra.mxu0 0.0
  %2438 = vmatprep.subr.mxu0 0.0
  %2439 = vmatpush1.msra.mxu0 0.0
  %2440 = vmatprep.subr.mxu0 0.0
  %2441 = vmatpush1.msra.mxu0 0.0
  %2442 = vmatprep.subr.mxu0 0.0
  %2443 = vmatpush1.msra.mxu0 0.0
  %2444 = vmatprep.subr.mxu0 0.0
  %2445 = vmatpush1.msra.mxu0 0.0
  %2446 = vmatprep.subr.mxu0 0.0
  %2447 = vmatpush1.msra.mxu0 0.0
  %2448 = vmatprep.subr.mxu0 0.0
  %2449 = vmatpush1.msra.mxu0 0.0
  %2450 = vmatprep.subr.mxu0 0.0
  %2451 = vmatpush1.msra.mxu0 0.0
  %2452 = vmatprep.mubr.f32.mxu0 0.0
  %2453 = vmatmul.mubr.f32.gmra.mrb[0].mxu0 %v2386
  %v2454 = vpop.f32.mrb[0].mxu0
  %v2455 = vadd.f32 %v1810, %v2454
  %v2456 = vpop.f32.mrb[0].mxu0
  %2457 = vdwg.mxu0
  %s2458 = scalar_lea.vmem %s5, 14
  %2459 = vst.msk [vmem:[%s2458] sm:$0x3] %vm200, %v2455
  %v2460 = vld [vmem:[%s1354] sm:$0x3]
  %v2461 = vld [vmem:[%s641] sm:$0x3]
  %2463 = vrot.lane.b32.xlu0 %v2461, 32
  %v2464 = vpop.permute.xlu0 %2463
  %v2466 = vsel %vm60, %v2460, %v2464
  %v2468 = vsel %vm62, %v2466, 0
  %2470 = vmatprep.subr.mxu0 0.0
  %2471 = vmatpush1.msra.mxu0 %v1790
  %2472 = vmatprep.subr.mxu0 0.0
  %2473 = vmatpush1.msra.mxu0 %v1791
  %2474 = vmatprep.subr.mxu0 0.0
  %2475 = vmatpush1.msra.mxu0 %v1792
  %2476 = vmatprep.subr.mxu0 0.0
  %2477 = vmatpush1.msra.mxu0 %v1793
  %2478 = vmatprep.subr.mxu0 0.0
  %2479 = vmatpush1.msra.mxu0 %v1794
  %2480 = vmatprep.subr.mxu0 0.0
  %2481 = vmatpush1.msra.mxu0 %v1795
  %2482 = vmatprep.subr.mxu0 0.0
  %2483 = vmatpush1.msra.mxu0 %v1796
  %2484 = vmatprep.subr.mxu0 0.0
  %2485 = vmatpush1.msra.mxu0 %v1797
  %2486 = vmatprep.subr.mxu0 0.0
  %2487 = vmatpush1.msra.mxu0 0.0
  %2488 = vmatprep.subr.mxu0 0.0
  %2489 = vmatpush1.msra.mxu0 0.0
  %2490 = vmatprep.subr.mxu0 0.0
  %2491 = vmatpush1.msra.mxu0 0.0
  %2492 = vmatprep.subr.mxu0 0.0
  %2493 = vmatpush1.msra.mxu0 0.0
  %2494 = vmatprep.subr.mxu0 0.0
  %2495 = vmatpush1.msra.mxu0 0.0
  %2496 = vmatprep.subr.mxu0 0.0
  %2497 = vmatpush1.msra.mxu0 0.0
  %2498 = vmatprep.subr.mxu0 0.0
  %2499 = vmatpush1.msra.mxu0 0.0
  %2500 = vmatprep.subr.mxu0 0.0
  %2501 = vmatpush1.msra.mxu0 0.0
  %2502 = vmatprep.subr.mxu0 0.0
  %2503 = vmatpush1.msra.mxu0 0.0
  %2504 = vmatprep.subr.mxu0 0.0
  %2505 = vmatpush1.msra.mxu0 0.0
  %2506 = vmatprep.subr.mxu0 0.0
  %2507 = vmatpush1.msra.mxu0 0.0
  %2508 = vmatprep.subr.mxu0 0.0
  %2509 = vmatpush1.msra.mxu0 0.0
  %2510 = vmatprep.subr.mxu0 0.0
  %2511 = vmatpush1.msra.mxu0 0.0
  %2512 = vmatprep.subr.mxu0 0.0
  %2513 = vmatpush1.msra.mxu0 0.0
  %2514 = vmatprep.subr.mxu0 0.0
  %2515 = vmatpush1.msra.mxu0 0.0
  %2516 = vmatprep.subr.mxu0 0.0
  %2517 = vmatpush1.msra.mxu0 0.0
  %2518 = vmatprep.subr.mxu0 0.0
  %2519 = vmatpush1.msra.mxu0 0.0
  %2520 = vmatprep.subr.mxu0 0.0
  %2521 = vmatpush1.msra.mxu0 0.0
  %2522 = vmatprep.subr.mxu0 0.0
  %2523 = vmatpush1.msra.mxu0 0.0
  %2524 = vmatprep.subr.mxu0 0.0
  %2525 = vmatpush1.msra.mxu0 0.0
  %2526 = vmatprep.subr.mxu0 0.0
  %2527 = vmatpush1.msra.mxu0 0.0
  %2528 = vmatprep.subr.mxu0 0.0
  %2529 = vmatpush1.msra.mxu0 0.0
  %2530 = vmatprep.subr.mxu0 0.0
  %2531 = vmatpush1.msra.mxu0 0.0
  %2532 = vmatprep.subr.mxu0 0.0
  %2533 = vmatpush1.msra.mxu0 0.0
  %2534 = vmatprep.mubr.f32.mxu0 0.0
  %2535 = vmatmul.mubr.f32.gmra.mrb[0].mxu0 %v2468
  %v2536 = vpop.f32.mrb[0].mxu0
  %v2537 = vadd.f32 %v1810, %v2536
  %v2538 = vpop.f32.mrb[0].mxu0
  %2539 = vdwg.mxu0
  %s2540 = scalar_lea.vmem %s5, 16
  %2541 = vst.msk [vmem:[%s2540] sm:$0x3] %vm200, %v2537
  %v2542 = vld [vmem:[%s1497] sm:$0x3]
  %v2543 = vld [vmem:[%s496] sm:$0x3]
  %2545 = vrot.lane.b32.xlu0 %v2543, 32
  %v2546 = vpop.permute.xlu0 %2545
  %v2548 = vsel %vm60, %v2542, %v2546
  %v2550 = vsel %vm62, %v2548, 0
  %2552 = vmatprep.subr.mxu0 0.0
  %2553 = vmatpush1.msra.mxu0 %v1790
  %2554 = vmatprep.subr.mxu0 0.0
  %2555 = vmatpush1.msra.mxu0 %v1791
  %2556 = vmatprep.subr.mxu0 0.0
  %2557 = vmatpush1.msra.mxu0 %v1792
  %2558 = vmatprep.subr.mxu0 0.0
  %2559 = vmatpush1.msra.mxu0 %v1793
  %2560 = vmatprep.subr.mxu0 0.0
  %2561 = vmatpush1.msra.mxu0 %v1794
  %2562 = vmatprep.subr.mxu0 0.0
  %2563 = vmatpush1.msra.mxu0 %v1795
  %2564 = vmatprep.subr.mxu0 0.0
  %2565 = vmatpush1.msra.mxu0 %v1796
  %2566 = vmatprep.subr.mxu0 0.0
  %2567 = vmatpush1.msra.mxu0 %v1797
  %2568 = vmatprep.subr.mxu0 0.0
  %2569 = vmatpush1.msra.mxu0 0.0
  %2570 = vmatprep.subr.mxu0 0.0
  %2571 = vmatpush1.msra.mxu0 0.0
  %2572 = vmatprep.subr.mxu0 0.0
  %2573 = vmatpush1.msra.mxu0 0.0
  %2574 = vmatprep.subr.mxu0 0.0
  %2575 = vmatpush1.msra.mxu0 0.0
  %2576 = vmatprep.subr.mxu0 0.0
  %2577 = vmatpush1.msra.mxu0 0.0
  %2578 = vmatprep.subr.mxu0 0.0
  %2579 = vmatpush1.msra.mxu0 0.0
  %2580 = vmatprep.subr.mxu0 0.0
  %2581 = vmatpush1.msra.mxu0 0.0
  %2582 = vmatprep.subr.mxu0 0.0
  %2583 = vmatpush1.msra.mxu0 0.0
  %2584 = vmatprep.subr.mxu0 0.0
  %2585 = vmatpush1.msra.mxu0 0.0
  %2586 = vmatprep.subr.mxu0 0.0
  %2587 = vmatpush1.msra.mxu0 0.0
  %2588 = vmatprep.subr.mxu0 0.0
  %2589 = vmatpush1.msra.mxu0 0.0
  %2590 = vmatprep.subr.mxu0 0.0
  %2591 = vmatpush1.msra.mxu0 0.0
  %2592 = vmatprep.subr.mxu0 0.0
  %2593 = vmatpush1.msra.mxu0 0.0
  %2594 = vmatprep.subr.mxu0 0.0
  %2595 = vmatpush1.msra.mxu0 0.0
  %2596 = vmatprep.subr.mxu0 0.0
  %2597 = vmatpush1.msra.mxu0 0.0
  %2598 = vmatprep.subr.mxu0 0.0
  %2599 = vmatpush1.msra.mxu0 0.0
  %2600 = vmatprep.subr.mxu0 0.0
  %2601 = vmatpush1.msra.mxu0 0.0
  %2602 = vmatprep.subr.mxu0 0.0
  %2603 = vmatpush1.msra.mxu0 0.0
  %2604 = vmatprep.subr.mxu0 0.0
  %2605 = vmatpush1.msra.mxu0 0.0
  %2606 = vmatprep.subr.mxu0 0.0
  %2607 = vmatpush1.msra.mxu0 0.0
  %2608 = vmatprep.subr.mxu0 0.0
  %2609 = vmatpush1.msra.mxu0 0.0
  %2610 = vmatprep.subr.mxu0 0.0
  %2611 = vmatpush1.msra.mxu0 0.0
  %2612 = vmatprep.subr.mxu0 0.0
  %2613 = vmatpush1.msra.mxu0 0.0
  %2614 = vmatprep.subr.mxu0 0.0
  %2615 = vmatpush1.msra.mxu0 0.0
  %2616 = vmatprep.mubr.f32.mxu0 0.0
  %2617 = vmatmul.mubr.f32.gmra.mrb[0].mxu0 %v2550
  %v2618 = vpop.f32.mrb[0].mxu0
  %v2619 = vadd.f32 %v1810, %v2618
  %v2620 = vpop.f32.mrb[0].mxu0
  %2621 = vdwg.mxu0
  %s2622 = scalar_lea.vmem %s5, 18
  %2623 = vst.msk [vmem:[%s2622] sm:$0x3] %vm200, %v2619
  %v2624 = vld [vmem:[%s1640] sm:$0x3]
  %v2625 = vld [vmem:[%s351] sm:$0x3]
  %2627 = vrot.lane.b32.xlu0 %v2625, 32
  %v2628 = vpop.permute.xlu0 %2627
  %v2630 = vsel %vm60, %v2624, %v2628
  %v2632 = vsel %vm62, %v2630, 0
  %2634 = vmatprep.subr.mxu0 0.0
  %2635 = vmatpush1.msra.mxu0 %v1790
  %2636 = vmatprep.subr.mxu0 0.0
  %2637 = vmatpush1.msra.mxu0 %v1791
  %2638 = vmatprep.subr.mxu0 0.0
  %2639 = vmatpush1.msra.mxu0 %v1792
  %2640 = vmatprep.subr.mxu0 0.0
  %2641 = vmatpush1.msra.mxu0 %v1793
  %2642 = vmatprep.subr.mxu0 0.0
  %2643 = vmatpush1.msra.mxu0 %v1794
  %2644 = vmatprep.subr.mxu0 0.0
  %2645 = vmatpush1.msra.mxu0 %v1795
  %2646 = vmatprep.subr.mxu0 0.0
  %2647 = vmatpush1.msra.mxu0 %v1796
  %2648 = vmatprep.subr.mxu0 0.0
  %2649 = vmatpush1.msra.mxu0 %v1797
  %2650 = vmatprep.subr.mxu0 0.0
  %2651 = vmatpush1.msra.mxu0 0.0
  %2652 = vmatprep.subr.mxu0 0.0
  %2653 = vmatpush1.msra.mxu0 0.0
  %2654 = vmatprep.subr.mxu0 0.0
  %2655 = vmatpush1.msra.mxu0 0.0
  %2656 = vmatprep.subr.mxu0 0.0
  %2657 = vmatpush1.msra.mxu0 0.0
  %2658 = vmatprep.subr.mxu0 0.0
  %2659 = vmatpush1.msra.mxu0 0.0
  %2660 = vmatprep.subr.mxu0 0.0
  %2661 = vmatpush1.msra.mxu0 0.0
  %2662 = vmatprep.subr.mxu0 0.0
  %2663 = vmatpush1.msra.mxu0 0.0
  %2664 = vmatprep.subr.mxu0 0.0
  %2665 = vmatpush1.msra.mxu0 0.0
  %2666 = vmatprep.subr.mxu0 0.0
  %2667 = vmatpush1.msra.mxu0 0.0
  %2668 = vmatprep.subr.mxu0 0.0
  %2669 = vmatpush1.msra.mxu0 0.0
  %2670 = vmatprep.subr.mxu0 0.0
  %2671 = vmatpush1.msra.mxu0 0.0
  %2672 = vmatprep.subr.mxu0 0.0
  %2673 = vmatpush1.msra.mxu0 0.0
  %2674 = vmatprep.subr.mxu0 0.0
  %2675 = vmatpush1.msra.mxu0 0.0
  %2676 = vmatprep.subr.mxu0 0.0
  %2677 = vmatpush1.msra.mxu0 0.0
  %2678 = vmatprep.subr.mxu0 0.0
  %2679 = vmatpush1.msra.mxu0 0.0
  %2680 = vmatprep.subr.mxu0 0.0
  %2681 = vmatpush1.msra.mxu0 0.0
  %2682 = vmatprep.subr.mxu0 0.0
  %2683 = vmatpush1.msra.mxu0 0.0
  %2684 = vmatprep.subr.mxu0 0.0
  %2685 = vmatpush1.msra.mxu0 0.0
  %2686 = vmatprep.subr.mxu0 0.0
  %2687 = vmatpush1.msra.mxu0 0.0
  %2688 = vmatprep.subr.mxu0 0.0
  %2689 = vmatpush1.msra.mxu0 0.0
  %2690 = vmatprep.subr.mxu0 0.0
  %2691 = vmatpush1.msra.mxu0 0.0
  %2692 = vmatprep.subr.mxu0 0.0
  %2693 = vmatpush1.msra.mxu0 0.0
  %2694 = vmatprep.subr.mxu0 0.0
  %2695 = vmatpush1.msra.mxu0 0.0
  %2696 = vmatprep.subr.mxu0 0.0
  %2697 = vmatpush1.msra.mxu0 0.0
  %2698 = vmatprep.mubr.f32.mxu0 0.0
  %2699 = vmatmul.mubr.f32.gmra.mrb[0].mxu0 %v2632
  %v2700 = vpop.f32.mrb[0].mxu0
  %v2701 = vadd.f32 %v1810, %v2700
  %v2702 = vpop.f32.mrb[0].mxu0
  %2703 = vdwg.mxu0
  %s2704 = scalar_lea.vmem %s5, 20
  %2705 = vst.msk [vmem:[%s2704] sm:$0x3] %vm200, %v2701
  %v2706 = vld [vmem:[%s1783] sm:$0x3]
  %v2707 = vld [vmem:[%s206] sm:$0x3]
  %2709 = vrot.lane.b32.xlu0 %v2707, 32
  %v2710 = vpop.permute.xlu0 %2709
  %v2712 = vsel %vm60, %v2706, %v2710
  %v2714 = vsel %vm62, %v2712, 0
  %2716 = vmatprep.subr.mxu0 0.0
  %2717 = vmatpush1.msra.mxu0 %v1790
  %2718 = vmatprep.subr.mxu0 0.0
  %2719 = vmatpush1.msra.mxu0 %v1791
  %2720 = vmatprep.subr.mxu0 0.0
  %2721 = vmatpush1.msra.mxu0 %v1792
  %2722 = vmatprep.subr.mxu0 0.0
  %2723 = vmatpush1.msra.mxu0 %v1793
  %2724 = vmatprep.subr.mxu0 0.0
  %2725 = vmatpush1.msra.mxu0 %v1794
  %2726 = vmatprep.subr.mxu0 0.0
  %2727 = vmatpush1.msra.mxu0 %v1795
  %2728 = vmatprep.subr.mxu0 0.0
  %2729 = vmatpush1.msra.mxu0 %v1796
  %2730 = vmatprep.subr.mxu0 0.0
  %2731 = vmatpush1.msra.mxu0 %v1797
  %2732 = vmatprep.subr.mxu0 0.0
  %2733 = vmatpush1.msra.mxu0 0.0
  %2734 = vmatprep.subr.mxu0 0.0
  %2735 = vmatpush1.msra.mxu0 0.0
  %2736 = vmatprep.subr.mxu0 0.0
  %2737 = vmatpush1.msra.mxu0 0.0
  %2738 = vmatprep.subr.mxu0 0.0
  %2739 = vmatpush1.msra.mxu0 0.0
  %2740 = vmatprep.subr.mxu0 0.0
  %2741 = vmatpush1.msra.mxu0 0.0
  %2742 = vmatprep.subr.mxu0 0.0
  %2743 = vmatpush1.msra.mxu0 0.0
  %2744 = vmatprep.subr.mxu0 0.0
  %2745 = vmatpush1.msra.mxu0 0.0
  %2746 = vmatprep.subr.mxu0 0.0
  %2747 = vmatpush1.msra.mxu0 0.0
  %2748 = vmatprep.subr.mxu0 0.0
  %2749 = vmatpush1.msra.mxu0 0.0
  %2750 = vmatprep.subr.mxu0 0.0
  %2751 = vmatpush1.msra.mxu0 0.0
  %2752 = vmatprep.subr.mxu0 0.0
  %2753 = vmatpush1.msra.mxu0 0.0
  %2754 = vmatprep.subr.mxu0 0.0
  %2755 = vmatpush1.msra.mxu0 0.0
  %2756 = vmatprep.subr.mxu0 0.0
  %2757 = vmatpush1.msra.mxu0 0.0
  %2758 = vmatprep.subr.mxu0 0.0
  %2759 = vmatpush1.msra.mxu0 0.0
  %2760 = vmatprep.subr.mxu0 0.0
  %2761 = vmatpush1.msra.mxu0 0.0
  %2762 = vmatprep.subr.mxu0 0.0
  %2763 = vmatpush1.msra.mxu0 0.0
  %2764 = vmatprep.subr.mxu0 0.0
  %2765 = vmatpush1.msra.mxu0 0.0
  %2766 = vmatprep.subr.mxu0 0.0
  %2767 = vmatpush1.msra.mxu0 0.0
  %2768 = vmatprep.subr.mxu0 0.0
  %2769 = vmatpush1.msra.mxu0 0.0
  %2770 = vmatprep.subr.mxu0 0.0
  %2771 = vmatpush1.msra.mxu0 0.0
  %2772 = vmatprep.subr.mxu0 0.0
  %2773 = vmatpush1.msra.mxu0 0.0
  %2774 = vmatprep.subr.mxu0 0.0
  %2775 = vmatpush1.msra.mxu0 0.0
  %2776 = vmatprep.subr.mxu0 0.0
  %2777 = vmatpush1.msra.mxu0 0.0
  %2778 = vmatprep.subr.mxu0 0.0
  %2779 = vmatpush1.msra.mxu0 0.0
  %2780 = vmatprep.mubr.f32.mxu0 0.0
  %2781 = vmatmul.mubr.f32.gmra.mrb[0].mxu0 %v2714
  %v2782 = vpop.f32.mrb[0].mxu0
  %v2783 = vadd.f32 %v1810, %v2782
  %v2784 = vpop.f32.mrb[0].mxu0
  %2785 = vdwg.mxu0
  %s2786 = scalar_lea.vmem %s5, 22
  %2787 = vst.msk [vmem:[%s2786] sm:$0x3] %vm200, %v2783
  // Predicated region
  $region22: #{att_predictor_forward.2} parent=0 // pred_check
    _
  $region23: #{att_predictor_forward.2} parent=0 // pred_check_branch
    %2789 = sbr.rel (0) target = $region25
  $region24: #{att_predictor_forward.2} parent=0 // pred_region
    _
  $region25: #{att_predictor_forward.2} parent=0 // pred_fallthru
    _
  // Predicated region
  $region26: #{att_predictor_forward.2} parent=0 // pred_check
    _
  $region27: #{att_predictor_forward.2} parent=0 // pred_check_branch
    %2791 = sbr.rel (0) target = $region29
  $region28: #{att_predictor_forward.2} parent=0 // pred_region
    _
  $region29: #{att_predictor_forward.2} parent=0 // pred_fallthru
    _

// kernel: att_predictor_forward.3
$region0: #{att_predictor_forward.3}
  #allocation0 [shape = 'u32[]', space=smem, size = 0x4, offset = 0x4, fixed_abs, tag = 'smem constant byte address 0x4 - core index']
  #allocation1 [shape = 'u32[144,128]{1,0:T(1,128)}', space=vmem, size = 0x12000, scoped, tag = 'internal scratch']
  #allocation2 [shape = 'f32[1,1]{1,0:T(1,128)S(1)}', space=vmem, size = 0x200, scoped, tag = 'scoped memory for att_predictor_forward.3']
  %s0 = inlined_call_operand.vmem [shape: f32[2,12,32], index: 0, kind: input, shape index: {}]
  %s1 = inlined_call_operand.vmem [shape: f32[128,32], index: 1, kind: input, shape index: {}]
  %s2 = inlined_call_operand.vmem [shape: f32[1,1,32], index: 2, kind: input, shape index: {}]
  %s3 = inlined_call_operand.<no memory space> [shape: f32[1,1], index: 3, kind: input, shape index: {}]
  %s4 = inlined_call_operand.vmem [shape: f32[64,32], index: 4, kind: input, shape index: {}]
  %s5 = inlined_call_operand.vmem [shape: f32[1,32], index: 5, kind: input, shape index: {}]
  %s6 = inlined_call_operand.vmem [shape: f32[64,192], index: 6, kind: input, shape index: {}]
  %s7 = inlined_call_operand.vmem [shape: f32[1,192], index: 7, kind: input, shape index: {}]
  %s8 = inlined_call_operand.vmem [shape: f32[32,128], index: 8, kind: input, shape index: {}]
  %s9 = inlined_call_operand.vmem [shape: f32[1,128], index: 9, kind: input, shape index: {}]
  %s10 = inlined_call_operand.hbm [shape: f32[6,2,128], index: 10, kind: output, shape index: {}]
  %s11 = sld [smem:[#allocation0]]
  $region50: #{att_predictor_forward.3} parent=0
    _
  %s13 = ssub.s32 1, %s11
  %s14 = scalar_select 0, %s13, %s11
  %v15 = vstv %s3
  %16 = vst [vmem:[#allocation2] sm:$0x1] %v15
  $region1: #{att_predictor_forward.3} parent=0
    #allocation3 [shape = 'u8[6144]{0}', space=vmem, size = 0x1800, scoped, tag = 'output window, operand 0, single buffered']
    #allocation4 [shape = 's32[1]{0}', space=sflag, size = 0x4, scoped, tag = 'scoped memory for att_predictor_forward.3']
    %17 = vsyncpa [#allocation4], 0
    // Predicated region
    $region2: #{att_predictor_forward.3} parent=1 // pred_check
      _
    $region3: #{att_predictor_forward.3} parent=1 // pred_check_branch
      %19 = sbr.rel (0) target = $region5
    $region4: #{att_predictor_forward.3} parent=1 // pred_region
      _
    $region5: #{att_predictor_forward.3} parent=1 // pred_fallthru
      _
    // Predicated region
    $region6: #{att_predictor_forward.3} parent=1 // pred_check
      _
    $region7: #{att_predictor_forward.3} parent=1 // pred_check_branch
      %21 = sbr.rel (0) target = $region9
    $region8: #{att_predictor_forward.3} parent=1 // pred_region
      _
    $region9: #{att_predictor_forward.3} parent=1 // pred_fallthru
      _
    // Predicated region
    $region10: #{att_predictor_forward.3} parent=1 // pred_check
      _
    $region11: #{att_predictor_forward.3} parent=1 // pred_check_branch
      %23 = sbr.rel (0) target = $region13
    $region12: #{att_predictor_forward.3} parent=1 // pred_region
      _
    $region13: #{att_predictor_forward.3} parent=1 // pred_fallthru
      _
    // Predicated region
    $region14: #{att_predictor_forward.3} parent=1 // pred_check
      _
    $region15: #{att_predictor_forward.3} parent=1 // pred_check_branch
      %25 = sbr.rel (0) target = $region17
    $region16: #{att_predictor_forward.3} parent=1 // pred_region
      _
    $region17: #{att_predictor_forward.3} parent=1 // pred_fallthru
      _
    // Predicated region
    $region18: #{att_predictor_forward.3} parent=1 // pred_check
      _
    $region19: #{att_predictor_forward.3} parent=1 // pred_check_branch
      %27 = sbr.rel (0) target = $region21
    $region20: #{att_predictor_forward.3} parent=1 // pred_region
      _
    $region21: #{att_predictor_forward.3} parent=1 // pred_fallthru
      _
    // Predicated region
    $region22: #{att_predictor_forward.3} parent=1 // pred_check
      _
    $region23: #{att_predictor_forward.3} parent=1 // pred_check_branch
      %29 = sbr.rel (0) target = $region25
    $region24: #{att_predictor_forward.3} parent=1 // pred_region
      _
    $region25: #{att_predictor_forward.3} parent=1 // pred_fallthru
      _
    // Predicated region
    $region26: #{att_predictor_forward.3} parent=1 // pred_check
      _
    $region27: #{att_predictor_forward.3} parent=1 // pred_check_branch
      %31 = sbr.rel (0) target = $region29
    $region28: #{att_predictor_forward.3} parent=1 // pred_region
      _
    $region29: #{att_predictor_forward.3} parent=1 // pred_fallthru
      _
    // Predicated region
    $region30: #{att_predictor_forward.3} parent=1 // pred_check
      _
    $region31: #{att_predictor_forward.3} parent=1 // pred_check_branch
      %33 = sbr.rel (0) target = $region33
    $region32: #{att_predictor_forward.3} parent=1 // pred_region
      _
    $region33: #{att_predictor_forward.3} parent=1 // pred_fallthru
      _
    // Predicated region
    $region34: #{att_predictor_forward.3} parent=1 // pred_check
      _
    $region35: #{att_predictor_forward.3} parent=1 // pred_check_branch
      %35 = sbr.rel (0) target = $region37
    $region36: #{att_predictor_forward.3} parent=1 // pred_region
      _
    $region37: #{att_predictor_forward.3} parent=1 // pred_fallthru
      _
    // Predicated region
    $region38: #{att_predictor_forward.3} parent=1 // pred_check
      _
    $region39: #{att_predictor_forward.3} parent=1 // pred_check_branch
      %37 = sbr.rel (0) target = $region41
    $region40: #{att_predictor_forward.3} parent=1 // pred_region
      _
    $region41: #{att_predictor_forward.3} parent=1 // pred_fallthru
      _
    %v38 = vld [vmem:[%s0] sm:$0xff]
    %v39 = vld [vmem:[%s0 + $0x8] sm:$0xf]
    %v40 = vld [vmem:[%s0 + $0x10] sm:$0xff]
    %v41 = vld [vmem:[%s0 + $0x18] sm:$0xf]
    %v42 = vld [vmem:[%s1] sm:$0xff]
    %v43 = vld [vmem:[%s1 + $0x8] sm:$0xff]
    %v44 = vld [vmem:[%s1 + $0x10] sm:$0xff]
    %v45 = vld [vmem:[%s1 + $0x18] sm:$0xff]
    %v46 = vld [vmem:[%s1 + $0x20] sm:$0xff]
    %v47 = vld [vmem:[%s1 + $0x28] sm:$0xff]
    %v48 = vld [vmem:[%s1 + $0x30] sm:$0xff]
    %v49 = vld [vmem:[%s1 + $0x38] sm:$0xff]
    %v50 = vld [vmem:[%s1 + $0x40] sm:$0xff]
    %v51 = vld [vmem:[%s1 + $0x48] sm:$0xff]
    %v52 = vld [vmem:[%s1 + $0x50] sm:$0xff]
    %v53 = vld [vmem:[%s1 + $0x58] sm:$0xff]
    %v54 = vld [vmem:[%s1 + $0x60] sm:$0xff]
    %v55 = vld [vmem:[%s1 + $0x68] sm:$0xff]
    %v56 = vld [vmem:[%s1 + $0x70] sm:$0xff]
    %v57 = vld [vmem:[%s1 + $0x78] sm:$0xff]
    %v58 = vld [vmem:[%s2] sm:$0x1]
    %v59 = vld [vmem:[#allocation2] sm:$0x1]
    %v60 = vld [vmem:[%s4] sm:$0xff]
    %v61 = vld [vmem:[%s4 + $0x8] sm:$0xff]
    %v62 = vld [vmem:[%s4 + $0x10] sm:$0xff]
    %v63 = vld [vmem:[%s4 + $0x18] sm:$0xff]
    %v64 = vld [vmem:[%s4 + $0x20] sm:$0xff]
    %v65 = vld [vmem:[%s4 + $0x28] sm:$0xff]
    %v66 = vld [vmem:[%s4 + $0x30] sm:$0xff]
    %v67 = vld [vmem:[%s4 + $0x38] sm:$0xff]
    %v68 = vld [vmem:[%s5] sm:$0x1]
    %v69 = vld [vmem:[%s6] sm:$0xff]
    %v70 = vld [vmem:[%s6 + $0x8] sm:$0xff]
    %v71 = vld [vmem:[%s6 + $0x10] sm:$0xff]
    %v72 = vld [vmem:[%s6 + $0x18] sm:$0xff]
    %v73 = vld [vmem:[%s6 + $0x20] sm:$0xff]
    %v74 = vld [vmem:[%s6 + $0x28] sm:$0xff]
    %v75 = vld [vmem:[%s6 + $0x30] sm:$0xff]
    %v76 = vld [vmem:[%s6 + $0x38] sm:$0xff]
    %v77 = vld [vmem:[%s6 + $0x40] sm:$0xff]
    %v78 = vld [vmem:[%s6 + $0x48] sm:$0xff]
    %v79 = vld [vmem:[%s6 + $0x50] sm:$0xff]
    %v80 = vld [vmem:[%s6 + $0x58] sm:$0xff]
    %v81 = vld [vmem:[%s6 + $0x60] sm:$0xff]
    %v82 = vld [vmem:[%s6 + $0x68] sm:$0xff]
    %v83 = vld [vmem:[%s6 + $0x70] sm:$0xff]
    %v84 = vld [vmem:[%s6 + $0x78] sm:$0xff]
    %v85 = vld [vmem:[%s7] sm:$0x3]
    %v86 = vld [vmem:[%s8] sm:$0xff]
    %v87 = vld [vmem:[%s8 + $0x8] sm:$0xff]
    %v88 = vld [vmem:[%s8 + $0x10] sm:$0xff]
    %v89 = vld [vmem:[%s8 + $0x18] sm:$0xff]
    %v90 = vld [vmem:[%s9] sm:$0x1]
    %v91 = vlaneseq
    %v92 = vand.u32 %v91, 127
    %v93 = vcvt.s32.f32 %v92
    %vm94 = vcmp.eq.f32.partialorder %v93, 11.0
    %v95 = vsel %vm94, 1, 0
    %v96 = vcvt.s32.f32 %v95
    %97 = vmatprep.subr.mxu0 0.0
    %98 = vmatpush1.msra.mxu0 %v42
    %99 = vmatprep.subr.mxu0 0.0
    %100 = vmatpush1.msra.mxu0 %v43
    %101 = vmatprep.subr.mxu0 0.0
    %102 = vmatpush1.msra.mxu0 %v44
    %103 = vmatprep.subr.mxu0 0.0
    %104 = vmatpush1.msra.mxu0 %v45
    %105 = vmatprep.subr.mxu0 0.0
    %106 = vmatpush1.msra.mxu0 %v46
    %107 = vmatprep.subr.mxu0 0.0
    %108 = vmatpush1.msra.mxu0 %v47
    %109 = vmatprep.subr.mxu0 0.0
    %110 = vmatpush1.msra.mxu0 %v48
    %111 = vmatprep.subr.mxu0 0.0
    %112 = vmatpush1.msra.mxu0 %v49
    %113 = vmatprep.subr.mxu0 0.0
    %114 = vmatpush1.msra.mxu0 %v50
    %115 = vmatprep.subr.mxu0 0.0
    %116 = vmatpush1.msra.mxu0 %v51
    %117 = vmatprep.subr.mxu0 0.0
    %118 = vmatpush1.msra.mxu0 %v52
    %119 = vmatprep.subr.mxu0 0.0
    %120 = vmatpush1.msra.mxu0 %v53
    %121 = vmatprep.subr.mxu0 0.0
    %122 = vmatpush1.msra.mxu0 %v54
    %123 = vmatprep.subr.mxu0 0.0
    %124 = vmatpush1.msra.mxu0 %v55
    %125 = vmatprep.subr.mxu0 0.0
    %126 = vmatpush1.msra.mxu0 %v56
    %127 = vmatprep.subr.mxu0 0.0
    %128 = vmatpush1.msra.mxu0 %v57
    %129 = vmatprep.subr.mxu0 0.0
    %130 = vmatpush1.msra.mxu0 0.0
    %131 = vmatprep.subr.mxu0 0.0
    %132 = vmatpush1.msra.mxu0 0.0
    %133 = vmatprep.subr.mxu0 0.0
    %134 = vmatpush1.msra.mxu0 0.0
    %135 = vmatprep.subr.mxu0 0.0
    %136 = vmatpush1.msra.mxu0 0.0
    %137 = vmatprep.subr.mxu0 0.0
    %138 = vmatpush1.msra.mxu0 0.0
    %139 = vmatprep.subr.mxu0 0.0
    %140 = vmatpush1.msra.mxu0 0.0
    %141 = vmatprep.subr.mxu0 0.0
    %142 = vmatpush1.msra.mxu0 0.0
    %143 = vmatprep.subr.mxu0 0.0
    %144 = vmatpush1.msra.mxu0 0.0
    %145 = vmatprep.subr.mxu0 0.0
    %146 = vmatpush1.msra.mxu0 0.0
    %147 = vmatprep.subr.mxu0 0.0
    %148 = vmatpush1.msra.mxu0 0.0
    %149 = vmatprep.subr.mxu0 0.0
    %150 = vmatpush1.msra.mxu0 0.0
    %151 = vmatprep.subr.mxu0 0.0
    %152 = vmatpush1.msra.mxu0 0.0
    %153 = vmatprep.subr.mxu0 0.0
    %154 = vmatpush1.msra.mxu0 0.0
    %155 = vmatprep.subr.mxu0 0.0
    %156 = vmatpush1.msra.mxu0 0.0
    %157 = vmatprep.subr.mxu0 0.0
    %158 = vmatpush1.msra.mxu0 0.0
    %159 = vmatprep.subr.mxu0 0.0
    %160 = vmatpush1.msra.mxu0 0.0
    %161 = vmatprep.mubr.f32.mxu0 0.0
    %162 = vmatmul.mubr.f32.gmra.mrb[0].mxu0 %v96
    %v163 = vpop.f32.mrb[0].mxu0
    %v164 = vadd.f32 0.0, %v163
    %v165 = vpop.f32.mrb[0].mxu0
    %166 = vdwg.mxu0
    %v167 = vadd.f32 %v38, 0.0
    %v168 = vadd.f32 %v39, 0.0
    %v169 = vadd.f32 %v40, 0.0
    %v170 = vadd.f32 %v41, 0.0
    %v171 = vtanh.pop %v167
    %v172 = vtanh.pop %v168
    %v173 = vtanh.pop %v169
    %v174 = vtanh.pop %v170
    %v176 = vlaneseq
    %v177 = vshrl.u32 %v176, 7
    %v178 = vsub.s32 0, %v177
    %v179 = vrot.slane %v58, %v178
    %v181 = vmul.f32 %v171, %v179
    %v182 = vmul.f32 %v172, %v179
    %v183 = vmul.f32 %v173, %v179
    %v184 = vmul.f32 %v174, %v179
    %vm185 = vcmask 261120
    %v186 = vsel %vm185, %v181, 0.0
    %187 = vadd.xlane.f32.xlu0 %v186
    %v188 = vpop.xlane.xlu0 %187
    %vm189 = vcmask 257024
    %v190 = vsel %vm189, %v182, 0.0
    %191 = vadd.xlane.f32.xlu0 %v190
    %v192 = vpop.xlane.xlu0 %191
    %v193 = vsel %vm185, %v183, 0.0
    %194 = vadd.xlane.f32.xlu0 %v193
    %v195 = vpop.xlane.xlu0 %194
    %v196 = vsel %vm189, %v184, 0.0
    %197 = vadd.xlane.f32.xlu0 %v196
    %v198 = vpop.xlane.xlu0 %197
    %v200 = vlaneseq
    %v201 = vshrl.u32 %v200, 7
    %v202 = vsub.s32 0, %v201
    %v203 = vrot.slane %v59, %v202
    %204 = vset.pattern.permute.xlu0 0
    %205 = vperm.xlu0 %204, %v203
    %v206 = vpop.permute.xlu0 %205
    %v208 = vadd.f32 %v188, %v206
    %v209 = vadd.f32 %v192, %v206
    %v210 = vadd.f32 %v195, %v206
    %v211 = vadd.f32 %v198, %v206
    %v216 = vlaneseq
    %v217 = vshrl.u32 %v216, 7
    %v218 = vsub.s32 %v92, %v217
    %v219 = vrot.slane %v208, %v218
    %v220 = vadd.s32 %v92, 4294967288
    %v221 = vlaneseq
    %v222 = vshrl.u32 %v221, 7
    %v223 = vsub.s32 %v220, %v222
    %v224 = vrot.slane %v209, %v223
    %vm225 = vcmask 130112
    %v226 = vsel %vm225, %v224, %v219
    %v227 = vlaneseq
    %v228 = vshrl.u32 %v227, 7
    %v229 = vsub.s32 %v92, %v228
    %v230 = vrot.slane %v210, %v229
    %v231 = vlaneseq
    %v232 = vshrl.u32 %v231, 7
    %v233 = vsub.s32 %v220, %v232
    %v234 = vrot.slane %v211, %v233
    %v235 = vsel %vm225, %v234, %v230
    %vm236 = vcmask 1041409
    %v237 = vsel %vm236, %v235, %v226
    %vm239 = vcmask 91136
    %v240 = vsel %vm239, %v237, -inf
    %241 = vmax.xlane.f32.xlu0 %v240
    %v242 = vpop.xlane.xlu0 %241
    %v244 = vlaneseq
    %v245 = vshrl.u32 %v244, 7
    %v246 = vsub.s32 0, %v245
    %v247 = vrot.slane %v242, %v246
    %v248 = vlaneseq
    %v249 = vshrl.u32 %v248, 7
    %v250 = vsub.s32 1, %v249
    %v251 = vrot.slane %v242, %v250
    %v254 = vsub.f32 %v208, %v247
    %v255 = vsub.f32 %v209, %v247
    %v256 = vsub.f32 %v210, %v251
    %v257 = vsub.f32 %v211, %v251
    %v258 = vmul.f32 %v254, 1.442695
    %v259 = vpow.pop %v258
    %v260 = vmul.f32 %v255, 1.442695
    %v261 = vpow.pop %v260
    %v262 = vmul.f32 %v256, 1.442695
    %v263 = vpow.pop %v262
    %v264 = vmul.f32 %v257, 1.442695
    %v265 = vpow.pop %v264
    %270 = vset.pattern.permute.xlu0 0
    %271 = vperm.xlu0 %270, %v259
    %v272 = vpop.permute.xlu0 %271
    %273 = vset.pattern.permute.xlu0 0
    %274 = vperm.xlu0 %273, %v261
    %v275 = vpop.permute.xlu0 %274
    %276 = vset.pattern.permute.xlu0 0
    %277 = vperm.xlu0 %276, %v263
    %v278 = vpop.permute.xlu0 %277
    %279 = vset.pattern.permute.xlu0 0
    %280 = vperm.xlu0 %279, %v265
    %v281 = vpop.permute.xlu0 %280
    %v282 = vlaneseq
    %v283 = vshrl.u32 %v282, 7
    %v284 = vsub.s32 %v92, %v283
    %v285 = vrot.slane %v272, %v284
    %v286 = vlaneseq
    %v287 = vshrl.u32 %v286, 7
    %v288 = vsub.s32 %v220, %v287
    %v289 = vrot.slane %v275, %v288
    %v290 = vsel %vm225, %v289, %v285
    %v291 = vlaneseq
    %v292 = vshrl.u32 %v291, 7
    %v293 = vsub.s32 %v92, %v292
    %v294 = vrot.slane %v278, %v293
    %v295 = vlaneseq
    %v296 = vshrl.u32 %v295, 7
    %v297 = vsub.s32 %v220, %v296
    %v298 = vrot.slane %v281, %v297
    %v299 = vsel %vm225, %v298, %v294
    %v300 = vsel %vm236, %v299, %v290
    %v302 = vsel %vm239, %v300, 0.0
    %303 = vadd.xlane.f32.xlu0 %v302
    %v304 = vpop.xlane.xlu0 %303
    %v305 = vrcp.pop %v304
    %v307 = vlaneseq
    %v308 = vshrl.u32 %v307, 7
    %v309 = vsub.s32 0, %v308
    %v310 = vrot.slane %v305, %v309
    %v311 = vlaneseq
    %v312 = vshrl.u32 %v311, 7
    %v313 = vsub.s32 1, %v312
    %v314 = vrot.slane %v305, %v313
    %v317 = vmul.f32 %v259, %v310
    %v318 = vmul.f32 %v261, %v310
    %v319 = vmul.f32 %v263, %v314
    %v320 = vmul.f32 %v265, %v314
    %322 = vset.pattern.permute.xlu0 0
    %323 = vperm.xlu0 %322, %v317
    %v324 = vpop.permute.xlu0 %323
    %327 = vset.pattern.permute.xlu0 0
    %328 = vperm.xlu0 %327, %v318
    %v329 = vpop.permute.xlu0 %328
    %332 = vset.pattern.permute.xlu0 0
    %333 = vperm.xlu0 %332, %v319
    %v334 = vpop.permute.xlu0 %333
    %337 = vset.pattern.permute.xlu0 0
    %338 = vperm.xlu0 %337, %v320
    %v339 = vpop.permute.xlu0 %338
    %v341 = vmul.f32 %v324, %v38
    %v342 = vmul.f32 %v329, %v39
    %v343 = vmul.f32 %v334, %v40
    %v344 = vmul.f32 %v339, %v41
    %v345 = vsel %vm185, %v341, 0.0
    %v346 = vsel %vm189, %v342, 0.0
    %v347 = vadd.f32 %v345, %v346
    %v348 = vrot.slane %v347, 4
    %v349 = vadd.f32 %v347, %v348
    %v350 = vrot.slane %v349, 2
    %v351 = vadd.f32 %v349, %v350
    %v352 = vrot.slane %v351, 1
    %v353 = vadd.f32 %v351, %v352
    %v354 = vsel %vm185, %v343, 0.0
    %v355 = vsel %vm189, %v344, 0.0
    %v356 = vadd.f32 %v354, %v355
    %v357 = vrot.slane %v356, 4
    %v358 = vadd.f32 %v356, %v357
    %v359 = vrot.slane %v358, 2
    %v360 = vadd.f32 %v358, %v359
    %v361 = vrot.slane %v360, 1
    %v362 = vadd.f32 %v360, %v361
    %v365 = vsel %vm236, %v362, %v353
    %366 = vrot.lane.b32.xlu0 %v365, 32
    %v367 = vpop.permute.xlu0 %366
    %v369 = vsel %vm185, %v164, %v367
    %v371 = vlaneseq
    %v372 = vshrl.u32 %v371, 7
    %v373 = vsub.s32 0, %v372
    %v374 = vrot.slane %v68, %v373
    %vm376 = vcmask 523264
    %v378 = vsel %vm376, %v369, 0
    %380 = vmatprep.subr.mxu0 0.0
    %381 = vmatpush1.msra.mxu0 %v60
    %382 = vmatprep.subr.mxu0 0.0
    %383 = vmatpush1.msra.mxu0 %v61
    %384 = vmatprep.subr.mxu0 0.0
    %385 = vmatpush1.msra.mxu0 %v62
    %386 = vmatprep.subr.mxu0 0.0
    %387 = vmatpush1.msra.mxu0 %v63
    %388 = vmatprep.subr.mxu0 0.0
    %389 = vmatpush1.msra.mxu0 %v64
    %390 = vmatprep.subr.mxu0 0.0
    %391 = vmatpush1.msra.mxu0 %v65
    %392 = vmatprep.subr.mxu0 0.0
    %393 = vmatpush1.msra.mxu0 %v66
    %394 = vmatprep.subr.mxu0 0.0
    %395 = vmatpush1.msra.mxu0 %v67
    %396 = vmatprep.subr.mxu0 0.0
    %397 = vmatpush1.msra.mxu0 0.0
    %398 = vmatprep.subr.mxu0 0.0
    %399 = vmatpush1.msra.mxu0 0.0
    %400 = vmatprep.subr.mxu0 0.0
    %401 = vmatpush1.msra.mxu0 0.0
    %402 = vmatprep.subr.mxu0 0.0
    %403 = vmatpush1.msra.mxu0 0.0
    %404 = vmatprep.subr.mxu0 0.0
    %405 = vmatpush1.msra.mxu0 0.0
    %406 = vmatprep.subr.mxu0 0.0
    %407 = vmatpush1.msra.mxu0 0.0
    %408 = vmatprep.subr.mxu0 0.0
    %409 = vmatpush1.msra.mxu0 0.0
    %410 = vmatprep.subr.mxu0 0.0
    %411 = vmatpush1.msra.mxu0 0.0
    %412 = vmatprep.subr.mxu0 0.0
    %413 = vmatpush1.msra.mxu0 0.0
    %414 = vmatprep.subr.mxu0 0.0
    %415 = vmatpush1.msra.mxu0 0.0
    %416 = vmatprep.subr.mxu0 0.0
    %417 = vmatpush1.msra.mxu0 0.0
    %418 = vmatprep.subr.mxu0 0.0
    %419 = vmatpush1.msra.mxu0 0.0
    %420 = vmatprep.subr.mxu0 0.0
    %421 = vmatpush1.msra.mxu0 0.0
    %422 = vmatprep.subr.mxu0 0.0
    %423 = vmatpush1.msra.mxu0 0.0
    %424 = vmatprep.subr.mxu0 0.0
    %425 = vmatpush1.msra.mxu0 0.0
    %426 = vmatprep.subr.mxu0 0.0
    %427 = vmatpush1.msra.mxu0 0.0
    %428 = vmatprep.subr.mxu0 0.0
    %429 = vmatpush1.msra.mxu0 0.0
    %430 = vmatprep.subr.mxu0 0.0
    %431 = vmatpush1.msra.mxu0 0.0
    %432 = vmatprep.subr.mxu0 0.0
    %433 = vmatpush1.msra.mxu0 0.0
    %434 = vmatprep.subr.mxu0 0.0
    %435 = vmatpush1.msra.mxu0 0.0
    %436 = vmatprep.subr.mxu0 0.0
    %437 = vmatpush1.msra.mxu0 0.0
    %438 = vmatprep.subr.mxu0 0.0
    %439 = vmatpush1.msra.mxu0 0.0
    %440 = vmatprep.subr.mxu0 0.0
    %441 = vmatpush1.msra.mxu0 0.0
    %442 = vmatprep.subr.mxu0 0.0
    %443 = vmatpush1.msra.mxu0 0.0
    %444 = vmatprep.mubr.f32.mxu0 0.0
    %445 = vmatmul.mubr.f32.gmra.mrb[0].mxu0 %v378
    %v446 = vpop.f32.mrb[0].mxu0
    %v447 = vadd.f32 %v374, %v446
    %v448 = vpop.f32.mrb[0].mxu0
    %449 = vdwg.mxu0
    %v450 = vmax.f32 %v447, 0.0
    %v451 = vsel %vm185, %v450, 0.0
    %v453 = vlaneseq
    %v454 = vshrl.u32 %v453, 7
    %v455 = vsub.s32 0, %v454
    %v456 = vrot.slane %v85, %v455
    %v457 = vlaneseq
    %v458 = vshrl.u32 %v457, 7
    %v459 = vsub.s32 1, %v458
    %v460 = vrot.slane %v85, %v459
    %v464 = vsel %vm376, %v451, 0
    %466 = vmatprep.subr.mxu0 %v70
    %467 = vmatpush1.msra.mxu0 %v69
    %468 = vmatprep.subr.mxu0 %v72
    %469 = vmatpush1.msra.mxu0 %v71
    %470 = vmatprep.subr.mxu0 %v74
    %471 = vmatpush1.msra.mxu0 %v73
    %472 = vmatprep.subr.mxu0 %v76
    %473 = vmatpush1.msra.mxu0 %v75
    %474 = vmatprep.subr.mxu0 %v78
    %475 = vmatpush1.msra.mxu0 %v77
    %476 = vmatprep.subr.mxu0 %v80
    %477 = vmatpush1.msra.mxu0 %v79
    %478 = vmatprep.subr.mxu0 %v82
    %479 = vmatpush1.msra.mxu0 %v81
    %480 = vmatprep.subr.mxu0 %v84
    %481 = vmatpush1.msra.mxu0 %v83
    %482 = vmatprep.subr.mxu0 0.0
    %483 = vmatpush1.msra.mxu0 0.0
    %484 = vmatprep.subr.mxu0 0.0
    %485 = vmatpush1.msra.mxu0 0.0
    %486 = vmatprep.subr.mxu0 0.0
    %487 = vmatpush1.msra.mxu0 0.0
    %488 = vmatprep.subr.mxu0 0.0
    %489 = vmatpush1.msra.mxu0 0.0
    %490 = vmatprep.subr.mxu0 0.0
    %491 = vmatpush1.msra.mxu0 0.0
    %492 = vmatprep.subr.mxu0 0.0
    %493 = vmatpush1.msra.mxu0 0.0
    %494 = vmatprep.subr.mxu0 0.0
    %495 = vmatpush1.msra.mxu0 0.0
    %496 = vmatprep.subr.mxu0 0.0
    %497 = vmatpush1.msra.mxu0 0.0
    %498 = vmatprep.subr.mxu0 0.0
    %499 = vmatpush1.msra.mxu0 0.0
    %500 = vmatprep.subr.mxu0 0.0
    %501 = vmatpush1.msra.mxu0 0.0
    %502 = vmatprep.subr.mxu0 0.0
    %503 = vmatpush1.msra.mxu0 0.0
    %504 = vmatprep.subr.mxu0 0.0
    %505 = vmatpush1.msra.mxu0 0.0
    %506 = vmatprep.subr.mxu0 0.0
    %507 = vmatpush1.msra.mxu0 0.0
    %508 = vmatprep.subr.mxu0 0.0
    %509 = vmatpush1.msra.mxu0 0.0
    %510 = vmatprep.subr.mxu0 0.0
    %511 = vmatpush1.msra.mxu0 0.0
    %512 = vmatprep.subr.mxu0 0.0
    %513 = vmatpush1.msra.mxu0 0.0
    %514 = vmatprep.subr.mxu0 0.0
    %515 = vmatpush1.msra.mxu0 0.0
    %516 = vmatprep.subr.mxu0 0.0
    %517 = vmatpush1.msra.mxu0 0.0
    %518 = vmatprep.subr.mxu0 0.0
    %519 = vmatpush1.msra.mxu0 0.0
    %520 = vmatprep.subr.mxu0 0.0
    %521 = vmatpush1.msra.mxu0 0.0
    %522 = vmatprep.subr.mxu0 0.0
    %523 = vmatpush1.msra.mxu0 0.0
    %524 = vmatprep.subr.mxu0 0.0
    %525 = vmatpush1.msra.mxu0 0.0
    %526 = vmatprep.subr.mxu0 0.0
    %527 = vmatpush1.msra.mxu0 0.0
    %528 = vmatprep.subr.mxu0 0.0
    %529 = vmatpush1.msra.mxu0 0.0
    %530 = vmatprep.mubr.f32.mxu0 0.0
    %531 = vmatmul.mubr.f32.gmra.mrb[0].mxu0 %v464
    %v532 = vpop.f32.mrb[0].mxu0
    %v533 = vadd.f32 %v456, %v532
    %v534 = vpop.f32.mrb[0].mxu0
    %v535 = vadd.f32 %v460, %v534
    %536 = vdwg.mxu0
    %538 = vrot.lane.b32.xlu0 %v533, 32
    %v539 = vpop.permute.xlu0 %538
    %v541 = vadd.f32 %v533, %v539
    %v542 = vxor.u32 %v541, 2147483648
    %v543 = vmul.f32 %v542, 1.442695
    %v544 = vpow.pop %v543
    %v545 = vadd.f32 %v544, 1.0
    %v546 = vrcp.pop %v545
    %v547 = vmul.f32 1.0, %v546
    %549 = vrot.lane.b32.xlu0 %v535, 32
    %v550 = vpop.permute.xlu0 %549
    %v552 = vadd.f32 %v533, %v550
    %v553 = vxor.u32 %v552, 2147483648
    %v554 = vmul.f32 %v553, 1.442695
    %v555 = vpow.pop %v554
    %v556 = vadd.f32 %v555, 1.0
    %v557 = vrcp.pop %v556
    %v558 = vmul.f32 1.0, %v557
    %559 = vrot.lane.b32.xlu0 %v535, 96
    %v560 = vpop.permute.xlu0 %559
    %v562 = vmul.f32 %v547, %v560
    %564 = vrot.lane.b32.xlu0 %v562, 64
    %v565 = vpop.permute.xlu0 %564
    %v567 = vadd.f32 %v533, %v565
    %v568 = vtanh.pop %v567
    %v569 = vsub.f32 1.0, %v558
    %571 = vrot.lane.b32.xlu0 %v568, 96
    %v572 = vpop.permute.xlu0 %571
    %v574 = vmul.f32 %v569, %v572
    %v575 = vmul.f32 %v558, 0.0
    %v576 = vadd.f32 %v574, %v575
    %v578 = vlaneseq
    %v579 = vshrl.u32 %v578, 7
    %v580 = vsub.s32 0, %v579
    %v581 = vrot.slane %v90, %v580
    %584 = vrot.lane.b32.xlu0 %v576, 96
    %v585 = vpop.permute.xlu0 %584
    %v586 = vsel %vm185, %v585, 0
    %588 = vmatprep.subr.mxu0 0.0
    %589 = vmatpush1.msra.mxu0 %v86
    %590 = vmatprep.subr.mxu0 0.0
    %591 = vmatpush1.msra.mxu0 %v87
    %592 = vmatprep.subr.mxu0 0.0
    %593 = vmatpush1.msra.mxu0 %v88
    %594 = vmatprep.subr.mxu0 0.0
    %595 = vmatpush1.msra.mxu0 %v89
    %596 = vmatprep.subr.mxu0 0.0
    %597 = vmatpush1.msra.mxu0 0.0
    %598 = vmatprep.subr.mxu0 0.0
    %599 = vmatpush1.msra.mxu0 0.0
    %600 = vmatprep.subr.mxu0 0.0
    %601 = vmatpush1.msra.mxu0 0.0
    %602 = vmatprep.subr.mxu0 0.0
    %603 = vmatpush1.msra.mxu0 0.0
    %604 = vmatprep.subr.mxu0 0.0
    %605 = vmatpush1.msra.mxu0 0.0
    %606 = vmatprep.subr.mxu0 0.0
    %607 = vmatpush1.msra.mxu0 0.0
    %608 = vmatprep.subr.mxu0 0.0
    %609 = vmatpush1.msra.mxu0 0.0
    %610 = vmatprep.subr.mxu0 0.0
    %611 = vmatpush1.msra.mxu0 0.0
    %612 = vmatprep.subr.mxu0 0.0
    %613 = vmatpush1.msra.mxu0 0.0
    %614 = vmatprep.subr.mxu0 0.0
    %615 = vmatpush1.msra.mxu0 0.0
    %616 = vmatprep.subr.mxu0 0.0
    %617 = vmatpush1.msra.mxu0 0.0
    %618 = vmatprep.subr.mxu0 0.0
    %619 = vmatpush1.msra.mxu0 0.0
    %620 = vmatprep.subr.mxu0 0.0
    %621 = vmatpush1.msra.mxu0 0.0
    %622 = vmatprep.subr.mxu0 0.0
    %623 = vmatpush1.msra.mxu0 0.0
    %624 = vmatprep.subr.mxu0 0.0
    %625 = vmatpush1.msra.mxu0 0.0
    %626 = vmatprep.subr.mxu0 0.0
    %627 = vmatpush1.msra.mxu0 0.0
    %628 = vmatprep.subr.mxu0 0.0
    %629 = vmatpush1.msra.mxu0 0.0
    %630 = vmatprep.subr.mxu0 0.0
    %631 = vmatpush1.msra.mxu0 0.0
    %632 = vmatprep.subr.mxu0 0.0
    %633 = vmatpush1.msra.mxu0 0.0
    %634 = vmatprep.subr.mxu0 0.0
    %635 = vmatpush1.msra.mxu0 0.0
    %636 = vmatprep.subr.mxu0 0.0
    %637 = vmatpush1.msra.mxu0 0.0
    %638 = vmatprep.subr.mxu0 0.0
    %639 = vmatpush1.msra.mxu0 0.0
    %640 = vmatprep.subr.mxu0 0.0
    %641 = vmatpush1.msra.mxu0 0.0
    %642 = vmatprep.subr.mxu0 0.0
    %643 = vmatpush1.msra.mxu0 0.0
    %644 = vmatprep.subr.mxu0 0.0
    %645 = vmatpush1.msra.mxu0 0.0
    %646 = vmatprep.subr.mxu0 0.0
    %647 = vmatpush1.msra.mxu0 0.0
    %648 = vmatprep.subr.mxu0 0.0
    %649 = vmatpush1.msra.mxu0 0.0
    %650 = vmatprep.subr.mxu0 0.0
    %651 = vmatpush1.msra.mxu0 0.0
    %652 = vmatprep.mubr.f32.mxu0 0.0
    %653 = vmatmul.mubr.f32.gmra.mrb[0].mxu0 %v586
    %v654 = vpop.f32.mrb[0].mxu0
    %v655 = vadd.f32 %v581, %v654
    %v656 = vpop.f32.mrb[0].mxu0
    %657 = vdwg.mxu0
    %vm658 = vcmask 1041408
    %v659 = vsel %vm658, %v655, -inf
    %660 = vmax.xlane.f32.xlu0 %v659
    %v661 = vpop.xlane.xlu0 %660
    %v662 = vsub.f32 %v655, %v661
    %v663 = vmul.f32 %v662, 1.442695
    %v664 = vpow.pop %v663
    %v665 = vsel %vm658, %v664, 0.0
    %666 = vadd.xlane.f32.xlu0 %v665
    %v667 = vpop.xlane.xlu0 %666
    %v668 = vlog2.pop %v667
    %v669 = vmul.f32 %v668, 0.6931472
    %v670 = vadd.f32 %v661, %v669
    %v671 = vsub.f32 %v655, %v670
    %v672 = vmul.f32 %v671, 1.442695
    %v673 = vpow.pop %v672
    %674 = vst [vmem:[#allocation3] sm:$0x3] %v673
    %v675 = vsel %vm658, %v671, -inf
    %676 = vmax.xlane.f32.xlu0 %v675
    %v677 = vpop.xlane.xlu0 %676
    %vm678 = vcmp.eq.f32.partialorder %v671, %v677
    %v679 = vsel %vm678, %v93, 128.0
    %v680 = vsel %vm658, %v679, inf
    %681 = vmin.xlane.f32.xlu0 %v680
    %v682 = vpop.xlane.xlu0 %681
    %vm683 = vcmp.eq.f32.partialorder %v93, %v682
    %v684 = vsel %vm683, 1, 0
    %v685 = vcvt.s32.f32 %v684
    %686 = vmatprep.subr.mxu0 0.0
    %687 = vmatpush1.msra.mxu0 %v42
    %688 = vmatprep.subr.mxu0 0.0
    %689 = vmatpush1.msra.mxu0 %v43
    %690 = vmatprep.subr.mxu0 0.0
    %691 = vmatpush1.msra.mxu0 %v44
    %692 = vmatprep.subr.mxu0 0.0
    %693 = vmatpush1.msra.mxu0 %v45
    %694 = vmatprep.subr.mxu0 0.0
    %695 = vmatpush1.msra.mxu0 %v46
    %696 = vmatprep.subr.mxu0 0.0
    %697 = vmatpush1.msra.mxu0 %v47
    %698 = vmatprep.subr.mxu0 0.0
    %699 = vmatpush1.msra.mxu0 %v48
    %700 = vmatprep.subr.mxu0 0.0
    %701 = vmatpush1.msra.mxu0 %v49
    %702 = vmatprep.subr.mxu0 0.0
    %703 = vmatpush1.msra.mxu0 %v50
    %704 = vmatprep.subr.mxu0 0.0
    %705 = vmatpush1.msra.mxu0 %v51
    %706 = vmatprep.subr.mxu0 0.0
    %707 = vmatpush1.msra.mxu0 %v52
    %708 = vmatprep.subr.mxu0 0.0
    %709 = vmatpush1.msra.mxu0 %v53
    %710 = vmatprep.subr.mxu0 0.0
    %711 = vmatpush1.msra.mxu0 %v54
    %712 = vmatprep.subr.mxu0 0.0
    %713 = vmatpush1.msra.mxu0 %v55
    %714 = vmatprep.subr.mxu0 0.0
    %715 = vmatpush1.msra.mxu0 %v56
    %716 = vmatprep.subr.mxu0 0.0
    %717 = vmatpush1.msra.mxu0 %v57
    %718 = vmatprep.subr.mxu0 0.0
    %719 = vmatpush1.msra.mxu0 0.0
    %720 = vmatprep.subr.mxu0 0.0
    %721 = vmatpush1.msra.mxu0 0.0
    %722 = vmatprep.subr.mxu0 0.0
    %723 = vmatpush1.msra.mxu0 0.0
    %724 = vmatprep.subr.mxu0 0.0
    %725 = vmatpush1.msra.mxu0 0.0
    %726 = vmatprep.subr.mxu0 0.0
    %727 = vmatpush1.msra.mxu0 0.0
    %728 = vmatprep.subr.mxu0 0.0
    %729 = vmatpush1.msra.mxu0 0.0
    %730 = vmatprep.subr.mxu0 0.0
    %731 = vmatpush1.msra.mxu0 0.0
    %732 = vmatprep.subr.mxu0 0.0
    %733 = vmatpush1.msra.mxu0 0.0
    %734 = vmatprep.subr.mxu0 0.0
    %735 = vmatpush1.msra.mxu0 0.0
    %736 = vmatprep.subr.mxu0 0.0
    %737 = vmatpush1.msra.mxu0 0.0
    %738 = vmatprep.subr.mxu0 0.0
    %739 = vmatpush1.msra.mxu0 0.0
    %740 = vmatprep.subr.mxu0 0.0
    %741 = vmatpush1.msra.mxu0 0.0
    %742 = vmatprep.subr.mxu0 0.0
    %743 = vmatpush1.msra.mxu0 0.0
    %744 = vmatprep.subr.mxu0 0.0
    %745 = vmatpush1.msra.mxu0 0.0
    %746 = vmatprep.subr.mxu0 0.0
    %747 = vmatpush1.msra.mxu0 0.0
    %748 = vmatprep.subr.mxu0 0.0
    %749 = vmatpush1.msra.mxu0 0.0
    %750 = vmatprep.mubr.f32.mxu0 0.0
    %751 = vmatmul.mubr.f32.gmra.mrb[0].mxu0 %v685
    %v752 = vpop.f32.mrb[0].mxu0
    %v753 = vadd.f32 0.0, %v752
    %v754 = vpop.f32.mrb[0].mxu0
    %755 = vdwg.mxu0
    %v757 = vunpack.c.l.s4 1966171168
    %v758 = vunpack.c.0.s8 %v757
    %v759 = vlaneseq
    %v760 = vshrl.u32 %v759, 7
    %v761 = vsub.s32 %v758, %v760
    %v762 = vrot.slane %v576, %v761
    %v763 = vcombine.high %v762, %v762
    %v765 = vunpack.c.l.s4 1966171168
    %v766 = vunpack.c.0.s8 %v765
    %v767 = vlaneseq
    %v768 = vshrl.u32 %v767, 7
    %v769 = vsub.s32 %v766, %v768
    %v770 = vrot.slane %v762, %v769
    %v772 = vunpack.c.l.s4 1966171168
    %v773 = vunpack.c.0.s8 %v772
    %v774 = vlaneseq
    %v775 = vshrl.u32 %v774, 7
    %v776 = vsub.s32 %v773, %v775
    %v777 = vrot.slane %v763, %v776
    %v778 = vlaneseq
    %v779 = vshrl.u32 %v778, 7
    %v780 = vsub.s32 0, %v779
    %v781 = vrot.slane %v770, %v780
    %v782 = vlaneseq
    %v783 = vshrl.u32 %v782, 7
    %v784 = vsub.s32 0, %v783
    %v785 = vrot.slane %v777, %v784
    %792 = vrot.lane.b32.xlu0 %v38, 32
    %v793 = vpop.permute.xlu0 %792
    %794 = vrot.lane.b32.xlu0 %v39, 32
    %v795 = vpop.permute.xlu0 %794
    %796 = vrot.lane.b32.xlu0 %v40, 32
    %v797 = vpop.permute.xlu0 %796
    %798 = vrot.lane.b32.xlu0 %v41, 32
    %v799 = vpop.permute.xlu0 %798
    %v804 = vadd.f32 %v781, %v793
    %v805 = vadd.f32 %v781, %v795
    %v806 = vadd.f32 %v785, %v797
    %v807 = vadd.f32 %v785, %v799
    %v808 = vtanh.pop %v804
    %v809 = vtanh.pop %v805
    %v810 = vtanh.pop %v806
    %v811 = vtanh.pop %v807
    %812 = vrot.lane.b32.xlu0 %v179, 32
    %v813 = vpop.permute.xlu0 %812
    %v815 = vmul.f32 %v808, %v813
    %v816 = vmul.f32 %v809, %v813
    %v817 = vmul.f32 %v810, %v813
    %v818 = vmul.f32 %v811, %v813
    %823 = vrot.lane.b32.xlu0 %v815, 96
    %v824 = vpop.permute.xlu0 %823
    %825 = vrot.lane.b32.xlu0 %v816, 96
    %v826 = vpop.permute.xlu0 %825
    %827 = vrot.lane.b32.xlu0 %v817, 96
    %v828 = vpop.permute.xlu0 %827
    %829 = vrot.lane.b32.xlu0 %v818, 96
    %v830 = vpop.permute.xlu0 %829
    %v835 = vsel %vm185, %v824, 0.0
    %836 = vadd.xlane.f32.xlu0 %v835
    %v837 = vpop.xlane.xlu0 %836
    %v838 = vsel %vm189, %v826, 0.0
    %839 = vadd.xlane.f32.xlu0 %v838
    %v840 = vpop.xlane.xlu0 %839
    %v841 = vsel %vm185, %v828, 0.0
    %842 = vadd.xlane.f32.xlu0 %v841
    %v843 = vpop.xlane.xlu0 %842
    %v844 = vsel %vm189, %v830, 0.0
    %845 = vadd.xlane.f32.xlu0 %v844
    %v846 = vpop.xlane.xlu0 %845
    %v847 = vadd.f32 %v837, %v206
    %v848 = vadd.f32 %v840, %v206
    %v849 = vadd.f32 %v843, %v206
    %v850 = vadd.f32 %v846, %v206
    %v855 = vlaneseq
    %v856 = vshrl.u32 %v855, 7
    %v857 = vsub.s32 %v92, %v856
    %v858 = vrot.slane %v847, %v857
    %v859 = vlaneseq
    %v860 = vshrl.u32 %v859, 7
    %v861 = vsub.s32 %v220, %v860
    %v862 = vrot.slane %v848, %v861
    %v863 = vsel %vm225, %v862, %v858
    %v864 = vlaneseq
    %v865 = vshrl.u32 %v864, 7
    %v866 = vsub.s32 %v92, %v865
    %v867 = vrot.slane %v849, %v866
    %v868 = vlaneseq
    %v869 = vshrl.u32 %v868, 7
    %v870 = vsub.s32 %v220, %v869
    %v871 = vrot.slane %v850, %v870
    %v872 = vsel %vm225, %v871, %v867
    %v873 = vsel %vm236, %v872, %v863
    %v875 = vsel %vm239, %v873, -inf
    %876 = vmax.xlane.f32.xlu0 %v875
    %v877 = vpop.xlane.xlu0 %876
    %v879 = vlaneseq
    %v880 = vshrl.u32 %v879, 7
    %v881 = vsub.s32 0, %v880
    %v882 = vrot.slane %v877, %v881
    %v883 = vlaneseq
    %v884 = vshrl.u32 %v883, 7
    %v885 = vsub.s32 1, %v884
    %v886 = vrot.slane %v877, %v885
    %v889 = vsub.f32 %v847, %v882
    %v890 = vsub.f32 %v848, %v882
    %v891 = vsub.f32 %v849, %v886
    %v892 = vsub.f32 %v850, %v886
    %v893 = vmul.f32 %v889, 1.442695
    %v894 = vpow.pop %v893
    %v895 = vmul.f32 %v890, 1.442695
    %v896 = vpow.pop %v895
    %v897 = vmul.f32 %v891, 1.442695
    %v898 = vpow.pop %v897
    %v899 = vmul.f32 %v892, 1.442695
    %v900 = vpow.pop %v899
    %905 = vset.pattern.permute.xlu0 0
    %906 = vperm.xlu0 %905, %v894
    %v907 = vpop.permute.xlu0 %906
    %908 = vset.pattern.permute.xlu0 0
    %909 = vperm.xlu0 %908, %v896
    %v910 = vpop.permute.xlu0 %909
    %911 = vset.pattern.permute.xlu0 0
    %912 = vperm.xlu0 %911, %v898
    %v913 = vpop.permute.xlu0 %912
    %914 = vset.pattern.permute.xlu0 0
    %915 = vperm.xlu0 %914, %v900
    %v916 = vpop.permute.xlu0 %915
    %v917 = vlaneseq
    %v918 = vshrl.u32 %v917, 7
    %v919 = vsub.s32 %v92, %v918
    %v920 = vrot.slane %v907, %v919
    %v921 = vlaneseq
    %v922 = vshrl.u32 %v921, 7
    %v923 = vsub.s32 %v220, %v922
    %v924 = vrot.slane %v910, %v923
    %v925 = vsel %vm225, %v924, %v920
    %v926 = vlaneseq
    %v927 = vshrl.u32 %v926, 7
    %v928 = vsub.s32 %v92, %v927
    %v929 = vrot.slane %v913, %v928
    %v930 = vlaneseq
    %v931 = vshrl.u32 %v930, 7
    %v932 = vsub.s32 %v220, %v931
    %v933 = vrot.slane %v916, %v932
    %v934 = vsel %vm225, %v933, %v929
    %v935 = vsel %vm236, %v934, %v925
    %v937 = vsel %vm239, %v935, 0.0
    %938 = vadd.xlane.f32.xlu0 %v937
    %v939 = vpop.xlane.xlu0 %938
    %v940 = vrcp.pop %v939
    %v942 = vlaneseq
    %v943 = vshrl.u32 %v942, 7
    %v944 = vsub.s32 0, %v943
    %v945 = vrot.slane %v940, %v944
    %v946 = vlaneseq
    %v947 = vshrl.u32 %v946, 7
    %v948 = vsub.s32 1, %v947
    %v949 = vrot.slane %v940, %v948
    %v952 = vmul.f32 %v894, %v945
    %v953 = vmul.f32 %v896, %v945
    %v954 = vmul.f32 %v898, %v949
    %v955 = vmul.f32 %v900, %v949
    %957 = vset.pattern.permute.xlu0 0
    %958 = vperm.xlu0 %957, %v952
    %v959 = vpop.permute.xlu0 %958
    %962 = vset.pattern.permute.xlu0 0
    %963 = vperm.xlu0 %962, %v953
    %v964 = vpop.permute.xlu0 %963
    %967 = vset.pattern.permute.xlu0 0
    %968 = vperm.xlu0 %967, %v954
    %v969 = vpop.permute.xlu0 %968
    %972 = vset.pattern.permute.xlu0 0
    %973 = vperm.xlu0 %972, %v955
    %v974 = vpop.permute.xlu0 %973
    %v976 = vmul.f32 %v959, %v38
    %v977 = vmul.f32 %v964, %v39
    %v978 = vmul.f32 %v969, %v40
    %v979 = vmul.f32 %v974, %v41
    %v980 = vsel %vm185, %v976, 0.0
    %v981 = vsel %vm189, %v977, 0.0
    %v982 = vadd.f32 %v980, %v981
    %v983 = vrot.slane %v982, 4
    %v984 = vadd.f32 %v982, %v983
    %v985 = vrot.slane %v984, 2
    %v986 = vadd.f32 %v984, %v985
    %v987 = vrot.slane %v986, 1
    %v988 = vadd.f32 %v986, %v987
    %v989 = vsel %vm185, %v978, 0.0
    %v990 = vsel %vm189, %v979, 0.0
    %v991 = vadd.f32 %v989, %v990
    %v992 = vrot.slane %v991, 4
    %v993 = vadd.f32 %v991, %v992
    %v994 = vrot.slane %v993, 2
    %v995 = vadd.f32 %v993, %v994
    %v996 = vrot.slane %v995, 1
    %v997 = vadd.f32 %v995, %v996
    %v1000 = vsel %vm236, %v997, %v988
    %1001 = vrot.lane.b32.xlu0 %v1000, 32
    %v1002 = vpop.permute.xlu0 %1001
    %v1004 = vsel %vm185, %v753, %v1002
    %v1006 = vsel %vm376, %v1004, 0
    %1008 = vmatprep.subr.mxu0 0.0
    %1009 = vmatpush1.msra.mxu0 %v60
    %1010 = vmatprep.subr.mxu0 0.0
    %1011 = vmatpush1.msra.mxu0 %v61
    %1012 = vmatprep.subr.mxu0 0.0
    %1013 = vmatpush1.msra.mxu0 %v62
    %1014 = vmatprep.subr.mxu0 0.0
    %1015 = vmatpush1.msra.mxu0 %v63
    %1016 = vmatprep.subr.mxu0 0.0
    %1017 = vmatpush1.msra.mxu0 %v64
    %1018 = vmatprep.subr.mxu0 0.0
    %1019 = vmatpush1.msra.mxu0 %v65
    %1020 = vmatprep.subr.mxu0 0.0
    %1021 = vmatpush1.msra.mxu0 %v66
    %1022 = vmatprep.subr.mxu0 0.0
    %1023 = vmatpush1.msra.mxu0 %v67
    %1024 = vmatprep.subr.mxu0 0.0
    %1025 = vmatpush1.msra.mxu0 0.0
    %1026 = vmatprep.subr.mxu0 0.0
    %1027 = vmatpush1.msra.mxu0 0.0
    %1028 = vmatprep.subr.mxu0 0.0
    %1029 = vmatpush1.msra.mxu0 0.0
    %1030 = vmatprep.subr.mxu0 0.0
    %1031 = vmatpush1.msra.mxu0 0.0
    %1032 = vmatprep.subr.mxu0 0.0
    %1033 = vmatpush1.msra.mxu0 0.0
    %1034 = vmatprep.subr.mxu0 0.0
    %1035 = vmatpush1.msra.mxu0 0.0
    %1036 = vmatprep.subr.mxu0 0.0
    %1037 = vmatpush1.msra.mxu0 0.0
    %1038 = vmatprep.subr.mxu0 0.0
    %1039 = vmatpush1.msra.mxu0 0.0
    %1040 = vmatprep.subr.mxu0 0.0
    %1041 = vmatpush1.msra.mxu0 0.0
    %1042 = vmatprep.subr.mxu0 0.0
    %1043 = vmatpush1.msra.mxu0 0.0
    %1044 = vmatprep.subr.mxu0 0.0
    %1045 = vmatpush1.msra.mxu0 0.0
    %1046 = vmatprep.subr.mxu0 0.0
    %1047 = vmatpush1.msra.mxu0 0.0
    %1048 = vmatprep.subr.mxu0 0.0
    %1049 = vmatpush1.msra.mxu0 0.0
    %1050 = vmatprep.subr.mxu0 0.0
    %1051 = vmatpush1.msra.mxu0 0.0
    %1052 = vmatprep.subr.mxu0 0.0
    %1053 = vmatpush1.msra.mxu0 0.0
    %1054 = vmatprep.subr.mxu0 0.0
    %1055 = vmatpush1.msra.mxu0 0.0
    %1056 = vmatprep.subr.mxu0 0.0
    %1057 = vmatpush1.msra.mxu0 0.0
    %1058 = vmatprep.subr.mxu0 0.0
    %1059 = vmatpush1.msra.mxu0 0.0
    %1060 = vmatprep.subr.mxu0 0.0
    %1061 = vmatpush1.msra.mxu0 0.0
    %1062 = vmatprep.subr.mxu0 0.0
    %1063 = vmatpush1.msra.mxu0 0.0
    %1064 = vmatprep.subr.mxu0 0.0
    %1065 = vmatpush1.msra.mxu0 0.0
    %1066 = vmatprep.subr.mxu0 0.0
    %1067 = vmatpush1.msra.mxu0 0.0
    %1068 = vmatprep.subr.mxu0 0.0
    %1069 = vmatpush1.msra.mxu0 0.0
    %1070 = vmatprep.subr.mxu0 0.0
    %1071 = vmatpush1.msra.mxu0 0.0
    %1072 = vmatprep.mubr.f32.mxu0 0.0
    %1073 = vmatmul.mubr.f32.gmra.mrb[0].mxu0 %v1006
    %v1074 = vpop.f32.mrb[0].mxu0
    %v1075 = vadd.f32 %v374, %v1074
    %v1076 = vpop.f32.mrb[0].mxu0
    %1077 = vdwg.mxu0
    %v1078 = vmax.f32 %v1075, 0.0
    %v1079 = vsel %vm185, %v1078, %v576
    %v1081 = vsel %vm376, %v1079, 0
    %1083 = vmatprep.subr.mxu0 %v70
    %1084 = vmatpush1.msra.mxu0 %v69
    %1085 = vmatprep.subr.mxu0 %v72
    %1086 = vmatpush1.msra.mxu0 %v71
    %1087 = vmatprep.subr.mxu0 %v74
    %1088 = vmatpush1.msra.mxu0 %v73
    %1089 = vmatprep.subr.mxu0 %v76
    %1090 = vmatpush1.msra.mxu0 %v75
    %1091 = vmatprep.subr.mxu0 %v78
    %1092 = vmatpush1.msra.mxu0 %v77
    %1093 = vmatprep.subr.mxu0 %v80
    %1094 = vmatpush1.msra.mxu0 %v79
    %1095 = vmatprep.subr.mxu0 %v82
    %1096 = vmatpush1.msra.mxu0 %v81
    %1097 = vmatprep.subr.mxu0 %v84
    %1098 = vmatpush1.msra.mxu0 %v83
    %1099 = vmatprep.subr.mxu0 0.0
    %1100 = vmatpush1.msra.mxu0 0.0
    %1101 = vmatprep.subr.mxu0 0.0
    %1102 = vmatpush1.msra.mxu0 0.0
    %1103 = vmatprep.subr.mxu0 0.0
    %1104 = vmatpush1.msra.mxu0 0.0
    %1105 = vmatprep.subr.mxu0 0.0
    %1106 = vmatpush1.msra.mxu0 0.0
    %1107 = vmatprep.subr.mxu0 0.0
    %1108 = vmatpush1.msra.mxu0 0.0
    %1109 = vmatprep.subr.mxu0 0.0
    %1110 = vmatpush1.msra.mxu0 0.0
    %1111 = vmatprep.subr.mxu0 0.0
    %1112 = vmatpush1.msra.mxu0 0.0
    %1113 = vmatprep.subr.mxu0 0.0
    %1114 = vmatpush1.msra.mxu0 0.0
    %1115 = vmatprep.subr.mxu0 0.0
    %1116 = vmatpush1.msra.mxu0 0.0
    %1117 = vmatprep.subr.mxu0 0.0
    %1118 = vmatpush1.msra.mxu0 0.0
    %1119 = vmatprep.subr.mxu0 0.0
    %1120 = vmatpush1.msra.mxu0 0.0
    %1121 = vmatprep.subr.mxu0 0.0
    %1122 = vmatpush1.msra.mxu0 0.0
    %1123 = vmatprep.subr.mxu0 0.0
    %1124 = vmatpush1.msra.mxu0 0.0
    %1125 = vmatprep.subr.mxu0 0.0
    %1126 = vmatpush1.msra.mxu0 0.0
    %1127 = vmatprep.subr.mxu0 0.0
    %1128 = vmatpush1.msra.mxu0 0.0
    %1129 = vmatprep.subr.mxu0 0.0
    %1130 = vmatpush1.msra.mxu0 0.0
    %1131 = vmatprep.subr.mxu0 0.0
    %1132 = vmatpush1.msra.mxu0 0.0
    %1133 = vmatprep.subr.mxu0 0.0
    %1134 = vmatpush1.msra.mxu0 0.0
    %1135 = vmatprep.subr.mxu0 0.0
    %1136 = vmatpush1.msra.mxu0 0.0
    %1137 = vmatprep.subr.mxu0 0.0
    %1138 = vmatpush1.msra.mxu0 0.0
    %1139 = vmatprep.subr.mxu0 0.0
    %1140 = vmatpush1.msra.mxu0 0.0
    %1141 = vmatprep.subr.mxu0 0.0
    %1142 = vmatpush1.msra.mxu0 0.0
    %1143 = vmatprep.subr.mxu0 0.0
    %1144 = vmatpush1.msra.mxu0 0.0
    %1145 = vmatprep.subr.mxu0 0.0
    %1146 = vmatpush1.msra.mxu0 0.0
    %1147 = vmatprep.mubr.f32.mxu0 0.0
    %1148 = vmatmul.mubr.f32.gmra.mrb[0].mxu0 %v1081
    %v1149 = vpop.f32.mrb[0].mxu0
    %v1150 = vadd.f32 %v456, %v1149
    %v1151 = vpop.f32.mrb[0].mxu0
    %v1152 = vadd.f32 %v460, %v1151
    %1153 = vdwg.mxu0
    %1155 = vrot.lane.b32.xlu0 %v1150, 32
    %v1156 = vpop.permute.xlu0 %1155
    %v1158 = vadd.f32 %v1150, %v1156
    %v1159 = vxor.u32 %v1158, 2147483648
    %v1160 = vmul.f32 %v1159, 1.442695
    %v1161 = vpow.pop %v1160
    %v1162 = vadd.f32 %v1161, 1.0
    %v1163 = vrcp.pop %v1162
    %v1164 = vmul.f32 1.0, %v1163
    %1166 = vrot.lane.b32.xlu0 %v1152, 32
    %v1167 = vpop.permute.xlu0 %1166
    %v1169 = vadd.f32 %v1150, %v1167
    %v1170 = vxor.u32 %v1169, 2147483648
    %v1171 = vmul.f32 %v1170, 1.442695
    %v1172 = vpow.pop %v1171
    %v1173 = vadd.f32 %v1172, 1.0
    %v1174 = vrcp.pop %v1173
    %v1175 = vmul.f32 1.0, %v1174
    %1176 = vrot.lane.b32.xlu0 %v1152, 96
    %v1177 = vpop.permute.xlu0 %1176
    %v1179 = vmul.f32 %v1164, %v1177
    %1181 = vrot.lane.b32.xlu0 %v1179, 64
    %v1182 = vpop.permute.xlu0 %1181
    %v1184 = vadd.f32 %v1150, %v1182
    %v1185 = vtanh.pop %v1184
    %v1186 = vsub.f32 1.0, %v1175
    %1188 = vrot.lane.b32.xlu0 %v1185, 96
    %v1189 = vpop.permute.xlu0 %1188
    %v1191 = vmul.f32 %v1186, %v1189
    %v1192 = vmul.f32 %v1175, %v576
    %v1193 = vadd.f32 %v1191, %v1192
    %1195 = vrot.lane.b32.xlu0 %v1193, 96
    %v1196 = vpop.permute.xlu0 %1195
    %v1197 = vsel %vm185, %v1196, 0
    %1199 = vmatprep.subr.mxu0 0.0
    %1200 = vmatpush1.msra.mxu0 %v86
    %1201 = vmatprep.subr.mxu0 0.0
    %1202 = vmatpush1.msra.mxu0 %v87
    %1203 = vmatprep.subr.mxu0 0.0
    %1204 = vmatpush1.msra.mxu0 %v88
    %1205 = vmatprep.subr.mxu0 0.0
    %1206 = vmatpush1.msra.mxu0 %v89
    %1207 = vmatprep.subr.mxu0 0.0
    %1208 = vmatpush1.msra.mxu0 0.0
    %1209 = vmatprep.subr.mxu0 0.0
    %1210 = vmatpush1.msra.mxu0 0.0
    %1211 = vmatprep.subr.mxu0 0.0
    %1212 = vmatpush1.msra.mxu0 0.0
    %1213 = vmatprep.subr.mxu0 0.0
    %1214 = vmatpush1.msra.mxu0 0.0
    %1215 = vmatprep.subr.mxu0 0.0
    %1216 = vmatpush1.msra.mxu0 0.0
    %1217 = vmatprep.subr.mxu0 0.0
    %1218 = vmatpush1.msra.mxu0 0.0
    %1219 = vmatprep.subr.mxu0 0.0
    %1220 = vmatpush1.msra.mxu0 0.0
    %1221 = vmatprep.subr.mxu0 0.0
    %1222 = vmatpush1.msra.mxu0 0.0
    %1223 = vmatprep.subr.mxu0 0.0
    %1224 = vmatpush1.msra.mxu0 0.0
    %1225 = vmatprep.subr.mxu0 0.0
    %1226 = vmatpush1.msra.mxu0 0.0
    %1227 = vmatprep.subr.mxu0 0.0
    %1228 = vmatpush1.msra.mxu0 0.0
    %1229 = vmatprep.subr.mxu0 0.0
    %1230 = vmatpush1.msra.mxu0 0.0
    %1231 = vmatprep.subr.mxu0 0.0
    %1232 = vmatpush1.msra.mxu0 0.0
    %1233 = vmatprep.subr.mxu0 0.0
    %1234 = vmatpush1.msra.mxu0 0.0
    %1235 = vmatprep.subr.mxu0 0.0
    %1236 = vmatpush1.msra.mxu0 0.0
    %1237 = vmatprep.subr.mxu0 0.0
    %1238 = vmatpush1.msra.mxu0 0.0
    %1239 = vmatprep.subr.mxu0 0.0
    %1240 = vmatpush1.msra.mxu0 0.0
    %1241 = vmatprep.subr.mxu0 0.0
    %1242 = vmatpush1.msra.mxu0 0.0
    %1243 = vmatprep.subr.mxu0 0.0
    %1244 = vmatpush1.msra.mxu0 0.0
    %1245 = vmatprep.subr.mxu0 0.0
    %1246 = vmatpush1.msra.mxu0 0.0
    %1247 = vmatprep.subr.mxu0 0.0
    %1248 = vmatpush1.msra.mxu0 0.0
    %1249 = vmatprep.subr.mxu0 0.0
    %1250 = vmatpush1.msra.mxu0 0.0
    %1251 = vmatprep.subr.mxu0 0.0
    %1252 = vmatpush1.msra.mxu0 0.0
    %1253 = vmatprep.subr.mxu0 0.0
    %1254 = vmatpush1.msra.mxu0 0.0
    %1255 = vmatprep.subr.mxu0 0.0
    %1256 = vmatpush1.msra.mxu0 0.0
    %1257 = vmatprep.subr.mxu0 0.0
    %1258 = vmatpush1.msra.mxu0 0.0
    %1259 = vmatprep.subr.mxu0 0.0
    %1260 = vmatpush1.msra.mxu0 0.0
    %1261 = vmatprep.subr.mxu0 0.0
    %1262 = vmatpush1.msra.mxu0 0.0
    %1263 = vmatprep.mubr.f32.mxu0 0.0
    %1264 = vmatmul.mubr.f32.gmra.mrb[0].mxu0 %v1197
    %v1265 = vpop.f32.mrb[0].mxu0
    %v1266 = vadd.f32 %v581, %v1265
    %v1267 = vpop.f32.mrb[0].mxu0
    %1268 = vdwg.mxu0
    %v1269 = vsel %vm658, %v1266, -inf
    %1270 = vmax.xlane.f32.xlu0 %v1269
    %v1271 = vpop.xlane.xlu0 %1270
    %v1272 = vsub.f32 %v1266, %v1271
    %v1273 = vmul.f32 %v1272, 1.442695
    %v1274 = vpow.pop %v1273
    %v1275 = vsel %vm658, %v1274, 0.0
    %1276 = vadd.xlane.f32.xlu0 %v1275
    %v1277 = vpop.xlane.xlu0 %1276
    %v1278 = vlog2.pop %v1277
    %v1279 = vmul.f32 %v1278, 0.6931472
    %v1280 = vadd.f32 %v1271, %v1279
    %v1281 = vsub.f32 %v1266, %v1280
    %v1282 = vmul.f32 %v1281, 1.442695
    %v1283 = vpow.pop %v1282
    %s1284 = scalar_lea.vmem [#allocation3], 2
    %1285 = vst [vmem:[%s1284] sm:$0x3] %v1283
    %v1286 = vsel %vm658, %v1281, -inf
    %1287 = vmax.xlane.f32.xlu0 %v1286
    %v1288 = vpop.xlane.xlu0 %1287
    %vm1289 = vcmp.eq.f32.partialorder %v1281, %v1288
    %v1290 = vsel %vm1289, %v93, 128.0
    %v1291 = vsel %vm658, %v1290, inf
    %1292 = vmin.xlane.f32.xlu0 %v1291
    %v1293 = vpop.xlane.xlu0 %1292
    %vm1294 = vcmp.eq.f32.partialorder %v93, %v1293
    %v1295 = vsel %vm1294, 1, 0
    %v1296 = vcvt.s32.f32 %v1295
    %1297 = vmatprep.subr.mxu0 0.0
    %1298 = vmatpush1.msra.mxu0 %v42
    %1299 = vmatprep.subr.mxu0 0.0
    %1300 = vmatpush1.msra.mxu0 %v43
    %1301 = vmatprep.subr.mxu0 0.0
    %1302 = vmatpush1.msra.mxu0 %v44
    %1303 = vmatprep.subr.mxu0 0.0
    %1304 = vmatpush1.msra.mxu0 %v45
    %1305 = vmatprep.subr.mxu0 0.0
    %1306 = vmatpush1.msra.mxu0 %v46
    %1307 = vmatprep.subr.mxu0 0.0
    %1308 = vmatpush1.msra.mxu0 %v47
    %1309 = vmatprep.subr.mxu0 0.0
    %1310 = vmatpush1.msra.mxu0 %v48
    %1311 = vmatprep.subr.mxu0 0.0
    %1312 = vmatpush1.msra.mxu0 %v49
    %1313 = vmatprep.subr.mxu0 0.0
    %1314 = vmatpush1.msra.mxu0 %v50
    %1315 = vmatprep.subr.mxu0 0.0
    %1316 = vmatpush1.msra.mxu0 %v51
    %1317 = vmatprep.subr.mxu0 0.0
    %1318 = vmatpush1.msra.mxu0 %v52
    %1319 = vmatprep.subr.mxu0 0.0
    %1320 = vmatpush1.msra.mxu0 %v53
    %1321 = vmatprep.subr.mxu0 0.0
    %1322 = vmatpush1.msra.mxu0 %v54
    %1323 = vmatprep.subr.mxu0 0.0
    %1324 = vmatpush1.msra.mxu0 %v55
    %1325 = vmatprep.subr.mxu0 0.0
    %1326 = vmatpush1.msra.mxu0 %v56
    %1327 = vmatprep.subr.mxu0 0.0
    %1328 = vmatpush1.msra.mxu0 %v57
    %1329 = vmatprep.subr.mxu0 0.0
    %1330 = vmatpush1.msra.mxu0 0.0
    %1331 = vmatprep.subr.mxu0 0.0
    %1332 = vmatpush1.msra.mxu0 0.0
    %1333 = vmatprep.subr.mxu0 0.0
    %1334 = vmatpush1.msra.mxu0 0.0
    %1335 = vmatprep.subr.mxu0 0.0
    %1336 = vmatpush1.msra.mxu0 0.0
    %1337 = vmatprep.subr.mxu0 0.0
    %1338 = vmatpush1.msra.mxu0 0.0
    %1339 = vmatprep.subr.mxu0 0.0
    %1340 = vmatpush1.msra.mxu0 0.0
    %1341 = vmatprep.subr.mxu0 0.0
    %1342 = vmatpush1.msra.mxu0 0.0
    %1343 = vmatprep.subr.mxu0 0.0
    %1344 = vmatpush1.msra.mxu0 0.0
    %1345 = vmatprep.subr.mxu0 0.0
    %1346 = vmatpush1.msra.mxu0 0.0
    %1347 = vmatprep.subr.mxu0 0.0
    %1348 = vmatpush1.msra.mxu0 0.0
    %1349 = vmatprep.subr.mxu0 0.0
    %1350 = vmatpush1.msra.mxu0 0.0
    %1351 = vmatprep.subr.mxu0 0.0
    %1352 = vmatpush1.msra.mxu0 0.0
    %1353 = vmatprep.subr.mxu0 0.0
    %1354 = vmatpush1.msra.mxu0 0.0
    %1355 = vmatprep.subr.mxu0 0.0
    %1356 = vmatpush1.msra.mxu0 0.0
    %1357 = vmatprep.subr.mxu0 0.0
    %1358 = vmatpush1.msra.mxu0 0.0
    %1359 = vmatprep.subr.mxu0 0.0
    %1360 = vmatpush1.msra.mxu0 0.0
    %1361 = vmatprep.mubr.f32.mxu0 0.0
    %1362 = vmatmul.mubr.f32.gmra.mrb[0].mxu0 %v1296
    %v1363 = vpop.f32.mrb[0].mxu0
    %v1364 = vadd.f32 0.0, %v1363
    %v1365 = vpop.f32.mrb[0].mxu0
    %1366 = vdwg.mxu0
    %v1368 = vunpack.c.l.s4 1966171168
    %v1369 = vunpack.c.0.s8 %v1368
    %v1370 = vlaneseq
    %v1371 = vshrl.u32 %v1370, 7
    %v1372 = vsub.s32 %v1369, %v1371
    %v1373 = vrot.slane %v1193, %v1372
    %v1374 = vcombine.high %v1373, %v1373
    %v1376 = vunpack.c.l.s4 1966171168
    %v1377 = vunpack.c.0.s8 %v1376
    %v1378 = vlaneseq
    %v1379 = vshrl.u32 %v1378, 7
    %v1380 = vsub.s32 %v1377, %v1379
    %v1381 = vrot.slane %v1373, %v1380
    %v1383 = vunpack.c.l.s4 1966171168
    %v1384 = vunpack.c.0.s8 %v1383
    %v1385 = vlaneseq
    %v1386 = vshrl.u32 %v1385, 7
    %v1387 = vsub.s32 %v1384, %v1386
    %v1388 = vrot.slane %v1374, %v1387
    %v1389 = vlaneseq
    %v1390 = vshrl.u32 %v1389, 7
    %v1391 = vsub.s32 0, %v1390
    %v1392 = vrot.slane %v1381, %v1391
    %v1393 = vlaneseq
    %v1394 = vshrl.u32 %v1393, 7
    %v1395 = vsub.s32 0, %v1394
    %v1396 = vrot.slane %v1388, %v1395
    %v1399 = vadd.f32 %v1392, %v793
    %v1400 = vadd.f32 %v1392, %v795
    %v1401 = vadd.f32 %v1396, %v797
    %v1402 = vadd.f32 %v1396, %v799
    %v1403 = vtanh.pop %v1399
    %v1404 = vtanh.pop %v1400
    %v1405 = vtanh.pop %v1401
    %v1406 = vtanh.pop %v1402
    %v1407 = vmul.f32 %v1403, %v813
    %v1408 = vmul.f32 %v1404, %v813
    %v1409 = vmul.f32 %v1405, %v813
    %v1410 = vmul.f32 %v1406, %v813
    %1415 = vrot.lane.b32.xlu0 %v1407, 96
    %v1416 = vpop.permute.xlu0 %1415
    %1417 = vrot.lane.b32.xlu0 %v1408, 96
    %v1418 = vpop.permute.xlu0 %1417
    %1419 = vrot.lane.b32.xlu0 %v1409, 96
    %v1420 = vpop.permute.xlu0 %1419
    %1421 = vrot.lane.b32.xlu0 %v1410, 96
    %v1422 = vpop.permute.xlu0 %1421
    %v1427 = vsel %vm185, %v1416, 0.0
    %1428 = vadd.xlane.f32.xlu0 %v1427
    %v1429 = vpop.xlane.xlu0 %1428
    %v1430 = vsel %vm189, %v1418, 0.0
    %1431 = vadd.xlane.f32.xlu0 %v1430
    %v1432 = vpop.xlane.xlu0 %1431
    %v1433 = vsel %vm185, %v1420, 0.0
    %1434 = vadd.xlane.f32.xlu0 %v1433
    %v1435 = vpop.xlane.xlu0 %1434
    %v1436 = vsel %vm189, %v1422, 0.0
    %1437 = vadd.xlane.f32.xlu0 %v1436
    %v1438 = vpop.xlane.xlu0 %1437
    %v1439 = vadd.f32 %v1429, %v206
    %v1440 = vadd.f32 %v1432, %v206
    %v1441 = vadd.f32 %v1435, %v206
    %v1442 = vadd.f32 %v1438, %v206
    %v1447 = vlaneseq
    %v1448 = vshrl.u32 %v1447, 7
    %v1449 = vsub.s32 %v92, %v1448
    %v1450 = vrot.slane %v1439, %v1449
    %v1451 = vlaneseq
    %v1452 = vshrl.u32 %v1451, 7
    %v1453 = vsub.s32 %v220, %v1452
    %v1454 = vrot.slane %v1440, %v1453
    %v1455 = vsel %vm225, %v1454, %v1450
    %v1456 = vlaneseq
    %v1457 = vshrl.u32 %v1456, 7
    %v1458 = vsub.s32 %v92, %v1457
    %v1459 = vrot.slane %v1441, %v1458
    %v1460 = vlaneseq
    %v1461 = vshrl.u32 %v1460, 7
    %v1462 = vsub.s32 %v220, %v1461
    %v1463 = vrot.slane %v1442, %v1462
    %v1464 = vsel %vm225, %v1463, %v1459
    %v1465 = vsel %vm236, %v1464, %v1455
    %v1467 = vsel %vm239, %v1465, -inf
    %1468 = vmax.xlane.f32.xlu0 %v1467
    %v1469 = vpop.xlane.xlu0 %1468
    %v1471 = vlaneseq
    %v1472 = vshrl.u32 %v1471, 7
    %v1473 = vsub.s32 0, %v1472
    %v1474 = vrot.slane %v1469, %v1473
    %v1475 = vlaneseq
    %v1476 = vshrl.u32 %v1475, 7
    %v1477 = vsub.s32 1, %v1476
    %v1478 = vrot.slane %v1469, %v1477
    %v1481 = vsub.f32 %v1439, %v1474
    %v1482 = vsub.f32 %v1440, %v1474
    %v1483 = vsub.f32 %v1441, %v1478
    %v1484 = vsub.f32 %v1442, %v1478
    %v1485 = vmul.f32 %v1481, 1.442695
    %v1486 = vpow.pop %v1485
    %v1487 = vmul.f32 %v1482, 1.442695
    %v1488 = vpow.pop %v1487
    %v1489 = vmul.f32 %v1483, 1.442695
    %v1490 = vpow.pop %v1489
    %v1491 = vmul.f32 %v1484, 1.442695
    %v1492 = vpow.pop %v1491
    %1497 = vset.pattern.permute.xlu0 0
    %1498 = vperm.xlu0 %1497, %v1486
    %v1499 = vpop.permute.xlu0 %1498
    %1500 = vset.pattern.permute.xlu0 0
    %1501 = vperm.xlu0 %1500, %v1488
    %v1502 = vpop.permute.xlu0 %1501
    %1503 = vset.pattern.permute.xlu0 0
    %1504 = vperm.xlu0 %1503, %v1490
    %v1505 = vpop.permute.xlu0 %1504
    %1506 = vset.pattern.permute.xlu0 0
    %1507 = vperm.xlu0 %1506, %v1492
    %v1508 = vpop.permute.xlu0 %1507
    %v1509 = vlaneseq
    %v1510 = vshrl.u32 %v1509, 7
    %v1511 = vsub.s32 %v92, %v1510
    %v1512 = vrot.slane %v1499, %v1511
    %v1513 = vlaneseq
    %v1514 = vshrl.u32 %v1513, 7
    %v1515 = vsub.s32 %v220, %v1514
    %v1516 = vrot.slane %v1502, %v1515
    %v1517 = vsel %vm225, %v1516, %v1512
    %v1518 = vlaneseq
    %v1519 = vshrl.u32 %v1518, 7
    %v1520 = vsub.s32 %v92, %v1519
    %v1521 = vrot.slane %v1505, %v1520
    %v1522 = vlaneseq
    %v1523 = vshrl.u32 %v1522, 7
    %v1524 = vsub.s32 %v220, %v1523
    %v1525 = vrot.slane %v1508, %v1524
    %v1526 = vsel %vm225, %v1525, %v1521
    %v1527 = vsel %vm236, %v1526, %v1517
    %v1529 = vsel %vm239, %v1527, 0.0
    %1530 = vadd.xlane.f32.xlu0 %v1529
    %v1531 = vpop.xlane.xlu0 %1530
    %v1532 = vrcp.pop %v1531
    %v1534 = vlaneseq
    %v1535 = vshrl.u32 %v1534, 7
    %v1536 = vsub.s32 0, %v1535
    %v1537 = vrot.slane %v1532, %v1536
    %v1538 = vlaneseq
    %v1539 = vshrl.u32 %v1538, 7
    %v1540 = vsub.s32 1, %v1539
    %v1541 = vrot.slane %v1532, %v1540
    %v1544 = vmul.f32 %v1486, %v1537
    %v1545 = vmul.f32 %v1488, %v1537
    %v1546 = vmul.f32 %v1490, %v1541
    %v1547 = vmul.f32 %v1492, %v1541
    %1549 = vset.pattern.permute.xlu0 0
    %1550 = vperm.xlu0 %1549, %v1544
    %v1551 = vpop.permute.xlu0 %1550
    %1554 = vset.pattern.permute.xlu0 0
    %1555 = vperm.xlu0 %1554, %v1545
    %v1556 = vpop.permute.xlu0 %1555
    %1559 = vset.pattern.permute.xlu0 0
    %1560 = vperm.xlu0 %1559, %v1546
    %v1561 = vpop.permute.xlu0 %1560
    %1564 = vset.pattern.permute.xlu0 0
    %1565 = vperm.xlu0 %1564, %v1547
    %v1566 = vpop.permute.xlu0 %1565
    %v1568 = vmul.f32 %v1551, %v38
    %v1569 = vmul.f32 %v1556, %v39
    %v1570 = vmul.f32 %v1561, %v40
    %v1571 = vmul.f32 %v1566, %v41
    %v1572 = vsel %vm185, %v1568, 0.0
    %v1573 = vsel %vm189, %v1569, 0.0
    %v1574 = vadd.f32 %v1572, %v1573
    %v1575 = vrot.slane %v1574, 4
    %v1576 = vadd.f32 %v1574, %v1575
    %v1577 = vrot.slane %v1576, 2
    %v1578 = vadd.f32 %v1576, %v1577
    %v1579 = vrot.slane %v1578, 1
    %v1580 = vadd.f32 %v1578, %v1579
    %v1581 = vsel %vm185, %v1570, 0.0
    %v1582 = vsel %vm189, %v1571, 0.0
    %v1583 = vadd.f32 %v1581, %v1582
    %v1584 = vrot.slane %v1583, 4
    %v1585 = vadd.f32 %v1583, %v1584
    %v1586 = vrot.slane %v1585, 2
    %v1587 = vadd.f32 %v1585, %v1586
    %v1588 = vrot.slane %v1587, 1
    %v1589 = vadd.f32 %v1587, %v1588
    %v1592 = vsel %vm236, %v1589, %v1580
    %1593 = vrot.lane.b32.xlu0 %v1592, 32
    %v1594 = vpop.permute.xlu0 %1593
    %v1596 = vsel %vm185, %v1364, %v1594
    %v1598 = vsel %vm376, %v1596, 0
    %1600 = vmatprep.subr.mxu0 0.0
    %1601 = vmatpush1.msra.mxu0 %v60
    %1602 = vmatprep.subr.mxu0 0.0
    %1603 = vmatpush1.msra.mxu0 %v61
    %1604 = vmatprep.subr.mxu0 0.0
    %1605 = vmatpush1.msra.mxu0 %v62
    %1606 = vmatprep.subr.mxu0 0.0
    %1607 = vmatpush1.msra.mxu0 %v63
    %1608 = vmatprep.subr.mxu0 0.0
    %1609 = vmatpush1.msra.mxu0 %v64
    %1610 = vmatprep.subr.mxu0 0.0
    %1611 = vmatpush1.msra.mxu0 %v65
    %1612 = vmatprep.subr.mxu0 0.0
    %1613 = vmatpush1.msra.mxu0 %v66
    %1614 = vmatprep.subr.mxu0 0.0
    %1615 = vmatpush1.msra.mxu0 %v67
    %1616 = vmatprep.subr.mxu0 0.0
    %1617 = vmatpush1.msra.mxu0 0.0
    %1618 = vmatprep.subr.mxu0 0.0
    %1619 = vmatpush1.msra.mxu0 0.0
    %1620 = vmatprep.subr.mxu0 0.0
    %1621 = vmatpush1.msra.mxu0 0.0
    %1622 = vmatprep.subr.mxu0 0.0
    %1623 = vmatpush1.msra.mxu0 0.0
    %1624 = vmatprep.subr.mxu0 0.0
    %1625 = vmatpush1.msra.mxu0 0.0
    %1626 = vmatprep.subr.mxu0 0.0
    %1627 = vmatpush1.msra.mxu0 0.0
    %1628 = vmatprep.subr.mxu0 0.0
    %1629 = vmatpush1.msra.mxu0 0.0
    %1630 = vmatprep.subr.mxu0 0.0
    %1631 = vmatpush1.msra.mxu0 0.0
    %1632 = vmatprep.subr.mxu0 0.0
    %1633 = vmatpush1.msra.mxu0 0.0
    %1634 = vmatprep.subr.mxu0 0.0
    %1635 = vmatpush1.msra.mxu0 0.0
    %1636 = vmatprep.subr.mxu0 0.0
    %1637 = vmatpush1.msra.mxu0 0.0
    %1638 = vmatprep.subr.mxu0 0.0
    %1639 = vmatpush1.msra.mxu0 0.0
    %1640 = vmatprep.subr.mxu0 0.0
    %1641 = vmatpush1.msra.mxu0 0.0
    %1642 = vmatprep.subr.mxu0 0.0
    %1643 = vmatpush1.msra.mxu0 0.0
    %1644 = vmatprep.subr.mxu0 0.0
    %1645 = vmatpush1.msra.mxu0 0.0
    %1646 = vmatprep.subr.mxu0 0.0
    %1647 = vmatpush1.msra.mxu0 0.0
    %1648 = vmatprep.subr.mxu0 0.0
    %1649 = vmatpush1.msra.mxu0 0.0
    %1650 = vmatprep.subr.mxu0 0.0
    %1651 = vmatpush1.msra.mxu0 0.0
    %1652 = vmatprep.subr.mxu0 0.0
    %1653 = vmatpush1.msra.mxu0 0.0
    %1654 = vmatprep.subr.mxu0 0.0
    %1655 = vmatpush1.msra.mxu0 0.0
    %1656 = vmatprep.subr.mxu0 0.0
    %1657 = vmatpush1.msra.mxu0 0.0
    %1658 = vmatprep.subr.mxu0 0.0
    %1659 = vmatpush1.msra.mxu0 0.0
    %1660 = vmatprep.subr.mxu0 0.0
    %1661 = vmatpush1.msra.mxu0 0.0
    %1662 = vmatprep.subr.mxu0 0.0
    %1663 = vmatpush1.msra.mxu0 0.0
    %1664 = vmatprep.mubr.f32.mxu0 0.0
    %1665 = vmatmul.mubr.f32.gmra.mrb[0].mxu0 %v1598
    %v1666 = vpop.f32.mrb[0].mxu0
    %v1667 = vadd.f32 %v374, %v1666
    %v1668 = vpop.f32.mrb[0].mxu0
    %1669 = vdwg.mxu0
    %v1670 = vmax.f32 %v1667, 0.0
    %v1671 = vsel %vm185, %v1670, %v1193
    %v1673 = vsel %vm376, %v1671, 0
    %1675 = vmatprep.subr.mxu0 %v70
    %1676 = vmatpush1.msra.mxu0 %v69
    %1677 = vmatprep.subr.mxu0 %v72
    %1678 = vmatpush1.msra.mxu0 %v71
    %1679 = vmatprep.subr.mxu0 %v74
    %1680 = vmatpush1.msra.mxu0 %v73
    %1681 = vmatprep.subr.mxu0 %v76
    %1682 = vmatpush1.msra.mxu0 %v75
    %1683 = vmatprep.subr.mxu0 %v78
    %1684 = vmatpush1.msra.mxu0 %v77
    %1685 = vmatprep.subr.mxu0 %v80
    %1686 = vmatpush1.msra.mxu0 %v79
    %1687 = vmatprep.subr.mxu0 %v82
    %1688 = vmatpush1.msra.mxu0 %v81
    %1689 = vmatprep.subr.mxu0 %v84
    %1690 = vmatpush1.msra.mxu0 %v83
    %1691 = vmatprep.subr.mxu0 0.0
    %1692 = vmatpush1.msra.mxu0 0.0
    %1693 = vmatprep.subr.mxu0 0.0
    %1694 = vmatpush1.msra.mxu0 0.0
    %1695 = vmatprep.subr.mxu0 0.0
    %1696 = vmatpush1.msra.mxu0 0.0
    %1697 = vmatprep.subr.mxu0 0.0
    %1698 = vmatpush1.msra.mxu0 0.0
    %1699 = vmatprep.subr.mxu0 0.0
    %1700 = vmatpush1.msra.mxu0 0.0
    %1701 = vmatprep.subr.mxu0 0.0
    %1702 = vmatpush1.msra.mxu0 0.0
    %1703 = vmatprep.subr.mxu0 0.0
    %1704 = vmatpush1.msra.mxu0 0.0
    %1705 = vmatprep.subr.mxu0 0.0
    %1706 = vmatpush1.msra.mxu0 0.0
    %1707 = vmatprep.subr.mxu0 0.0
    %1708 = vmatpush1.msra.mxu0 0.0
    %1709 = vmatprep.subr.mxu0 0.0
    %1710 = vmatpush1.msra.mxu0 0.0
    %1711 = vmatprep.subr.mxu0 0.0
    %1712 = vmatpush1.msra.mxu0 0.0
    %1713 = vmatprep.subr.mxu0 0.0
    %1714 = vmatpush1.msra.mxu0 0.0
    %1715 = vmatprep.subr.mxu0 0.0
    %1716 = vmatpush1.msra.mxu0 0.0
    %1717 = vmatprep.subr.mxu0 0.0
    %1718 = vmatpush1.msra.mxu0 0.0
    %1719 = vmatprep.subr.mxu0 0.0
    %1720 = vmatpush1.msra.mxu0 0.0
    %1721 = vmatprep.subr.mxu0 0.0
    %1722 = vmatpush1.msra.mxu0 0.0
    %1723 = vmatprep.subr.mxu0 0.0
    %1724 = vmatpush1.msra.mxu0 0.0
    %1725 = vmatprep.subr.mxu0 0.0
    %1726 = vmatpush1.msra.mxu0 0.0
    %1727 = vmatprep.subr.mxu0 0.0
    %1728 = vmatpush1.msra.mxu0 0.0
    %1729 = vmatprep.subr.mxu0 0.0
    %1730 = vmatpush1.msra.mxu0 0.0
    %1731 = vmatprep.subr.mxu0 0.0
    %1732 = vmatpush1.msra.mxu0 0.0
    %1733 = vmatprep.subr.mxu0 0.0
    %1734 = vmatpush1.msra.mxu0 0.0
    %1735 = vmatprep.subr.mxu0 0.0
    %1736 = vmatpush1.msra.mxu0 0.0
    %1737 = vmatprep.subr.mxu0 0.0
    %1738 = vmatpush1.msra.mxu0 0.0
    %1739 = vmatprep.mubr.f32.mxu0 0.0
    %1740 = vmatmul.mubr.f32.gmra.mrb[0].mxu0 %v1673
    %v1741 = vpop.f32.mrb[0].mxu0
    %v1742 = vadd.f32 %v456, %v1741
    %v1743 = vpop.f32.mrb[0].mxu0
    %v1744 = vadd.f32 %v460, %v1743
    %1745 = vdwg.mxu0
    %1747 = vrot.lane.b32.xlu0 %v1742, 32
    %v1748 = vpop.permute.xlu0 %1747
    %v1750 = vadd.f32 %v1742, %v1748
    %v1751 = vxor.u32 %v1750, 2147483648
    %v1752 = vmul.f32 %v1751, 1.442695
    %v1753 = vpow.pop %v1752
    %v1754 = vadd.f32 %v1753, 1.0
    %v1755 = vrcp.pop %v1754
    %v1756 = vmul.f32 1.0, %v1755
    %1758 = vrot.lane.b32.xlu0 %v1744, 32
    %v1759 = vpop.permute.xlu0 %1758
    %v1761 = vadd.f32 %v1742, %v1759
    %v1762 = vxor.u32 %v1761, 2147483648
    %v1763 = vmul.f32 %v1762, 1.442695
    %v1764 = vpow.pop %v1763
    %v1765 = vadd.f32 %v1764, 1.0
    %v1766 = vrcp.pop %v1765
    %v1767 = vmul.f32 1.0, %v1766
    %1768 = vrot.lane.b32.xlu0 %v1744, 96
    %v1769 = vpop.permute.xlu0 %1768
    %v1771 = vmul.f32 %v1756, %v1769
    %1773 = vrot.lane.b32.xlu0 %v1771, 64
    %v1774 = vpop.permute.xlu0 %1773
    %v1776 = vadd.f32 %v1742, %v1774
    %v1777 = vtanh.pop %v1776
    %v1778 = vsub.f32 1.0, %v1767
    %1780 = vrot.lane.b32.xlu0 %v1777, 96
    %v1781 = vpop.permute.xlu0 %1780
    %v1783 = vmul.f32 %v1778, %v1781
    %v1784 = vmul.f32 %v1767, %v1193
    %v1785 = vadd.f32 %v1783, %v1784
    %1787 = vrot.lane.b32.xlu0 %v1785, 96
    %v1788 = vpop.permute.xlu0 %1787
    %v1789 = vsel %vm185, %v1788, 0
    %1791 = vmatprep.subr.mxu0 0.0
    %1792 = vmatpush1.msra.mxu0 %v86
    %1793 = vmatprep.subr.mxu0 0.0
    %1794 = vmatpush1.msra.mxu0 %v87
    %1795 = vmatprep.subr.mxu0 0.0
    %1796 = vmatpush1.msra.mxu0 %v88
    %1797 = vmatprep.subr.mxu0 0.0
    %1798 = vmatpush1.msra.mxu0 %v89
    %1799 = vmatprep.subr.mxu0 0.0
    %1800 = vmatpush1.msra.mxu0 0.0
    %1801 = vmatprep.subr.mxu0 0.0
    %1802 = vmatpush1.msra.mxu0 0.0
    %1803 = vmatprep.subr.mxu0 0.0
    %1804 = vmatpush1.msra.mxu0 0.0
    %1805 = vmatprep.subr.mxu0 0.0
    %1806 = vmatpush1.msra.mxu0 0.0
    %1807 = vmatprep.subr.mxu0 0.0
    %1808 = vmatpush1.msra.mxu0 0.0
    %1809 = vmatprep.subr.mxu0 0.0
    %1810 = vmatpush1.msra.mxu0 0.0
    %1811 = vmatprep.subr.mxu0 0.0
    %1812 = vmatpush1.msra.mxu0 0.0
    %1813 = vmatprep.subr.mxu0 0.0
    %1814 = vmatpush1.msra.mxu0 0.0
    %1815 = vmatprep.subr.mxu0 0.0
    %1816 = vmatpush1.msra.mxu0 0.0
    %1817 = vmatprep.subr.mxu0 0.0
    %1818 = vmatpush1.msra.mxu0 0.0
    %1819 = vmatprep.subr.mxu0 0.0
    %1820 = vmatpush1.msra.mxu0 0.0
    %1821 = vmatprep.subr.mxu0 0.0
    %1822 = vmatpush1.msra.mxu0 0.0
    %1823 = vmatprep.subr.mxu0 0.0
    %1824 = vmatpush1.msra.mxu0 0.0
    %1825 = vmatprep.subr.mxu0 0.0
    %1826 = vmatpush1.msra.mxu0 0.0
    %1827 = vmatprep.subr.mxu0 0.0
    %1828 = vmatpush1.msra.mxu0 0.0
    %1829 = vmatprep.subr.mxu0 0.0
    %1830 = vmatpush1.msra.mxu0 0.0
    %1831 = vmatprep.subr.mxu0 0.0
    %1832 = vmatpush1.msra.mxu0 0.0
    %1833 = vmatprep.subr.mxu0 0.0
    %1834 = vmatpush1.msra.mxu0 0.0
    %1835 = vmatprep.subr.mxu0 0.0
    %1836 = vmatpush1.msra.mxu0 0.0
    %1837 = vmatprep.subr.mxu0 0.0
    %1838 = vmatpush1.msra.mxu0 0.0
    %1839 = vmatprep.subr.mxu0 0.0
    %1840 = vmatpush1.msra.mxu0 0.0
    %1841 = vmatprep.subr.mxu0 0.0
    %1842 = vmatpush1.msra.mxu0 0.0
    %1843 = vmatprep.subr.mxu0 0.0
    %1844 = vmatpush1.msra.mxu0 0.0
    %1845 = vmatprep.subr.mxu0 0.0
    %1846 = vmatpush1.msra.mxu0 0.0
    %1847 = vmatprep.subr.mxu0 0.0
    %1848 = vmatpush1.msra.mxu0 0.0
    %1849 = vmatprep.subr.mxu0 0.0
    %1850 = vmatpush1.msra.mxu0 0.0
    %1851 = vmatprep.subr.mxu0 0.0
    %1852 = vmatpush1.msra.mxu0 0.0
    %1853 = vmatprep.subr.mxu0 0.0
    %1854 = vmatpush1.msra.mxu0 0.0
    %1855 = vmatprep.mubr.f32.mxu0 0.0
    %1856 = vmatmul.mubr.f32.gmra.mrb[0].mxu0 %v1789
    %v1857 = vpop.f32.mrb[0].mxu0
    %v1858 = vadd.f32 %v581, %v1857
    %v1859 = vpop.f32.mrb[0].mxu0
    %1860 = vdwg.mxu0
    %v1861 = vsel %vm658, %v1858, -inf
    %1862 = vmax.xlane.f32.xlu0 %v1861
    %v1863 = vpop.xlane.xlu0 %1862
    %v1864 = vsub.f32 %v1858, %v1863
    %v1865 = vmul.f32 %v1864, 1.442695
    %v1866 = vpow.pop %v1865
    %v1867 = vsel %vm658, %v1866, 0.0
    %1868 = vadd.xlane.f32.xlu0 %v1867
    %v1869 = vpop.xlane.xlu0 %1868
    %v1870 = vlog2.pop %v1869
    %v1871 = vmul.f32 %v1870, 0.6931472
    %v1872 = vadd.f32 %v1863, %v1871
    %v1873 = vsub.f32 %v1858, %v1872
    %v1874 = vmul.f32 %v1873, 1.442695
    %v1875 = vpow.pop %v1874
    %s1876 = scalar_lea.vmem [#allocation3], 4
    %1877 = vst [vmem:[%s1876] sm:$0x3] %v1875
    %v1878 = vsel %vm658, %v1873, -inf
    %1879 = vmax.xlane.f32.xlu0 %v1878
    %v1880 = vpop.xlane.xlu0 %1879
    %vm1881 = vcmp.eq.f32.partialorder %v1873, %v1880
    %v1882 = vsel %vm1881, %v93, 128.0
    %v1883 = vsel %vm658, %v1882, inf
    %1884 = vmin.xlane.f32.xlu0 %v1883
    %v1885 = vpop.xlane.xlu0 %1884
    %vm1886 = vcmp.eq.f32.partialorder %v93, %v1885
    %v1887 = vsel %vm1886, 1, 0
    %v1888 = vcvt.s32.f32 %v1887
    %1889 = vmatprep.subr.mxu0 0.0
    %1890 = vmatpush1.msra.mxu0 %v42
    %1891 = vmatprep.subr.mxu0 0.0
    %1892 = vmatpush1.msra.mxu0 %v43
    %1893 = vmatprep.subr.mxu0 0.0
    %1894 = vmatpush1.msra.mxu0 %v44
    %1895 = vmatprep.subr.mxu0 0.0
    %1896 = vmatpush1.msra.mxu0 %v45
    %1897 = vmatprep.subr.mxu0 0.0
    %1898 = vmatpush1.msra.mxu0 %v46
    %1899 = vmatprep.subr.mxu0 0.0
    %1900 = vmatpush1.msra.mxu0 %v47
    %1901 = vmatprep.subr.mxu0 0.0
    %1902 = vmatpush1.msra.mxu0 %v48
    %1903 = vmatprep.subr.mxu0 0.0
    %1904 = vmatpush1.msra.mxu0 %v49
    %1905 = vmatprep.subr.mxu0 0.0
    %1906 = vmatpush1.msra.mxu0 %v50
    %1907 = vmatprep.subr.mxu0 0.0
    %1908 = vmatpush1.msra.mxu0 %v51
    %1909 = vmatprep.subr.mxu0 0.0
    %1910 = vmatpush1.msra.mxu0 %v52
    %1911 = vmatprep.subr.mxu0 0.0
    %1912 = vmatpush1.msra.mxu0 %v53
    %1913 = vmatprep.subr.mxu0 0.0
    %1914 = vmatpush1.msra.mxu0 %v54
    %1915 = vmatprep.subr.mxu0 0.0
    %1916 = vmatpush1.msra.mxu0 %v55
    %1917 = vmatprep.subr.mxu0 0.0
    %1918 = vmatpush1.msra.mxu0 %v56
    %1919 = vmatprep.subr.mxu0 0.0
    %1920 = vmatpush1.msra.mxu0 %v57
    %1921 = vmatprep.subr.mxu0 0.0
    %1922 = vmatpush1.msra.mxu0 0.0
    %1923 = vmatprep.subr.mxu0 0.0
    %1924 = vmatpush1.msra.mxu0 0.0
    %1925 = vmatprep.subr.mxu0 0.0
    %1926 = vmatpush1.msra.mxu0 0.0
    %1927 = vmatprep.subr.mxu0 0.0
    %1928 = vmatpush1.msra.mxu0 0.0
    %1929 = vmatprep.subr.mxu0 0.0
    %1930 = vmatpush1.msra.mxu0 0.0
    %1931 = vmatprep.subr.mxu0 0.0
    %1932 = vmatpush1.msra.mxu0 0.0
    %1933 = vmatprep.subr.mxu0 0.0
    %1934 = vmatpush1.msra.mxu0 0.0
    %1935 = vmatprep.subr.mxu0 0.0
    %1936 = vmatpush1.msra.mxu0 0.0
    %1937 = vmatprep.subr.mxu0 0.0
    %1938 = vmatpush1.msra.mxu0 0.0
    %1939 = vmatprep.subr.mxu0 0.0
    %1940 = vmatpush1.msra.mxu0 0.0
    %1941 = vmatprep.subr.mxu0 0.0
    %1942 = vmatpush1.msra.mxu0 0.0
    %1943 = vmatprep.subr.mxu0 0.0
    %1944 = vmatpush1.msra.mxu0 0.0
    %1945 = vmatprep.subr.mxu0 0.0
    %1946 = vmatpush1.msra.mxu0 0.0
    %1947 = vmatprep.subr.mxu0 0.0
    %1948 = vmatpush1.msra.mxu0 0.0
    %1949 = vmatprep.subr.mxu0 0.0
    %1950 = vmatpush1.msra.mxu0 0.0
    %1951 = vmatprep.subr.mxu0 0.0
    %1952 = vmatpush1.msra.mxu0 0.0
    %1953 = vmatprep.mubr.f32.mxu0 0.0
    %1954 = vmatmul.mubr.f32.gmra.mrb[0].mxu0 %v1888
    %v1955 = vpop.f32.mrb[0].mxu0
    %v1956 = vadd.f32 0.0, %v1955
    %v1957 = vpop.f32.mrb[0].mxu0
    %1958 = vdwg.mxu0
    %v1960 = vunpack.c.l.s4 1966171168
    %v1961 = vunpack.c.0.s8 %v1960
    %v1962 = vlaneseq
    %v1963 = vshrl.u32 %v1962, 7
    %v1964 = vsub.s32 %v1961, %v1963
    %v1965 = vrot.slane %v1785, %v1964
    %v1966 = vcombine.high %v1965, %v1965
    %v1968 = vunpack.c.l.s4 1966171168
    %v1969 = vunpack.c.0.s8 %v1968
    %v1970 = vlaneseq
    %v1971 = vshrl.u32 %v1970, 7
    %v1972 = vsub.s32 %v1969, %v1971
    %v1973 = vrot.slane %v1965, %v1972
    %v1975 = vunpack.c.l.s4 1966171168
    %v1976 = vunpack.c.0.s8 %v1975
    %v1977 = vlaneseq
    %v1978 = vshrl.u32 %v1977, 7
    %v1979 = vsub.s32 %v1976, %v1978
    %v1980 = vrot.slane %v1966, %v1979
    %v1981 = vlaneseq
    %v1982 = vshrl.u32 %v1981, 7
    %v1983 = vsub.s32 0, %v1982
    %v1984 = vrot.slane %v1973, %v1983
    %v1985 = vlaneseq
    %v1986 = vshrl.u32 %v1985, 7
    %v1987 = vsub.s32 0, %v1986
    %v1988 = vrot.slane %v1980, %v1987
    %v1991 = vadd.f32 %v1984, %v793
    %v1992 = vadd.f32 %v1984, %v795
    %v1993 = vadd.f32 %v1988, %v797
    %v1994 = vadd.f32 %v1988, %v799
    %v1995 = vtanh.pop %v1991
    %v1996 = vtanh.pop %v1992
    %v1997 = vtanh.pop %v1993
    %v1998 = vtanh.pop %v1994
    %v1999 = vmul.f32 %v1995, %v813
    %v2000 = vmul.f32 %v1996, %v813
    %v2001 = vmul.f32 %v1997, %v813
    %v2002 = vmul.f32 %v1998, %v813
    %2007 = vrot.lane.b32.xlu0 %v1999, 96
    %v2008 = vpop.permute.xlu0 %2007
    %2009 = vrot.lane.b32.xlu0 %v2000, 96
    %v2010 = vpop.permute.xlu0 %2009
    %2011 = vrot.lane.b32.xlu0 %v2001, 96
    %v2012 = vpop.permute.xlu0 %2011
    %2013 = vrot.lane.b32.xlu0 %v2002, 96
    %v2014 = vpop.permute.xlu0 %2013
    %v2019 = vsel %vm185, %v2008, 0.0
    %2020 = vadd.xlane.f32.xlu0 %v2019
    %v2021 = vpop.xlane.xlu0 %2020
    %v2022 = vsel %vm189, %v2010, 0.0
    %2023 = vadd.xlane.f32.xlu0 %v2022
    %v2024 = vpop.xlane.xlu0 %2023
    %v2025 = vsel %vm185, %v2012, 0.0
    %2026 = vadd.xlane.f32.xlu0 %v2025
    %v2027 = vpop.xlane.xlu0 %2026
    %v2028 = vsel %vm189, %v2014, 0.0
    %2029 = vadd.xlane.f32.xlu0 %v2028
    %v2030 = vpop.xlane.xlu0 %2029
    %v2031 = vadd.f32 %v2021, %v206
    %v2032 = vadd.f32 %v2024, %v206
    %v2033 = vadd.f32 %v2027, %v206
    %v2034 = vadd.f32 %v2030, %v206
    %v2039 = vlaneseq
    %v2040 = vshrl.u32 %v2039, 7
    %v2041 = vsub.s32 %v92, %v2040
    %v2042 = vrot.slane %v2031, %v2041
    %v2043 = vlaneseq
    %v2044 = vshrl.u32 %v2043, 7
    %v2045 = vsub.s32 %v220, %v2044
    %v2046 = vrot.slane %v2032, %v2045
    %v2047 = vsel %vm225, %v2046, %v2042
    %v2048 = vlaneseq
    %v2049 = vshrl.u32 %v2048, 7
    %v2050 = vsub.s32 %v92, %v2049
    %v2051 = vrot.slane %v2033, %v2050
    %v2052 = vlaneseq
    %v2053 = vshrl.u32 %v2052, 7
    %v2054 = vsub.s32 %v220, %v2053
    %v2055 = vrot.slane %v2034, %v2054
    %v2056 = vsel %vm225, %v2055, %v2051
    %v2057 = vsel %vm236, %v2056, %v2047
    %v2059 = vsel %vm239, %v2057, -inf
    %2060 = vmax.xlane.f32.xlu0 %v2059
    %v2061 = vpop.xlane.xlu0 %2060
    %v2063 = vlaneseq
    %v2064 = vshrl.u32 %v2063, 7
    %v2065 = vsub.s32 0, %v2064
    %v2066 = vrot.slane %v2061, %v2065
    %v2067 = vlaneseq
    %v2068 = vshrl.u32 %v2067, 7
    %v2069 = vsub.s32 1, %v2068
    %v2070 = vrot.slane %v2061, %v2069
    %v2073 = vsub.f32 %v2031, %v2066
    %v2074 = vsub.f32 %v2032, %v2066
    %v2075 = vsub.f32 %v2033, %v2070
    %v2076 = vsub.f32 %v2034, %v2070
    %v2077 = vmul.f32 %v2073, 1.442695
    %v2078 = vpow.pop %v2077
    %v2079 = vmul.f32 %v2074, 1.442695
    %v2080 = vpow.pop %v2079
    %v2081 = vmul.f32 %v2075, 1.442695
    %v2082 = vpow.pop %v2081
    %v2083 = vmul.f32 %v2076, 1.442695
    %v2084 = vpow.pop %v2083
    %2089 = vset.pattern.permute.xlu0 0
    %2090 = vperm.xlu0 %2089, %v2078
    %v2091 = vpop.permute.xlu0 %2090
    %2092 = vset.pattern.permute.xlu0 0
    %2093 = vperm.xlu0 %2092, %v2080
    %v2094 = vpop.permute.xlu0 %2093
    %2095 = vset.pattern.permute.xlu0 0
    %2096 = vperm.xlu0 %2095, %v2082
    %v2097 = vpop.permute.xlu0 %2096
    %2098 = vset.pattern.permute.xlu0 0
    %2099 = vperm.xlu0 %2098, %v2084
    %v2100 = vpop.permute.xlu0 %2099
    %v2101 = vlaneseq
    %v2102 = vshrl.u32 %v2101, 7
    %v2103 = vsub.s32 %v92, %v2102
    %v2104 = vrot.slane %v2091, %v2103
    %v2105 = vlaneseq
    %v2106 = vshrl.u32 %v2105, 7
    %v2107 = vsub.s32 %v220, %v2106
    %v2108 = vrot.slane %v2094, %v2107
    %v2109 = vsel %vm225, %v2108, %v2104
    %v2110 = vlaneseq
    %v2111 = vshrl.u32 %v2110, 7
    %v2112 = vsub.s32 %v92, %v2111
    %v2113 = vrot.slane %v2097, %v2112
    %v2114 = vlaneseq
    %v2115 = vshrl.u32 %v2114, 7
    %v2116 = vsub.s32 %v220, %v2115
    %v2117 = vrot.slane %v2100, %v2116
    %v2118 = vsel %vm225, %v2117, %v2113
    %v2119 = vsel %vm236, %v2118, %v2109
    %v2121 = vsel %vm239, %v2119, 0.0
    %2122 = vadd.xlane.f32.xlu0 %v2121
    %v2123 = vpop.xlane.xlu0 %2122
    %v2124 = vrcp.pop %v2123
    %v2126 = vlaneseq
    %v2127 = vshrl.u32 %v2126, 7
    %v2128 = vsub.s32 0, %v2127
    %v2129 = vrot.slane %v2124, %v2128
    %v2130 = vlaneseq
    %v2131 = vshrl.u32 %v2130, 7
    %v2132 = vsub.s32 1, %v2131
    %v2133 = vrot.slane %v2124, %v2132
    %v2136 = vmul.f32 %v2078, %v2129
    %v2137 = vmul.f32 %v2080, %v2129
    %v2138 = vmul.f32 %v2082, %v2133
    %v2139 = vmul.f32 %v2084, %v2133
    %2141 = vset.pattern.permute.xlu0 0
    %2142 = vperm.xlu0 %2141, %v2136
    %v2143 = vpop.permute.xlu0 %2142
    %2146 = vset.pattern.permute.xlu0 0
    %2147 = vperm.xlu0 %2146, %v2137
    %v2148 = vpop.permute.xlu0 %2147
    %2151 = vset.pattern.permute.xlu0 0
    %2152 = vperm.xlu0 %2151, %v2138
    %v2153 = vpop.permute.xlu0 %2152
    %2156 = vset.pattern.permute.xlu0 0
    %2157 = vperm.xlu0 %2156, %v2139
    %v2158 = vpop.permute.xlu0 %2157
    %v2160 = vmul.f32 %v2143, %v38
    %v2161 = vmul.f32 %v2148, %v39
    %v2162 = vmul.f32 %v2153, %v40
    %v2163 = vmul.f32 %v2158, %v41
    %v2164 = vsel %vm185, %v2160, 0.0
    %v2165 = vsel %vm189, %v2161, 0.0
    %v2166 = vadd.f32 %v2164, %v2165
    %v2167 = vrot.slane %v2166, 4
    %v2168 = vadd.f32 %v2166, %v2167
    %v2169 = vrot.slane %v2168, 2
    %v2170 = vadd.f32 %v2168, %v2169
    %v2171 = vrot.slane %v2170, 1
    %v2172 = vadd.f32 %v2170, %v2171
    %v2173 = vsel %vm185, %v2162, 0.0
    %v2174 = vsel %vm189, %v2163, 0.0
    %v2175 = vadd.f32 %v2173, %v2174
    %v2176 = vrot.slane %v2175, 4
    %v2177 = vadd.f32 %v2175, %v2176
    %v2178 = vrot.slane %v2177, 2
    %v2179 = vadd.f32 %v2177, %v2178
    %v2180 = vrot.slane %v2179, 1
    %v2181 = vadd.f32 %v2179, %v2180
    %v2184 = vsel %vm236, %v2181, %v2172
    %2185 = vrot.lane.b32.xlu0 %v2184, 32
    %v2186 = vpop.permute.xlu0 %2185
    %v2188 = vsel %vm185, %v1956, %v2186
    %v2190 = vsel %vm376, %v2188, 0
    %2192 = vmatprep.subr.mxu0 0.0
    %2193 = vmatpush1.msra.mxu0 %v60
    %2194 = vmatprep.subr.mxu0 0.0
    %2195 = vmatpush1.msra.mxu0 %v61
    %2196 = vmatprep.subr.mxu0 0.0
    %2197 = vmatpush1.msra.mxu0 %v62
    %2198 = vmatprep.subr.mxu0 0.0
    %2199 = vmatpush1.msra.mxu0 %v63
    %2200 = vmatprep.subr.mxu0 0.0
    %2201 = vmatpush1.msra.mxu0 %v64
    %2202 = vmatprep.subr.mxu0 0.0
    %2203 = vmatpush1.msra.mxu0 %v65
    %2204 = vmatprep.subr.mxu0 0.0
    %2205 = vmatpush1.msra.mxu0 %v66
    %2206 = vmatprep.subr.mxu0 0.0
    %2207 = vmatpush1.msra.mxu0 %v67
    %2208 = vmatprep.subr.mxu0 0.0
    %2209 = vmatpush1.msra.mxu0 0.0
    %2210 = vmatprep.subr.mxu0 0.0
    %2211 = vmatpush1.msra.mxu0 0.0
    %2212 = vmatprep.subr.mxu0 0.0
    %2213 = vmatpush1.msra.mxu0 0.0
    %2214 = vmatprep.subr.mxu0 0.0
    %2215 = vmatpush1.msra.mxu0 0.0
    %2216 = vmatprep.subr.mxu0 0.0
    %2217 = vmatpush1.msra.mxu0 0.0
    %2218 = vmatprep.subr.mxu0 0.0
    %2219 = vmatpush1.msra.mxu0 0.0
    %2220 = vmatprep.subr.mxu0 0.0
    %2221 = vmatpush1.msra.mxu0 0.0
    %2222 = vmatprep.subr.mxu0 0.0
    %2223 = vmatpush1.msra.mxu0 0.0
    %2224 = vmatprep.subr.mxu0 0.0
    %2225 = vmatpush1.msra.mxu0 0.0
    %2226 = vmatprep.subr.mxu0 0.0
    %2227 = vmatpush1.msra.mxu0 0.0
    %2228 = vmatprep.subr.mxu0 0.0
    %2229 = vmatpush1.msra.mxu0 0.0
    %2230 = vmatprep.subr.mxu0 0.0
    %2231 = vmatpush1.msra.mxu0 0.0
    %2232 = vmatprep.subr.mxu0 0.0
    %2233 = vmatpush1.msra.mxu0 0.0
    %2234 = vmatprep.subr.mxu0 0.0
    %2235 = vmatpush1.msra.mxu0 0.0
    %2236 = vmatprep.subr.mxu0 0.0
    %2237 = vmatpush1.msra.mxu0 0.0
    %2238 = vmatprep.subr.mxu0 0.0
    %2239 = vmatpush1.msra.mxu0 0.0
    %2240 = vmatprep.subr.mxu0 0.0
    %2241 = vmatpush1.msra.mxu0 0.0
    %2242 = vmatprep.subr.mxu0 0.0
    %2243 = vmatpush1.msra.mxu0 0.0
    %2244 = vmatprep.subr.mxu0 0.0
    %2245 = vmatpush1.msra.mxu0 0.0
    %2246 = vmatprep.subr.mxu0 0.0
    %2247 = vmatpush1.msra.mxu0 0.0
    %2248 = vmatprep.subr.mxu0 0.0
    %2249 = vmatpush1.msra.mxu0 0.0
    %2250 = vmatprep.subr.mxu0 0.0
    %2251 = vmatpush1.msra.mxu0 0.0
    %2252 = vmatprep.subr.mxu0 0.0
    %2253 = vmatpush1.msra.mxu0 0.0
    %2254 = vmatprep.subr.mxu0 0.0
    %2255 = vmatpush1.msra.mxu0 0.0
    %2256 = vmatprep.mubr.f32.mxu0 0.0
    %2257 = vmatmul.mubr.f32.gmra.mrb[0].mxu0 %v2190
    %v2258 = vpop.f32.mrb[0].mxu0
    %v2259 = vadd.f32 %v374, %v2258
    %v2260 = vpop.f32.mrb[0].mxu0
    %2261 = vdwg.mxu0
    %v2262 = vmax.f32 %v2259, 0.0
    %v2263 = vsel %vm185, %v2262, %v1785
    %v2265 = vsel %vm376, %v2263, 0
    %2267 = vmatprep.subr.mxu0 %v70
    %2268 = vmatpush1.msra.mxu0 %v69
    %2269 = vmatprep.subr.mxu0 %v72
    %2270 = vmatpush1.msra.mxu0 %v71
    %2271 = vmatprep.subr.mxu0 %v74
    %2272 = vmatpush1.msra.mxu0 %v73
    %2273 = vmatprep.subr.mxu0 %v76
    %2274 = vmatpush1.msra.mxu0 %v75
    %2275 = vmatprep.subr.mxu0 %v78
    %2276 = vmatpush1.msra.mxu0 %v77
    %2277 = vmatprep.subr.mxu0 %v80
    %2278 = vmatpush1.msra.mxu0 %v79
    %2279 = vmatprep.subr.mxu0 %v82
    %2280 = vmatpush1.msra.mxu0 %v81
    %2281 = vmatprep.subr.mxu0 %v84
    %2282 = vmatpush1.msra.mxu0 %v83
    %2283 = vmatprep.subr.mxu0 0.0
    %2284 = vmatpush1.msra.mxu0 0.0
    %2285 = vmatprep.subr.mxu0 0.0
    %2286 = vmatpush1.msra.mxu0 0.0
    %2287 = vmatprep.subr.mxu0 0.0
    %2288 = vmatpush1.msra.mxu0 0.0
    %2289 = vmatprep.subr.mxu0 0.0
    %2290 = vmatpush1.msra.mxu0 0.0
    %2291 = vmatprep.subr.mxu0 0.0
    %2292 = vmatpush1.msra.mxu0 0.0
    %2293 = vmatprep.subr.mxu0 0.0
    %2294 = vmatpush1.msra.mxu0 0.0
    %2295 = vmatprep.subr.mxu0 0.0
    %2296 = vmatpush1.msra.mxu0 0.0
    %2297 = vmatprep.subr.mxu0 0.0
    %2298 = vmatpush1.msra.mxu0 0.0
    %2299 = vmatprep.subr.mxu0 0.0
    %2300 = vmatpush1.msra.mxu0 0.0
    %2301 = vmatprep.subr.mxu0 0.0
    %2302 = vmatpush1.msra.mxu0 0.0
    %2303 = vmatprep.subr.mxu0 0.0
    %2304 = vmatpush1.msra.mxu0 0.0
    %2305 = vmatprep.subr.mxu0 0.0
    %2306 = vmatpush1.msra.mxu0 0.0
    %2307 = vmatprep.subr.mxu0 0.0
    %2308 = vmatpush1.msra.mxu0 0.0
    %2309 = vmatprep.subr.mxu0 0.0
    %2310 = vmatpush1.msra.mxu0 0.0
    %2311 = vmatprep.subr.mxu0 0.0
    %2312 = vmatpush1.msra.mxu0 0.0
    %2313 = vmatprep.subr.mxu0 0.0
    %2314 = vmatpush1.msra.mxu0 0.0
    %2315 = vmatprep.subr.mxu0 0.0
    %2316 = vmatpush1.msra.mxu0 0.0
    %2317 = vmatprep.subr.mxu0 0.0
    %2318 = vmatpush1.msra.mxu0 0.0
    %2319 = vmatprep.subr.mxu0 0.0
    %2320 = vmatpush1.msra.mxu0 0.0
    %2321 = vmatprep.subr.mxu0 0.0
    %2322 = vmatpush1.msra.mxu0 0.0
    %2323 = vmatprep.subr.mxu0 0.0
    %2324 = vmatpush1.msra.mxu0 0.0
    %2325 = vmatprep.subr.mxu0 0.0
    %2326 = vmatpush1.msra.mxu0 0.0
    %2327 = vmatprep.subr.mxu0 0.0
    %2328 = vmatpush1.msra.mxu0 0.0
    %2329 = vmatprep.subr.mxu0 0.0
    %2330 = vmatpush1.msra.mxu0 0.0
    %2331 = vmatprep.mubr.f32.mxu0 0.0
    %2332 = vmatmul.mubr.f32.gmra.mrb[0].mxu0 %v2265
    %v2333 = vpop.f32.mrb[0].mxu0
    %v2334 = vadd.f32 %v456, %v2333
    %v2335 = vpop.f32.mrb[0].mxu0
    %v2336 = vadd.f32 %v460, %v2335
    %2337 = vdwg.mxu0
    %2339 = vrot.lane.b32.xlu0 %v2334, 32
    %v2340 = vpop.permute.xlu0 %2339
    %v2342 = vadd.f32 %v2334, %v2340
    %v2343 = vxor.u32 %v2342, 2147483648
    %v2344 = vmul.f32 %v2343, 1.442695
    %v2345 = vpow.pop %v2344
    %v2346 = vadd.f32 %v2345, 1.0
    %v2347 = vrcp.pop %v2346
    %v2348 = vmul.f32 1.0, %v2347
    %2350 = vrot.lane.b32.xlu0 %v2336, 32
    %v2351 = vpop.permute.xlu0 %2350
    %v2353 = vadd.f32 %v2334, %v2351
    %v2354 = vxor.u32 %v2353, 2147483648
    %v2355 = vmul.f32 %v2354, 1.442695
    %v2356 = vpow.pop %v2355
    %v2357 = vadd.f32 %v2356, 1.0
    %v2358 = vrcp.pop %v2357
    %v2359 = vmul.f32 1.0, %v2358
    %2360 = vrot.lane.b32.xlu0 %v2336, 96
    %v2361 = vpop.permute.xlu0 %2360
    %v2363 = vmul.f32 %v2348, %v2361
    %2365 = vrot.lane.b32.xlu0 %v2363, 64
    %v2366 = vpop.permute.xlu0 %2365
    %v2368 = vadd.f32 %v2334, %v2366
    %v2369 = vtanh.pop %v2368
    %v2370 = vsub.f32 1.0, %v2359
    %2372 = vrot.lane.b32.xlu0 %v2369, 96
    %v2373 = vpop.permute.xlu0 %2372
    %v2375 = vmul.f32 %v2370, %v2373
    %v2376 = vmul.f32 %v2359, %v1785
    %v2377 = vadd.f32 %v2375, %v2376
    %2379 = vrot.lane.b32.xlu0 %v2377, 96
    %v2380 = vpop.permute.xlu0 %2379
    %v2381 = vsel %vm185, %v2380, 0
    %2383 = vmatprep.subr.mxu0 0.0
    %2384 = vmatpush1.msra.mxu0 %v86
    %2385 = vmatprep.subr.mxu0 0.0
    %2386 = vmatpush1.msra.mxu0 %v87
    %2387 = vmatprep.subr.mxu0 0.0
    %2388 = vmatpush1.msra.mxu0 %v88
    %2389 = vmatprep.subr.mxu0 0.0
    %2390 = vmatpush1.msra.mxu0 %v89
    %2391 = vmatprep.subr.mxu0 0.0
    %2392 = vmatpush1.msra.mxu0 0.0
    %2393 = vmatprep.subr.mxu0 0.0
    %2394 = vmatpush1.msra.mxu0 0.0
    %2395 = vmatprep.subr.mxu0 0.0
    %2396 = vmatpush1.msra.mxu0 0.0
    %2397 = vmatprep.subr.mxu0 0.0
    %2398 = vmatpush1.msra.mxu0 0.0
    %2399 = vmatprep.subr.mxu0 0.0
    %2400 = vmatpush1.msra.mxu0 0.0
    %2401 = vmatprep.subr.mxu0 0.0
    %2402 = vmatpush1.msra.mxu0 0.0
    %2403 = vmatprep.subr.mxu0 0.0
    %2404 = vmatpush1.msra.mxu0 0.0
    %2405 = vmatprep.subr.mxu0 0.0
    %2406 = vmatpush1.msra.mxu0 0.0
    %2407 = vmatprep.subr.mxu0 0.0
    %2408 = vmatpush1.msra.mxu0 0.0
    %2409 = vmatprep.subr.mxu0 0.0
    %2410 = vmatpush1.msra.mxu0 0.0
    %2411 = vmatprep.subr.mxu0 0.0
    %2412 = vmatpush1.msra.mxu0 0.0
    %2413 = vmatprep.subr.mxu0 0.0
    %2414 = vmatpush1.msra.mxu0 0.0
    %2415 = vmatprep.subr.mxu0 0.0
    %2416 = vmatpush1.msra.mxu0 0.0
    %2417 = vmatprep.subr.mxu0 0.0
    %2418 = vmatpush1.msra.mxu0 0.0
    %2419 = vmatprep.subr.mxu0 0.0
    %2420 = vmatpush1.msra.mxu0 0.0
    %2421 = vmatprep.subr.mxu0 0.0
    %2422 = vmatpush1.msra.mxu0 0.0
    %2423 = vmatprep.subr.mxu0 0.0
    %2424 = vmatpush1.msra.mxu0 0.0
    %2425 = vmatprep.subr.mxu0 0.0
    %2426 = vmatpush1.msra.mxu0 0.0
    %2427 = vmatprep.subr.mxu0 0.0
    %2428 = vmatpush1.msra.mxu0 0.0
    %2429 = vmatprep.subr.mxu0 0.0
    %2430 = vmatpush1.msra.mxu0 0.0
    %2431 = vmatprep.subr.mxu0 0.0
    %2432 = vmatpush1.msra.mxu0 0.0
    %2433 = vmatprep.subr.mxu0 0.0
    %2434 = vmatpush1.msra.mxu0 0.0
    %2435 = vmatprep.subr.mxu0 0.0
    %2436 = vmatpush1.msra.mxu0 0.0
    %2437 = vmatprep.subr.mxu0 0.0
    %2438 = vmatpush1.msra.mxu0 0.0
    %2439 = vmatprep.subr.mxu0 0.0
    %2440 = vmatpush1.msra.mxu0 0.0
    %2441 = vmatprep.subr.mxu0 0.0
    %2442 = vmatpush1.msra.mxu0 0.0
    %2443 = vmatprep.subr.mxu0 0.0
    %2444 = vmatpush1.msra.mxu0 0.0
    %2445 = vmatprep.subr.mxu0 0.0
    %2446 = vmatpush1.msra.mxu0 0.0
    %2447 = vmatprep.mubr.f32.mxu0 0.0
    %2448 = vmatmul.mubr.f32.gmra.mrb[0].mxu0 %v2381
    %v2449 = vpop.f32.mrb[0].mxu0
    %v2450 = vadd.f32 %v581, %v2449
    %v2451 = vpop.f32.mrb[0].mxu0
    %2452 = vdwg.mxu0
    %v2453 = vsel %vm658, %v2450, -inf
    %2454 = vmax.xlane.f32.xlu0 %v2453
    %v2455 = vpop.xlane.xlu0 %2454
    %v2456 = vsub.f32 %v2450, %v2455
    %v2457 = vmul.f32 %v2456, 1.442695
    %v2458 = vpow.pop %v2457
    %v2459 = vsel %vm658, %v2458, 0.0
    %2460 = vadd.xlane.f32.xlu0 %v2459
    %v2461 = vpop.xlane.xlu0 %2460
    %v2462 = vlog2.pop %v2461
    %v2463 = vmul.f32 %v2462, 0.6931472
    %v2464 = vadd.f32 %v2455, %v2463
    %v2465 = vsub.f32 %v2450, %v2464
    %v2466 = vmul.f32 %v2465, 1.442695
    %v2467 = vpow.pop %v2466
    %s2468 = scalar_lea.vmem [#allocation3], 6
    %2469 = vst [vmem:[%s2468] sm:$0x3] %v2467
    %v2470 = vsel %vm658, %v2465, -inf
    %2471 = vmax.xlane.f32.xlu0 %v2470
    %v2472 = vpop.xlane.xlu0 %2471
    %vm2473 = vcmp.eq.f32.partialorder %v2465, %v2472
    %v2474 = vsel %vm2473, %v93, 128.0
    %v2475 = vsel %vm658, %v2474, inf
    %2476 = vmin.xlane.f32.xlu0 %v2475
    %v2477 = vpop.xlane.xlu0 %2476
    %vm2478 = vcmp.eq.f32.partialorder %v93, %v2477
    %v2479 = vsel %vm2478, 1, 0
    %v2480 = vcvt.s32.f32 %v2479
    %2481 = vmatprep.subr.mxu0 0.0
    %2482 = vmatpush1.msra.mxu0 %v42
    %2483 = vmatprep.subr.mxu0 0.0
    %2484 = vmatpush1.msra.mxu0 %v43
    %2485 = vmatprep.subr.mxu0 0.0
    %2486 = vmatpush1.msra.mxu0 %v44
    %2487 = vmatprep.subr.mxu0 0.0
    %2488 = vmatpush1.msra.mxu0 %v45
    %2489 = vmatprep.subr.mxu0 0.0
    %2490 = vmatpush1.msra.mxu0 %v46
    %2491 = vmatprep.subr.mxu0 0.0
    %2492 = vmatpush1.msra.mxu0 %v47
    %2493 = vmatprep.subr.mxu0 0.0
    %2494 = vmatpush1.msra.mxu0 %v48
    %2495 = vmatprep.subr.mxu0 0.0
    %2496 = vmatpush1.msra.mxu0 %v49
    %2497 = vmatprep.subr.mxu0 0.0
    %2498 = vmatpush1.msra.mxu0 %v50
    %2499 = vmatprep.subr.mxu0 0.0
    %2500 = vmatpush1.msra.mxu0 %v51
    %2501 = vmatprep.subr.mxu0 0.0
    %2502 = vmatpush1.msra.mxu0 %v52
    %2503 = vmatprep.subr.mxu0 0.0
    %2504 = vmatpush1.msra.mxu0 %v53
    %2505 = vmatprep.subr.mxu0 0.0
    %2506 = vmatpush1.msra.mxu0 %v54
    %2507 = vmatprep.subr.mxu0 0.0
    %2508 = vmatpush1.msra.mxu0 %v55
    %2509 = vmatprep.subr.mxu0 0.0
    %2510 = vmatpush1.msra.mxu0 %v56
    %2511 = vmatprep.subr.mxu0 0.0
    %2512 = vmatpush1.msra.mxu0 %v57
    %2513 = vmatprep.subr.mxu0 0.0
    %2514 = vmatpush1.msra.mxu0 0.0
    %2515 = vmatprep.subr.mxu0 0.0
    %2516 = vmatpush1.msra.mxu0 0.0
    %2517 = vmatprep.subr.mxu0 0.0
    %2518 = vmatpush1.msra.mxu0 0.0
    %2519 = vmatprep.subr.mxu0 0.0
    %2520 = vmatpush1.msra.mxu0 0.0
    %2521 = vmatprep.subr.mxu0 0.0
    %2522 = vmatpush1.msra.mxu0 0.0
    %2523 = vmatprep.subr.mxu0 0.0
    %2524 = vmatpush1.msra.mxu0 0.0
    %2525 = vmatprep.subr.mxu0 0.0
    %2526 = vmatpush1.msra.mxu0 0.0
    %2527 = vmatprep.subr.mxu0 0.0
    %2528 = vmatpush1.msra.mxu0 0.0
    %2529 = vmatprep.subr.mxu0 0.0
    %2530 = vmatpush1.msra.mxu0 0.0
    %2531 = vmatprep.subr.mxu0 0.0
    %2532 = vmatpush1.msra.mxu0 0.0
    %2533 = vmatprep.subr.mxu0 0.0
    %2534 = vmatpush1.msra.mxu0 0.0
    %2535 = vmatprep.subr.mxu0 0.0
    %2536 = vmatpush1.msra.mxu0 0.0
    %2537 = vmatprep.subr.mxu0 0.0
    %2538 = vmatpush1.msra.mxu0 0.0
    %2539 = vmatprep.subr.mxu0 0.0
    %2540 = vmatpush1.msra.mxu0 0.0
    %2541 = vmatprep.subr.mxu0 0.0
    %2542 = vmatpush1.msra.mxu0 0.0
    %2543 = vmatprep.subr.mxu0 0.0
    %2544 = vmatpush1.msra.mxu0 0.0
    %2545 = vmatprep.mubr.f32.mxu0 0.0
    %2546 = vmatmul.mubr.f32.gmra.mrb[0].mxu0 %v2480
    %v2547 = vpop.f32.mrb[0].mxu0
    %v2548 = vadd.f32 0.0, %v2547
    %v2549 = vpop.f32.mrb[0].mxu0
    %2550 = vdwg.mxu0
    %v2552 = vunpack.c.l.s4 1966171168
    %v2553 = vunpack.c.0.s8 %v2552
    %v2554 = vlaneseq
    %v2555 = vshrl.u32 %v2554, 7
    %v2556 = vsub.s32 %v2553, %v2555
    %v2557 = vrot.slane %v2377, %v2556
    %v2558 = vcombine.high %v2557, %v2557
    %v2560 = vunpack.c.l.s4 1966171168
    %v2561 = vunpack.c.0.s8 %v2560
    %v2562 = vlaneseq
    %v2563 = vshrl.u32 %v2562, 7
    %v2564 = vsub.s32 %v2561, %v2563
    %v2565 = vrot.slane %v2557, %v2564
    %v2567 = vunpack.c.l.s4 1966171168
    %v2568 = vunpack.c.0.s8 %v2567
    %v2569 = vlaneseq
    %v2570 = vshrl.u32 %v2569, 7
    %v2571 = vsub.s32 %v2568, %v2570
    %v2572 = vrot.slane %v2558, %v2571
    %v2573 = vlaneseq
    %v2574 = vshrl.u32 %v2573, 7
    %v2575 = vsub.s32 0, %v2574
    %v2576 = vrot.slane %v2565, %v2575
    %v2577 = vlaneseq
    %v2578 = vshrl.u32 %v2577, 7
    %v2579 = vsub.s32 0, %v2578
    %v2580 = vrot.slane %v2572, %v2579
    %v2583 = vadd.f32 %v2576, %v793
    %v2584 = vadd.f32 %v2576, %v795
    %v2585 = vadd.f32 %v2580, %v797
    %v2586 = vadd.f32 %v2580, %v799
    %v2587 = vtanh.pop %v2583
    %v2588 = vtanh.pop %v2584
    %v2589 = vtanh.pop %v2585
    %v2590 = vtanh.pop %v2586
    %v2591 = vmul.f32 %v2587, %v813
    %v2592 = vmul.f32 %v2588, %v813
    %v2593 = vmul.f32 %v2589, %v813
    %v2594 = vmul.f32 %v2590, %v813
    %2599 = vrot.lane.b32.xlu0 %v2591, 96
    %v2600 = vpop.permute.xlu0 %2599
    %2601 = vrot.lane.b32.xlu0 %v2592, 96
    %v2602 = vpop.permute.xlu0 %2601
    %2603 = vrot.lane.b32.xlu0 %v2593, 96
    %v2604 = vpop.permute.xlu0 %2603
    %2605 = vrot.lane.b32.xlu0 %v2594, 96
    %v2606 = vpop.permute.xlu0 %2605
    %v2611 = vsel %vm185, %v2600, 0.0
    %2612 = vadd.xlane.f32.xlu0 %v2611
    %v2613 = vpop.xlane.xlu0 %2612
    %v2614 = vsel %vm189, %v2602, 0.0
    %2615 = vadd.xlane.f32.xlu0 %v2614
    %v2616 = vpop.xlane.xlu0 %2615
    %v2617 = vsel %vm185, %v2604, 0.0
    %2618 = vadd.xlane.f32.xlu0 %v2617
    %v2619 = vpop.xlane.xlu0 %2618
    %v2620 = vsel %vm189, %v2606, 0.0
    %2621 = vadd.xlane.f32.xlu0 %v2620
    %v2622 = vpop.xlane.xlu0 %2621
    %v2623 = vadd.f32 %v2613, %v206
    %v2624 = vadd.f32 %v2616, %v206
    %v2625 = vadd.f32 %v2619, %v206
    %v2626 = vadd.f32 %v2622, %v206
    %v2631 = vlaneseq
    %v2632 = vshrl.u32 %v2631, 7
    %v2633 = vsub.s32 %v92, %v2632
    %v2634 = vrot.slane %v2623, %v2633
    %v2635 = vlaneseq
    %v2636 = vshrl.u32 %v2635, 7
    %v2637 = vsub.s32 %v220, %v2636
    %v2638 = vrot.slane %v2624, %v2637
    %v2639 = vsel %vm225, %v2638, %v2634
    %v2640 = vlaneseq
    %v2641 = vshrl.u32 %v2640, 7
    %v2642 = vsub.s32 %v92, %v2641
    %v2643 = vrot.slane %v2625, %v2642
    %v2644 = vlaneseq
    %v2645 = vshrl.u32 %v2644, 7
    %v2646 = vsub.s32 %v220, %v2645
    %v2647 = vrot.slane %v2626, %v2646
    %v2648 = vsel %vm225, %v2647, %v2643
    %v2649 = vsel %vm236, %v2648, %v2639
    %v2651 = vsel %vm239, %v2649, -inf
    %2652 = vmax.xlane.f32.xlu0 %v2651
    %v2653 = vpop.xlane.xlu0 %2652
    %v2655 = vlaneseq
    %v2656 = vshrl.u32 %v2655, 7
    %v2657 = vsub.s32 0, %v2656
    %v2658 = vrot.slane %v2653, %v2657
    %v2659 = vlaneseq
    %v2660 = vshrl.u32 %v2659, 7
    %v2661 = vsub.s32 1, %v2660
    %v2662 = vrot.slane %v2653, %v2661
    %v2665 = vsub.f32 %v2623, %v2658
    %v2666 = vsub.f32 %v2624, %v2658
    %v2667 = vsub.f32 %v2625, %v2662
    %v2668 = vsub.f32 %v2626, %v2662
    %v2669 = vmul.f32 %v2665, 1.442695
    %v2670 = vpow.pop %v2669
    %v2671 = vmul.f32 %v2666, 1.442695
    %v2672 = vpow.pop %v2671
    %v2673 = vmul.f32 %v2667, 1.442695
    %v2674 = vpow.pop %v2673
    %v2675 = vmul.f32 %v2668, 1.442695
    %v2676 = vpow.pop %v2675
    %2681 = vset.pattern.permute.xlu0 0
    %2682 = vperm.xlu0 %2681, %v2670
    %v2683 = vpop.permute.xlu0 %2682
    %2684 = vset.pattern.permute.xlu0 0
    %2685 = vperm.xlu0 %2684, %v2672
    %v2686 = vpop.permute.xlu0 %2685
    %2687 = vset.pattern.permute.xlu0 0
    %2688 = vperm.xlu0 %2687, %v2674
    %v2689 = vpop.permute.xlu0 %2688
    %2690 = vset.pattern.permute.xlu0 0
    %2691 = vperm.xlu0 %2690, %v2676
    %v2692 = vpop.permute.xlu0 %2691
    %v2693 = vlaneseq
    %v2694 = vshrl.u32 %v2693, 7
    %v2695 = vsub.s32 %v92, %v2694
    %v2696 = vrot.slane %v2683, %v2695
    %v2697 = vlaneseq
    %v2698 = vshrl.u32 %v2697, 7
    %v2699 = vsub.s32 %v220, %v2698
    %v2700 = vrot.slane %v2686, %v2699
    %v2701 = vsel %vm225, %v2700, %v2696
    %v2702 = vlaneseq
    %v2703 = vshrl.u32 %v2702, 7
    %v2704 = vsub.s32 %v92, %v2703
    %v2705 = vrot.slane %v2689, %v2704
    %v2706 = vlaneseq
    %v2707 = vshrl.u32 %v2706, 7
    %v2708 = vsub.s32 %v220, %v2707
    %v2709 = vrot.slane %v2692, %v2708
    %v2710 = vsel %vm225, %v2709, %v2705
    %v2711 = vsel %vm236, %v2710, %v2701
    %v2713 = vsel %vm239, %v2711, 0.0
    %2714 = vadd.xlane.f32.xlu0 %v2713
    %v2715 = vpop.xlane.xlu0 %2714
    %v2716 = vrcp.pop %v2715
    %v2718 = vlaneseq
    %v2719 = vshrl.u32 %v2718, 7
    %v2720 = vsub.s32 0, %v2719
    %v2721 = vrot.slane %v2716, %v2720
    %v2722 = vlaneseq
    %v2723 = vshrl.u32 %v2722, 7
    %v2724 = vsub.s32 1, %v2723
    %v2725 = vrot.slane %v2716, %v2724
    %v2728 = vmul.f32 %v2670, %v2721
    %v2729 = vmul.f32 %v2672, %v2721
    %v2730 = vmul.f32 %v2674, %v2725
    %v2731 = vmul.f32 %v2676, %v2725
    %2733 = vset.pattern.permute.xlu0 0
    %2734 = vperm.xlu0 %2733, %v2728
    %v2735 = vpop.permute.xlu0 %2734
    %2738 = vset.pattern.permute.xlu0 0
    %2739 = vperm.xlu0 %2738, %v2729
    %v2740 = vpop.permute.xlu0 %2739
    %2743 = vset.pattern.permute.xlu0 0
    %2744 = vperm.xlu0 %2743, %v2730
    %v2745 = vpop.permute.xlu0 %2744
    %2748 = vset.pattern.permute.xlu0 0
    %2749 = vperm.xlu0 %2748, %v2731
    %v2750 = vpop.permute.xlu0 %2749
    %v2752 = vmul.f32 %v2735, %v38
    %v2753 = vmul.f32 %v2740, %v39
    %v2754 = vmul.f32 %v2745, %v40
    %v2755 = vmul.f32 %v2750, %v41
    %v2756 = vsel %vm185, %v2752, 0.0
    %v2757 = vsel %vm189, %v2753, 0.0
    %v2758 = vadd.f32 %v2756, %v2757
    %v2759 = vrot.slane %v2758, 4
    %v2760 = vadd.f32 %v2758, %v2759
    %v2761 = vrot.slane %v2760, 2
    %v2762 = vadd.f32 %v2760, %v2761
    %v2763 = vrot.slane %v2762, 1
    %v2764 = vadd.f32 %v2762, %v2763
    %v2765 = vsel %vm185, %v2754, 0.0
    %v2766 = vsel %vm189, %v2755, 0.0
    %v2767 = vadd.f32 %v2765, %v2766
    %v2768 = vrot.slane %v2767, 4
    %v2769 = vadd.f32 %v2767, %v2768
    %v2770 = vrot.slane %v2769, 2
    %v2771 = vadd.f32 %v2769, %v2770
    %v2772 = vrot.slane %v2771, 1
    %v2773 = vadd.f32 %v2771, %v2772
    %v2776 = vsel %vm236, %v2773, %v2764
    %2777 = vrot.lane.b32.xlu0 %v2776, 32
    %v2778 = vpop.permute.xlu0 %2777
    %v2780 = vsel %vm185, %v2548, %v2778
    %v2782 = vsel %vm376, %v2780, 0
    %2784 = vmatprep.subr.mxu0 0.0
    %2785 = vmatpush1.msra.mxu0 %v60
    %2786 = vmatprep.subr.mxu0 0.0
    %2787 = vmatpush1.msra.mxu0 %v61
    %2788 = vmatprep.subr.mxu0 0.0
    %2789 = vmatpush1.msra.mxu0 %v62
    %2790 = vmatprep.subr.mxu0 0.0
    %2791 = vmatpush1.msra.mxu0 %v63
    %2792 = vmatprep.subr.mxu0 0.0
    %2793 = vmatpush1.msra.mxu0 %v64
    %2794 = vmatprep.subr.mxu0 0.0
    %2795 = vmatpush1.msra.mxu0 %v65
    %2796 = vmatprep.subr.mxu0 0.0
    %2797 = vmatpush1.msra.mxu0 %v66
    %2798 = vmatprep.subr.mxu0 0.0
    %2799 = vmatpush1.msra.mxu0 %v67
    %2800 = vmatprep.subr.mxu0 0.0
    %2801 = vmatpush1.msra.mxu0 0.0
    %2802 = vmatprep.subr.mxu0 0.0
    %2803 = vmatpush1.msra.mxu0 0.0
    %2804 = vmatprep.subr.mxu0 0.0
    %2805 = vmatpush1.msra.mxu0 0.0
    %2806 = vmatprep.subr.mxu0 0.0
    %2807 = vmatpush1.msra.mxu0 0.0
    %2808 = vmatprep.subr.mxu0 0.0
    %2809 = vmatpush1.msra.mxu0 0.0
    %2810 = vmatprep.subr.mxu0 0.0
    %2811 = vmatpush1.msra.mxu0 0.0
    %2812 = vmatprep.subr.mxu0 0.0
    %2813 = vmatpush1.msra.mxu0 0.0
    %2814 = vmatprep.subr.mxu0 0.0
    %2815 = vmatpush1.msra.mxu0 0.0
    %2816 = vmatprep.subr.mxu0 0.0
    %2817 = vmatpush1.msra.mxu0 0.0
    %2818 = vmatprep.subr.mxu0 0.0
    %2819 = vmatpush1.msra.mxu0 0.0
    %2820 = vmatprep.subr.mxu0 0.0
    %2821 = vmatpush1.msra.mxu0 0.0
    %2822 = vmatprep.subr.mxu0 0.0
    %2823 = vmatpush1.msra.mxu0 0.0
    %2824 = vmatprep.subr.mxu0 0.0
    %2825 = vmatpush1.msra.mxu0 0.0
    %2826 = vmatprep.subr.mxu0 0.0
    %2827 = vmatpush1.msra.mxu0 0.0
    %2828 = vmatprep.subr.mxu0 0.0
    %2829 = vmatpush1.msra.mxu0 0.0
    %2830 = vmatprep.subr.mxu0 0.0
    %2831 = vmatpush1.msra.mxu0 0.0
    %2832 = vmatprep.subr.mxu0 0.0
    %2833 = vmatpush1.msra.mxu0 0.0
    %2834 = vmatprep.subr.mxu0 0.0
    %2835 = vmatpush1.msra.mxu0 0.0
    %2836 = vmatprep.subr.mxu0 0.0
    %2837 = vmatpush1.msra.mxu0 0.0
    %2838 = vmatprep.subr.mxu0 0.0
    %2839 = vmatpush1.msra.mxu0 0.0
    %2840 = vmatprep.subr.mxu0 0.0
    %2841 = vmatpush1.msra.mxu0 0.0
    %2842 = vmatprep.subr.mxu0 0.0
    %2843 = vmatpush1.msra.mxu0 0.0
    %2844 = vmatprep.subr.mxu0 0.0
    %2845 = vmatpush1.msra.mxu0 0.0
    %2846 = vmatprep.subr.mxu0 0.0
    %2847 = vmatpush1.msra.mxu0 0.0
    %2848 = vmatprep.mubr.f32.mxu0 0.0
    %2849 = vmatmul.mubr.f32.gmra.mrb[0].mxu0 %v2782
    %v2850 = vpop.f32.mrb[0].mxu0
    %v2851 = vadd.f32 %v374, %v2850
    %v2852 = vpop.f32.mrb[0].mxu0
    %2853 = vdwg.mxu0
    %v2854 = vmax.f32 %v2851, 0.0
    %v2855 = vsel %vm185, %v2854, %v2377
    %v2857 = vsel %vm376, %v2855, 0
    %2859 = vmatprep.subr.mxu0 %v70
    %2860 = vmatpush1.msra.mxu0 %v69
    %2861 = vmatprep.subr.mxu0 %v72
    %2862 = vmatpush1.msra.mxu0 %v71
    %2863 = vmatprep.subr.mxu0 %v74
    %2864 = vmatpush1.msra.mxu0 %v73
    %2865 = vmatprep.subr.mxu0 %v76
    %2866 = vmatpush1.msra.mxu0 %v75
    %2867 = vmatprep.subr.mxu0 %v78
    %2868 = vmatpush1.msra.mxu0 %v77
    %2869 = vmatprep.subr.mxu0 %v80
    %2870 = vmatpush1.msra.mxu0 %v79
    %2871 = vmatprep.subr.mxu0 %v82
    %2872 = vmatpush1.msra.mxu0 %v81
    %2873 = vmatprep.subr.mxu0 %v84
    %2874 = vmatpush1.msra.mxu0 %v83
    %2875 = vmatprep.subr.mxu0 0.0
    %2876 = vmatpush1.msra.mxu0 0.0
    %2877 = vmatprep.subr.mxu0 0.0
    %2878 = vmatpush1.msra.mxu0 0.0
    %2879 = vmatprep.subr.mxu0 0.0
    %2880 = vmatpush1.msra.mxu0 0.0
    %2881 = vmatprep.subr.mxu0 0.0
    %2882 = vmatpush1.msra.mxu0 0.0
    %2883 = vmatprep.subr.mxu0 0.0
    %2884 = vmatpush1.msra.mxu0 0.0
    %2885 = vmatprep.subr.mxu0 0.0
    %2886 = vmatpush1.msra.mxu0 0.0
    %2887 = vmatprep.subr.mxu0 0.0
    %2888 = vmatpush1.msra.mxu0 0.0
    %2889 = vmatprep.subr.mxu0 0.0
    %2890 = vmatpush1.msra.mxu0 0.0
    %2891 = vmatprep.subr.mxu0 0.0
    %2892 = vmatpush1.msra.mxu0 0.0
    %2893 = vmatprep.subr.mxu0 0.0
    %2894 = vmatpush1.msra.mxu0 0.0
    %2895 = vmatprep.subr.mxu0 0.0
    %2896 = vmatpush1.msra.mxu0 0.0
    %2897 = vmatprep.subr.mxu0 0.0
    %2898 = vmatpush1.msra.mxu0 0.0
    %2899 = vmatprep.subr.mxu0 0.0
    %2900 = vmatpush1.msra.mxu0 0.0
    %2901 = vmatprep.subr.mxu0 0.0
    %2902 = vmatpush1.msra.mxu0 0.0
    %2903 = vmatprep.subr.mxu0 0.0
    %2904 = vmatpush1.msra.mxu0 0.0
    %2905 = vmatprep.subr.mxu0 0.0
    %2906 = vmatpush1.msra.mxu0 0.0
    %2907 = vmatprep.subr.mxu0 0.0
    %2908 = vmatpush1.msra.mxu0 0.0
    %2909 = vmatprep.subr.mxu0 0.0
    %2910 = vmatpush1.msra.mxu0 0.0
    %2911 = vmatprep.subr.mxu0 0.0
    %2912 = vmatpush1.msra.mxu0 0.0
    %2913 = vmatprep.subr.mxu0 0.0
    %2914 = vmatpush1.msra.mxu0 0.0
    %2915 = vmatprep.subr.mxu0 0.0
    %2916 = vmatpush1.msra.mxu0 0.0
    %2917 = vmatprep.subr.mxu0 0.0
    %2918 = vmatpush1.msra.mxu0 0.0
    %2919 = vmatprep.subr.mxu0 0.0
    %2920 = vmatpush1.msra.mxu0 0.0
    %2921 = vmatprep.subr.mxu0 0.0
    %2922 = vmatpush1.msra.mxu0 0.0
    %2923 = vmatprep.mubr.f32.mxu0 0.0
    %2924 = vmatmul.mubr.f32.gmra.mrb[0].mxu0 %v2857
    %v2925 = vpop.f32.mrb[0].mxu0
    %v2926 = vadd.f32 %v456, %v2925
    %v2927 = vpop.f32.mrb[0].mxu0
    %v2928 = vadd.f32 %v460, %v2927
    %2929 = vdwg.mxu0
    %2931 = vrot.lane.b32.xlu0 %v2926, 32
    %v2932 = vpop.permute.xlu0 %2931
    %v2934 = vadd.f32 %v2926, %v2932
    %v2935 = vxor.u32 %v2934, 2147483648
    %v2936 = vmul.f32 %v2935, 1.442695
    %v2937 = vpow.pop %v2936
    %v2938 = vadd.f32 %v2937, 1.0
    %v2939 = vrcp.pop %v2938
    %v2940 = vmul.f32 1.0, %v2939
    %2942 = vrot.lane.b32.xlu0 %v2928, 32
    %v2943 = vpop.permute.xlu0 %2942
    %v2945 = vadd.f32 %v2926, %v2943
    %v2946 = vxor.u32 %v2945, 2147483648
    %v2947 = vmul.f32 %v2946, 1.442695
    %v2948 = vpow.pop %v2947
    %v2949 = vadd.f32 %v2948, 1.0
    %v2950 = vrcp.pop %v2949
    %v2951 = vmul.f32 1.0, %v2950
    %2952 = vrot.lane.b32.xlu0 %v2928, 96
    %v2953 = vpop.permute.xlu0 %2952
    %v2955 = vmul.f32 %v2940, %v2953
    %2957 = vrot.lane.b32.xlu0 %v2955, 64
    %v2958 = vpop.permute.xlu0 %2957
    %v2960 = vadd.f32 %v2926, %v2958
    %v2961 = vtanh.pop %v2960
    %v2962 = vsub.f32 1.0, %v2951
    %2964 = vrot.lane.b32.xlu0 %v2961, 96
    %v2965 = vpop.permute.xlu0 %2964
    %v2967 = vmul.f32 %v2962, %v2965
    %v2968 = vmul.f32 %v2951, %v2377
    %v2969 = vadd.f32 %v2967, %v2968
    %2971 = vrot.lane.b32.xlu0 %v2969, 96
    %v2972 = vpop.permute.xlu0 %2971
    %v2973 = vsel %vm185, %v2972, 0
    %2975 = vmatprep.subr.mxu0 0.0
    %2976 = vmatpush1.msra.mxu0 %v86
    %2977 = vmatprep.subr.mxu0 0.0
    %2978 = vmatpush1.msra.mxu0 %v87
    %2979 = vmatprep.subr.mxu0 0.0
    %2980 = vmatpush1.msra.mxu0 %v88
    %2981 = vmatprep.subr.mxu0 0.0
    %2982 = vmatpush1.msra.mxu0 %v89
    %2983 = vmatprep.subr.mxu0 0.0
    %2984 = vmatpush1.msra.mxu0 0.0
    %2985 = vmatprep.subr.mxu0 0.0
    %2986 = vmatpush1.msra.mxu0 0.0
    %2987 = vmatprep.subr.mxu0 0.0
    %2988 = vmatpush1.msra.mxu0 0.0
    %2989 = vmatprep.subr.mxu0 0.0
    %2990 = vmatpush1.msra.mxu0 0.0
    %2991 = vmatprep.subr.mxu0 0.0
    %2992 = vmatpush1.msra.mxu0 0.0
    %2993 = vmatprep.subr.mxu0 0.0
    %2994 = vmatpush1.msra.mxu0 0.0
    %2995 = vmatprep.subr.mxu0 0.0
    %2996 = vmatpush1.msra.mxu0 0.0
    %2997 = vmatprep.subr.mxu0 0.0
    %2998 = vmatpush1.msra.mxu0 0.0
    %2999 = vmatprep.subr.mxu0 0.0
    %3000 = vmatpush1.msra.mxu0 0.0
    %3001 = vmatprep.subr.mxu0 0.0
    %3002 = vmatpush1.msra.mxu0 0.0
    %3003 = vmatprep.subr.mxu0 0.0
    %3004 = vmatpush1.msra.mxu0 0.0
    %3005 = vmatprep.subr.mxu0 0.0
    %3006 = vmatpush1.msra.mxu0 0.0
    %3007 = vmatprep.subr.mxu0 0.0
    %3008 = vmatpush1.msra.mxu0 0.0
    %3009 = vmatprep.subr.mxu0 0.0
    %3010 = vmatpush1.msra.mxu0 0.0
    %3011 = vmatprep.subr.mxu0 0.0
    %3012 = vmatpush1.msra.mxu0 0.0
    %3013 = vmatprep.subr.mxu0 0.0
    %3014 = vmatpush1.msra.mxu0 0.0
    %3015 = vmatprep.subr.mxu0 0.0
    %3016 = vmatpush1.msra.mxu0 0.0
    %3017 = vmatprep.subr.mxu0 0.0
    %3018 = vmatpush1.msra.mxu0 0.0
    %3019 = vmatprep.subr.mxu0 0.0
    %3020 = vmatpush1.msra.mxu0 0.0
    %3021 = vmatprep.subr.mxu0 0.0
    %3022 = vmatpush1.msra.mxu0 0.0
    %3023 = vmatprep.subr.mxu0 0.0
    %3024 = vmatpush1.msra.mxu0 0.0
    %3025 = vmatprep.subr.mxu0 0.0
    %3026 = vmatpush1.msra.mxu0 0.0
    %3027 = vmatprep.subr.mxu0 0.0
    %3028 = vmatpush1.msra.mxu0 0.0
    %3029 = vmatprep.subr.mxu0 0.0
    %3030 = vmatpush1.msra.mxu0 0.0
    %3031 = vmatprep.subr.mxu0 0.0
    %3032 = vmatpush1.msra.mxu0 0.0
    %3033 = vmatprep.subr.mxu0 0.0
    %3034 = vmatpush1.msra.mxu0 0.0
    %3035 = vmatprep.subr.mxu0 0.0
    %3036 = vmatpush1.msra.mxu0 0.0
    %3037 = vmatprep.subr.mxu0 0.0
    %3038 = vmatpush1.msra.mxu0 0.0
    %3039 = vmatprep.mubr.f32.mxu0 0.0
    %3040 = vmatmul.mubr.f32.gmra.mrb[0].mxu0 %v2973
    %v3041 = vpop.f32.mrb[0].mxu0
    %v3042 = vadd.f32 %v581, %v3041
    %v3043 = vpop.f32.mrb[0].mxu0
    %3044 = vdwg.mxu0
    %v3045 = vsel %vm658, %v3042, -inf
    %3046 = vmax.xlane.f32.xlu0 %v3045
    %v3047 = vpop.xlane.xlu0 %3046
    %v3048 = vsub.f32 %v3042, %v3047
    %v3049 = vmul.f32 %v3048, 1.442695
    %v3050 = vpow.pop %v3049
    %v3051 = vsel %vm658, %v3050, 0.0
    %3052 = vadd.xlane.f32.xlu0 %v3051
    %v3053 = vpop.xlane.xlu0 %3052
    %v3054 = vlog2.pop %v3053
    %v3055 = vmul.f32 %v3054, 0.6931472
    %v3056 = vadd.f32 %v3047, %v3055
    %v3057 = vsub.f32 %v3042, %v3056
    %v3058 = vmul.f32 %v3057, 1.442695
    %v3059 = vpow.pop %v3058
    %s3060 = scalar_lea.vmem [#allocation3], 8
    %3061 = vst [vmem:[%s3060] sm:$0x3] %v3059
    %v3062 = vsel %vm658, %v3057, -inf
    %3063 = vmax.xlane.f32.xlu0 %v3062
    %v3064 = vpop.xlane.xlu0 %3063
    %vm3065 = vcmp.eq.f32.partialorder %v3057, %v3064
    %v3066 = vsel %vm3065, %v93, 128.0
    %v3067 = vsel %vm658, %v3066, inf
    %3068 = vmin.xlane.f32.xlu0 %v3067
    %v3069 = vpop.xlane.xlu0 %3068
    %vm3070 = vcmp.eq.f32.partialorder %v93, %v3069
    %v3071 = vsel %vm3070, 1, 0
    %v3072 = vcvt.s32.f32 %v3071
    %3073 = vmatprep.subr.mxu0 0.0
    %3074 = vmatpush1.msra.mxu0 %v42
    %3075 = vmatprep.subr.mxu0 0.0
    %3076 = vmatpush1.msra.mxu0 %v43
    %3077 = vmatprep.subr.mxu0 0.0
    %3078 = vmatpush1.msra.mxu0 %v44
    %3079 = vmatprep.subr.mxu0 0.0
    %3080 = vmatpush1.msra.mxu0 %v45
    %3081 = vmatprep.subr.mxu0 0.0
    %3082 = vmatpush1.msra.mxu0 %v46
    %3083 = vmatprep.subr.mxu0 0.0
    %3084 = vmatpush1.msra.mxu0 %v47
    %3085 = vmatprep.subr.mxu0 0.0
    %3086 = vmatpush1.msra.mxu0 %v48
    %3087 = vmatprep.subr.mxu0 0.0
    %3088 = vmatpush1.msra.mxu0 %v49
    %3089 = vmatprep.subr.mxu0 0.0
    %3090 = vmatpush1.msra.mxu0 %v50
    %3091 = vmatprep.subr.mxu0 0.0
    %3092 = vmatpush1.msra.mxu0 %v51
    %3093 = vmatprep.subr.mxu0 0.0
    %3094 = vmatpush1.msra.mxu0 %v52
    %3095 = vmatprep.subr.mxu0 0.0
    %3096 = vmatpush1.msra.mxu0 %v53
    %3097 = vmatprep.subr.mxu0 0.0
    %3098 = vmatpush1.msra.mxu0 %v54
    %3099 = vmatprep.subr.mxu0 0.0
    %3100 = vmatpush1.msra.mxu0 %v55
    %3101 = vmatprep.subr.mxu0 0.0
    %3102 = vmatpush1.msra.mxu0 %v56
    %3103 = vmatprep.subr.mxu0 0.0
    %3104 = vmatpush1.msra.mxu0 %v57
    %3105 = vmatprep.subr.mxu0 0.0
    %3106 = vmatpush1.msra.mxu0 0.0
    %3107 = vmatprep.subr.mxu0 0.0
    %3108 = vmatpush1.msra.mxu0 0.0
    %3109 = vmatprep.subr.mxu0 0.0
    %3110 = vmatpush1.msra.mxu0 0.0
    %3111 = vmatprep.subr.mxu0 0.0
    %3112 = vmatpush1.msra.mxu0 0.0
    %3113 = vmatprep.subr.mxu0 0.0
    %3114 = vmatpush1.msra.mxu0 0.0
    %3115 = vmatprep.subr.mxu0 0.0
    %3116 = vmatpush1.msra.mxu0 0.0
    %3117 = vmatprep.subr.mxu0 0.0
    %3118 = vmatpush1.msra.mxu0 0.0
    %3119 = vmatprep.subr.mxu0 0.0
    %3120 = vmatpush1.msra.mxu0 0.0
    %3121 = vmatprep.subr.mxu0 0.0
    %3122 = vmatpush1.msra.mxu0 0.0
    %3123 = vmatprep.subr.mxu0 0.0
    %3124 = vmatpush1.msra.mxu0 0.0
    %3125 = vmatprep.subr.mxu0 0.0
    %3126 = vmatpush1.msra.mxu0 0.0
    %3127 = vmatprep.subr.mxu0 0.0
    %3128 = vmatpush1.msra.mxu0 0.0
    %3129 = vmatprep.subr.mxu0 0.0
    %3130 = vmatpush1.msra.mxu0 0.0
    %3131 = vmatprep.subr.mxu0 0.0
    %3132 = vmatpush1.msra.mxu0 0.0
    %3133 = vmatprep.subr.mxu0 0.0
    %3134 = vmatpush1.msra.mxu0 0.0
    %3135 = vmatprep.subr.mxu0 0.0
    %3136 = vmatpush1.msra.mxu0 0.0
    %3137 = vmatprep.mubr.f32.mxu0 0.0
    %3138 = vmatmul.mubr.f32.gmra.mrb[0].mxu0 %v3072
    %v3139 = vpop.f32.mrb[0].mxu0
    %v3140 = vadd.f32 0.0, %v3139
    %v3141 = vpop.f32.mrb[0].mxu0
    %3142 = vdwg.mxu0
    %v3144 = vunpack.c.l.s4 1966171168
    %v3145 = vunpack.c.0.s8 %v3144
    %v3146 = vlaneseq
    %v3147 = vshrl.u32 %v3146, 7
    %v3148 = vsub.s32 %v3145, %v3147
    %v3149 = vrot.slane %v2969, %v3148
    %v3150 = vcombine.high %v3149, %v3149
    %v3152 = vunpack.c.l.s4 1966171168
    %v3153 = vunpack.c.0.s8 %v3152
    %v3154 = vlaneseq
    %v3155 = vshrl.u32 %v3154, 7
    %v3156 = vsub.s32 %v3153, %v3155
    %v3157 = vrot.slane %v3149, %v3156
    %v3159 = vunpack.c.l.s4 1966171168
    %v3160 = vunpack.c.0.s8 %v3159
    %v3161 = vlaneseq
    %v3162 = vshrl.u32 %v3161, 7
    %v3163 = vsub.s32 %v3160, %v3162
    %v3164 = vrot.slane %v3150, %v3163
    %v3165 = vlaneseq
    %v3166 = vshrl.u32 %v3165, 7
    %v3167 = vsub.s32 0, %v3166
    %v3168 = vrot.slane %v3157, %v3167
    %v3169 = vlaneseq
    %v3170 = vshrl.u32 %v3169, 7
    %v3171 = vsub.s32 0, %v3170
    %v3172 = vrot.slane %v3164, %v3171
    %v3175 = vadd.f32 %v3168, %v793
    %v3176 = vadd.f32 %v3168, %v795
    %v3177 = vadd.f32 %v3172, %v797
    %v3178 = vadd.f32 %v3172, %v799
    %v3179 = vtanh.pop %v3175
    %v3180 = vtanh.pop %v3176
    %v3181 = vtanh.pop %v3177
    %v3182 = vtanh.pop %v3178
    %v3183 = vmul.f32 %v3179, %v813
    %v3184 = vmul.f32 %v3180, %v813
    %v3185 = vmul.f32 %v3181, %v813
    %v3186 = vmul.f32 %v3182, %v813
    %3191 = vrot.lane.b32.xlu0 %v3183, 96
    %v3192 = vpop.permute.xlu0 %3191
    %3193 = vrot.lane.b32.xlu0 %v3184, 96
    %v3194 = vpop.permute.xlu0 %3193
    %3195 = vrot.lane.b32.xlu0 %v3185, 96
    %v3196 = vpop.permute.xlu0 %3195
    %3197 = vrot.lane.b32.xlu0 %v3186, 96
    %v3198 = vpop.permute.xlu0 %3197
    %v3203 = vsel %vm185, %v3192, 0.0
    %3204 = vadd.xlane.f32.xlu0 %v3203
    %v3205 = vpop.xlane.xlu0 %3204
    %v3206 = vsel %vm189, %v3194, 0.0
    %3207 = vadd.xlane.f32.xlu0 %v3206
    %v3208 = vpop.xlane.xlu0 %3207
    %v3209 = vsel %vm185, %v3196, 0.0
    %3210 = vadd.xlane.f32.xlu0 %v3209
    %v3211 = vpop.xlane.xlu0 %3210
    %v3212 = vsel %vm189, %v3198, 0.0
    %3213 = vadd.xlane.f32.xlu0 %v3212
    %v3214 = vpop.xlane.xlu0 %3213
    %v3215 = vadd.f32 %v3205, %v206
    %v3216 = vadd.f32 %v3208, %v206
    %v3217 = vadd.f32 %v3211, %v206
    %v3218 = vadd.f32 %v3214, %v206
    %v3223 = vlaneseq
    %v3224 = vshrl.u32 %v3223, 7
    %v3225 = vsub.s32 %v92, %v3224
    %v3226 = vrot.slane %v3215, %v3225
    %v3227 = vlaneseq
    %v3228 = vshrl.u32 %v3227, 7
    %v3229 = vsub.s32 %v220, %v3228
    %v3230 = vrot.slane %v3216, %v3229
    %v3231 = vsel %vm225, %v3230, %v3226
    %v3232 = vlaneseq
    %v3233 = vshrl.u32 %v3232, 7
    %v3234 = vsub.s32 %v92, %v3233
    %v3235 = vrot.slane %v3217, %v3234
    %v3236 = vlaneseq
    %v3237 = vshrl.u32 %v3236, 7
    %v3238 = vsub.s32 %v220, %v3237
    %v3239 = vrot.slane %v3218, %v3238
    %v3240 = vsel %vm225, %v3239, %v3235
    %v3241 = vsel %vm236, %v3240, %v3231
    %v3243 = vsel %vm239, %v3241, -inf
    %3244 = vmax.xlane.f32.xlu0 %v3243
    %v3245 = vpop.xlane.xlu0 %3244
    %v3247 = vlaneseq
    %v3248 = vshrl.u32 %v3247, 7
    %v3249 = vsub.s32 0, %v3248
    %v3250 = vrot.slane %v3245, %v3249
    %v3251 = vlaneseq
    %v3252 = vshrl.u32 %v3251, 7
    %v3253 = vsub.s32 1, %v3252
    %v3254 = vrot.slane %v3245, %v3253
    %v3257 = vsub.f32 %v3215, %v3250
    %v3258 = vsub.f32 %v3216, %v3250
    %v3259 = vsub.f32 %v3217, %v3254
    %v3260 = vsub.f32 %v3218, %v3254
    %v3261 = vmul.f32 %v3257, 1.442695
    %v3262 = vpow.pop %v3261
    %v3263 = vmul.f32 %v3258, 1.442695
    %v3264 = vpow.pop %v3263
    %v3265 = vmul.f32 %v3259, 1.442695
    %v3266 = vpow.pop %v3265
    %v3267 = vmul.f32 %v3260, 1.442695
    %v3268 = vpow.pop %v3267
    %3273 = vset.pattern.permute.xlu0 0
    %3274 = vperm.xlu0 %3273, %v3262
    %v3275 = vpop.permute.xlu0 %3274
    %3276 = vset.pattern.permute.xlu0 0
    %3277 = vperm.xlu0 %3276, %v3264
    %v3278 = vpop.permute.xlu0 %3277
    %3279 = vset.pattern.permute.xlu0 0
    %3280 = vperm.xlu0 %3279, %v3266
    %v3281 = vpop.permute.xlu0 %3280
    %3282 = vset.pattern.permute.xlu0 0
    %3283 = vperm.xlu0 %3282, %v3268
    %v3284 = vpop.permute.xlu0 %3283
    %v3285 = vlaneseq
    %v3286 = vshrl.u32 %v3285, 7
    %v3287 = vsub.s32 %v92, %v3286
    %v3288 = vrot.slane %v3275, %v3287
    %v3289 = vlaneseq
    %v3290 = vshrl.u32 %v3289, 7
    %v3291 = vsub.s32 %v220, %v3290
    %v3292 = vrot.slane %v3278, %v3291
    %v3293 = vsel %vm225, %v3292, %v3288
    %v3294 = vlaneseq
    %v3295 = vshrl.u32 %v3294, 7
    %v3296 = vsub.s32 %v92, %v3295
    %v3297 = vrot.slane %v3281, %v3296
    %v3298 = vlaneseq
    %v3299 = vshrl.u32 %v3298, 7
    %v3300 = vsub.s32 %v220, %v3299
    %v3301 = vrot.slane %v3284, %v3300
    %v3302 = vsel %vm225, %v3301, %v3297
    %v3303 = vsel %vm236, %v3302, %v3293
    %v3305 = vsel %vm239, %v3303, 0.0
    %3306 = vadd.xlane.f32.xlu0 %v3305
    %v3307 = vpop.xlane.xlu0 %3306
    %v3308 = vrcp.pop %v3307
    %v3310 = vlaneseq
    %v3311 = vshrl.u32 %v3310, 7
    %v3312 = vsub.s32 0, %v3311
    %v3313 = vrot.slane %v3308, %v3312
    %v3314 = vlaneseq
    %v3315 = vshrl.u32 %v3314, 7
    %v3316 = vsub.s32 1, %v3315
    %v3317 = vrot.slane %v3308, %v3316
    %v3320 = vmul.f32 %v3262, %v3313
    %v3321 = vmul.f32 %v3264, %v3313
    %v3322 = vmul.f32 %v3266, %v3317
    %v3323 = vmul.f32 %v3268, %v3317
    %3325 = vset.pattern.permute.xlu0 0
    %3326 = vperm.xlu0 %3325, %v3320
    %v3327 = vpop.permute.xlu0 %3326
    %3330 = vset.pattern.permute.xlu0 0
    %3331 = vperm.xlu0 %3330, %v3321
    %v3332 = vpop.permute.xlu0 %3331
    %3335 = vset.pattern.permute.xlu0 0
    %3336 = vperm.xlu0 %3335, %v3322
    %v3337 = vpop.permute.xlu0 %3336
    %3340 = vset.pattern.permute.xlu0 0
    %3341 = vperm.xlu0 %3340, %v3323
    %v3342 = vpop.permute.xlu0 %3341
    %v3344 = vmul.f32 %v3327, %v38
    %v3345 = vmul.f32 %v3332, %v39
    %v3346 = vmul.f32 %v3337, %v40
    %v3347 = vmul.f32 %v3342, %v41
    %v3348 = vsel %vm185, %v3344, 0.0
    %v3349 = vsel %vm189, %v3345, 0.0
    %v3350 = vadd.f32 %v3348, %v3349
    %v3351 = vrot.slane %v3350, 4
    %v3352 = vadd.f32 %v3350, %v3351
    %v3353 = vrot.slane %v3352, 2
    %v3354 = vadd.f32 %v3352, %v3353
    %v3355 = vrot.slane %v3354, 1
    %v3356 = vadd.f32 %v3354, %v3355
    %v3357 = vsel %vm185, %v3346, 0.0
    %v3358 = vsel %vm189, %v3347, 0.0
    %v3359 = vadd.f32 %v3357, %v3358
    %v3360 = vrot.slane %v3359, 4
    %v3361 = vadd.f32 %v3359, %v3360
    %v3362 = vrot.slane %v3361, 2
    %v3363 = vadd.f32 %v3361, %v3362
    %v3364 = vrot.slane %v3363, 1
    %v3365 = vadd.f32 %v3363, %v3364
    %v3368 = vsel %vm236, %v3365, %v3356
    %3369 = vrot.lane.b32.xlu0 %v3368, 32
    %v3370 = vpop.permute.xlu0 %3369
    %v3372 = vsel %vm185, %v3140, %v3370
    %v3374 = vsel %vm376, %v3372, 0
    %3376 = vmatprep.subr.mxu0 0.0
    %3377 = vmatpush1.msra.mxu0 %v60
    %3378 = vmatprep.subr.mxu0 0.0
    %3379 = vmatpush1.msra.mxu0 %v61
    %3380 = vmatprep.subr.mxu0 0.0
    %3381 = vmatpush1.msra.mxu0 %v62
    %3382 = vmatprep.subr.mxu0 0.0
    %3383 = vmatpush1.msra.mxu0 %v63
    %3384 = vmatprep.subr.mxu0 0.0
    %3385 = vmatpush1.msra.mxu0 %v64
    %3386 = vmatprep.subr.mxu0 0.0
    %3387 = vmatpush1.msra.mxu0 %v65
    %3388 = vmatprep.subr.mxu0 0.0
    %3389 = vmatpush1.msra.mxu0 %v66
    %3390 = vmatprep.subr.mxu0 0.0
    %3391 = vmatpush1.msra.mxu0 %v67
    %3392 = vmatprep.subr.mxu0 0.0
    %3393 = vmatpush1.msra.mxu0 0.0
    %3394 = vmatprep.subr.mxu0 0.0
    %3395 = vmatpush1.msra.mxu0 0.0
    %3396 = vmatprep.subr.mxu0 0.0
    %3397 = vmatpush1.msra.mxu0 0.0
    %3398 = vmatprep.subr.mxu0 0.0
    %3399 = vmatpush1.msra.mxu0 0.0
    %3400 = vmatprep.subr.mxu0 0.0
    %3401 = vmatpush1.msra.mxu0 0.0
    %3402 = vmatprep.subr.mxu0 0.0
    %3403 = vmatpush1.msra.mxu0 0.0
    %3404 = vmatprep.subr.mxu0 0.0
    %3405 = vmatpush1.msra.mxu0 0.0
    %3406 = vmatprep.subr.mxu0 0.0
    %3407 = vmatpush1.msra.mxu0 0.0
    %3408 = vmatprep.subr.mxu0 0.0
    %3409 = vmatpush1.msra.mxu0 0.0
    %3410 = vmatprep.subr.mxu0 0.0
    %3411 = vmatpush1.msra.mxu0 0.0
    %3412 = vmatprep.subr.mxu0 0.0
    %3413 = vmatpush1.msra.mxu0 0.0
    %3414 = vmatprep.subr.mxu0 0.0
    %3415 = vmatpush1.msra.mxu0 0.0
    %3416 = vmatprep.subr.mxu0 0.0
    %3417 = vmatpush1.msra.mxu0 0.0
    %3418 = vmatprep.subr.mxu0 0.0
    %3419 = vmatpush1.msra.mxu0 0.0
    %3420 = vmatprep.subr.mxu0 0.0
    %3421 = vmatpush1.msra.mxu0 0.0
    %3422 = vmatprep.subr.mxu0 0.0
    %3423 = vmatpush1.msra.mxu0 0.0
    %3424 = vmatprep.subr.mxu0 0.0
    %3425 = vmatpush1.msra.mxu0 0.0
    %3426 = vmatprep.subr.mxu0 0.0
    %3427 = vmatpush1.msra.mxu0 0.0
    %3428 = vmatprep.subr.mxu0 0.0
    %3429 = vmatpush1.msra.mxu0 0.0
    %3430 = vmatprep.subr.mxu0 0.0
    %3431 = vmatpush1.msra.mxu0 0.0
    %3432 = vmatprep.subr.mxu0 0.0
    %3433 = vmatpush1.msra.mxu0 0.0
    %3434 = vmatprep.subr.mxu0 0.0
    %3435 = vmatpush1.msra.mxu0 0.0
    %3436 = vmatprep.subr.mxu0 0.0
    %3437 = vmatpush1.msra.mxu0 0.0
    %3438 = vmatprep.subr.mxu0 0.0
    %3439 = vmatpush1.msra.mxu0 0.0
    %3440 = vmatprep.mubr.f32.mxu0 0.0
    %3441 = vmatmul.mubr.f32.gmra.mrb[0].mxu0 %v3374
    %v3442 = vpop.f32.mrb[0].mxu0
    %v3443 = vadd.f32 %v374, %v3442
    %v3444 = vpop.f32.mrb[0].mxu0
    %3445 = vdwg.mxu0
    %v3446 = vmax.f32 %v3443, 0.0
    %v3447 = vsel %vm185, %v3446, %v2969
    %v3449 = vsel %vm376, %v3447, 0
    %3451 = vmatprep.subr.mxu0 %v70
    %3452 = vmatpush1.msra.mxu0 %v69
    %3453 = vmatprep.subr.mxu0 %v72
    %3454 = vmatpush1.msra.mxu0 %v71
    %3455 = vmatprep.subr.mxu0 %v74
    %3456 = vmatpush1.msra.mxu0 %v73
    %3457 = vmatprep.subr.mxu0 %v76
    %3458 = vmatpush1.msra.mxu0 %v75
    %3459 = vmatprep.subr.mxu0 %v78
    %3460 = vmatpush1.msra.mxu0 %v77
    %3461 = vmatprep.subr.mxu0 %v80
    %3462 = vmatpush1.msra.mxu0 %v79
    %3463 = vmatprep.subr.mxu0 %v82
    %3464 = vmatpush1.msra.mxu0 %v81
    %3465 = vmatprep.subr.mxu0 %v84
    %3466 = vmatpush1.msra.mxu0 %v83
    %3467 = vmatprep.subr.mxu0 0.0
    %3468 = vmatpush1.msra.mxu0 0.0
    %3469 = vmatprep.subr.mxu0 0.0
    %3470 = vmatpush1.msra.mxu0 0.0
    %3471 = vmatprep.subr.mxu0 0.0
    %3472 = vmatpush1.msra.mxu0 0.0
    %3473 = vmatprep.subr.mxu0 0.0
    %3474 = vmatpush1.msra.mxu0 0.0
    %3475 = vmatprep.subr.mxu0 0.0
    %3476 = vmatpush1.msra.mxu0 0.0
    %3477 = vmatprep.subr.mxu0 0.0
    %3478 = vmatpush1.msra.mxu0 0.0
    %3479 = vmatprep.subr.mxu0 0.0
    %3480 = vmatpush1.msra.mxu0 0.0
    %3481 = vmatprep.subr.mxu0 0.0
    %3482 = vmatpush1.msra.mxu0 0.0
    %3483 = vmatprep.subr.mxu0 0.0
    %3484 = vmatpush1.msra.mxu0 0.0
    %3485 = vmatprep.subr.mxu0 0.0
    %3486 = vmatpush1.msra.mxu0 0.0
    %3487 = vmatprep.subr.mxu0 0.0
    %3488 = vmatpush1.msra.mxu0 0.0
    %3489 = vmatprep.subr.mxu0 0.0
    %3490 = vmatpush1.msra.mxu0 0.0
    %3491 = vmatprep.subr.mxu0 0.0
    %3492 = vmatpush1.msra.mxu0 0.0
    %3493 = vmatprep.subr.mxu0 0.0
    %3494 = vmatpush1.msra.mxu0 0.0
    %3495 = vmatprep.subr.mxu0 0.0
    %3496 = vmatpush1.msra.mxu0 0.0
    %3497 = vmatprep.subr.mxu0 0.0
    %3498 = vmatpush1.msra.mxu0 0.0
    %3499 = vmatprep.subr.mxu0 0.0
    %3500 = vmatpush1.msra.mxu0 0.0
    %3501 = vmatprep.subr.mxu0 0.0
    %3502 = vmatpush1.msra.mxu0 0.0
    %3503 = vmatprep.subr.mxu0 0.0
    %3504 = vmatpush1.msra.mxu0 0.0
    %3505 = vmatprep.subr.mxu0 0.0
    %3506 = vmatpush1.msra.mxu0 0.0
    %3507 = vmatprep.subr.mxu0 0.0
    %3508 = vmatpush1.msra.mxu0 0.0
    %3509 = vmatprep.subr.mxu0 0.0
    %3510 = vmatpush1.msra.mxu0 0.0
    %3511 = vmatprep.subr.mxu0 0.0
    %3512 = vmatpush1.msra.mxu0 0.0
    %3513 = vmatprep.subr.mxu0 0.0
    %3514 = vmatpush1.msra.mxu0 0.0
    %3515 = vmatprep.mubr.f32.mxu0 0.0
    %3516 = vmatmul.mubr.f32.gmra.mrb[0].mxu0 %v3449
    %v3517 = vpop.f32.mrb[0].mxu0
    %v3518 = vadd.f32 %v456, %v3517
    %v3519 = vpop.f32.mrb[0].mxu0
    %v3520 = vadd.f32 %v460, %v3519
    %3521 = vdwg.mxu0
    %3523 = vrot.lane.b32.xlu0 %v3518, 32
    %v3524 = vpop.permute.xlu0 %3523
    %v3526 = vadd.f32 %v3518, %v3524
    %v3527 = vxor.u32 %v3526, 2147483648
    %v3528 = vmul.f32 %v3527, 1.442695
    %v3529 = vpow.pop %v3528
    %v3530 = vadd.f32 %v3529, 1.0
    %v3531 = vrcp.pop %v3530
    %v3532 = vmul.f32 1.0, %v3531
    %3534 = vrot.lane.b32.xlu0 %v3520, 32
    %v3535 = vpop.permute.xlu0 %3534
    %v3537 = vadd.f32 %v3518, %v3535
    %v3538 = vxor.u32 %v3537, 2147483648
    %v3539 = vmul.f32 %v3538, 1.442695
    %v3540 = vpow.pop %v3539
    %v3541 = vadd.f32 %v3540, 1.0
    %v3542 = vrcp.pop %v3541
    %v3543 = vmul.f32 1.0, %v3542
    %3544 = vrot.lane.b32.xlu0 %v3520, 96
    %v3545 = vpop.permute.xlu0 %3544
    %v3547 = vmul.f32 %v3532, %v3545
    %3549 = vrot.lane.b32.xlu0 %v3547, 64
    %v3550 = vpop.permute.xlu0 %3549
    %v3552 = vadd.f32 %v3518, %v3550
    %v3553 = vtanh.pop %v3552
    %v3554 = vsub.f32 1.0, %v3543
    %3556 = vrot.lane.b32.xlu0 %v3553, 96
    %v3557 = vpop.permute.xlu0 %3556
    %v3559 = vmul.f32 %v3554, %v3557
    %v3560 = vmul.f32 %v3543, %v2969
    %v3561 = vadd.f32 %v3559, %v3560
    %3563 = vrot.lane.b32.xlu0 %v3561, 96
    %v3564 = vpop.permute.xlu0 %3563
    %v3565 = vsel %vm185, %v3564, 0
    %3567 = vmatprep.subr.mxu0 0.0
    %3568 = vmatpush1.msra.mxu0 %v86
    %3569 = vmatprep.subr.mxu0 0.0
    %3570 = vmatpush1.msra.mxu0 %v87
    %3571 = vmatprep.subr.mxu0 0.0
    %3572 = vmatpush1.msra.mxu0 %v88
    %3573 = vmatprep.subr.mxu0 0.0
    %3574 = vmatpush1.msra.mxu0 %v89
    %3575 = vmatprep.subr.mxu0 0.0
    %3576 = vmatpush1.msra.mxu0 0.0
    %3577 = vmatprep.subr.mxu0 0.0
    %3578 = vmatpush1.msra.mxu0 0.0
    %3579 = vmatprep.subr.mxu0 0.0
    %3580 = vmatpush1.msra.mxu0 0.0
    %3581 = vmatprep.subr.mxu0 0.0
    %3582 = vmatpush1.msra.mxu0 0.0
    %3583 = vmatprep.subr.mxu0 0.0
    %3584 = vmatpush1.msra.mxu0 0.0
    %3585 = vmatprep.subr.mxu0 0.0
    %3586 = vmatpush1.msra.mxu0 0.0
    %3587 = vmatprep.subr.mxu0 0.0
    %3588 = vmatpush1.msra.mxu0 0.0
    %3589 = vmatprep.subr.mxu0 0.0
    %3590 = vmatpush1.msra.mxu0 0.0
    %3591 = vmatprep.subr.mxu0 0.0
    %3592 = vmatpush1.msra.mxu0 0.0
    %3593 = vmatprep.subr.mxu0 0.0
    %3594 = vmatpush1.msra.mxu0 0.0
    %3595 = vmatprep.subr.mxu0 0.0
    %3596 = vmatpush1.msra.mxu0 0.0
    %3597 = vmatprep.subr.mxu0 0.0
    %3598 = vmatpush1.msra.mxu0 0.0
    %3599 = vmatprep.subr.mxu0 0.0
    %3600 = vmatpush1.msra.mxu0 0.0
    %3601 = vmatprep.subr.mxu0 0.0
    %3602 = vmatpush1.msra.mxu0 0.0
    %3603 = vmatprep.subr.mxu0 0.0
    %3604 = vmatpush1.msra.mxu0 0.0
    %3605 = vmatprep.subr.mxu0 0.0
    %3606 = vmatpush1.msra.mxu0 0.0
    %3607 = vmatprep.subr.mxu0 0.0
    %3608 = vmatpush1.msra.mxu0 0.0
    %3609 = vmatprep.subr.mxu0 0.0
    %3610 = vmatpush1.msra.mxu0 0.0
    %3611 = vmatprep.subr.mxu0 0.0
    %3612 = vmatpush1.msra.mxu0 0.0
    %3613 = vmatprep.subr.mxu0 0.0
    %3614 = vmatpush1.msra.mxu0 0.0
    %3615 = vmatprep.subr.mxu0 0.0
    %3616 = vmatpush1.msra.mxu0 0.0
    %3617 = vmatprep.subr.mxu0 0.0
    %3618 = vmatpush1.msra.mxu0 0.0
    %3619 = vmatprep.subr.mxu0 0.0
    %3620 = vmatpush1.msra.mxu0 0.0
    %3621 = vmatprep.subr.mxu0 0.0
    %3622 = vmatpush1.msra.mxu0 0.0
    %3623 = vmatprep.subr.mxu0 0.0
    %3624 = vmatpush1.msra.mxu0 0.0
    %3625 = vmatprep.subr.mxu0 0.0
    %3626 = vmatpush1.msra.mxu0 0.0
    %3627 = vmatprep.subr.mxu0 0.0
    %3628 = vmatpush1.msra.mxu0 0.0
    %3629 = vmatprep.subr.mxu0 0.0
    %3630 = vmatpush1.msra.mxu0 0.0
    %3631 = vmatprep.mubr.f32.mxu0 0.0
    %3632 = vmatmul.mubr.f32.gmra.mrb[0].mxu0 %v3565
    %v3633 = vpop.f32.mrb[0].mxu0
    %v3634 = vadd.f32 %v581, %v3633
    %v3635 = vpop.f32.mrb[0].mxu0
    %3636 = vdwg.mxu0
    %v3637 = vsel %vm658, %v3634, -inf
    %3638 = vmax.xlane.f32.xlu0 %v3637
    %v3639 = vpop.xlane.xlu0 %3638
    %v3640 = vsub.f32 %v3634, %v3639
    %v3641 = vmul.f32 %v3640, 1.442695
    %v3642 = vpow.pop %v3641
    %v3643 = vsel %vm658, %v3642, 0.0
    %3644 = vadd.xlane.f32.xlu0 %v3643
    %v3645 = vpop.xlane.xlu0 %3644
    %v3646 = vlog2.pop %v3645
    %v3647 = vmul.f32 %v3646, 0.6931472
    %v3648 = vadd.f32 %v3639, %v3647
    %v3649 = vsub.f32 %v3634, %v3648
    %v3650 = vmul.f32 %v3649, 1.442695
    %v3651 = vpow.pop %v3650
    %s3652 = scalar_lea.vmem [#allocation3], 10
    %3653 = vst [vmem:[%s3652] sm:$0x3] %v3651
    // Predicated region
    $region42: #{att_predictor_forward.3} parent=1 // pred_check
      _
    $region43: #{att_predictor_forward.3} parent=1 // pred_check_branch
      %3655 = sbr.rel (0) target = $region45
    $region44: #{att_predictor_forward.3} parent=1 // pred_region
      %s3657 = ssub.s32 192, 192
      %3658 = vsyncadd [#allocation4], %s3657
      %s3659 = sshll.u32 [#allocation3], 4
      %s3660 = int_to_ptr.vmem [resolvable:$true] %s3659
      %3665 = dma.vmem_to_hbm [thread:$0]  %s3660, 192, %s10, [#allocation4], 32, 32, 2
    $region45: #{att_predictor_forward.3} parent=1 // pred_fallthru
      _
    // Predicated region
    $region46: #{att_predictor_forward.3} parent=1 // pred_check
      _
    $region47: #{att_predictor_forward.3} parent=1 // pred_check_branch
      %3667 = sbr.rel (0) target = $region49
    $region48: #{att_predictor_forward.3} parent=1 // pred_region
      %3668 = dma.done [#allocation4], 192
    $region49: #{att_predictor_forward.3} parent=1 // pred_fallthru
      _
    %3669 = vsyncpa [#allocation4], 1

</llo_original>
